<compile_context>
chip_gen: v5e
topology: v5e:2x2
jax: 0.10.0
libtpu: 0.0.40
codegen_flags: <defaults>
</compile_context>

<pallas_src>
import functools

import numpy as np
import jax
import jax.numpy as jnp
from jax import lax
from jax.experimental import pallas as pl
from jax.experimental.pallas import tpu as pltpu


def _edge_mask_rows(D, H, W):
    """(6, D*H*W) f32 0/1 rows: [d>=1, d<=D-2, h>=1, h<=H-2, w>=1, w<=W-2]."""
    d_idx, h_idx, w_idx = np.meshgrid(np.arange(D), np.arange(H), np.arange(W),
                                      indexing="ij")
    rows = np.stack([
        d_idx >= 1, d_idx <= D - 2,
        h_idx >= 1, h_idx <= H - 2,
        w_idx >= 1, w_idx <= W - 2,
    ]).reshape(6, -1).astype(np.float32)
    return jnp.asarray(rows)


def _fused_kernel(mask_ref, x_ref, w1_ref, w2_ref, b2_ref, o_ref, *, D, H, W):
    """One batch element per grid step.

    mask_ref : (6, D*H*W)        edge-validity rows (0/1 f32)
    x_ref    : (1, Cin, D*H*W)   input block (spatial on lanes)
    w1_ref   : (27, Cmid, Cin)   conv1 weights, tap-major (tap = kd*9+kh*3+kw)
    w2_ref   : (27, Cout, Cmid)  conv2 weights, tap-major
    b2_ref   : (Cout, 1)         conv2 bias
    o_ref    : (1, Cout, D*H*W)  output block (spatial on lanes)
    """
    HW = H * W
    DHW = D * HW

    em = mask_ref[...]                                    # (6, DHW) f32
    md = (em[0:1, :], None, em[1:2, :])                   # kd = 0, 1, 2
    mh = (em[2:3, :], None, em[3:4, :])                   # kh = 0, 1, 2
    mw = (em[4:5, :], None, em[5:6, :])                   # kw = 0, 1, 2

    def conv3x3(src, w_ref):
        """3x3x3 'SAME' conv: 27 tap-matmuls accumulated in registers.

        src: (K, DHW) f32 value; w_ref: (27, M, K) ref; returns (M, DHW) f32.
        """
        acc = None
        for kd in range(3):
            for kh in range(3):
                for kw in range(3):
                    off = (kd - 1) * HW + (kh - 1) * W + (kw - 1)
                    tap = kd * 9 + kh * 3 + kw
                    # shifted[:, j] = src[:, j + off]; lane wrap-around values
                    # are zeroed by the boundary masks below.
                    if off == 0:
                        shifted = src
                    else:
                        shifted = pltpu.roll(src, (-off) % DHW, axis=1)
                    contrib = jnp.dot(w_ref[tap], shifted,
                                      preferred_element_type=jnp.float32)
                    parts = [m for m in (md[kd], mh[kh], mw[kw])
                             if m is not None]
                    if parts:
                        m = parts[0]
                        for p in parts[1:]:
                            m = m * p
                        contrib = contrib * m            # (1,DHW) bcast on rows
                    acc = contrib if acc is None else acc + contrib
        return acc

    x = x_ref[0]                                          # (Cin, DHW) f32

    # ---- Conv_1 (bias dropped: InstanceNorm3d(affine=False) subtracts the
    # per-channel mean, so adding a per-channel constant is a no-op) ---------
    mid = conv3x3(x, w1_ref)                              # (Cmid, DHW) f32

    # ---- InstanceNorm3d (eps=1e-5, biased variance) + LeakyReLU(0.2) -------
    inv_n = jnp.float32(1.0 / DHW)
    mean = jnp.sum(mid, axis=1, keepdims=True) * inv_n
    cent = mid - mean
    var = jnp.sum(cent * cent, axis=1, keepdims=True) * inv_n
    act = cent * lax.rsqrt(var + jnp.float32(1e-5))
    act = jnp.where(act >= 0, act, jnp.float32(0.2) * act)

    # ---- Conv_2 + bias ------------------------------------------------------
    out = conv3x3(act, w2_ref) + b2_ref[...]              # (Cout, DHW)
    o_ref[...] = out[None].astype(o_ref.dtype)


def _vmem_budget_bytes(Cin, Cmid, Cout, DHW):
    """Rough scoped-VMEM need: double-buffered blocks + weights + spill slack."""
    f32 = 4

    def pad(a, m):
        return -(-a // m) * m

    io = 2 * f32 * DHW * (Cin + Cout + 6)                       # 2x-buffered blocks
    wts = 2 * f32 * 27 * (pad(Cmid, 8) * pad(Cin, 128)
                          + pad(Cout, 8) * pad(Cmid, 128))      # padded tiles
    live = f32 * DHW * (2 * Cin + 3 * Cmid + 2 * Cout + 8)      # value-spill slack
    return io + wts + live + (2 << 20)


def exploration_forward(x_ncdhw, params):
    """PyTorch-facing wrapper: NCDHW in, NCDHW out (no layout transposes)."""
    N, Cin, D, H, W = x_ncdhw.shape
    Cmid = params["w1"].shape[0]
    Cout = params["w2"].shape[0]
    DHW = D * H * W

    # Tap-major weights: (27, O, I), tap = kd*9 + kh*3 + kw.
    w1m = jnp.transpose(params["w1"], (2, 3, 4, 0, 1)).reshape(27, Cmid, Cin)
    w2m = jnp.transpose(params["w2"], (2, 3, 4, 0, 1)).reshape(27, Cout, Cmid)
    b2 = params["b2"].reshape(Cout, 1).astype(jnp.float32)
    edge = _edge_mask_rows(D, H, W)                              # (6, DHW)

    xf = x_ncdhw.reshape(N, Cin, DHW).astype(jnp.float32)        # free reshape

    # Scoped-VMEM sizing (review item): set the limit from the real footprint
    # and guard the v7x 64 MiB physical ceiling.
    est = _vmem_budget_bytes(Cin, Cmid, Cout, DHW)
    assert est <= (64 << 20), (
        "exploration_forward: estimated VMEM %.1f MiB exceeds v7x's 64 MiB; "
        "chunk DHW inside the kernel for volumes this large" % (est / 2**20))
    # TODO(synk): for very large volumes, tile DHW inside the kernel and carry
    # per-channel sum/sumsq across chunks for InstanceNorm.
    vmem_limit = int(min(max(est, 16 << 20), 64 << 20))

    kernel = functools.partial(_fused_kernel, D=D, H=H, W=W)
    out_flat = pl.pallas_call(
        kernel,
        out_shape=jax.ShapeDtypeStruct((N, Cout, DHW), jnp.float32),
        grid_spec=pltpu.PrefetchScalarGridSpec(
            num_scalar_prefetch=0,
            grid=(N,),
            in_specs=[
                pl.BlockSpec((6, DHW), lambda n: (0, 0)),          # edge masks
                pl.BlockSpec((1, Cin, DHW), lambda n: (n, 0, 0)),  # x
                pl.BlockSpec((27, Cmid, Cin), lambda n: (0, 0, 0)),
                pl.BlockSpec((27, Cout, Cmid), lambda n: (0, 0, 0)),
                pl.BlockSpec((Cout, 1), lambda n: (0, 0)),
            ],
            out_specs=pl.BlockSpec((1, Cout, DHW), lambda n: (n, 0, 0)),
        ),
        compiler_params=pltpu.CompilerParams(
            dimension_semantics=("parallel",),
            vmem_limit_bytes=vmem_limit),
    )(edge, xf, w1m.astype(jnp.float32), w2m.astype(jnp.float32), b2)

    return out_flat.reshape(N, Cout, D, H, W)


def init_params(key, in_channels, out_channels):
    """Deterministic parameter init; weights stored in torch (O, I, kD, kH, kW)."""
    mid = in_channels // 2
    k1, k2, k3 = jax.random.split(key, 3)
    bound1 = 1.0 / np.sqrt(in_channels * 27)
    bound2 = 1.0 / np.sqrt(mid * 27)
    w1 = jax.random.uniform(k1, (mid, in_channels, 3, 3, 3), jnp.float32,
                            -bound1, bound1)
    b1 = jax.random.uniform(k2, (mid,), jnp.float32, -bound1, bound1)
    w2 = jnp.zeros((out_channels, mid, 3, 3, 3), jnp.float32)      # nn.init.zeros_
    b2 = jax.random.uniform(k3, (out_channels,), jnp.float32, -bound2, bound2)
    return {"w1": w1, "b1": b1, "w2": w2, "b2": b2}


def _ref_forward(x_ncdhw, params):
    """Pure-JAX reference (includes b1; the kernel drops it as a no-op)."""
    dn = ("NCDHW", "OIDHW", "NCDHW")
    y = lax.conv_general_dilated(x_ncdhw, params["w1"], (1, 1, 1), "SAME",
                                 dimension_numbers=dn)
    y = y + params["b1"].reshape(1, -1, 1, 1, 1)
    mean = jnp.mean(y, axis=(2, 3, 4), keepdims=True)
    var = jnp.var(y, axis=(2, 3, 4), keepdims=True)
    y = (y - mean) * lax.rsqrt(var + 1e-5)
    y = jnp.where(y >= 0, y, 0.2 * y)
    out = lax.conv_general_dilated(y, params["w2"], (1, 1, 1), "SAME",
                                   dimension_numbers=dn)
    return out + params["b2"].reshape(1, -1, 1, 1, 1)


if __name__ == "__main__":
    key = jax.random.PRNGKey(0)
    kx, kp, kw2 = jax.random.split(key, 3)

    N, Cin, Cout, D, H, W = 2, 4, 4, 8, 8, 8
    x = jax.random.normal(kx, (N, Cin, D, H, W), jnp.float32)      # NCDHW
    params = init_params(kp, Cin, Cout)                            # module init (w2 == 0)

    out = jax.block_until_ready(exploration_forward(x, params))
    np.testing.assert_allclose(np.asarray(out),
                               np.asarray(_ref_forward(x, params)),
                               atol=1e-4, rtol=1e-4)

    # Conv_2's weight is zero-initialized in the module, which makes the
    # end-to-end check trivial — re-check with a random Conv_2 weight so the
    # full fused path (conv1 + norm + act + conv2) is exercised numerically.
    bound2 = 1.0 / np.sqrt((Cin // 2) * 27)
    params_nz = dict(params)
    params_nz["w2"] = jax.random.uniform(kw2, params["w2"].shape, jnp.float32,
                                         -bound2, bound2)
    out_nz = jax.block_until_ready(exploration_forward(x, params_nz))
    np.testing.assert_allclose(np.asarray(out_nz),
                               np.asarray(_ref_forward(x, params_nz)),
                               atol=1e-4, rtol=1e-4)

    print("KERNEL_OK")
</pallas_src>

<mosaic_0001>
module attributes {stable_mosaic.version = 11 : i64} {
  func.func @_fused_kernel(%arg0: i32, %arg1: memref<6x512xf32, #tpu.memory_space<vmem>>, %arg2: memref<1x4x512xf32, #tpu.memory_space<vmem>>, %arg3: memref<27x2x4xf32, #tpu.memory_space<vmem>>, %arg4: memref<27x4x2xf32, #tpu.memory_space<vmem>>, %arg5: memref<4x1xf32, #tpu.memory_space<vmem>>, %arg6: memref<1x4x512xf32, #tpu.memory_space<vmem>>) attributes {dimension_semantics = [#tpu.dimension_semantics<parallel>], iteration_bounds = array<i64: 2>, scalar_prefetch = 0 : i64, scratch_operands = 0 : i64, tpu.core_type = #tpu.core_type<tc>, window_params = [{pipeline_mode = #tpu.pipeline_mode<synchronous>, transform_indices = @transform_0, window_bounds = array<i64: 6, 512>}, {transform_indices = @transform_1, window_bounds = array<i64: 1, 4, 512>}, {pipeline_mode = #tpu.pipeline_mode<synchronous>, transform_indices = @transform_2, window_bounds = array<i64: 27, 2, 4>}, {pipeline_mode = #tpu.pipeline_mode<synchronous>, transform_indices = @transform_3, window_bounds = array<i64: 27, 4, 2>}, {pipeline_mode = #tpu.pipeline_mode<synchronous>, transform_indices = @transform_4, window_bounds = array<i64: 4, 1>}, {transform_indices = @transform_5, window_bounds = array<i64: 1, 4, 512>}]} {
    %c0 = arith.constant 0 : index
    %c0_0 = arith.constant 0 : index
    %0 = vector.load %arg1[%c0, %c0_0] : memref<6x512xf32, #tpu.memory_space<vmem>>, vector<6x512xf32>
    %1 = vector.extract_strided_slice %0 {offsets = [0, 0], sizes = [1, 512], strides = [1, 1]} : vector<6x512xf32> to vector<1x512xf32>
    %2 = vector.extract_strided_slice %0 {offsets = [1, 0], sizes = [1, 512], strides = [1, 1]} : vector<6x512xf32> to vector<1x512xf32>
    %3 = vector.extract_strided_slice %0 {offsets = [2, 0], sizes = [1, 512], strides = [1, 1]} : vector<6x512xf32> to vector<1x512xf32>
    %4 = vector.extract_strided_slice %0 {offsets = [3, 0], sizes = [1, 512], strides = [1, 1]} : vector<6x512xf32> to vector<1x512xf32>
    %5 = vector.extract_strided_slice %0 {offsets = [4, 0], sizes = [1, 512], strides = [1, 1]} : vector<6x512xf32> to vector<1x512xf32>
    %6 = vector.extract_strided_slice %0 {offsets = [5, 0], sizes = [1, 512], strides = [1, 1]} : vector<6x512xf32> to vector<1x512xf32>
    %c0_1 = arith.constant 0 : index
    %c0_2 = arith.constant 0 : index
    %c0_3 = arith.constant 0 : index
    %7 = vector.load %arg2[%c0_1, %c0_2, %c0_3] : memref<1x4x512xf32, #tpu.memory_space<vmem>>, vector<1x4x512xf32>
    %8 = vector.shape_cast %7 : vector<1x4x512xf32> to vector<4x512xf32>
    %c73_i32 = arith.constant 73 : i32
    %9 = tpu.dynamic_rotate %8 by %c73_i32 dim 1 : vector<4x512xf32>, i32 -> vector<4x512xf32>
    %c0_4 = arith.constant 0 : index
    %c0_5 = arith.constant 0 : index
    %c0_6 = arith.constant 0 : index
    %10 = vector.load %arg3[%c0_4, %c0_5, %c0_6] : memref<27x2x4xf32, #tpu.memory_space<vmem>>, vector<1x2x4xf32>
    %11 = vector.shape_cast %10 : vector<1x2x4xf32> to vector<2x4xf32>
    %cst = arith.constant dense<0.000000e+00> : vector<2x512xf32>
    %12 = tpu.matmul %11, %9, %cst {dimension_numbers = #tpu.dot_dimension_numbers<[1], [0], [0], [1], [0, 0, 1, 1], [], []>} : vector<2x4xf32>, vector<4x512xf32>, vector<2x512xf32> -> vector<2x512xf32>
    %13 = arith.mulf %1, %3 : vector<1x512xf32>
    %14 = arith.mulf %13, %5 : vector<1x512xf32>
    %15 = vector.broadcast %14 : vector<1x512xf32> to vector<2x512xf32>
    %16 = arith.mulf %12, %15 : vector<2x512xf32>
    %c72_i32 = arith.constant 72 : i32
    %17 = tpu.dynamic_rotate %8 by %c72_i32 dim 1 : vector<4x512xf32>, i32 -> vector<4x512xf32>
    %c1 = arith.constant 1 : index
    %c0_7 = arith.constant 0 : index
    %c0_8 = arith.constant 0 : index
    %18 = vector.load %arg3[%c1, %c0_7, %c0_8] : memref<27x2x4xf32, #tpu.memory_space<vmem>>, vector<1x2x4xf32>
    %19 = vector.shape_cast %18 : vector<1x2x4xf32> to vector<2x4xf32>
    %cst_9 = arith.constant dense<0.000000e+00> : vector<2x512xf32>
    %20 = tpu.matmul %19, %17, %cst_9 {dimension_numbers = #tpu.dot_dimension_numbers<[1], [0], [0], [1], [0, 0, 1, 1], [], []>} : vector<2x4xf32>, vector<4x512xf32>, vector<2x512xf32> -> vector<2x512xf32>
    %21 = arith.mulf %1, %3 : vector<1x512xf32>
    %22 = vector.broadcast %21 : vector<1x512xf32> to vector<2x512xf32>
    %23 = arith.mulf %20, %22 : vector<2x512xf32>
    %24 = arith.addf %16, %23 : vector<2x512xf32>
    %c71_i32 = arith.constant 71 : i32
    %25 = tpu.dynamic_rotate %8 by %c71_i32 dim 1 : vector<4x512xf32>, i32 -> vector<4x512xf32>
    %c2 = arith.constant 2 : index
    %c0_10 = arith.constant 0 : index
    %c0_11 = arith.constant 0 : index
    %26 = vector.load %arg3[%c2, %c0_10, %c0_11] : memref<27x2x4xf32, #tpu.memory_space<vmem>>, vector<1x2x4xf32>
    %27 = vector.shape_cast %26 : vector<1x2x4xf32> to vector<2x4xf32>
    %cst_12 = arith.constant dense<0.000000e+00> : vector<2x512xf32>
    %28 = tpu.matmul %27, %25, %cst_12 {dimension_numbers = #tpu.dot_dimension_numbers<[1], [0], [0], [1], [0, 0, 1, 1], [], []>} : vector<2x4xf32>, vector<4x512xf32>, vector<2x512xf32> -> vector<2x512xf32>
    %29 = arith.mulf %1, %3 : vector<1x512xf32>
    %30 = arith.mulf %29, %6 : vector<1x512xf32>
    %31 = vector.broadcast %30 : vector<1x512xf32> to vector<2x512xf32>
    %32 = arith.mulf %28, %31 : vector<2x512xf32>
    %33 = arith.addf %24, %32 : vector<2x512xf32>
    %c65_i32 = arith.constant 65 : i32
    %34 = tpu.dynamic_rotate %8 by %c65_i32 dim 1 : vector<4x512xf32>, i32 -> vector<4x512xf32>
    %c3 = arith.constant 3 : index
    %c0_13 = arith.constant 0 : index
    %c0_14 = arith.constant 0 : index
    %35 = vector.load %arg3[%c3, %c0_13, %c0_14] : memref<27x2x4xf32, #tpu.memory_space<vmem>>, vector<1x2x4xf32>
    %36 = vector.shape_cast %35 : vector<1x2x4xf32> to vector<2x4xf32>
    %cst_15 = arith.constant dense<0.000000e+00> : vector<2x512xf32>
    %37 = tpu.matmul %36, %34, %cst_15 {dimension_numbers = #tpu.dot_dimension_numbers<[1], [0], [0], [1], [0, 0, 1, 1], [], []>} : vector<2x4xf32>, vector<4x512xf32>, vector<2x512xf32> -> vector<2x512xf32>
    %38 = arith.mulf %1, %5 : vector<1x512xf32>
    %39 = vector.broadcast %38 : vector<1x512xf32> to vector<2x512xf32>
    %40 = arith.mulf %37, %39 : vector<2x512xf32>
    %41 = arith.addf %33, %40 : vector<2x512xf32>
    %c64_i32 = arith.constant 64 : i32
    %42 = tpu.dynamic_rotate %8 by %c64_i32 dim 1 : vector<4x512xf32>, i32 -> vector<4x512xf32>
    %c4 = arith.constant 4 : index
    %c0_16 = arith.constant 0 : index
    %c0_17 = arith.constant 0 : index
    %43 = vector.load %arg3[%c4, %c0_16, %c0_17] : memref<27x2x4xf32, #tpu.memory_space<vmem>>, vector<1x2x4xf32>
    %44 = vector.shape_cast %43 : vector<1x2x4xf32> to vector<2x4xf32>
    %cst_18 = arith.constant dense<0.000000e+00> : vector<2x512xf32>
    %45 = tpu.matmul %44, %42, %cst_18 {dimension_numbers = #tpu.dot_dimension_numbers<[1], [0], [0], [1], [0, 0, 1, 1], [], []>} : vector<2x4xf32>, vector<4x512xf32>, vector<2x512xf32> -> vector<2x512xf32>
    %46 = vector.broadcast %1 : vector<1x512xf32> to vector<2x512xf32>
    %47 = arith.mulf %45, %46 : vector<2x512xf32>
    %48 = arith.addf %41, %47 : vector<2x512xf32>
    %c63_i32 = arith.constant 63 : i32
    %49 = tpu.dynamic_rotate %8 by %c63_i32 dim 1 : vector<4x512xf32>, i32 -> vector<4x512xf32>
    %c5 = arith.constant 5 : index
    %c0_19 = arith.constant 0 : index
    %c0_20 = arith.constant 0 : index
    %50 = vector.load %arg3[%c5, %c0_19, %c0_20] : memref<27x2x4xf32, #tpu.memory_space<vmem>>, vector<1x2x4xf32>
    %51 = vector.shape_cast %50 : vector<1x2x4xf32> to vector<2x4xf32>
    %cst_21 = arith.constant dense<0.000000e+00> : vector<2x512xf32>
    %52 = tpu.matmul %51, %49, %cst_21 {dimension_numbers = #tpu.dot_dimension_numbers<[1], [0], [0], [1], [0, 0, 1, 1], [], []>} : vector<2x4xf32>, vector<4x512xf32>, vector<2x512xf32> -> vector<2x512xf32>
    %53 = arith.mulf %1, %6 : vector<1x512xf32>
    %54 = vector.broadcast %53 : vector<1x512xf32> to vector<2x512xf32>
    %55 = arith.mulf %52, %54 : vector<2x512xf32>
    %56 = arith.addf %48, %55 : vector<2x512xf32>
    %c57_i32 = arith.constant 57 : i32
    %57 = tpu.dynamic_rotate %8 by %c57_i32 dim 1 : vector<4x512xf32>, i32 -> vector<4x512xf32>
    %c6 = arith.constant 6 : index
    %c0_22 = arith.constant 0 : index
    %c0_23 = arith.constant 0 : index
    %58 = vector.load %arg3[%c6, %c0_22, %c0_23] : memref<27x2x4xf32, #tpu.memory_space<vmem>>, vector<1x2x4xf32>
    %59 = vector.shape_cast %58 : vector<1x2x4xf32> to vector<2x4xf32>
    %cst_24 = arith.constant dense<0.000000e+00> : vector<2x512xf32>
    %60 = tpu.matmul %59, %57, %cst_24 {dimension_numbers = #tpu.dot_dimension_numbers<[1], [0], [0], [1], [0, 0, 1, 1], [], []>} : vector<2x4xf32>, vector<4x512xf32>, vector<2x512xf32> -> vector<2x512xf32>
    %61 = arith.mulf %1, %4 : vector<1x512xf32>
    %62 = arith.mulf %61, %5 : vector<1x512xf32>
    %63 = vector.broadcast %62 : vector<1x512xf32> to vector<2x512xf32>
    %64 = arith.mulf %60, %63 : vector<2x512xf32>
    %65 = arith.addf %56, %64 : vector<2x512xf32>
    %c56_i32 = arith.constant 56 : i32
    %66 = tpu.dynamic_rotate %8 by %c56_i32 dim 1 : vector<4x512xf32>, i32 -> vector<4x512xf32>
    %c7 = arith.constant 7 : index
    %c0_25 = arith.constant 0 : index
    %c0_26 = arith.constant 0 : index
    %67 = vector.load %arg3[%c7, %c0_25, %c0_26] : memref<27x2x4xf32, #tpu.memory_space<vmem>>, vector<1x2x4xf32>
    %68 = vector.shape_cast %67 : vector<1x2x4xf32> to vector<2x4xf32>
    %cst_27 = arith.constant dense<0.000000e+00> : vector<2x512xf32>
    %69 = tpu.matmul %68, %66, %cst_27 {dimension_numbers = #tpu.dot_dimension_numbers<[1], [0], [0], [1], [0, 0, 1, 1], [], []>} : vector<2x4xf32>, vector<4x512xf32>, vector<2x512xf32> -> vector<2x512xf32>
    %70 = arith.mulf %1, %4 : vector<1x512xf32>
    %71 = vector.broadcast %70 : vector<1x512xf32> to vector<2x512xf32>
    %72 = arith.mulf %69, %71 : vector<2x512xf32>
    %73 = arith.addf %65, %72 : vector<2x512xf32>
    %c55_i32 = arith.constant 55 : i32
    %74 = tpu.dynamic_rotate %8 by %c55_i32 dim 1 : vector<4x512xf32>, i32 -> vector<4x512xf32>
    %c8 = arith.constant 8 : index
    %c0_28 = arith.constant 0 : index
    %c0_29 = arith.constant 0 : index
    %75 = vector.load %arg3[%c8, %c0_28, %c0_29] : memref<27x2x4xf32, #tpu.memory_space<vmem>>, vector<1x2x4xf32>
    %76 = vector.shape_cast %75 : vector<1x2x4xf32> to vector<2x4xf32>
    %cst_30 = arith.constant dense<0.000000e+00> : vector<2x512xf32>
    %77 = tpu.matmul %76, %74, %cst_30 {dimension_numbers = #tpu.dot_dimension_numbers<[1], [0], [0], [1], [0, 0, 1, 1], [], []>} : vector<2x4xf32>, vector<4x512xf32>, vector<2x512xf32> -> vector<2x512xf32>
    %78 = arith.mulf %1, %4 : vector<1x512xf32>
    %79 = arith.mulf %78, %6 : vector<1x512xf32>
    %80 = vector.broadcast %79 : vector<1x512xf32> to vector<2x512xf32>
    %81 = arith.mulf %77, %80 : vector<2x512xf32>
    %82 = arith.addf %73, %81 : vector<2x512xf32>
    %c9_i32 = arith.constant 9 : i32
    %83 = tpu.dynamic_rotate %8 by %c9_i32 dim 1 : vector<4x512xf32>, i32 -> vector<4x512xf32>
    %c9 = arith.constant 9 : index
    %c0_31 = arith.constant 0 : index
    %c0_32 = arith.constant 0 : index
    %84 = vector.load %arg3[%c9, %c0_31, %c0_32] : memref<27x2x4xf32, #tpu.memory_space<vmem>>, vector<1x2x4xf32>
    %85 = vector.shape_cast %84 : vector<1x2x4xf32> to vector<2x4xf32>
    %cst_33 = arith.constant dense<0.000000e+00> : vector<2x512xf32>
    %86 = tpu.matmul %85, %83, %cst_33 {dimension_numbers = #tpu.dot_dimension_numbers<[1], [0], [0], [1], [0, 0, 1, 1], [], []>} : vector<2x4xf32>, vector<4x512xf32>, vector<2x512xf32> -> vector<2x512xf32>
    %87 = arith.mulf %3, %5 : vector<1x512xf32>
    %88 = vector.broadcast %87 : vector<1x512xf32> to vector<2x512xf32>
    %89 = arith.mulf %86, %88 : vector<2x512xf32>
    %90 = arith.addf %82, %89 : vector<2x512xf32>
    %c8_i32 = arith.constant 8 : i32
    %91 = tpu.dynamic_rotate %8 by %c8_i32 dim 1 : vector<4x512xf32>, i32 -> vector<4x512xf32>
    %c10 = arith.constant 10 : index
    %c0_34 = arith.constant 0 : index
    %c0_35 = arith.constant 0 : index
    %92 = vector.load %arg3[%c10, %c0_34, %c0_35] : memref<27x2x4xf32, #tpu.memory_space<vmem>>, vector<1x2x4xf32>
    %93 = vector.shape_cast %92 : vector<1x2x4xf32> to vector<2x4xf32>
    %cst_36 = arith.constant dense<0.000000e+00> : vector<2x512xf32>
    %94 = tpu.matmul %93, %91, %cst_36 {dimension_numbers = #tpu.dot_dimension_numbers<[1], [0], [0], [1], [0, 0, 1, 1], [], []>} : vector<2x4xf32>, vector<4x512xf32>, vector<2x512xf32> -> vector<2x512xf32>
    %95 = vector.broadcast %3 : vector<1x512xf32> to vector<2x512xf32>
    %96 = arith.mulf %94, %95 : vector<2x512xf32>
    %97 = arith.addf %90, %96 : vector<2x512xf32>
    %c7_i32 = arith.constant 7 : i32
    %98 = tpu.dynamic_rotate %8 by %c7_i32 dim 1 : vector<4x512xf32>, i32 -> vector<4x512xf32>
    %c11 = arith.constant 11 : index
    %c0_37 = arith.constant 0 : index
    %c0_38 = arith.constant 0 : index
    %99 = vector.load %arg3[%c11, %c0_37, %c0_38] : memref<27x2x4xf32, #tpu.memory_space<vmem>>, vector<1x2x4xf32>
    %100 = vector.shape_cast %99 : vector<1x2x4xf32> to vector<2x4xf32>
    %cst_39 = arith.constant dense<0.000000e+00> : vector<2x512xf32>
    %101 = tpu.matmul %100, %98, %cst_39 {dimension_numbers = #tpu.dot_dimension_numbers<[1], [0], [0], [1], [0, 0, 1, 1], [], []>} : vector<2x4xf32>, vector<4x512xf32>, vector<2x512xf32> -> vector<2x512xf32>
    %102 = arith.mulf %3, %6 : vector<1x512xf32>
    %103 = vector.broadcast %102 : vector<1x512xf32> to vector<2x512xf32>
    %104 = arith.mulf %101, %103 : vector<2x512xf32>
    %105 = arith.addf %97, %104 : vector<2x512xf32>
    %c1_i32 = arith.constant 1 : i32
    %106 = tpu.dynamic_rotate %8 by %c1_i32 dim 1 : vector<4x512xf32>, i32 -> vector<4x512xf32>
    %c12 = arith.constant 12 : index
    %c0_40 = arith.constant 0 : index
    %c0_41 = arith.constant 0 : index
    %107 = vector.load %arg3[%c12, %c0_40, %c0_41] : memref<27x2x4xf32, #tpu.memory_space<vmem>>, vector<1x2x4xf32>
    %108 = vector.shape_cast %107 : vector<1x2x4xf32> to vector<2x4xf32>
    %cst_42 = arith.constant dense<0.000000e+00> : vector<2x512xf32>
    %109 = tpu.matmul %108, %106, %cst_42 {dimension_numbers = #tpu.dot_dimension_numbers<[1], [0], [0], [1], [0, 0, 1, 1], [], []>} : vector<2x4xf32>, vector<4x512xf32>, vector<2x512xf32> -> vector<2x512xf32>
    %110 = vector.broadcast %5 : vector<1x512xf32> to vector<2x512xf32>
    %111 = arith.mulf %109, %110 : vector<2x512xf32>
    %112 = arith.addf %105, %111 : vector<2x512xf32>
    %c13 = arith.constant 13 : index
    %c0_43 = arith.constant 0 : index
    %c0_44 = arith.constant 0 : index
    %113 = vector.load %arg3[%c13, %c0_43, %c0_44] : memref<27x2x4xf32, #tpu.memory_space<vmem>>, vector<1x2x4xf32>
    %114 = vector.shape_cast %113 : vector<1x2x4xf32> to vector<2x4xf32>
    %cst_45 = arith.constant dense<0.000000e+00> : vector<2x512xf32>
    %115 = tpu.matmul %114, %8, %cst_45 {dimension_numbers = #tpu.dot_dimension_numbers<[1], [0], [0], [1], [0, 0, 1, 1], [], []>} : vector<2x4xf32>, vector<4x512xf32>, vector<2x512xf32> -> vector<2x512xf32>
    %116 = arith.addf %112, %115 : vector<2x512xf32>
    %c511_i32 = arith.constant 511 : i32
    %117 = tpu.dynamic_rotate %8 by %c511_i32 dim 1 : vector<4x512xf32>, i32 -> vector<4x512xf32>
    %c14 = arith.constant 14 : index
    %c0_46 = arith.constant 0 : index
    %c0_47 = arith.constant 0 : index
    %118 = vector.load %arg3[%c14, %c0_46, %c0_47] : memref<27x2x4xf32, #tpu.memory_space<vmem>>, vector<1x2x4xf32>
    %119 = vector.shape_cast %118 : vector<1x2x4xf32> to vector<2x4xf32>
    %cst_48 = arith.constant dense<0.000000e+00> : vector<2x512xf32>
    %120 = tpu.matmul %119, %117, %cst_48 {dimension_numbers = #tpu.dot_dimension_numbers<[1], [0], [0], [1], [0, 0, 1, 1], [], []>} : vector<2x4xf32>, vector<4x512xf32>, vector<2x512xf32> -> vector<2x512xf32>
    %121 = vector.broadcast %6 : vector<1x512xf32> to vector<2x512xf32>
    %122 = arith.mulf %120, %121 : vector<2x512xf32>
    %123 = arith.addf %116, %122 : vector<2x512xf32>
    %c505_i32 = arith.constant 505 : i32
    %124 = tpu.dynamic_rotate %8 by %c505_i32 dim 1 : vector<4x512xf32>, i32 -> vector<4x512xf32>
    %c15 = arith.constant 15 : index
    %c0_49 = arith.constant 0 : index
    %c0_50 = arith.constant 0 : index
    %125 = vector.load %arg3[%c15, %c0_49, %c0_50] : memref<27x2x4xf32, #tpu.memory_space<vmem>>, vector<1x2x4xf32>
    %126 = vector.shape_cast %125 : vector<1x2x4xf32> to vector<2x4xf32>
    %cst_51 = arith.constant dense<0.000000e+00> : vector<2x512xf32>
    %127 = tpu.matmul %126, %124, %cst_51 {dimension_numbers = #tpu.dot_dimension_numbers<[1], [0], [0], [1], [0, 0, 1, 1], [], []>} : vector<2x4xf32>, vector<4x512xf32>, vector<2x512xf32> -> vector<2x512xf32>
    %128 = arith.mulf %4, %5 : vector<1x512xf32>
    %129 = vector.broadcast %128 : vector<1x512xf32> to vector<2x512xf32>
    %130 = arith.mulf %127, %129 : vector<2x512xf32>
    %131 = arith.addf %123, %130 : vector<2x512xf32>
    %c504_i32 = arith.constant 504 : i32
    %132 = tpu.dynamic_rotate %8 by %c504_i32 dim 1 : vector<4x512xf32>, i32 -> vector<4x512xf32>
    %c16 = arith.constant 16 : index
    %c0_52 = arith.constant 0 : index
    %c0_53 = arith.constant 0 : index
    %133 = vector.load %arg3[%c16, %c0_52, %c0_53] : memref<27x2x4xf32, #tpu.memory_space<vmem>>, vector<1x2x4xf32>
    %134 = vector.shape_cast %133 : vector<1x2x4xf32> to vector<2x4xf32>
    %cst_54 = arith.constant dense<0.000000e+00> : vector<2x512xf32>
    %135 = tpu.matmul %134, %132, %cst_54 {dimension_numbers = #tpu.dot_dimension_numbers<[1], [0], [0], [1], [0, 0, 1, 1], [], []>} : vector<2x4xf32>, vector<4x512xf32>, vector<2x512xf32> -> vector<2x512xf32>
    %136 = vector.broadcast %4 : vector<1x512xf32> to vector<2x512xf32>
    %137 = arith.mulf %135, %136 : vector<2x512xf32>
    %138 = arith.addf %131, %137 : vector<2x512xf32>
    %c503_i32 = arith.constant 503 : i32
    %139 = tpu.dynamic_rotate %8 by %c503_i32 dim 1 : vector<4x512xf32>, i32 -> vector<4x512xf32>
    %c17 = arith.constant 17 : index
    %c0_55 = arith.constant 0 : index
    %c0_56 = arith.constant 0 : index
    %140 = vector.load %arg3[%c17, %c0_55, %c0_56] : memref<27x2x4xf32, #tpu.memory_space<vmem>>, vector<1x2x4xf32>
    %141 = vector.shape_cast %140 : vector<1x2x4xf32> to vector<2x4xf32>
    %cst_57 = arith.constant dense<0.000000e+00> : vector<2x512xf32>
    %142 = tpu.matmul %141, %139, %cst_57 {dimension_numbers = #tpu.dot_dimension_numbers<[1], [0], [0], [1], [0, 0, 1, 1], [], []>} : vector<2x4xf32>, vector<4x512xf32>, vector<2x512xf32> -> vector<2x512xf32>
    %143 = arith.mulf %4, %6 : vector<1x512xf32>
    %144 = vector.broadcast %143 : vector<1x512xf32> to vector<2x512xf32>
    %145 = arith.mulf %142, %144 : vector<2x512xf32>
    %146 = arith.addf %138, %145 : vector<2x512xf32>
    %c457_i32 = arith.constant 457 : i32
    %147 = tpu.dynamic_rotate %8 by %c457_i32 dim 1 : vector<4x512xf32>, i32 -> vector<4x512xf32>
    %c18 = arith.constant 18 : index
    %c0_58 = arith.constant 0 : index
    %c0_59 = arith.constant 0 : index
    %148 = vector.load %arg3[%c18, %c0_58, %c0_59] : memref<27x2x4xf32, #tpu.memory_space<vmem>>, vector<1x2x4xf32>
    %149 = vector.shape_cast %148 : vector<1x2x4xf32> to vector<2x4xf32>
    %cst_60 = arith.constant dense<0.000000e+00> : vector<2x512xf32>
    %150 = tpu.matmul %149, %147, %cst_60 {dimension_numbers = #tpu.dot_dimension_numbers<[1], [0], [0], [1], [0, 0, 1, 1], [], []>} : vector<2x4xf32>, vector<4x512xf32>, vector<2x512xf32> -> vector<2x512xf32>
    %151 = arith.mulf %2, %3 : vector<1x512xf32>
    %152 = arith.mulf %151, %5 : vector<1x512xf32>
    %153 = vector.broadcast %152 : vector<1x512xf32> to vector<2x512xf32>
    %154 = arith.mulf %150, %153 : vector<2x512xf32>
    %155 = arith.addf %146, %154 : vector<2x512xf32>
    %c456_i32 = arith.constant 456 : i32
    %156 = tpu.dynamic_rotate %8 by %c456_i32 dim 1 : vector<4x512xf32>, i32 -> vector<4x512xf32>
    %c19 = arith.constant 19 : index
    %c0_61 = arith.constant 0 : index
    %c0_62 = arith.constant 0 : index
    %157 = vector.load %arg3[%c19, %c0_61, %c0_62] : memref<27x2x4xf32, #tpu.memory_space<vmem>>, vector<1x2x4xf32>
    %158 = vector.shape_cast %157 : vector<1x2x4xf32> to vector<2x4xf32>
    %cst_63 = arith.constant dense<0.000000e+00> : vector<2x512xf32>
    %159 = tpu.matmul %158, %156, %cst_63 {dimension_numbers = #tpu.dot_dimension_numbers<[1], [0], [0], [1], [0, 0, 1, 1], [], []>} : vector<2x4xf32>, vector<4x512xf32>, vector<2x512xf32> -> vector<2x512xf32>
    %160 = arith.mulf %2, %3 : vector<1x512xf32>
    %161 = vector.broadcast %160 : vector<1x512xf32> to vector<2x512xf32>
    %162 = arith.mulf %159, %161 : vector<2x512xf32>
    %163 = arith.addf %155, %162 : vector<2x512xf32>
    %c455_i32 = arith.constant 455 : i32
    %164 = tpu.dynamic_rotate %8 by %c455_i32 dim 1 : vector<4x512xf32>, i32 -> vector<4x512xf32>
    %c20 = arith.constant 20 : index
    %c0_64 = arith.constant 0 : index
    %c0_65 = arith.constant 0 : index
    %165 = vector.load %arg3[%c20, %c0_64, %c0_65] : memref<27x2x4xf32, #tpu.memory_space<vmem>>, vector<1x2x4xf32>
    %166 = vector.shape_cast %165 : vector<1x2x4xf32> to vector<2x4xf32>
    %cst_66 = arith.constant dense<0.000000e+00> : vector<2x512xf32>
    %167 = tpu.matmul %166, %164, %cst_66 {dimension_numbers = #tpu.dot_dimension_numbers<[1], [0], [0], [1], [0, 0, 1, 1], [], []>} : vector<2x4xf32>, vector<4x512xf32>, vector<2x512xf32> -> vector<2x512xf32>
    %168 = arith.mulf %2, %3 : vector<1x512xf32>
    %169 = arith.mulf %168, %6 : vector<1x512xf32>
    %170 = vector.broadcast %169 : vector<1x512xf32> to vector<2x512xf32>
    %171 = arith.mulf %167, %170 : vector<2x512xf32>
    %172 = arith.addf %163, %171 : vector<2x512xf32>
    %c449_i32 = arith.constant 449 : i32
    %173 = tpu.dynamic_rotate %8 by %c449_i32 dim 1 : vector<4x512xf32>, i32 -> vector<4x512xf32>
    %c21 = arith.constant 21 : index
    %c0_67 = arith.constant 0 : index
    %c0_68 = arith.constant 0 : index
    %174 = vector.load %arg3[%c21, %c0_67, %c0_68] : memref<27x2x4xf32, #tpu.memory_space<vmem>>, vector<1x2x4xf32>
    %175 = vector.shape_cast %174 : vector<1x2x4xf32> to vector<2x4xf32>
    %cst_69 = arith.constant dense<0.000000e+00> : vector<2x512xf32>
    %176 = tpu.matmul %175, %173, %cst_69 {dimension_numbers = #tpu.dot_dimension_numbers<[1], [0], [0], [1], [0, 0, 1, 1], [], []>} : vector<2x4xf32>, vector<4x512xf32>, vector<2x512xf32> -> vector<2x512xf32>
    %177 = arith.mulf %2, %5 : vector<1x512xf32>
    %178 = vector.broadcast %177 : vector<1x512xf32> to vector<2x512xf32>
    %179 = arith.mulf %176, %178 : vector<2x512xf32>
    %180 = arith.addf %172, %179 : vector<2x512xf32>
    %c448_i32 = arith.constant 448 : i32
    %181 = tpu.dynamic_rotate %8 by %c448_i32 dim 1 : vector<4x512xf32>, i32 -> vector<4x512xf32>
    %c22 = arith.constant 22 : index
    %c0_70 = arith.constant 0 : index
    %c0_71 = arith.constant 0 : index
    %182 = vector.load %arg3[%c22, %c0_70, %c0_71] : memref<27x2x4xf32, #tpu.memory_space<vmem>>, vector<1x2x4xf32>
    %183 = vector.shape_cast %182 : vector<1x2x4xf32> to vector<2x4xf32>
    %cst_72 = arith.constant dense<0.000000e+00> : vector<2x512xf32>
    %184 = tpu.matmul %183, %181, %cst_72 {dimension_numbers = #tpu.dot_dimension_numbers<[1], [0], [0], [1], [0, 0, 1, 1], [], []>} : vector<2x4xf32>, vector<4x512xf32>, vector<2x512xf32> -> vector<2x512xf32>
    %185 = vector.broadcast %2 : vector<1x512xf32> to vector<2x512xf32>
    %186 = arith.mulf %184, %185 : vector<2x512xf32>
    %187 = arith.addf %180, %186 : vector<2x512xf32>
    %c447_i32 = arith.constant 447 : i32
    %188 = tpu.dynamic_rotate %8 by %c447_i32 dim 1 : vector<4x512xf32>, i32 -> vector<4x512xf32>
    %c23 = arith.constant 23 : index
    %c0_73 = arith.constant 0 : index
    %c0_74 = arith.constant 0 : index
    %189 = vector.load %arg3[%c23, %c0_73, %c0_74] : memref<27x2x4xf32, #tpu.memory_space<vmem>>, vector<1x2x4xf32>
    %190 = vector.shape_cast %189 : vector<1x2x4xf32> to vector<2x4xf32>
    %cst_75 = arith.constant dense<0.000000e+00> : vector<2x512xf32>
    %191 = tpu.matmul %190, %188, %cst_75 {dimension_numbers = #tpu.dot_dimension_numbers<[1], [0], [0], [1], [0, 0, 1, 1], [], []>} : vector<2x4xf32>, vector<4x512xf32>, vector<2x512xf32> -> vector<2x512xf32>
    %192 = arith.mulf %2, %6 : vector<1x512xf32>
    %193 = vector.broadcast %192 : vector<1x512xf32> to vector<2x512xf32>
    %194 = arith.mulf %191, %193 : vector<2x512xf32>
    %195 = arith.addf %187, %194 : vector<2x512xf32>
    %c441_i32 = arith.constant 441 : i32
    %196 = tpu.dynamic_rotate %8 by %c441_i32 dim 1 : vector<4x512xf32>, i32 -> vector<4x512xf32>
    %c24 = arith.constant 24 : index
    %c0_76 = arith.constant 0 : index
    %c0_77 = arith.constant 0 : index
    %197 = vector.load %arg3[%c24, %c0_76, %c0_77] : memref<27x2x4xf32, #tpu.memory_space<vmem>>, vector<1x2x4xf32>
    %198 = vector.shape_cast %197 : vector<1x2x4xf32> to vector<2x4xf32>
    %cst_78 = arith.constant dense<0.000000e+00> : vector<2x512xf32>
    %199 = tpu.matmul %198, %196, %cst_78 {dimension_numbers = #tpu.dot_dimension_numbers<[1], [0], [0], [1], [0, 0, 1, 1], [], []>} : vector<2x4xf32>, vector<4x512xf32>, vector<2x512xf32> -> vector<2x512xf32>
    %200 = arith.mulf %2, %4 : vector<1x512xf32>
    %201 = arith.mulf %200, %5 : vector<1x512xf32>
    %202 = vector.broadcast %201 : vector<1x512xf32> to vector<2x512xf32>
    %203 = arith.mulf %199, %202 : vector<2x512xf32>
    %204 = arith.addf %195, %203 : vector<2x512xf32>
    %c440_i32 = arith.constant 440 : i32
    %205 = tpu.dynamic_rotate %8 by %c440_i32 dim 1 : vector<4x512xf32>, i32 -> vector<4x512xf32>
    %c25 = arith.constant 25 : index
    %c0_79 = arith.constant 0 : index
    %c0_80 = arith.constant 0 : index
    %206 = vector.load %arg3[%c25, %c0_79, %c0_80] : memref<27x2x4xf32, #tpu.memory_space<vmem>>, vector<1x2x4xf32>
    %207 = vector.shape_cast %206 : vector<1x2x4xf32> to vector<2x4xf32>
    %cst_81 = arith.constant dense<0.000000e+00> : vector<2x512xf32>
    %208 = tpu.matmul %207, %205, %cst_81 {dimension_numbers = #tpu.dot_dimension_numbers<[1], [0], [0], [1], [0, 0, 1, 1], [], []>} : vector<2x4xf32>, vector<4x512xf32>, vector<2x512xf32> -> vector<2x512xf32>
    %209 = arith.mulf %2, %4 : vector<1x512xf32>
    %210 = vector.broadcast %209 : vector<1x512xf32> to vector<2x512xf32>
    %211 = arith.mulf %208, %210 : vector<2x512xf32>
    %212 = arith.addf %204, %211 : vector<2x512xf32>
    %c439_i32 = arith.constant 439 : i32
    %213 = tpu.dynamic_rotate %8 by %c439_i32 dim 1 : vector<4x512xf32>, i32 -> vector<4x512xf32>
    %c26 = arith.constant 26 : index
    %c0_82 = arith.constant 0 : index
    %c0_83 = arith.constant 0 : index
    %214 = vector.load %arg3[%c26, %c0_82, %c0_83] : memref<27x2x4xf32, #tpu.memory_space<vmem>>, vector<1x2x4xf32>
    %215 = vector.shape_cast %214 : vector<1x2x4xf32> to vector<2x4xf32>
    %cst_84 = arith.constant dense<0.000000e+00> : vector<2x512xf32>
    %216 = tpu.matmul %215, %213, %cst_84 {dimension_numbers = #tpu.dot_dimension_numbers<[1], [0], [0], [1], [0, 0, 1, 1], [], []>} : vector<2x4xf32>, vector<4x512xf32>, vector<2x512xf32> -> vector<2x512xf32>
    %217 = arith.mulf %2, %4 : vector<1x512xf32>
    %218 = arith.mulf %217, %6 : vector<1x512xf32>
    %219 = vector.broadcast %218 : vector<1x512xf32> to vector<2x512xf32>
    %220 = arith.mulf %216, %219 : vector<2x512xf32>
    %221 = arith.addf %212, %220 : vector<2x512xf32>
    %cst_85 = arith.constant dense<0.000000e+00> : vector<2xf32>
    %222 = vector.multi_reduction <add>, %221, %cst_85 [1] : vector<2x512xf32> to vector<2xf32>
    %223 = vector.shape_cast %222 : vector<2xf32> to vector<2x1xf32>
    %cst_86 = arith.constant 0.001953125 : f32
    %224 = vector.broadcast %cst_86 : f32 to vector<2x1xf32>
    %225 = arith.mulf %223, %224 : vector<2x1xf32>
    %226 = vector.broadcast %225 : vector<2x1xf32> to vector<2x512xf32>
    %227 = arith.subf %221, %226 : vector<2x512xf32>
    %228 = arith.mulf %227, %227 : vector<2x512xf32>
    %cst_87 = arith.constant dense<0.000000e+00> : vector<2xf32>
    %229 = vector.multi_reduction <add>, %228, %cst_87 [1] : vector<2x512xf32> to vector<2xf32>
    %230 = vector.shape_cast %229 : vector<2xf32> to vector<2x1xf32>
    %cst_88 = arith.constant 0.001953125 : f32
    %231 = vector.broadcast %cst_88 : f32 to vector<2x1xf32>
    %232 = arith.mulf %230, %231 : vector<2x1xf32>
    %cst_89 = arith.constant 9.99999974E-6 : f32
    %233 = vector.broadcast %cst_89 : f32 to vector<2x1xf32>
    %234 = arith.addf %232, %233 : vector<2x1xf32>
    %235 = math.rsqrt %234 : vector<2x1xf32>
    %236 = vector.broadcast %235 : vector<2x1xf32> to vector<2x512xf32>
    %237 = arith.mulf %227, %236 : vector<2x512xf32>
    %cst_90 = arith.constant 0.000000e+00 : f32
    %238 = vector.broadcast %cst_90 : f32 to vector<2x512xf32>
    %239 = arith.cmpf oge, %237, %238 : vector<2x512xf32>
    %cst_91 = arith.constant 2.000000e-01 : f32
    %240 = vector.broadcast %cst_91 : f32 to vector<2x512xf32>
    %241 = arith.mulf %240, %237 : vector<2x512xf32>
    %242 = arith.select %239, %237, %241 : vector<2x512xi1>, vector<2x512xf32>
    %c73_i32_92 = arith.constant 73 : i32
    %243 = tpu.dynamic_rotate %242 by %c73_i32_92 dim 1 : vector<2x512xf32>, i32 -> vector<2x512xf32>
    %c0_93 = arith.constant 0 : index
    %c0_94 = arith.constant 0 : index
    %c0_95 = arith.constant 0 : index
    %244 = vector.load %arg4[%c0_93, %c0_94, %c0_95] : memref<27x4x2xf32, #tpu.memory_space<vmem>>, vector<1x4x2xf32>
    %245 = vector.shape_cast %244 : vector<1x4x2xf32> to vector<4x2xf32>
    %cst_96 = arith.constant dense<0.000000e+00> : vector<4x512xf32>
    %246 = tpu.matmul %245, %243, %cst_96 {dimension_numbers = #tpu.dot_dimension_numbers<[1], [0], [0], [1], [0, 0, 1, 1], [], []>} : vector<4x2xf32>, vector<2x512xf32>, vector<4x512xf32> -> vector<4x512xf32>
    %247 = arith.mulf %1, %3 : vector<1x512xf32>
    %248 = arith.mulf %247, %5 : vector<1x512xf32>
    %249 = vector.broadcast %248 : vector<1x512xf32> to vector<4x512xf32>
    %250 = arith.mulf %246, %249 : vector<4x512xf32>
    %c72_i32_97 = arith.constant 72 : i32
    %251 = tpu.dynamic_rotate %242 by %c72_i32_97 dim 1 : vector<2x512xf32>, i32 -> vector<2x512xf32>
    %c1_98 = arith.constant 1 : index
    %c0_99 = arith.constant 0 : index
    %c0_100 = arith.constant 0 : index
    %252 = vector.load %arg4[%c1_98, %c0_99, %c0_100] : memref<27x4x2xf32, #tpu.memory_space<vmem>>, vector<1x4x2xf32>
    %253 = vector.shape_cast %252 : vector<1x4x2xf32> to vector<4x2xf32>
    %cst_101 = arith.constant dense<0.000000e+00> : vector<4x512xf32>
    %254 = tpu.matmul %253, %251, %cst_101 {dimension_numbers = #tpu.dot_dimension_numbers<[1], [0], [0], [1], [0, 0, 1, 1], [], []>} : vector<4x2xf32>, vector<2x512xf32>, vector<4x512xf32> -> vector<4x512xf32>
    %255 = arith.mulf %1, %3 : vector<1x512xf32>
    %256 = vector.broadcast %255 : vector<1x512xf32> to vector<4x512xf32>
    %257 = arith.mulf %254, %256 : vector<4x512xf32>
    %258 = arith.addf %250, %257 : vector<4x512xf32>
    %c71_i32_102 = arith.constant 71 : i32
    %259 = tpu.dynamic_rotate %242 by %c71_i32_102 dim 1 : vector<2x512xf32>, i32 -> vector<2x512xf32>
    %c2_103 = arith.constant 2 : index
    %c0_104 = arith.constant 0 : index
    %c0_105 = arith.constant 0 : index
    %260 = vector.load %arg4[%c2_103, %c0_104, %c0_105] : memref<27x4x2xf32, #tpu.memory_space<vmem>>, vector<1x4x2xf32>
    %261 = vector.shape_cast %260 : vector<1x4x2xf32> to vector<4x2xf32>
    %cst_106 = arith.constant dense<0.000000e+00> : vector<4x512xf32>
    %262 = tpu.matmul %261, %259, %cst_106 {dimension_numbers = #tpu.dot_dimension_numbers<[1], [0], [0], [1], [0, 0, 1, 1], [], []>} : vector<4x2xf32>, vector<2x512xf32>, vector<4x512xf32> -> vector<4x512xf32>
    %263 = arith.mulf %1, %3 : vector<1x512xf32>
    %264 = arith.mulf %263, %6 : vector<1x512xf32>
    %265 = vector.broadcast %264 : vector<1x512xf32> to vector<4x512xf32>
    %266 = arith.mulf %262, %265 : vector<4x512xf32>
    %267 = arith.addf %258, %266 : vector<4x512xf32>
    %c65_i32_107 = arith.constant 65 : i32
    %268 = tpu.dynamic_rotate %242 by %c65_i32_107 dim 1 : vector<2x512xf32>, i32 -> vector<2x512xf32>
    %c3_108 = arith.constant 3 : index
    %c0_109 = arith.constant 0 : index
    %c0_110 = arith.constant 0 : index
    %269 = vector.load %arg4[%c3_108, %c0_109, %c0_110] : memref<27x4x2xf32, #tpu.memory_space<vmem>>, vector<1x4x2xf32>
    %270 = vector.shape_cast %269 : vector<1x4x2xf32> to vector<4x2xf32>
    %cst_111 = arith.constant dense<0.000000e+00> : vector<4x512xf32>
    %271 = tpu.matmul %270, %268, %cst_111 {dimension_numbers = #tpu.dot_dimension_numbers<[1], [0], [0], [1], [0, 0, 1, 1], [], []>} : vector<4x2xf32>, vector<2x512xf32>, vector<4x512xf32> -> vector<4x512xf32>
    %272 = arith.mulf %1, %5 : vector<1x512xf32>
    %273 = vector.broadcast %272 : vector<1x512xf32> to vector<4x512xf32>
    %274 = arith.mulf %271, %273 : vector<4x512xf32>
    %275 = arith.addf %267, %274 : vector<4x512xf32>
    %c64_i32_112 = arith.constant 64 : i32
    %276 = tpu.dynamic_rotate %242 by %c64_i32_112 dim 1 : vector<2x512xf32>, i32 -> vector<2x512xf32>
    %c4_113 = arith.constant 4 : index
    %c0_114 = arith.constant 0 : index
    %c0_115 = arith.constant 0 : index
    %277 = vector.load %arg4[%c4_113, %c0_114, %c0_115] : memref<27x4x2xf32, #tpu.memory_space<vmem>>, vector<1x4x2xf32>
    %278 = vector.shape_cast %277 : vector<1x4x2xf32> to vector<4x2xf32>
    %cst_116 = arith.constant dense<0.000000e+00> : vector<4x512xf32>
    %279 = tpu.matmul %278, %276, %cst_116 {dimension_numbers = #tpu.dot_dimension_numbers<[1], [0], [0], [1], [0, 0, 1, 1], [], []>} : vector<4x2xf32>, vector<2x512xf32>, vector<4x512xf32> -> vector<4x512xf32>
    %280 = vector.broadcast %1 : vector<1x512xf32> to vector<4x512xf32>
    %281 = arith.mulf %279, %280 : vector<4x512xf32>
    %282 = arith.addf %275, %281 : vector<4x512xf32>
    %c63_i32_117 = arith.constant 63 : i32
    %283 = tpu.dynamic_rotate %242 by %c63_i32_117 dim 1 : vector<2x512xf32>, i32 -> vector<2x512xf32>
    %c5_118 = arith.constant 5 : index
    %c0_119 = arith.constant 0 : index
    %c0_120 = arith.constant 0 : index
    %284 = vector.load %arg4[%c5_118, %c0_119, %c0_120] : memref<27x4x2xf32, #tpu.memory_space<vmem>>, vector<1x4x2xf32>
    %285 = vector.shape_cast %284 : vector<1x4x2xf32> to vector<4x2xf32>
    %cst_121 = arith.constant dense<0.000000e+00> : vector<4x512xf32>
    %286 = tpu.matmul %285, %283, %cst_121 {dimension_numbers = #tpu.dot_dimension_numbers<[1], [0], [0], [1], [0, 0, 1, 1], [], []>} : vector<4x2xf32>, vector<2x512xf32>, vector<4x512xf32> -> vector<4x512xf32>
    %287 = arith.mulf %1, %6 : vector<1x512xf32>
    %288 = vector.broadcast %287 : vector<1x512xf32> to vector<4x512xf32>
    %289 = arith.mulf %286, %288 : vector<4x512xf32>
    %290 = arith.addf %282, %289 : vector<4x512xf32>
    %c57_i32_122 = arith.constant 57 : i32
    %291 = tpu.dynamic_rotate %242 by %c57_i32_122 dim 1 : vector<2x512xf32>, i32 -> vector<2x512xf32>
    %c6_123 = arith.constant 6 : index
    %c0_124 = arith.constant 0 : index
    %c0_125 = arith.constant 0 : index
    %292 = vector.load %arg4[%c6_123, %c0_124, %c0_125] : memref<27x4x2xf32, #tpu.memory_space<vmem>>, vector<1x4x2xf32>
    %293 = vector.shape_cast %292 : vector<1x4x2xf32> to vector<4x2xf32>
    %cst_126 = arith.constant dense<0.000000e+00> : vector<4x512xf32>
    %294 = tpu.matmul %293, %291, %cst_126 {dimension_numbers = #tpu.dot_dimension_numbers<[1], [0], [0], [1], [0, 0, 1, 1], [], []>} : vector<4x2xf32>, vector<2x512xf32>, vector<4x512xf32> -> vector<4x512xf32>
    %295 = arith.mulf %1, %4 : vector<1x512xf32>
    %296 = arith.mulf %295, %5 : vector<1x512xf32>
    %297 = vector.broadcast %296 : vector<1x512xf32> to vector<4x512xf32>
    %298 = arith.mulf %294, %297 : vector<4x512xf32>
    %299 = arith.addf %290, %298 : vector<4x512xf32>
    %c56_i32_127 = arith.constant 56 : i32
    %300 = tpu.dynamic_rotate %242 by %c56_i32_127 dim 1 : vector<2x512xf32>, i32 -> vector<2x512xf32>
    %c7_128 = arith.constant 7 : index
    %c0_129 = arith.constant 0 : index
    %c0_130 = arith.constant 0 : index
    %301 = vector.load %arg4[%c7_128, %c0_129, %c0_130] : memref<27x4x2xf32, #tpu.memory_space<vmem>>, vector<1x4x2xf32>
    %302 = vector.shape_cast %301 : vector<1x4x2xf32> to vector<4x2xf32>
    %cst_131 = arith.constant dense<0.000000e+00> : vector<4x512xf32>
    %303 = tpu.matmul %302, %300, %cst_131 {dimension_numbers = #tpu.dot_dimension_numbers<[1], [0], [0], [1], [0, 0, 1, 1], [], []>} : vector<4x2xf32>, vector<2x512xf32>, vector<4x512xf32> -> vector<4x512xf32>
    %304 = arith.mulf %1, %4 : vector<1x512xf32>
    %305 = vector.broadcast %304 : vector<1x512xf32> to vector<4x512xf32>
    %306 = arith.mulf %303, %305 : vector<4x512xf32>
    %307 = arith.addf %299, %306 : vector<4x512xf32>
    %c55_i32_132 = arith.constant 55 : i32
    %308 = tpu.dynamic_rotate %242 by %c55_i32_132 dim 1 : vector<2x512xf32>, i32 -> vector<2x512xf32>
    %c8_133 = arith.constant 8 : index
    %c0_134 = arith.constant 0 : index
    %c0_135 = arith.constant 0 : index
    %309 = vector.load %arg4[%c8_133, %c0_134, %c0_135] : memref<27x4x2xf32, #tpu.memory_space<vmem>>, vector<1x4x2xf32>
    %310 = vector.shape_cast %309 : vector<1x4x2xf32> to vector<4x2xf32>
    %cst_136 = arith.constant dense<0.000000e+00> : vector<4x512xf32>
    %311 = tpu.matmul %310, %308, %cst_136 {dimension_numbers = #tpu.dot_dimension_numbers<[1], [0], [0], [1], [0, 0, 1, 1], [], []>} : vector<4x2xf32>, vector<2x512xf32>, vector<4x512xf32> -> vector<4x512xf32>
    %312 = arith.mulf %1, %4 : vector<1x512xf32>
    %313 = arith.mulf %312, %6 : vector<1x512xf32>
    %314 = vector.broadcast %313 : vector<1x512xf32> to vector<4x512xf32>
    %315 = arith.mulf %311, %314 : vector<4x512xf32>
    %316 = arith.addf %307, %315 : vector<4x512xf32>
    %c9_i32_137 = arith.constant 9 : i32
    %317 = tpu.dynamic_rotate %242 by %c9_i32_137 dim 1 : vector<2x512xf32>, i32 -> vector<2x512xf32>
    %c9_138 = arith.constant 9 : index
    %c0_139 = arith.constant 0 : index
    %c0_140 = arith.constant 0 : index
    %318 = vector.load %arg4[%c9_138, %c0_139, %c0_140] : memref<27x4x2xf32, #tpu.memory_space<vmem>>, vector<1x4x2xf32>
    %319 = vector.shape_cast %318 : vector<1x4x2xf32> to vector<4x2xf32>
    %cst_141 = arith.constant dense<0.000000e+00> : vector<4x512xf32>
    %320 = tpu.matmul %319, %317, %cst_141 {dimension_numbers = #tpu.dot_dimension_numbers<[1], [0], [0], [1], [0, 0, 1, 1], [], []>} : vector<4x2xf32>, vector<2x512xf32>, vector<4x512xf32> -> vector<4x512xf32>
    %321 = arith.mulf %3, %5 : vector<1x512xf32>
    %322 = vector.broadcast %321 : vector<1x512xf32> to vector<4x512xf32>
    %323 = arith.mulf %320, %322 : vector<4x512xf32>
    %324 = arith.addf %316, %323 : vector<4x512xf32>
    %c8_i32_142 = arith.constant 8 : i32
    %325 = tpu.dynamic_rotate %242 by %c8_i32_142 dim 1 : vector<2x512xf32>, i32 -> vector<2x512xf32>
    %c10_143 = arith.constant 10 : index
    %c0_144 = arith.constant 0 : index
    %c0_145 = arith.constant 0 : index
    %326 = vector.load %arg4[%c10_143, %c0_144, %c0_145] : memref<27x4x2xf32, #tpu.memory_space<vmem>>, vector<1x4x2xf32>
    %327 = vector.shape_cast %326 : vector<1x4x2xf32> to vector<4x2xf32>
    %cst_146 = arith.constant dense<0.000000e+00> : vector<4x512xf32>
    %328 = tpu.matmul %327, %325, %cst_146 {dimension_numbers = #tpu.dot_dimension_numbers<[1], [0], [0], [1], [0, 0, 1, 1], [], []>} : vector<4x2xf32>, vector<2x512xf32>, vector<4x512xf32> -> vector<4x512xf32>
    %329 = vector.broadcast %3 : vector<1x512xf32> to vector<4x512xf32>
    %330 = arith.mulf %328, %329 : vector<4x512xf32>
    %331 = arith.addf %324, %330 : vector<4x512xf32>
    %c7_i32_147 = arith.constant 7 : i32
    %332 = tpu.dynamic_rotate %242 by %c7_i32_147 dim 1 : vector<2x512xf32>, i32 -> vector<2x512xf32>
    %c11_148 = arith.constant 11 : index
    %c0_149 = arith.constant 0 : index
    %c0_150 = arith.constant 0 : index
    %333 = vector.load %arg4[%c11_148, %c0_149, %c0_150] : memref<27x4x2xf32, #tpu.memory_space<vmem>>, vector<1x4x2xf32>
    %334 = vector.shape_cast %333 : vector<1x4x2xf32> to vector<4x2xf32>
    %cst_151 = arith.constant dense<0.000000e+00> : vector<4x512xf32>
    %335 = tpu.matmul %334, %332, %cst_151 {dimension_numbers = #tpu.dot_dimension_numbers<[1], [0], [0], [1], [0, 0, 1, 1], [], []>} : vector<4x2xf32>, vector<2x512xf32>, vector<4x512xf32> -> vector<4x512xf32>
    %336 = arith.mulf %3, %6 : vector<1x512xf32>
    %337 = vector.broadcast %336 : vector<1x512xf32> to vector<4x512xf32>
    %338 = arith.mulf %335, %337 : vector<4x512xf32>
    %339 = arith.addf %331, %338 : vector<4x512xf32>
    %c1_i32_152 = arith.constant 1 : i32
    %340 = tpu.dynamic_rotate %242 by %c1_i32_152 dim 1 : vector<2x512xf32>, i32 -> vector<2x512xf32>
    %c12_153 = arith.constant 12 : index
    %c0_154 = arith.constant 0 : index
    %c0_155 = arith.constant 0 : index
    %341 = vector.load %arg4[%c12_153, %c0_154, %c0_155] : memref<27x4x2xf32, #tpu.memory_space<vmem>>, vector<1x4x2xf32>
    %342 = vector.shape_cast %341 : vector<1x4x2xf32> to vector<4x2xf32>
    %cst_156 = arith.constant dense<0.000000e+00> : vector<4x512xf32>
    %343 = tpu.matmul %342, %340, %cst_156 {dimension_numbers = #tpu.dot_dimension_numbers<[1], [0], [0], [1], [0, 0, 1, 1], [], []>} : vector<4x2xf32>, vector<2x512xf32>, vector<4x512xf32> -> vector<4x512xf32>
    %344 = vector.broadcast %5 : vector<1x512xf32> to vector<4x512xf32>
    %345 = arith.mulf %343, %344 : vector<4x512xf32>
    %346 = arith.addf %339, %345 : vector<4x512xf32>
    %c13_157 = arith.constant 13 : index
    %c0_158 = arith.constant 0 : index
    %c0_159 = arith.constant 0 : index
    %347 = vector.load %arg4[%c13_157, %c0_158, %c0_159] : memref<27x4x2xf32, #tpu.memory_space<vmem>>, vector<1x4x2xf32>
    %348 = vector.shape_cast %347 : vector<1x4x2xf32> to vector<4x2xf32>
    %cst_160 = arith.constant dense<0.000000e+00> : vector<4x512xf32>
    %349 = tpu.matmul %348, %242, %cst_160 {dimension_numbers = #tpu.dot_dimension_numbers<[1], [0], [0], [1], [0, 0, 1, 1], [], []>} : vector<4x2xf32>, vector<2x512xf32>, vector<4x512xf32> -> vector<4x512xf32>
    %350 = arith.addf %346, %349 : vector<4x512xf32>
    %c511_i32_161 = arith.constant 511 : i32
    %351 = tpu.dynamic_rotate %242 by %c511_i32_161 dim 1 : vector<2x512xf32>, i32 -> vector<2x512xf32>
    %c14_162 = arith.constant 14 : index
    %c0_163 = arith.constant 0 : index
    %c0_164 = arith.constant 0 : index
    %352 = vector.load %arg4[%c14_162, %c0_163, %c0_164] : memref<27x4x2xf32, #tpu.memory_space<vmem>>, vector<1x4x2xf32>
    %353 = vector.shape_cast %352 : vector<1x4x2xf32> to vector<4x2xf32>
    %cst_165 = arith.constant dense<0.000000e+00> : vector<4x512xf32>
    %354 = tpu.matmul %353, %351, %cst_165 {dimension_numbers = #tpu.dot_dimension_numbers<[1], [0], [0], [1], [0, 0, 1, 1], [], []>} : vector<4x2xf32>, vector<2x512xf32>, vector<4x512xf32> -> vector<4x512xf32>
    %355 = vector.broadcast %6 : vector<1x512xf32> to vector<4x512xf32>
    %356 = arith.mulf %354, %355 : vector<4x512xf32>
    %357 = arith.addf %350, %356 : vector<4x512xf32>
    %c505_i32_166 = arith.constant 505 : i32
    %358 = tpu.dynamic_rotate %242 by %c505_i32_166 dim 1 : vector<2x512xf32>, i32 -> vector<2x512xf32>
    %c15_167 = arith.constant 15 : index
    %c0_168 = arith.constant 0 : index
    %c0_169 = arith.constant 0 : index
    %359 = vector.load %arg4[%c15_167, %c0_168, %c0_169] : memref<27x4x2xf32, #tpu.memory_space<vmem>>, vector<1x4x2xf32>
    %360 = vector.shape_cast %359 : vector<1x4x2xf32> to vector<4x2xf32>
    %cst_170 = arith.constant dense<0.000000e+00> : vector<4x512xf32>
    %361 = tpu.matmul %360, %358, %cst_170 {dimension_numbers = #tpu.dot_dimension_numbers<[1], [0], [0], [1], [0, 0, 1, 1], [], []>} : vector<4x2xf32>, vector<2x512xf32>, vector<4x512xf32> -> vector<4x512xf32>
    %362 = arith.mulf %4, %5 : vector<1x512xf32>
    %363 = vector.broadcast %362 : vector<1x512xf32> to vector<4x512xf32>
    %364 = arith.mulf %361, %363 : vector<4x512xf32>
    %365 = arith.addf %357, %364 : vector<4x512xf32>
    %c504_i32_171 = arith.constant 504 : i32
    %366 = tpu.dynamic_rotate %242 by %c504_i32_171 dim 1 : vector<2x512xf32>, i32 -> vector<2x512xf32>
    %c16_172 = arith.constant 16 : index
    %c0_173 = arith.constant 0 : index
    %c0_174 = arith.constant 0 : index
    %367 = vector.load %arg4[%c16_172, %c0_173, %c0_174] : memref<27x4x2xf32, #tpu.memory_space<vmem>>, vector<1x4x2xf32>
    %368 = vector.shape_cast %367 : vector<1x4x2xf32> to vector<4x2xf32>
    %cst_175 = arith.constant dense<0.000000e+00> : vector<4x512xf32>
    %369 = tpu.matmul %368, %366, %cst_175 {dimension_numbers = #tpu.dot_dimension_numbers<[1], [0], [0], [1], [0, 0, 1, 1], [], []>} : vector<4x2xf32>, vector<2x512xf32>, vector<4x512xf32> -> vector<4x512xf32>
    %370 = vector.broadcast %4 : vector<1x512xf32> to vector<4x512xf32>
    %371 = arith.mulf %369, %370 : vector<4x512xf32>
    %372 = arith.addf %365, %371 : vector<4x512xf32>
    %c503_i32_176 = arith.constant 503 : i32
    %373 = tpu.dynamic_rotate %242 by %c503_i32_176 dim 1 : vector<2x512xf32>, i32 -> vector<2x512xf32>
    %c17_177 = arith.constant 17 : index
    %c0_178 = arith.constant 0 : index
    %c0_179 = arith.constant 0 : index
    %374 = vector.load %arg4[%c17_177, %c0_178, %c0_179] : memref<27x4x2xf32, #tpu.memory_space<vmem>>, vector<1x4x2xf32>
    %375 = vector.shape_cast %374 : vector<1x4x2xf32> to vector<4x2xf32>
    %cst_180 = arith.constant dense<0.000000e+00> : vector<4x512xf32>
    %376 = tpu.matmul %375, %373, %cst_180 {dimension_numbers = #tpu.dot_dimension_numbers<[1], [0], [0], [1], [0, 0, 1, 1], [], []>} : vector<4x2xf32>, vector<2x512xf32>, vector<4x512xf32> -> vector<4x512xf32>
    %377 = arith.mulf %4, %6 : vector<1x512xf32>
    %378 = vector.broadcast %377 : vector<1x512xf32> to vector<4x512xf32>
    %379 = arith.mulf %376, %378 : vector<4x512xf32>
    %380 = arith.addf %372, %379 : vector<4x512xf32>
    %c457_i32_181 = arith.constant 457 : i32
    %381 = tpu.dynamic_rotate %242 by %c457_i32_181 dim 1 : vector<2x512xf32>, i32 -> vector<2x512xf32>
    %c18_182 = arith.constant 18 : index
    %c0_183 = arith.constant 0 : index
    %c0_184 = arith.constant 0 : index
    %382 = vector.load %arg4[%c18_182, %c0_183, %c0_184] : memref<27x4x2xf32, #tpu.memory_space<vmem>>, vector<1x4x2xf32>
    %383 = vector.shape_cast %382 : vector<1x4x2xf32> to vector<4x2xf32>
    %cst_185 = arith.constant dense<0.000000e+00> : vector<4x512xf32>
    %384 = tpu.matmul %383, %381, %cst_185 {dimension_numbers = #tpu.dot_dimension_numbers<[1], [0], [0], [1], [0, 0, 1, 1], [], []>} : vector<4x2xf32>, vector<2x512xf32>, vector<4x512xf32> -> vector<4x512xf32>
    %385 = arith.mulf %2, %3 : vector<1x512xf32>
    %386 = arith.mulf %385, %5 : vector<1x512xf32>
    %387 = vector.broadcast %386 : vector<1x512xf32> to vector<4x512xf32>
    %388 = arith.mulf %384, %387 : vector<4x512xf32>
    %389 = arith.addf %380, %388 : vector<4x512xf32>
    %c456_i32_186 = arith.constant 456 : i32
    %390 = tpu.dynamic_rotate %242 by %c456_i32_186 dim 1 : vector<2x512xf32>, i32 -> vector<2x512xf32>
    %c19_187 = arith.constant 19 : index
    %c0_188 = arith.constant 0 : index
    %c0_189 = arith.constant 0 : index
    %391 = vector.load %arg4[%c19_187, %c0_188, %c0_189] : memref<27x4x2xf32, #tpu.memory_space<vmem>>, vector<1x4x2xf32>
    %392 = vector.shape_cast %391 : vector<1x4x2xf32> to vector<4x2xf32>
    %cst_190 = arith.constant dense<0.000000e+00> : vector<4x512xf32>
    %393 = tpu.matmul %392, %390, %cst_190 {dimension_numbers = #tpu.dot_dimension_numbers<[1], [0], [0], [1], [0, 0, 1, 1], [], []>} : vector<4x2xf32>, vector<2x512xf32>, vector<4x512xf32> -> vector<4x512xf32>
    %394 = arith.mulf %2, %3 : vector<1x512xf32>
    %395 = vector.broadcast %394 : vector<1x512xf32> to vector<4x512xf32>
    %396 = arith.mulf %393, %395 : vector<4x512xf32>
    %397 = arith.addf %389, %396 : vector<4x512xf32>
    %c455_i32_191 = arith.constant 455 : i32
    %398 = tpu.dynamic_rotate %242 by %c455_i32_191 dim 1 : vector<2x512xf32>, i32 -> vector<2x512xf32>
    %c20_192 = arith.constant 20 : index
    %c0_193 = arith.constant 0 : index
    %c0_194 = arith.constant 0 : index
    %399 = vector.load %arg4[%c20_192, %c0_193, %c0_194] : memref<27x4x2xf32, #tpu.memory_space<vmem>>, vector<1x4x2xf32>
    %400 = vector.shape_cast %399 : vector<1x4x2xf32> to vector<4x2xf32>
    %cst_195 = arith.constant dense<0.000000e+00> : vector<4x512xf32>
    %401 = tpu.matmul %400, %398, %cst_195 {dimension_numbers = #tpu.dot_dimension_numbers<[1], [0], [0], [1], [0, 0, 1, 1], [], []>} : vector<4x2xf32>, vector<2x512xf32>, vector<4x512xf32> -> vector<4x512xf32>
    %402 = arith.mulf %2, %3 : vector<1x512xf32>
    %403 = arith.mulf %402, %6 : vector<1x512xf32>
    %404 = vector.broadcast %403 : vector<1x512xf32> to vector<4x512xf32>
    %405 = arith.mulf %401, %404 : vector<4x512xf32>
    %406 = arith.addf %397, %405 : vector<4x512xf32>
    %c449_i32_196 = arith.constant 449 : i32
    %407 = tpu.dynamic_rotate %242 by %c449_i32_196 dim 1 : vector<2x512xf32>, i32 -> vector<2x512xf32>
    %c21_197 = arith.constant 21 : index
    %c0_198 = arith.constant 0 : index
    %c0_199 = arith.constant 0 : index
    %408 = vector.load %arg4[%c21_197, %c0_198, %c0_199] : memref<27x4x2xf32, #tpu.memory_space<vmem>>, vector<1x4x2xf32>
    %409 = vector.shape_cast %408 : vector<1x4x2xf32> to vector<4x2xf32>
    %cst_200 = arith.constant dense<0.000000e+00> : vector<4x512xf32>
    %410 = tpu.matmul %409, %407, %cst_200 {dimension_numbers = #tpu.dot_dimension_numbers<[1], [0], [0], [1], [0, 0, 1, 1], [], []>} : vector<4x2xf32>, vector<2x512xf32>, vector<4x512xf32> -> vector<4x512xf32>
    %411 = arith.mulf %2, %5 : vector<1x512xf32>
    %412 = vector.broadcast %411 : vector<1x512xf32> to vector<4x512xf32>
    %413 = arith.mulf %410, %412 : vector<4x512xf32>
    %414 = arith.addf %406, %413 : vector<4x512xf32>
    %c448_i32_201 = arith.constant 448 : i32
    %415 = tpu.dynamic_rotate %242 by %c448_i32_201 dim 1 : vector<2x512xf32>, i32 -> vector<2x512xf32>
    %c22_202 = arith.constant 22 : index
    %c0_203 = arith.constant 0 : index
    %c0_204 = arith.constant 0 : index
    %416 = vector.load %arg4[%c22_202, %c0_203, %c0_204] : memref<27x4x2xf32, #tpu.memory_space<vmem>>, vector<1x4x2xf32>
    %417 = vector.shape_cast %416 : vector<1x4x2xf32> to vector<4x2xf32>
    %cst_205 = arith.constant dense<0.000000e+00> : vector<4x512xf32>
    %418 = tpu.matmul %417, %415, %cst_205 {dimension_numbers = #tpu.dot_dimension_numbers<[1], [0], [0], [1], [0, 0, 1, 1], [], []>} : vector<4x2xf32>, vector<2x512xf32>, vector<4x512xf32> -> vector<4x512xf32>
    %419 = vector.broadcast %2 : vector<1x512xf32> to vector<4x512xf32>
    %420 = arith.mulf %418, %419 : vector<4x512xf32>
    %421 = arith.addf %414, %420 : vector<4x512xf32>
    %c447_i32_206 = arith.constant 447 : i32
    %422 = tpu.dynamic_rotate %242 by %c447_i32_206 dim 1 : vector<2x512xf32>, i32 -> vector<2x512xf32>
    %c23_207 = arith.constant 23 : index
    %c0_208 = arith.constant 0 : index
    %c0_209 = arith.constant 0 : index
    %423 = vector.load %arg4[%c23_207, %c0_208, %c0_209] : memref<27x4x2xf32, #tpu.memory_space<vmem>>, vector<1x4x2xf32>
    %424 = vector.shape_cast %423 : vector<1x4x2xf32> to vector<4x2xf32>
    %cst_210 = arith.constant dense<0.000000e+00> : vector<4x512xf32>
    %425 = tpu.matmul %424, %422, %cst_210 {dimension_numbers = #tpu.dot_dimension_numbers<[1], [0], [0], [1], [0, 0, 1, 1], [], []>} : vector<4x2xf32>, vector<2x512xf32>, vector<4x512xf32> -> vector<4x512xf32>
    %426 = arith.mulf %2, %6 : vector<1x512xf32>
    %427 = vector.broadcast %426 : vector<1x512xf32> to vector<4x512xf32>
    %428 = arith.mulf %425, %427 : vector<4x512xf32>
    %429 = arith.addf %421, %428 : vector<4x512xf32>
    %c441_i32_211 = arith.constant 441 : i32
    %430 = tpu.dynamic_rotate %242 by %c441_i32_211 dim 1 : vector<2x512xf32>, i32 -> vector<2x512xf32>
    %c24_212 = arith.constant 24 : index
    %c0_213 = arith.constant 0 : index
    %c0_214 = arith.constant 0 : index
    %431 = vector.load %arg4[%c24_212, %c0_213, %c0_214] : memref<27x4x2xf32, #tpu.memory_space<vmem>>, vector<1x4x2xf32>
    %432 = vector.shape_cast %431 : vector<1x4x2xf32> to vector<4x2xf32>
    %cst_215 = arith.constant dense<0.000000e+00> : vector<4x512xf32>
    %433 = tpu.matmul %432, %430, %cst_215 {dimension_numbers = #tpu.dot_dimension_numbers<[1], [0], [0], [1], [0, 0, 1, 1], [], []>} : vector<4x2xf32>, vector<2x512xf32>, vector<4x512xf32> -> vector<4x512xf32>
    %434 = arith.mulf %2, %4 : vector<1x512xf32>
    %435 = arith.mulf %434, %5 : vector<1x512xf32>
    %436 = vector.broadcast %435 : vector<1x512xf32> to vector<4x512xf32>
    %437 = arith.mulf %433, %436 : vector<4x512xf32>
    %438 = arith.addf %429, %437 : vector<4x512xf32>
    %c440_i32_216 = arith.constant 440 : i32
    %439 = tpu.dynamic_rotate %242 by %c440_i32_216 dim 1 : vector<2x512xf32>, i32 -> vector<2x512xf32>
    %c25_217 = arith.constant 25 : index
    %c0_218 = arith.constant 0 : index
    %c0_219 = arith.constant 0 : index
    %440 = vector.load %arg4[%c25_217, %c0_218, %c0_219] : memref<27x4x2xf32, #tpu.memory_space<vmem>>, vector<1x4x2xf32>
    %441 = vector.shape_cast %440 : vector<1x4x2xf32> to vector<4x2xf32>
    %cst_220 = arith.constant dense<0.000000e+00> : vector<4x512xf32>
    %442 = tpu.matmul %441, %439, %cst_220 {dimension_numbers = #tpu.dot_dimension_numbers<[1], [0], [0], [1], [0, 0, 1, 1], [], []>} : vector<4x2xf32>, vector<2x512xf32>, vector<4x512xf32> -> vector<4x512xf32>
    %443 = arith.mulf %2, %4 : vector<1x512xf32>
    %444 = vector.broadcast %443 : vector<1x512xf32> to vector<4x512xf32>
    %445 = arith.mulf %442, %444 : vector<4x512xf32>
    %446 = arith.addf %438, %445 : vector<4x512xf32>
    %c439_i32_221 = arith.constant 439 : i32
    %447 = tpu.dynamic_rotate %242 by %c439_i32_221 dim 1 : vector<2x512xf32>, i32 -> vector<2x512xf32>
    %c26_222 = arith.constant 26 : index
    %c0_223 = arith.constant 0 : index
    %c0_224 = arith.constant 0 : index
    %448 = vector.load %arg4[%c26_222, %c0_223, %c0_224] : memref<27x4x2xf32, #tpu.memory_space<vmem>>, vector<1x4x2xf32>
    %449 = vector.shape_cast %448 : vector<1x4x2xf32> to vector<4x2xf32>
    %cst_225 = arith.constant dense<0.000000e+00> : vector<4x512xf32>
    %450 = tpu.matmul %449, %447, %cst_225 {dimension_numbers = #tpu.dot_dimension_numbers<[1], [0], [0], [1], [0, 0, 1, 1], [], []>} : vector<4x2xf32>, vector<2x512xf32>, vector<4x512xf32> -> vector<4x512xf32>
    %451 = arith.mulf %2, %4 : vector<1x512xf32>
    %452 = arith.mulf %451, %6 : vector<1x512xf32>
    %453 = vector.broadcast %452 : vector<1x512xf32> to vector<4x512xf32>
    %454 = arith.mulf %450, %453 : vector<4x512xf32>
    %455 = arith.addf %446, %454 : vector<4x512xf32>
    %c0_226 = arith.constant 0 : index
    %c0_227 = arith.constant 0 : index
    %456 = vector.load %arg5[%c0_226, %c0_227] : memref<4x1xf32, #tpu.memory_space<vmem>>, vector<4x1xf32>
    %457 = vector.broadcast %456 : vector<4x1xf32> to vector<4x512xf32>
    %458 = arith.addf %455, %457 : vector<4x512xf32>
    %459 = vector.shape_cast %458 : vector<4x512xf32> to vector<1x4x512xf32>
    %c0_228 = arith.constant 0 : index
    %c0_229 = arith.constant 0 : index
    %c0_230 = arith.constant 0 : index
    %460 = vector.load %arg6[%c0_228, %c0_229, %c0_230] : memref<1x4x512xf32, #tpu.memory_space<vmem>>, vector<1x4x512xf32>
    tpu.vector_store %arg6[%c0_228, %c0_229, %c0_230], %459 {strides = array<i32>} : memref<1x4x512xf32, #tpu.memory_space<vmem>>, vector<1x4x512xf32>,
    return
  }
  func.func @transform_0(%arg0: i32) -> (i32, i32) {
    %c0_i32 = arith.constant 0 : i32
    %c0_i32_0 = arith.constant 0 : i32
    %c0_i32_1 = arith.constant 0 : i32
    return %c0_i32, %c0_i32_0 : i32, i32
  }
  func.func @transform_1(%arg0: i32) -> (i32, i32, i32) {
    %c0_i32 = arith.constant 0 : i32
    %c0_i32_0 = arith.constant 0 : i32
    %c0_i32_1 = arith.constant 0 : i32
    return %arg0, %c0_i32, %c0_i32_0 : i32, i32, i32
  }
  func.func @transform_2(%arg0: i32) -> (i32, i32, i32) {
    %c0_i32 = arith.constant 0 : i32
    %c0_i32_0 = arith.constant 0 : i32
    %c0_i32_1 = arith.constant 0 : i32
    %c0_i32_2 = arith.constant 0 : i32
    return %c0_i32, %c0_i32_0, %c0_i32_1 : i32, i32, i32
  }
  func.func @transform_3(%arg0: i32) -> (i32, i32, i32) {
    %c0_i32 = arith.constant 0 : i32
    %c0_i32_0 = arith.constant 0 : i32
    %c0_i32_1 = arith.constant 0 : i32
    %c0_i32_2 = arith.constant 0 : i32
    return %c0_i32, %c0_i32_0, %c0_i32_1 : i32, i32, i32
  }
  func.func @transform_4(%arg0: i32) -> (i32, i32) {
    %c0_i32 = arith.constant 0 : i32
    %c0_i32_0 = arith.constant 0 : i32
    %c0_i32_1 = arith.constant 0 : i32
    return %c0_i32, %c0_i32_0 : i32, i32
  }
  func.func @transform_5(%arg0: i32) -> (i32, i32, i32) {
    %c0_i32 = arith.constant 0 : i32
    %c0_i32_0 = arith.constant 0 : i32
    %c0_i32_1 = arith.constant 0 : i32
    return %arg0, %c0_i32, %c0_i32_0 : i32, i32, i32
  }
}

</mosaic_0001>

<llo_original>
// kernel: tpu_custom_call.1
$region0: #{tpu_custom_call.1}
  #allocation0 [shape = 'u32[]', space=smem, size = 0x4, offset = 0x4, fixed_abs, tag = 'smem constant byte address 0x4 - core index']
  #allocation1 [shape = 'u32[72,128]{1,0:T(1,128)}', space=vmem, size = 0x9000, scoped, tag = 'internal scratch']
  %s0 = inlined_call_operand.vmem [shape: f32[6,512], index: 0, kind: input, shape index: {}]
  %s1 = inlined_call_operand.vmem [shape: f32[2,4,512], index: 1, kind: input, shape index: {}]
  %s2 = inlined_call_operand.vmem [shape: f32[27,2,4], index: 2, kind: input, shape index: {}]
  %s3 = inlined_call_operand.vmem [shape: f32[27,4,2], index: 3, kind: input, shape index: {}]
  %s4 = inlined_call_operand.vmem [shape: f32[4,1], index: 4, kind: input, shape index: {}]
  %s5 = inlined_call_operand.hbm [shape: f32[2,4,512], index: 5, kind: output, shape index: {}]
  %s6 = sld [smem:[#allocation0]]
  $region53: #{tpu_custom_call.1} parent=0
    _
  %s8 = ssub.s32 1, %s6
  %s9 = scalar_select 0, %s8, %s6
  $region1: #{tpu_custom_call.1} parent=0
    #allocation2 [shape = 'u8[16384]{0}', space=vmem, size = 0x4000, scoped, tag = 'output window, operand 0']
    #allocation3 [shape = 's32[2]{0}', space=sflag, size = 0x8, scoped, tag = 'scoped memory for tpu_custom_call.1']
    %10 = vsyncpa [#allocation3], 0
    %s11 = scalar_lea.sflag [#allocation3], 1
    %12 = vsyncpa %s11, 0
    loop: start=0, step=1, limit=4
    $region2: #{tpu_custom_call.1} parent=1 // loop_pre_header
      _
    $region3: #{tpu_custom_call.1} parent=1 // loop_header
      %s14 = sphi 0, %s18
      %p15 = scmp.ge.s32.totalorder %s14, 4
      %s22 = sphi 0, %s22
      %s24 = sphi 0, %s22
      %s25 = sphi 0, %s24
      %s39 = sphi 0, %s25
      %s45 = sphi 0, %s47
      %s48 = sphi 0, %s45
      %s49 = sphi 0, %s48
      %s65 = sphi 0, %s49
      %s69 = sphi 0, %s69
      %s71 = sphi 0, %s69
      %s72 = sphi 0, %s71
      %s86 = sphi 0, %s72
      %s90 = sphi 0, %s90
      %s92 = sphi 0, %s90
      %s93 = sphi 0, %s92
      %s107 = sphi 0, %s93
      %s111 = sphi 0, %s111
      %s113 = sphi 0, %s111
      %s114 = sphi 0, %s113
      %s128 = sphi 0, %s114
      %s134 = sphi 0, %s136
      %s137 = sphi 0, %s134
      %s138 = sphi 0, %s137
      %s154 = sphi 0, %s138
    $region4: #{tpu_custom_call.1} parent=1 // loop_header_branch
      %17 = sbr.rel (%p15) target = $region8
    $region5: #{tpu_custom_call.1} parent=1 // loop_body
      %s19 = ssub.s32 %s14, 1
      %s20 = ssub.s32 %s14, 2
      %s21 = sadd.s32 %s14, 1
      %s23 = sadd.s32 %s22, 1
      %p26 = scmp.eq.s32.totalorder %s14, 1
      %p27 = scmp.ne.s32.totalorder %s22, %s24
      %p28 = scmp.eq.s32.totalorder %s14, 0
      %p29 = por %p27, %p28
      %p30 = scmp.ne.s32.totalorder %s22, %s24
      %p31 = scmp.eq.s32.totalorder %s19, 1
      %p32 = por %p30, %p31
      %p33 = scmp.ne.s32.totalorder %s24, %s25
      %p34 = scmp.eq.s32.totalorder %s19, 0
      %p35 = por %p33, %p34
      %p36 = scmp.ne.s32.totalorder %s24, %s25
      %p37 = scmp.eq.s32.totalorder %s20, 1
      %p38 = por %p36, %p37
      %p40 = scmp.ne.s32.totalorder %s25, %s39
      %p41 = scmp.eq.s32.totalorder %s20, 0
      %p42 = por %p40, %p41
      %s43 = ssub.s32 %s14, %s21
      %p44 = scmp.eq.s32.totalorder %s43, 0
      %s46 = sadd.s32 %s45, 1
      %s47 = scalar_select %p44, %s45, %s46
      %p50 = pneg %p44
      %p51 = scmp.eq.s32.totalorder %s14, 1
      %p52 = por %p50, %p51
      %p53 = scmp.ne.s32.totalorder %s45, %s48
      %p54 = scmp.eq.s32.totalorder %s14, 0
      %p55 = por %p53, %p54
      %p56 = scmp.ne.s32.totalorder %s45, %s48
      %p57 = scmp.eq.s32.totalorder %s19, 1
      %p58 = por %p56, %p57
      %p59 = scmp.ne.s32.totalorder %s48, %s49
      %p60 = scmp.eq.s32.totalorder %s19, 0
      %p61 = por %p59, %p60
      %p62 = scmp.ne.s32.totalorder %s48, %s49
      %p63 = scmp.eq.s32.totalorder %s20, 1
      %p64 = por %p62, %p63
      %p66 = scmp.ne.s32.totalorder %s49, %s65
      %p67 = scmp.eq.s32.totalorder %s20, 0
      %p68 = por %p66, %p67
      %s70 = sadd.s32 %s69, 1
      %p73 = scmp.eq.s32.totalorder %s14, 1
      %p74 = scmp.ne.s32.totalorder %s69, %s71
      %p75 = scmp.eq.s32.totalorder %s14, 0
      %p76 = por %p74, %p75
      %p77 = scmp.ne.s32.totalorder %s69, %s71
      %p78 = scmp.eq.s32.totalorder %s19, 1
      %p79 = por %p77, %p78
      %p80 = scmp.ne.s32.totalorder %s71, %s72
      %p81 = scmp.eq.s32.totalorder %s19, 0
      %p82 = por %p80, %p81
      %p83 = scmp.ne.s32.totalorder %s71, %s72
      %p84 = scmp.eq.s32.totalorder %s20, 1
      %p85 = por %p83, %p84
      %p87 = scmp.ne.s32.totalorder %s72, %s86
      %p88 = scmp.eq.s32.totalorder %s20, 0
      %p89 = por %p87, %p88
      %s91 = sadd.s32 %s90, 1
      %p94 = scmp.eq.s32.totalorder %s14, 1
      %p95 = scmp.ne.s32.totalorder %s90, %s92
      %p96 = scmp.eq.s32.totalorder %s14, 0
      %p97 = por %p95, %p96
      %p98 = scmp.ne.s32.totalorder %s90, %s92
      %p99 = scmp.eq.s32.totalorder %s19, 1
      %p100 = por %p98, %p99
      %p101 = scmp.ne.s32.totalorder %s92, %s93
      %p102 = scmp.eq.s32.totalorder %s19, 0
      %p103 = por %p101, %p102
      %p104 = scmp.ne.s32.totalorder %s92, %s93
      %p105 = scmp.eq.s32.totalorder %s20, 1
      %p106 = por %p104, %p105
      %p108 = scmp.ne.s32.totalorder %s93, %s107
      %p109 = scmp.eq.s32.totalorder %s20, 0
      %p110 = por %p108, %p109
      %s112 = sadd.s32 %s111, 1
      %p115 = scmp.eq.s32.totalorder %s14, 1
      %p116 = scmp.ne.s32.totalorder %s111, %s113
      %p117 = scmp.eq.s32.totalorder %s14, 0
      %p118 = por %p116, %p117
      %p119 = scmp.ne.s32.totalorder %s111, %s113
      %p120 = scmp.eq.s32.totalorder %s19, 1
      %p121 = por %p119, %p120
      %p122 = scmp.ne.s32.totalorder %s113, %s114
      %p123 = scmp.eq.s32.totalorder %s19, 0
      %p124 = por %p122, %p123
      %p125 = scmp.ne.s32.totalorder %s113, %s114
      %p126 = scmp.eq.s32.totalorder %s20, 1
      %p127 = por %p125, %p126
      %p129 = scmp.ne.s32.totalorder %s114, %s128
      %p130 = scmp.eq.s32.totalorder %s20, 0
      %p131 = por %p129, %p130
      %s132 = ssub.s32 %s14, %s21
      %p133 = scmp.eq.s32.totalorder %s132, 0
      %s135 = sadd.s32 %s134, 1
      %s136 = scalar_select %p133, %s134, %s135
      %p139 = pneg %p133
      %p140 = scmp.eq.s32.totalorder %s14, 1
      %p141 = por %p139, %p140
      %p142 = scmp.ne.s32.totalorder %s134, %s137
      %p143 = scmp.eq.s32.totalorder %s14, 0
      %p144 = por %p142, %p143
      %p145 = scmp.ne.s32.totalorder %s134, %s137
      %p146 = scmp.eq.s32.totalorder %s19, 1
      %p147 = por %p145, %p146
      %p148 = scmp.ne.s32.totalorder %s137, %s138
      %p149 = scmp.eq.s32.totalorder %s19, 0
      %p150 = por %p148, %p149
      %p151 = scmp.ne.s32.totalorder %s137, %s138
      %p152 = scmp.eq.s32.totalorder %s20, 1
      %p153 = por %p151, %p152
      %p155 = scmp.ne.s32.totalorder %s138, %s154
      %p156 = scmp.eq.s32.totalorder %s20, 0
      %p157 = por %p155, %p156
      %p158 = scmp.le.s32.totalorder 1, %s14
      %p159 = scmp.lt.s32.totalorder %s14, 3
      %p160 = pnand %p158, %p159
      %p161 = pneg %p160
      // Predicated region
      $region9: #{tpu_custom_call.1} parent=5 // pred_check
        _
      $region10: #{tpu_custom_call.1} parent=5 // pred_check_branch
        %163 = sbr.rel (%p160) target = $region12
      $region11: #{tpu_custom_call.1} parent=5 // pred_region
        %s164 = ssub.s32 %s14, 1
        // Predicated region
        $region13: #{tpu_custom_call.1} parent=11 // pred_check
          %p165 = pneg %p35
        $region14: #{tpu_custom_call.1} parent=11 // pred_check_branch
          %167 = sbr.rel (%p165) target = $region16
        $region15: #{tpu_custom_call.1} parent=11 // pred_region
          _
        $region16: #{tpu_custom_call.1} parent=11 // pred_fallthru
          _
        // Predicated region
        $region17: #{tpu_custom_call.1} parent=11 // pred_check
          %p168 = pneg %p82
        $region18: #{tpu_custom_call.1} parent=11 // pred_check_branch
          %170 = sbr.rel (%p168) target = $region20
        $region19: #{tpu_custom_call.1} parent=11 // pred_region
          _
        $region20: #{tpu_custom_call.1} parent=11 // pred_fallthru
          _
        // Predicated region
        $region21: #{tpu_custom_call.1} parent=11 // pred_check
          %p171 = pneg %p103
        $region22: #{tpu_custom_call.1} parent=11 // pred_check_branch
          %173 = sbr.rel (%p171) target = $region24
        $region23: #{tpu_custom_call.1} parent=11 // pred_region
          _
        $region24: #{tpu_custom_call.1} parent=11 // pred_fallthru
          _
        // Predicated region
        $region25: #{tpu_custom_call.1} parent=11 // pred_check
          %p174 = pneg %p124
        $region26: #{tpu_custom_call.1} parent=11 // pred_check_branch
          %176 = sbr.rel (%p174) target = $region28
        $region27: #{tpu_custom_call.1} parent=11 // pred_region
          _
        $region28: #{tpu_custom_call.1} parent=11 // pred_fallthru
          _
      $region12: #{tpu_custom_call.1} parent=5 // pred_fallthru
        _
      %p177 = scmp.lt.s32.totalorder %s14, 2
      // Predicated region
      $region29: #{tpu_custom_call.1} parent=5 // pred_check
        %p178 = pneg %p177
      $region30: #{tpu_custom_call.1} parent=5 // pred_check_branch
        %180 = sbr.rel (%p178) target = $region32
      $region31: #{tpu_custom_call.1} parent=5 // pred_region
        // Predicated region
        $region33: #{tpu_custom_call.1} parent=31 // pred_check
          %p181 = pneg %p55
        $region34: #{tpu_custom_call.1} parent=31 // pred_check_branch
          %183 = sbr.rel (%p181) target = $region36
        $region35: #{tpu_custom_call.1} parent=31 // pred_region
          %p184 = scmp.lt.s32.totalorder %s14, 1
          %s185 = scalar_select %p184, %s14, 1
          %s186 = smul.addr %s185, 4
          %s187 = smul.addr %s186, 4
          %s188 = scalar_lea.vmem %s1, %s187
        $region36: #{tpu_custom_call.1} parent=31 // pred_fallthru
          _
      $region32: #{tpu_custom_call.1} parent=5 // pred_fallthru
        _
      %p189 = scmp.le.s32.totalorder 1, %s14
      %p190 = scmp.lt.s32.totalorder %s14, 3
      %p191 = pnand %p189, %p190
      %p192 = pneg %p191
      // Predicated region
      $region37: #{tpu_custom_call.1} parent=5 // pred_check
        _
      $region38: #{tpu_custom_call.1} parent=5 // pred_check_branch
        %194 = sbr.rel (%p191) target = $region40
      $region39: #{tpu_custom_call.1} parent=5 // pred_region
        %s195 = ssub.s32 %s14, 1
        %p196 = pneg %p35
        %p197 = pneg %p32
        %p198 = scmp.lt.s32.totalorder %s19, 1
        %s199 = scalar_select %p198, %s19, 1
        %s200 = smul.addr %s199, 4
        %s201 = smul.addr %s200, 4
        %s202 = scalar_lea.vmem %s1, %s201
        %p203 = pneg %p61
        %p204 = pneg %p58
        %p205 = pneg %p82
        %p206 = pneg %p79
        %p207 = pneg %p103
        %p208 = pneg %p100
        %p209 = pneg %p124
        %p210 = pneg %p121
        %p211 = pneg %p150
        %p212 = pneg %p147
        %s213 = sand.u32 %s137, 1
        %s214 = scalar_lea.sflag [#allocation3], %s213
        %s215 = sand.u32 %s137, 1
        %s216 = smul.addr %s215, 16
        %s217 = scalar_lea.vmem [#allocation2], %s216
        %p218 = scmp.lt.s32.totalorder %s19, 1
        %s219 = scalar_select %p218, %s19, 1
        %s220 = smul.addr %s219, 4
        %s221 = smul.addr %s220, 4
        %s222 = scalar_lea.vmem %s1, %s221
        %v223 = vld [vmem:[%s0] sm:$0x3f]
        %v224 = vld [vmem:[%s0 + $0x8] sm:$0x3f]
        %v225 = vld [vmem:[%s0 + $0x10] sm:$0x3f]
        %v226 = vld [vmem:[%s0 + $0x18] sm:$0x3f]
        %v227 = vld [vmem:[%s222] sm:$0xff]
        %v228 = vld [vmem:[%s222 + $0x8] sm:$0xff]
        %231 = vst [vmem:[#allocation1] ss:$2 sm:$0xff] %v227
        %s232 = scalar_lea.vmem [#allocation1], 16
        %233 = vst [vmem:[%s232] ss:$2 sm:$0xff] %v228
        %v234 = vld.sshfl [vmem:[#allocation1] sm:$0xff pattern:$0x75316420]
        %v235 = vld.sshfl [vmem:[#allocation1 + $0x8] sm:$0xff pattern:$0x75316420]
        %v236 = vld.sshfl [vmem:[#allocation1 + $0x10] sm:$0xff pattern:$0x75316420]
        %v237 = vld.sshfl [vmem:[#allocation1 + $0x18] sm:$0xff pattern:$0x75316420]
        %242 = vrot.lane.b32.xlu0 %v234, 73
        %v243 = vpop.permute.xlu0 %242
        %244 = vrot.lane.b32.xlu0 %v235, 73
        %v245 = vpop.permute.xlu0 %244
        %246 = vrot.lane.b32.xlu0 %v236, 73
        %v247 = vpop.permute.xlu0 %246
        %248 = vrot.lane.b32.xlu0 %v237, 73
        %v249 = vpop.permute.xlu0 %248
        %v250 = vlaneseq
        %v251 = vand.u32 %v250, 127
        %vm252 = vcmp.lt.s32.totalorder %v251, 73
        %v253 = vsel %vm252, %v247, %v249
        %v254 = vsel %vm252, %v245, %v247
        %v255 = vsel %vm252, %v243, %v245
        %v256 = vsel %vm252, %v249, %v243
        %v257 = vld [vmem:[%s2] sm:$0x3]
        %vm258 = vcmask 31744
        %v260 = vsel %vm258, %v257, 0
        %vm262 = vcmask 1043456
        %v264 = vsel %vm262, %v256, 0
        %v267 = vsel %vm262, %v255, 0
        %v270 = vsel %vm262, %v254, 0
        %v273 = vsel %vm262, %v253, 0
        %275 = vmatpush.msra.mxu0 0.0
        %276 = vmatpush.msra.mxu0 0.0
        %277 = vmatpush.msra.mxu0 0.0
        %278 = vmatpush.msra.mxu0 0.0
        %279 = vmatpush.msra.mxu0 0.0
        %280 = vmatpush.msra.mxu0 0.0
        %281 = vmatpush.msra.mxu0 0.0
        %282 = vmatpush.msra.mxu0 0.0
        %283 = vmatpush.msra.mxu0 0.0
        %284 = vmatpush.msra.mxu0 0.0
        %285 = vmatpush.msra.mxu0 0.0
        %286 = vmatpush.msra.mxu0 0.0
        %287 = vmatpush.msra.mxu0 0.0
        %288 = vmatpush.msra.mxu0 0.0
        %289 = vmatpush.msra.mxu0 0.0
        %290 = vmatpush.msra.mxu0 %v264
        %291 = vmatmul.f32.gmra.mxu0 %v260
        %v292 = vpop.f32.mrf.mxu0
        %v293 = vadd.f32 0.0, %v292
        %294 = vdwg.mxu0
        %295 = vmatpush.msra.mxu0 0.0
        %296 = vmatpush.msra.mxu0 0.0
        %297 = vmatpush.msra.mxu0 0.0
        %298 = vmatpush.msra.mxu0 0.0
        %299 = vmatpush.msra.mxu0 0.0
        %300 = vmatpush.msra.mxu0 0.0
        %301 = vmatpush.msra.mxu0 0.0
        %302 = vmatpush.msra.mxu0 0.0
        %303 = vmatpush.msra.mxu0 0.0
        %304 = vmatpush.msra.mxu0 0.0
        %305 = vmatpush.msra.mxu0 0.0
        %306 = vmatpush.msra.mxu0 0.0
        %307 = vmatpush.msra.mxu0 0.0
        %308 = vmatpush.msra.mxu0 0.0
        %309 = vmatpush.msra.mxu0 0.0
        %310 = vmatpush.msra.mxu0 %v267
        %311 = vmatmul.f32.gmra.mxu0 %v260
        %v312 = vpop.f32.mrf.mxu0
        %v313 = vadd.f32 0.0, %v312
        %314 = vdwg.mxu0
        %315 = vmatpush.msra.mxu0 0.0
        %316 = vmatpush.msra.mxu0 0.0
        %317 = vmatpush.msra.mxu0 0.0
        %318 = vmatpush.msra.mxu0 0.0
        %319 = vmatpush.msra.mxu0 0.0
        %320 = vmatpush.msra.mxu0 0.0
        %321 = vmatpush.msra.mxu0 0.0
        %322 = vmatpush.msra.mxu0 0.0
        %323 = vmatpush.msra.mxu0 0.0
        %324 = vmatpush.msra.mxu0 0.0
        %325 = vmatpush.msra.mxu0 0.0
        %326 = vmatpush.msra.mxu0 0.0
        %327 = vmatpush.msra.mxu0 0.0
        %328 = vmatpush.msra.mxu0 0.0
        %329 = vmatpush.msra.mxu0 0.0
        %330 = vmatpush.msra.mxu0 %v270
        %331 = vmatmul.f32.gmra.mxu0 %v260
        %v332 = vpop.f32.mrf.mxu0
        %v333 = vadd.f32 0.0, %v332
        %334 = vdwg.mxu0
        %335 = vmatpush.msra.mxu0 0.0
        %336 = vmatpush.msra.mxu0 0.0
        %337 = vmatpush.msra.mxu0 0.0
        %338 = vmatpush.msra.mxu0 0.0
        %339 = vmatpush.msra.mxu0 0.0
        %340 = vmatpush.msra.mxu0 0.0
        %341 = vmatpush.msra.mxu0 0.0
        %342 = vmatpush.msra.mxu0 0.0
        %343 = vmatpush.msra.mxu0 0.0
        %344 = vmatpush.msra.mxu0 0.0
        %345 = vmatpush.msra.mxu0 0.0
        %346 = vmatpush.msra.mxu0 0.0
        %347 = vmatpush.msra.mxu0 0.0
        %348 = vmatpush.msra.mxu0 0.0
        %349 = vmatpush.msra.mxu0 0.0
        %350 = vmatpush.msra.mxu0 %v273
        %351 = vmatmul.f32.gmra.mxu0 %v260
        %v352 = vpop.f32.mrf.mxu0
        %v353 = vadd.f32 0.0, %v352
        %354 = vdwg.mxu0
        %v359 = vrot.slane %v223, 2
        %v360 = vrot.slane %v224, 2
        %v361 = vrot.slane %v225, 2
        %v362 = vrot.slane %v226, 2
        %v367 = vmul.f32 %v223, %v359
        %v368 = vmul.f32 %v224, %v360
        %v369 = vmul.f32 %v225, %v361
        %v370 = vmul.f32 %v226, %v362
        %v371 = vrot.slane %v223, 4
        %v372 = vrot.slane %v224, 4
        %v373 = vrot.slane %v225, 4
        %v374 = vrot.slane %v226, 4
        %v379 = vmul.f32 %v367, %v371
        %v380 = vmul.f32 %v368, %v372
        %v381 = vmul.f32 %v369, %v373
        %v382 = vmul.f32 %v370, %v374
        %v383 = vperm.slane %v379, 0
        %v384 = vperm.slane %v380, 0
        %v385 = vperm.slane %v381, 0
        %v386 = vperm.slane %v382, 0
        %v387 = vmul.f32 %v293, %v383
        %v388 = vmul.f32 %v313, %v384
        %v389 = vmul.f32 %v333, %v385
        %v390 = vmul.f32 %v353, %v386
        %391 = vst [vmem:[#allocation1] ss:$2 sm:$0xff] %v227
        %s392 = scalar_lea.vmem [#allocation1], 16
        %393 = vst [vmem:[%s392] ss:$2 sm:$0xff] %v228
        %v394 = vld.sshfl [vmem:[#allocation1] sm:$0xff pattern:$0x75316420]
        %v395 = vld.sshfl [vmem:[#allocation1 + $0x8] sm:$0xff pattern:$0x75316420]
        %v396 = vld.sshfl [vmem:[#allocation1 + $0x10] sm:$0xff pattern:$0x75316420]
        %v397 = vld.sshfl [vmem:[#allocation1 + $0x18] sm:$0xff pattern:$0x75316420]
        %402 = vrot.lane.b32.xlu0 %v394, 72
        %v403 = vpop.permute.xlu0 %402
        %404 = vrot.lane.b32.xlu0 %v395, 72
        %v405 = vpop.permute.xlu0 %404
        %406 = vrot.lane.b32.xlu0 %v396, 72
        %v407 = vpop.permute.xlu0 %406
        %408 = vrot.lane.b32.xlu0 %v397, 72
        %v409 = vpop.permute.xlu0 %408
        %vm410 = vcmp.lt.s32.totalorder %v251, 72
        %v411 = vsel %vm410, %v407, %v409
        %v412 = vsel %vm410, %v405, %v407
        %v413 = vsel %vm410, %v403, %v405
        %v414 = vsel %vm410, %v409, %v403
        %s415 = scalar_lea.vmem %s2, 2
        %v416 = vld [vmem:[%s415] sm:$0x3]
        %v418 = vsel %vm258, %v416, 0
        %v421 = vsel %vm262, %v414, 0
        %v424 = vsel %vm262, %v413, 0
        %v427 = vsel %vm262, %v412, 0
        %v430 = vsel %vm262, %v411, 0
        %432 = vmatpush.msra.mxu0 0.0
        %433 = vmatpush.msra.mxu0 0.0
        %434 = vmatpush.msra.mxu0 0.0
        %435 = vmatpush.msra.mxu0 0.0
        %436 = vmatpush.msra.mxu0 0.0
        %437 = vmatpush.msra.mxu0 0.0
        %438 = vmatpush.msra.mxu0 0.0
        %439 = vmatpush.msra.mxu0 0.0
        %440 = vmatpush.msra.mxu0 0.0
        %441 = vmatpush.msra.mxu0 0.0
        %442 = vmatpush.msra.mxu0 0.0
        %443 = vmatpush.msra.mxu0 0.0
        %444 = vmatpush.msra.mxu0 0.0
        %445 = vmatpush.msra.mxu0 0.0
        %446 = vmatpush.msra.mxu0 0.0
        %447 = vmatpush.msra.mxu0 %v421
        %448 = vmatmul.f32.gmra.mxu0 %v418
        %v449 = vpop.f32.mrf.mxu0
        %v450 = vadd.f32 0.0, %v449
        %451 = vdwg.mxu0
        %452 = vmatpush.msra.mxu0 0.0
        %453 = vmatpush.msra.mxu0 0.0
        %454 = vmatpush.msra.mxu0 0.0
        %455 = vmatpush.msra.mxu0 0.0
        %456 = vmatpush.msra.mxu0 0.0
        %457 = vmatpush.msra.mxu0 0.0
        %458 = vmatpush.msra.mxu0 0.0
        %459 = vmatpush.msra.mxu0 0.0
        %460 = vmatpush.msra.mxu0 0.0
        %461 = vmatpush.msra.mxu0 0.0
        %462 = vmatpush.msra.mxu0 0.0
        %463 = vmatpush.msra.mxu0 0.0
        %464 = vmatpush.msra.mxu0 0.0
        %465 = vmatpush.msra.mxu0 0.0
        %466 = vmatpush.msra.mxu0 0.0
        %467 = vmatpush.msra.mxu0 %v424
        %468 = vmatmul.f32.gmra.mxu0 %v418
        %v469 = vpop.f32.mrf.mxu0
        %v470 = vadd.f32 0.0, %v469
        %471 = vdwg.mxu0
        %472 = vmatpush.msra.mxu0 0.0
        %473 = vmatpush.msra.mxu0 0.0
        %474 = vmatpush.msra.mxu0 0.0
        %475 = vmatpush.msra.mxu0 0.0
        %476 = vmatpush.msra.mxu0 0.0
        %477 = vmatpush.msra.mxu0 0.0
        %478 = vmatpush.msra.mxu0 0.0
        %479 = vmatpush.msra.mxu0 0.0
        %480 = vmatpush.msra.mxu0 0.0
        %481 = vmatpush.msra.mxu0 0.0
        %482 = vmatpush.msra.mxu0 0.0
        %483 = vmatpush.msra.mxu0 0.0
        %484 = vmatpush.msra.mxu0 0.0
        %485 = vmatpush.msra.mxu0 0.0
        %486 = vmatpush.msra.mxu0 0.0
        %487 = vmatpush.msra.mxu0 %v427
        %488 = vmatmul.f32.gmra.mxu0 %v418
        %v489 = vpop.f32.mrf.mxu0
        %v490 = vadd.f32 0.0, %v489
        %491 = vdwg.mxu0
        %492 = vmatpush.msra.mxu0 0.0
        %493 = vmatpush.msra.mxu0 0.0
        %494 = vmatpush.msra.mxu0 0.0
        %495 = vmatpush.msra.mxu0 0.0
        %496 = vmatpush.msra.mxu0 0.0
        %497 = vmatpush.msra.mxu0 0.0
        %498 = vmatpush.msra.mxu0 0.0
        %499 = vmatpush.msra.mxu0 0.0
        %500 = vmatpush.msra.mxu0 0.0
        %501 = vmatpush.msra.mxu0 0.0
        %502 = vmatpush.msra.mxu0 0.0
        %503 = vmatpush.msra.mxu0 0.0
        %504 = vmatpush.msra.mxu0 0.0
        %505 = vmatpush.msra.mxu0 0.0
        %506 = vmatpush.msra.mxu0 0.0
        %507 = vmatpush.msra.mxu0 %v430
        %508 = vmatmul.f32.gmra.mxu0 %v418
        %v509 = vpop.f32.mrf.mxu0
        %v510 = vadd.f32 0.0, %v509
        %511 = vdwg.mxu0
        %v512 = vperm.slane %v367, 0
        %v513 = vperm.slane %v368, 0
        %v514 = vperm.slane %v369, 0
        %v515 = vperm.slane %v370, 0
        %v516 = vmul.f32 %v450, %v512
        %v517 = vmul.f32 %v470, %v513
        %v518 = vmul.f32 %v490, %v514
        %v519 = vmul.f32 %v510, %v515
        %v520 = vadd.f32 %v387, %v516
        %v521 = vadd.f32 %v388, %v517
        %v522 = vadd.f32 %v389, %v518
        %v523 = vadd.f32 %v390, %v519
        %524 = vst [vmem:[#allocation1] ss:$2 sm:$0xff] %v227
        %s525 = scalar_lea.vmem [#allocation1], 16
        %526 = vst [vmem:[%s525] ss:$2 sm:$0xff] %v228
        %v527 = vld.sshfl [vmem:[#allocation1] sm:$0xff pattern:$0x75316420]
        %v528 = vld.sshfl [vmem:[#allocation1 + $0x8] sm:$0xff pattern:$0x75316420]
        %v529 = vld.sshfl [vmem:[#allocation1 + $0x10] sm:$0xff pattern:$0x75316420]
        %v530 = vld.sshfl [vmem:[#allocation1 + $0x18] sm:$0xff pattern:$0x75316420]
        %535 = vrot.lane.b32.xlu0 %v527, 71
        %v536 = vpop.permute.xlu0 %535
        %537 = vrot.lane.b32.xlu0 %v528, 71
        %v538 = vpop.permute.xlu0 %537
        %539 = vrot.lane.b32.xlu0 %v529, 71
        %v540 = vpop.permute.xlu0 %539
        %541 = vrot.lane.b32.xlu0 %v530, 71
        %v542 = vpop.permute.xlu0 %541
        %vm543 = vcmp.lt.s32.totalorder %v251, 71
        %v544 = vsel %vm543, %v540, %v542
        %v545 = vsel %vm543, %v538, %v540
        %v546 = vsel %vm543, %v536, %v538
        %v547 = vsel %vm543, %v542, %v536
        %s548 = scalar_lea.vmem %s2, 4
        %v549 = vld [vmem:[%s548] sm:$0x3]
        %v551 = vsel %vm258, %v549, 0
        %v554 = vsel %vm262, %v547, 0
        %v557 = vsel %vm262, %v546, 0
        %v560 = vsel %vm262, %v545, 0
        %v563 = vsel %vm262, %v544, 0
        %565 = vmatpush.msra.mxu0 0.0
        %566 = vmatpush.msra.mxu0 0.0
        %567 = vmatpush.msra.mxu0 0.0
        %568 = vmatpush.msra.mxu0 0.0
        %569 = vmatpush.msra.mxu0 0.0
        %570 = vmatpush.msra.mxu0 0.0
        %571 = vmatpush.msra.mxu0 0.0
        %572 = vmatpush.msra.mxu0 0.0
        %573 = vmatpush.msra.mxu0 0.0
        %574 = vmatpush.msra.mxu0 0.0
        %575 = vmatpush.msra.mxu0 0.0
        %576 = vmatpush.msra.mxu0 0.0
        %577 = vmatpush.msra.mxu0 0.0
        %578 = vmatpush.msra.mxu0 0.0
        %579 = vmatpush.msra.mxu0 0.0
        %580 = vmatpush.msra.mxu0 %v554
        %581 = vmatmul.f32.gmra.mxu0 %v551
        %v582 = vpop.f32.mrf.mxu0
        %v583 = vadd.f32 0.0, %v582
        %584 = vdwg.mxu0
        %585 = vmatpush.msra.mxu0 0.0
        %586 = vmatpush.msra.mxu0 0.0
        %587 = vmatpush.msra.mxu0 0.0
        %588 = vmatpush.msra.mxu0 0.0
        %589 = vmatpush.msra.mxu0 0.0
        %590 = vmatpush.msra.mxu0 0.0
        %591 = vmatpush.msra.mxu0 0.0
        %592 = vmatpush.msra.mxu0 0.0
        %593 = vmatpush.msra.mxu0 0.0
        %594 = vmatpush.msra.mxu0 0.0
        %595 = vmatpush.msra.mxu0 0.0
        %596 = vmatpush.msra.mxu0 0.0
        %597 = vmatpush.msra.mxu0 0.0
        %598 = vmatpush.msra.mxu0 0.0
        %599 = vmatpush.msra.mxu0 0.0
        %600 = vmatpush.msra.mxu0 %v557
        %601 = vmatmul.f32.gmra.mxu0 %v551
        %v602 = vpop.f32.mrf.mxu0
        %v603 = vadd.f32 0.0, %v602
        %604 = vdwg.mxu0
        %605 = vmatpush.msra.mxu0 0.0
        %606 = vmatpush.msra.mxu0 0.0
        %607 = vmatpush.msra.mxu0 0.0
        %608 = vmatpush.msra.mxu0 0.0
        %609 = vmatpush.msra.mxu0 0.0
        %610 = vmatpush.msra.mxu0 0.0
        %611 = vmatpush.msra.mxu0 0.0
        %612 = vmatpush.msra.mxu0 0.0
        %613 = vmatpush.msra.mxu0 0.0
        %614 = vmatpush.msra.mxu0 0.0
        %615 = vmatpush.msra.mxu0 0.0
        %616 = vmatpush.msra.mxu0 0.0
        %617 = vmatpush.msra.mxu0 0.0
        %618 = vmatpush.msra.mxu0 0.0
        %619 = vmatpush.msra.mxu0 0.0
        %620 = vmatpush.msra.mxu0 %v560
        %621 = vmatmul.f32.gmra.mxu0 %v551
        %v622 = vpop.f32.mrf.mxu0
        %v623 = vadd.f32 0.0, %v622
        %624 = vdwg.mxu0
        %625 = vmatpush.msra.mxu0 0.0
        %626 = vmatpush.msra.mxu0 0.0
        %627 = vmatpush.msra.mxu0 0.0
        %628 = vmatpush.msra.mxu0 0.0
        %629 = vmatpush.msra.mxu0 0.0
        %630 = vmatpush.msra.mxu0 0.0
        %631 = vmatpush.msra.mxu0 0.0
        %632 = vmatpush.msra.mxu0 0.0
        %633 = vmatpush.msra.mxu0 0.0
        %634 = vmatpush.msra.mxu0 0.0
        %635 = vmatpush.msra.mxu0 0.0
        %636 = vmatpush.msra.mxu0 0.0
        %637 = vmatpush.msra.mxu0 0.0
        %638 = vmatpush.msra.mxu0 0.0
        %639 = vmatpush.msra.mxu0 0.0
        %640 = vmatpush.msra.mxu0 %v563
        %641 = vmatmul.f32.gmra.mxu0 %v551
        %v642 = vpop.f32.mrf.mxu0
        %v643 = vadd.f32 0.0, %v642
        %644 = vdwg.mxu0
        %v645 = vrot.slane %v223, 5
        %v646 = vrot.slane %v224, 5
        %v647 = vrot.slane %v225, 5
        %v648 = vrot.slane %v226, 5
        %v653 = vmul.f32 %v367, %v645
        %v654 = vmul.f32 %v368, %v646
        %v655 = vmul.f32 %v369, %v647
        %v656 = vmul.f32 %v370, %v648
        %v657 = vperm.slane %v653, 0
        %v658 = vperm.slane %v654, 0
        %v659 = vperm.slane %v655, 0
        %v660 = vperm.slane %v656, 0
        %v661 = vmul.f32 %v583, %v657
        %v662 = vmul.f32 %v603, %v658
        %v663 = vmul.f32 %v623, %v659
        %v664 = vmul.f32 %v643, %v660
        %v665 = vadd.f32 %v520, %v661
        %v666 = vadd.f32 %v521, %v662
        %v667 = vadd.f32 %v522, %v663
        %v668 = vadd.f32 %v523, %v664
        %669 = vst [vmem:[#allocation1] ss:$2 sm:$0xff] %v227
        %s670 = scalar_lea.vmem [#allocation1], 16
        %671 = vst [vmem:[%s670] ss:$2 sm:$0xff] %v228
        %v672 = vld.sshfl [vmem:[#allocation1] sm:$0xff pattern:$0x75316420]
        %v673 = vld.sshfl [vmem:[#allocation1 + $0x8] sm:$0xff pattern:$0x75316420]
        %v674 = vld.sshfl [vmem:[#allocation1 + $0x10] sm:$0xff pattern:$0x75316420]
        %v675 = vld.sshfl [vmem:[#allocation1 + $0x18] sm:$0xff pattern:$0x75316420]
        %680 = vrot.lane.b32.xlu0 %v672, 65
        %v681 = vpop.permute.xlu0 %680
        %682 = vrot.lane.b32.xlu0 %v673, 65
        %v683 = vpop.permute.xlu0 %682
        %684 = vrot.lane.b32.xlu0 %v674, 65
        %v685 = vpop.permute.xlu0 %684
        %686 = vrot.lane.b32.xlu0 %v675, 65
        %v687 = vpop.permute.xlu0 %686
        %vm688 = vcmp.lt.s32.totalorder %v251, 65
        %v689 = vsel %vm688, %v685, %v687
        %v690 = vsel %vm688, %v683, %v685
        %v691 = vsel %vm688, %v681, %v683
        %v692 = vsel %vm688, %v687, %v681
        %s693 = scalar_lea.vmem %s2, 6
        %v694 = vld [vmem:[%s693] sm:$0x3]
        %v696 = vsel %vm258, %v694, 0
        %v699 = vsel %vm262, %v692, 0
        %v702 = vsel %vm262, %v691, 0
        %v705 = vsel %vm262, %v690, 0
        %v708 = vsel %vm262, %v689, 0
        %710 = vmatpush.msra.mxu0 0.0
        %711 = vmatpush.msra.mxu0 0.0
        %712 = vmatpush.msra.mxu0 0.0
        %713 = vmatpush.msra.mxu0 0.0
        %714 = vmatpush.msra.mxu0 0.0
        %715 = vmatpush.msra.mxu0 0.0
        %716 = vmatpush.msra.mxu0 0.0
        %717 = vmatpush.msra.mxu0 0.0
        %718 = vmatpush.msra.mxu0 0.0
        %719 = vmatpush.msra.mxu0 0.0
        %720 = vmatpush.msra.mxu0 0.0
        %721 = vmatpush.msra.mxu0 0.0
        %722 = vmatpush.msra.mxu0 0.0
        %723 = vmatpush.msra.mxu0 0.0
        %724 = vmatpush.msra.mxu0 0.0
        %725 = vmatpush.msra.mxu0 %v699
        %726 = vmatmul.f32.gmra.mxu0 %v696
        %v727 = vpop.f32.mrf.mxu0
        %v728 = vadd.f32 0.0, %v727
        %729 = vdwg.mxu0
        %730 = vmatpush.msra.mxu0 0.0
        %731 = vmatpush.msra.mxu0 0.0
        %732 = vmatpush.msra.mxu0 0.0
        %733 = vmatpush.msra.mxu0 0.0
        %734 = vmatpush.msra.mxu0 0.0
        %735 = vmatpush.msra.mxu0 0.0
        %736 = vmatpush.msra.mxu0 0.0
        %737 = vmatpush.msra.mxu0 0.0
        %738 = vmatpush.msra.mxu0 0.0
        %739 = vmatpush.msra.mxu0 0.0
        %740 = vmatpush.msra.mxu0 0.0
        %741 = vmatpush.msra.mxu0 0.0
        %742 = vmatpush.msra.mxu0 0.0
        %743 = vmatpush.msra.mxu0 0.0
        %744 = vmatpush.msra.mxu0 0.0
        %745 = vmatpush.msra.mxu0 %v702
        %746 = vmatmul.f32.gmra.mxu0 %v696
        %v747 = vpop.f32.mrf.mxu0
        %v748 = vadd.f32 0.0, %v747
        %749 = vdwg.mxu0
        %750 = vmatpush.msra.mxu0 0.0
        %751 = vmatpush.msra.mxu0 0.0
        %752 = vmatpush.msra.mxu0 0.0
        %753 = vmatpush.msra.mxu0 0.0
        %754 = vmatpush.msra.mxu0 0.0
        %755 = vmatpush.msra.mxu0 0.0
        %756 = vmatpush.msra.mxu0 0.0
        %757 = vmatpush.msra.mxu0 0.0
        %758 = vmatpush.msra.mxu0 0.0
        %759 = vmatpush.msra.mxu0 0.0
        %760 = vmatpush.msra.mxu0 0.0
        %761 = vmatpush.msra.mxu0 0.0
        %762 = vmatpush.msra.mxu0 0.0
        %763 = vmatpush.msra.mxu0 0.0
        %764 = vmatpush.msra.mxu0 0.0
        %765 = vmatpush.msra.mxu0 %v705
        %766 = vmatmul.f32.gmra.mxu0 %v696
        %v767 = vpop.f32.mrf.mxu0
        %v768 = vadd.f32 0.0, %v767
        %769 = vdwg.mxu0
        %770 = vmatpush.msra.mxu0 0.0
        %771 = vmatpush.msra.mxu0 0.0
        %772 = vmatpush.msra.mxu0 0.0
        %773 = vmatpush.msra.mxu0 0.0
        %774 = vmatpush.msra.mxu0 0.0
        %775 = vmatpush.msra.mxu0 0.0
        %776 = vmatpush.msra.mxu0 0.0
        %777 = vmatpush.msra.mxu0 0.0
        %778 = vmatpush.msra.mxu0 0.0
        %779 = vmatpush.msra.mxu0 0.0
        %780 = vmatpush.msra.mxu0 0.0
        %781 = vmatpush.msra.mxu0 0.0
        %782 = vmatpush.msra.mxu0 0.0
        %783 = vmatpush.msra.mxu0 0.0
        %784 = vmatpush.msra.mxu0 0.0
        %785 = vmatpush.msra.mxu0 %v708
        %786 = vmatmul.f32.gmra.mxu0 %v696
        %v787 = vpop.f32.mrf.mxu0
        %v788 = vadd.f32 0.0, %v787
        %789 = vdwg.mxu0
        %v790 = vmul.f32 %v223, %v371
        %v791 = vmul.f32 %v224, %v372
        %v792 = vmul.f32 %v225, %v373
        %v793 = vmul.f32 %v226, %v374
        %v794 = vperm.slane %v790, 0
        %v795 = vperm.slane %v791, 0
        %v796 = vperm.slane %v792, 0
        %v797 = vperm.slane %v793, 0
        %v798 = vmul.f32 %v728, %v794
        %v799 = vmul.f32 %v748, %v795
        %v800 = vmul.f32 %v768, %v796
        %v801 = vmul.f32 %v788, %v797
        %v802 = vadd.f32 %v665, %v798
        %v803 = vadd.f32 %v666, %v799
        %v804 = vadd.f32 %v667, %v800
        %v805 = vadd.f32 %v668, %v801
        %806 = vst [vmem:[#allocation1] ss:$2 sm:$0xff] %v227
        %s807 = scalar_lea.vmem [#allocation1], 16
        %808 = vst [vmem:[%s807] ss:$2 sm:$0xff] %v228
        %v809 = vld.sshfl [vmem:[#allocation1] sm:$0xff pattern:$0x75316420]
        %v810 = vld.sshfl [vmem:[#allocation1 + $0x8] sm:$0xff pattern:$0x75316420]
        %v811 = vld.sshfl [vmem:[#allocation1 + $0x10] sm:$0xff pattern:$0x75316420]
        %v812 = vld.sshfl [vmem:[#allocation1 + $0x18] sm:$0xff pattern:$0x75316420]
        %817 = vrot.lane.b32.xlu0 %v809, 64
        %v818 = vpop.permute.xlu0 %817
        %819 = vrot.lane.b32.xlu0 %v810, 64
        %v820 = vpop.permute.xlu0 %819
        %821 = vrot.lane.b32.xlu0 %v811, 64
        %v822 = vpop.permute.xlu0 %821
        %823 = vrot.lane.b32.xlu0 %v812, 64
        %v824 = vpop.permute.xlu0 %823
        %vm825 = vcmp.lt.s32.totalorder %v251, 64
        %v826 = vsel %vm825, %v822, %v824
        %v827 = vsel %vm825, %v820, %v822
        %v828 = vsel %vm825, %v818, %v820
        %v829 = vsel %vm825, %v824, %v818
        %s830 = scalar_lea.vmem %s2, 8
        %v831 = vld [vmem:[%s830] sm:$0x3]
        %v833 = vsel %vm258, %v831, 0
        %v836 = vsel %vm262, %v829, 0
        %v839 = vsel %vm262, %v828, 0
        %v842 = vsel %vm262, %v827, 0
        %v845 = vsel %vm262, %v826, 0
        %847 = vmatpush.msra.mxu0 0.0
        %848 = vmatpush.msra.mxu0 0.0
        %849 = vmatpush.msra.mxu0 0.0
        %850 = vmatpush.msra.mxu0 0.0
        %851 = vmatpush.msra.mxu0 0.0
        %852 = vmatpush.msra.mxu0 0.0
        %853 = vmatpush.msra.mxu0 0.0
        %854 = vmatpush.msra.mxu0 0.0
        %855 = vmatpush.msra.mxu0 0.0
        %856 = vmatpush.msra.mxu0 0.0
        %857 = vmatpush.msra.mxu0 0.0
        %858 = vmatpush.msra.mxu0 0.0
        %859 = vmatpush.msra.mxu0 0.0
        %860 = vmatpush.msra.mxu0 0.0
        %861 = vmatpush.msra.mxu0 0.0
        %862 = vmatpush.msra.mxu0 %v836
        %863 = vmatmul.f32.gmra.mxu0 %v833
        %v864 = vpop.f32.mrf.mxu0
        %v865 = vadd.f32 0.0, %v864
        %866 = vdwg.mxu0
        %867 = vmatpush.msra.mxu0 0.0
        %868 = vmatpush.msra.mxu0 0.0
        %869 = vmatpush.msra.mxu0 0.0
        %870 = vmatpush.msra.mxu0 0.0
        %871 = vmatpush.msra.mxu0 0.0
        %872 = vmatpush.msra.mxu0 0.0
        %873 = vmatpush.msra.mxu0 0.0
        %874 = vmatpush.msra.mxu0 0.0
        %875 = vmatpush.msra.mxu0 0.0
        %876 = vmatpush.msra.mxu0 0.0
        %877 = vmatpush.msra.mxu0 0.0
        %878 = vmatpush.msra.mxu0 0.0
        %879 = vmatpush.msra.mxu0 0.0
        %880 = vmatpush.msra.mxu0 0.0
        %881 = vmatpush.msra.mxu0 0.0
        %882 = vmatpush.msra.mxu0 %v839
        %883 = vmatmul.f32.gmra.mxu0 %v833
        %v884 = vpop.f32.mrf.mxu0
        %v885 = vadd.f32 0.0, %v884
        %886 = vdwg.mxu0
        %887 = vmatpush.msra.mxu0 0.0
        %888 = vmatpush.msra.mxu0 0.0
        %889 = vmatpush.msra.mxu0 0.0
        %890 = vmatpush.msra.mxu0 0.0
        %891 = vmatpush.msra.mxu0 0.0
        %892 = vmatpush.msra.mxu0 0.0
        %893 = vmatpush.msra.mxu0 0.0
        %894 = vmatpush.msra.mxu0 0.0
        %895 = vmatpush.msra.mxu0 0.0
        %896 = vmatpush.msra.mxu0 0.0
        %897 = vmatpush.msra.mxu0 0.0
        %898 = vmatpush.msra.mxu0 0.0
        %899 = vmatpush.msra.mxu0 0.0
        %900 = vmatpush.msra.mxu0 0.0
        %901 = vmatpush.msra.mxu0 0.0
        %902 = vmatpush.msra.mxu0 %v842
        %903 = vmatmul.f32.gmra.mxu0 %v833
        %v904 = vpop.f32.mrf.mxu0
        %v905 = vadd.f32 0.0, %v904
        %906 = vdwg.mxu0
        %907 = vmatpush.msra.mxu0 0.0
        %908 = vmatpush.msra.mxu0 0.0
        %909 = vmatpush.msra.mxu0 0.0
        %910 = vmatpush.msra.mxu0 0.0
        %911 = vmatpush.msra.mxu0 0.0
        %912 = vmatpush.msra.mxu0 0.0
        %913 = vmatpush.msra.mxu0 0.0
        %914 = vmatpush.msra.mxu0 0.0
        %915 = vmatpush.msra.mxu0 0.0
        %916 = vmatpush.msra.mxu0 0.0
        %917 = vmatpush.msra.mxu0 0.0
        %918 = vmatpush.msra.mxu0 0.0
        %919 = vmatpush.msra.mxu0 0.0
        %920 = vmatpush.msra.mxu0 0.0
        %921 = vmatpush.msra.mxu0 0.0
        %922 = vmatpush.msra.mxu0 %v845
        %923 = vmatmul.f32.gmra.mxu0 %v833
        %v924 = vpop.f32.mrf.mxu0
        %v925 = vadd.f32 0.0, %v924
        %926 = vdwg.mxu0
        %v927 = vperm.slane %v223, 0
        %v928 = vperm.slane %v224, 0
        %v929 = vperm.slane %v225, 0
        %v930 = vperm.slane %v226, 0
        %v931 = vmul.f32 %v865, %v927
        %v932 = vmul.f32 %v885, %v928
        %v933 = vmul.f32 %v905, %v929
        %v934 = vmul.f32 %v925, %v930
        %v935 = vadd.f32 %v802, %v931
        %v936 = vadd.f32 %v803, %v932
        %v937 = vadd.f32 %v804, %v933
        %v938 = vadd.f32 %v805, %v934
        %939 = vst [vmem:[#allocation1] ss:$2 sm:$0xff] %v227
        %s940 = scalar_lea.vmem [#allocation1], 16
        %941 = vst [vmem:[%s940] ss:$2 sm:$0xff] %v228
        %v942 = vld.sshfl [vmem:[#allocation1] sm:$0xff pattern:$0x75316420]
        %v943 = vld.sshfl [vmem:[#allocation1 + $0x8] sm:$0xff pattern:$0x75316420]
        %v944 = vld.sshfl [vmem:[#allocation1 + $0x10] sm:$0xff pattern:$0x75316420]
        %v945 = vld.sshfl [vmem:[#allocation1 + $0x18] sm:$0xff pattern:$0x75316420]
        %950 = vrot.lane.b32.xlu0 %v942, 63
        %v951 = vpop.permute.xlu0 %950
        %952 = vrot.lane.b32.xlu0 %v943, 63
        %v953 = vpop.permute.xlu0 %952
        %954 = vrot.lane.b32.xlu0 %v944, 63
        %v955 = vpop.permute.xlu0 %954
        %956 = vrot.lane.b32.xlu0 %v945, 63
        %v957 = vpop.permute.xlu0 %956
        %vm958 = vcmp.lt.s32.totalorder %v251, 63
        %v959 = vsel %vm958, %v955, %v957
        %v960 = vsel %vm958, %v953, %v955
        %v961 = vsel %vm958, %v951, %v953
        %v962 = vsel %vm958, %v957, %v951
        %s963 = scalar_lea.vmem %s2, 10
        %v964 = vld [vmem:[%s963] sm:$0x3]
        %v966 = vsel %vm258, %v964, 0
        %v969 = vsel %vm262, %v962, 0
        %v972 = vsel %vm262, %v961, 0
        %v975 = vsel %vm262, %v960, 0
        %v978 = vsel %vm262, %v959, 0
        %980 = vmatpush.msra.mxu0 0.0
        %981 = vmatpush.msra.mxu0 0.0
        %982 = vmatpush.msra.mxu0 0.0
        %983 = vmatpush.msra.mxu0 0.0
        %984 = vmatpush.msra.mxu0 0.0
        %985 = vmatpush.msra.mxu0 0.0
        %986 = vmatpush.msra.mxu0 0.0
        %987 = vmatpush.msra.mxu0 0.0
        %988 = vmatpush.msra.mxu0 0.0
        %989 = vmatpush.msra.mxu0 0.0
        %990 = vmatpush.msra.mxu0 0.0
        %991 = vmatpush.msra.mxu0 0.0
        %992 = vmatpush.msra.mxu0 0.0
        %993 = vmatpush.msra.mxu0 0.0
        %994 = vmatpush.msra.mxu0 0.0
        %995 = vmatpush.msra.mxu0 %v969
        %996 = vmatmul.f32.gmra.mxu0 %v966
        %v997 = vpop.f32.mrf.mxu0
        %v998 = vadd.f32 0.0, %v997
        %999 = vdwg.mxu0
        %1000 = vmatpush.msra.mxu0 0.0
        %1001 = vmatpush.msra.mxu0 0.0
        %1002 = vmatpush.msra.mxu0 0.0
        %1003 = vmatpush.msra.mxu0 0.0
        %1004 = vmatpush.msra.mxu0 0.0
        %1005 = vmatpush.msra.mxu0 0.0
        %1006 = vmatpush.msra.mxu0 0.0
        %1007 = vmatpush.msra.mxu0 0.0
        %1008 = vmatpush.msra.mxu0 0.0
        %1009 = vmatpush.msra.mxu0 0.0
        %1010 = vmatpush.msra.mxu0 0.0
        %1011 = vmatpush.msra.mxu0 0.0
        %1012 = vmatpush.msra.mxu0 0.0
        %1013 = vmatpush.msra.mxu0 0.0
        %1014 = vmatpush.msra.mxu0 0.0
        %1015 = vmatpush.msra.mxu0 %v972
        %1016 = vmatmul.f32.gmra.mxu0 %v966
        %v1017 = vpop.f32.mrf.mxu0
        %v1018 = vadd.f32 0.0, %v1017
        %1019 = vdwg.mxu0
        %1020 = vmatpush.msra.mxu0 0.0
        %1021 = vmatpush.msra.mxu0 0.0
        %1022 = vmatpush.msra.mxu0 0.0
        %1023 = vmatpush.msra.mxu0 0.0
        %1024 = vmatpush.msra.mxu0 0.0
        %1025 = vmatpush.msra.mxu0 0.0
        %1026 = vmatpush.msra.mxu0 0.0
        %1027 = vmatpush.msra.mxu0 0.0
        %1028 = vmatpush.msra.mxu0 0.0
        %1029 = vmatpush.msra.mxu0 0.0
        %1030 = vmatpush.msra.mxu0 0.0
        %1031 = vmatpush.msra.mxu0 0.0
        %1032 = vmatpush.msra.mxu0 0.0
        %1033 = vmatpush.msra.mxu0 0.0
        %1034 = vmatpush.msra.mxu0 0.0
        %1035 = vmatpush.msra.mxu0 %v975
        %1036 = vmatmul.f32.gmra.mxu0 %v966
        %v1037 = vpop.f32.mrf.mxu0
        %v1038 = vadd.f32 0.0, %v1037
        %1039 = vdwg.mxu0
        %1040 = vmatpush.msra.mxu0 0.0
        %1041 = vmatpush.msra.mxu0 0.0
        %1042 = vmatpush.msra.mxu0 0.0
        %1043 = vmatpush.msra.mxu0 0.0
        %1044 = vmatpush.msra.mxu0 0.0
        %1045 = vmatpush.msra.mxu0 0.0
        %1046 = vmatpush.msra.mxu0 0.0
        %1047 = vmatpush.msra.mxu0 0.0
        %1048 = vmatpush.msra.mxu0 0.0
        %1049 = vmatpush.msra.mxu0 0.0
        %1050 = vmatpush.msra.mxu0 0.0
        %1051 = vmatpush.msra.mxu0 0.0
        %1052 = vmatpush.msra.mxu0 0.0
        %1053 = vmatpush.msra.mxu0 0.0
        %1054 = vmatpush.msra.mxu0 0.0
        %1055 = vmatpush.msra.mxu0 %v978
        %1056 = vmatmul.f32.gmra.mxu0 %v966
        %v1057 = vpop.f32.mrf.mxu0
        %v1058 = vadd.f32 0.0, %v1057
        %1059 = vdwg.mxu0
        %v1060 = vmul.f32 %v223, %v645
        %v1061 = vmul.f32 %v224, %v646
        %v1062 = vmul.f32 %v225, %v647
        %v1063 = vmul.f32 %v226, %v648
        %v1064 = vperm.slane %v1060, 0
        %v1065 = vperm.slane %v1061, 0
        %v1066 = vperm.slane %v1062, 0
        %v1067 = vperm.slane %v1063, 0
        %v1068 = vmul.f32 %v998, %v1064
        %v1069 = vmul.f32 %v1018, %v1065
        %v1070 = vmul.f32 %v1038, %v1066
        %v1071 = vmul.f32 %v1058, %v1067
        %v1072 = vadd.f32 %v935, %v1068
        %v1073 = vadd.f32 %v936, %v1069
        %v1074 = vadd.f32 %v937, %v1070
        %v1075 = vadd.f32 %v938, %v1071
        %1076 = vst [vmem:[#allocation1] ss:$2 sm:$0xff] %v227
        %s1077 = scalar_lea.vmem [#allocation1], 16
        %1078 = vst [vmem:[%s1077] ss:$2 sm:$0xff] %v228
        %v1079 = vld.sshfl [vmem:[#allocation1] sm:$0xff pattern:$0x75316420]
        %v1080 = vld.sshfl [vmem:[#allocation1 + $0x8] sm:$0xff pattern:$0x75316420]
        %v1081 = vld.sshfl [vmem:[#allocation1 + $0x10] sm:$0xff pattern:$0x75316420]
        %v1082 = vld.sshfl [vmem:[#allocation1 + $0x18] sm:$0xff pattern:$0x75316420]
        %1087 = vrot.lane.b32.xlu0 %v1079, 57
        %v1088 = vpop.permute.xlu0 %1087
        %1089 = vrot.lane.b32.xlu0 %v1080, 57
        %v1090 = vpop.permute.xlu0 %1089
        %1091 = vrot.lane.b32.xlu0 %v1081, 57
        %v1092 = vpop.permute.xlu0 %1091
        %1093 = vrot.lane.b32.xlu0 %v1082, 57
        %v1094 = vpop.permute.xlu0 %1093
        %vm1095 = vcmp.lt.s32.totalorder %v251, 57
        %v1096 = vsel %vm1095, %v1092, %v1094
        %v1097 = vsel %vm1095, %v1090, %v1092
        %v1098 = vsel %vm1095, %v1088, %v1090
        %v1099 = vsel %vm1095, %v1094, %v1088
        %s1100 = scalar_lea.vmem %s2, 12
        %v1101 = vld [vmem:[%s1100] sm:$0x3]
        %v1103 = vsel %vm258, %v1101, 0
        %v1106 = vsel %vm262, %v1099, 0
        %v1109 = vsel %vm262, %v1098, 0
        %v1112 = vsel %vm262, %v1097, 0
        %v1115 = vsel %vm262, %v1096, 0
        %1117 = vmatpush.msra.mxu0 0.0
        %1118 = vmatpush.msra.mxu0 0.0
        %1119 = vmatpush.msra.mxu0 0.0
        %1120 = vmatpush.msra.mxu0 0.0
        %1121 = vmatpush.msra.mxu0 0.0
        %1122 = vmatpush.msra.mxu0 0.0
        %1123 = vmatpush.msra.mxu0 0.0
        %1124 = vmatpush.msra.mxu0 0.0
        %1125 = vmatpush.msra.mxu0 0.0
        %1126 = vmatpush.msra.mxu0 0.0
        %1127 = vmatpush.msra.mxu0 0.0
        %1128 = vmatpush.msra.mxu0 0.0
        %1129 = vmatpush.msra.mxu0 0.0
        %1130 = vmatpush.msra.mxu0 0.0
        %1131 = vmatpush.msra.mxu0 0.0
        %1132 = vmatpush.msra.mxu0 %v1106
        %1133 = vmatmul.f32.gmra.mxu0 %v1103
        %v1134 = vpop.f32.mrf.mxu0
        %v1135 = vadd.f32 0.0, %v1134
        %1136 = vdwg.mxu0
        %1137 = vmatpush.msra.mxu0 0.0
        %1138 = vmatpush.msra.mxu0 0.0
        %1139 = vmatpush.msra.mxu0 0.0
        %1140 = vmatpush.msra.mxu0 0.0
        %1141 = vmatpush.msra.mxu0 0.0
        %1142 = vmatpush.msra.mxu0 0.0
        %1143 = vmatpush.msra.mxu0 0.0
        %1144 = vmatpush.msra.mxu0 0.0
        %1145 = vmatpush.msra.mxu0 0.0
        %1146 = vmatpush.msra.mxu0 0.0
        %1147 = vmatpush.msra.mxu0 0.0
        %1148 = vmatpush.msra.mxu0 0.0
        %1149 = vmatpush.msra.mxu0 0.0
        %1150 = vmatpush.msra.mxu0 0.0
        %1151 = vmatpush.msra.mxu0 0.0
        %1152 = vmatpush.msra.mxu0 %v1109
        %1153 = vmatmul.f32.gmra.mxu0 %v1103
        %v1154 = vpop.f32.mrf.mxu0
        %v1155 = vadd.f32 0.0, %v1154
        %1156 = vdwg.mxu0
        %1157 = vmatpush.msra.mxu0 0.0
        %1158 = vmatpush.msra.mxu0 0.0
        %1159 = vmatpush.msra.mxu0 0.0
        %1160 = vmatpush.msra.mxu0 0.0
        %1161 = vmatpush.msra.mxu0 0.0
        %1162 = vmatpush.msra.mxu0 0.0
        %1163 = vmatpush.msra.mxu0 0.0
        %1164 = vmatpush.msra.mxu0 0.0
        %1165 = vmatpush.msra.mxu0 0.0
        %1166 = vmatpush.msra.mxu0 0.0
        %1167 = vmatpush.msra.mxu0 0.0
        %1168 = vmatpush.msra.mxu0 0.0
        %1169 = vmatpush.msra.mxu0 0.0
        %1170 = vmatpush.msra.mxu0 0.0
        %1171 = vmatpush.msra.mxu0 0.0
        %1172 = vmatpush.msra.mxu0 %v1112
        %1173 = vmatmul.f32.gmra.mxu0 %v1103
        %v1174 = vpop.f32.mrf.mxu0
        %v1175 = vadd.f32 0.0, %v1174
        %1176 = vdwg.mxu0
        %1177 = vmatpush.msra.mxu0 0.0
        %1178 = vmatpush.msra.mxu0 0.0
        %1179 = vmatpush.msra.mxu0 0.0
        %1180 = vmatpush.msra.mxu0 0.0
        %1181 = vmatpush.msra.mxu0 0.0
        %1182 = vmatpush.msra.mxu0 0.0
        %1183 = vmatpush.msra.mxu0 0.0
        %1184 = vmatpush.msra.mxu0 0.0
        %1185 = vmatpush.msra.mxu0 0.0
        %1186 = vmatpush.msra.mxu0 0.0
        %1187 = vmatpush.msra.mxu0 0.0
        %1188 = vmatpush.msra.mxu0 0.0
        %1189 = vmatpush.msra.mxu0 0.0
        %1190 = vmatpush.msra.mxu0 0.0
        %1191 = vmatpush.msra.mxu0 0.0
        %1192 = vmatpush.msra.mxu0 %v1115
        %1193 = vmatmul.f32.gmra.mxu0 %v1103
        %v1194 = vpop.f32.mrf.mxu0
        %v1195 = vadd.f32 0.0, %v1194
        %1196 = vdwg.mxu0
        %v1197 = vrot.slane %v223, 3
        %v1198 = vrot.slane %v224, 3
        %v1199 = vrot.slane %v225, 3
        %v1200 = vrot.slane %v226, 3
        %v1205 = vmul.f32 %v223, %v1197
        %v1206 = vmul.f32 %v224, %v1198
        %v1207 = vmul.f32 %v225, %v1199
        %v1208 = vmul.f32 %v226, %v1200
        %v1209 = vmul.f32 %v1205, %v371
        %v1210 = vmul.f32 %v1206, %v372
        %v1211 = vmul.f32 %v1207, %v373
        %v1212 = vmul.f32 %v1208, %v374
        %v1213 = vperm.slane %v1209, 0
        %v1214 = vperm.slane %v1210, 0
        %v1215 = vperm.slane %v1211, 0
        %v1216 = vperm.slane %v1212, 0
        %v1217 = vmul.f32 %v1135, %v1213
        %v1218 = vmul.f32 %v1155, %v1214
        %v1219 = vmul.f32 %v1175, %v1215
        %v1220 = vmul.f32 %v1195, %v1216
        %v1221 = vadd.f32 %v1072, %v1217
        %v1222 = vadd.f32 %v1073, %v1218
        %v1223 = vadd.f32 %v1074, %v1219
        %v1224 = vadd.f32 %v1075, %v1220
        %1225 = vst [vmem:[#allocation1] ss:$2 sm:$0xff] %v227
        %s1226 = scalar_lea.vmem [#allocation1], 16
        %1227 = vst [vmem:[%s1226] ss:$2 sm:$0xff] %v228
        %v1228 = vld.sshfl [vmem:[#allocation1] sm:$0xff pattern:$0x75316420]
        %v1229 = vld.sshfl [vmem:[#allocation1 + $0x8] sm:$0xff pattern:$0x75316420]
        %v1230 = vld.sshfl [vmem:[#allocation1 + $0x10] sm:$0xff pattern:$0x75316420]
        %v1231 = vld.sshfl [vmem:[#allocation1 + $0x18] sm:$0xff pattern:$0x75316420]
        %1236 = vrot.lane.b32.xlu0 %v1228, 56
        %v1237 = vpop.permute.xlu0 %1236
        %1238 = vrot.lane.b32.xlu0 %v1229, 56
        %v1239 = vpop.permute.xlu0 %1238
        %1240 = vrot.lane.b32.xlu0 %v1230, 56
        %v1241 = vpop.permute.xlu0 %1240
        %1242 = vrot.lane.b32.xlu0 %v1231, 56
        %v1243 = vpop.permute.xlu0 %1242
        %vm1244 = vcmp.lt.s32.totalorder %v251, 56
        %v1245 = vsel %vm1244, %v1241, %v1243
        %v1246 = vsel %vm1244, %v1239, %v1241
        %v1247 = vsel %vm1244, %v1237, %v1239
        %v1248 = vsel %vm1244, %v1243, %v1237
        %s1249 = scalar_lea.vmem %s2, 14
        %v1250 = vld [vmem:[%s1249] sm:$0x3]
        %v1252 = vsel %vm258, %v1250, 0
        %v1255 = vsel %vm262, %v1248, 0
        %v1258 = vsel %vm262, %v1247, 0
        %v1261 = vsel %vm262, %v1246, 0
        %v1264 = vsel %vm262, %v1245, 0
        %1266 = vmatpush.msra.mxu0 0.0
        %1267 = vmatpush.msra.mxu0 0.0
        %1268 = vmatpush.msra.mxu0 0.0
        %1269 = vmatpush.msra.mxu0 0.0
        %1270 = vmatpush.msra.mxu0 0.0
        %1271 = vmatpush.msra.mxu0 0.0
        %1272 = vmatpush.msra.mxu0 0.0
        %1273 = vmatpush.msra.mxu0 0.0
        %1274 = vmatpush.msra.mxu0 0.0
        %1275 = vmatpush.msra.mxu0 0.0
        %1276 = vmatpush.msra.mxu0 0.0
        %1277 = vmatpush.msra.mxu0 0.0
        %1278 = vmatpush.msra.mxu0 0.0
        %1279 = vmatpush.msra.mxu0 0.0
        %1280 = vmatpush.msra.mxu0 0.0
        %1281 = vmatpush.msra.mxu0 %v1255
        %1282 = vmatmul.f32.gmra.mxu0 %v1252
        %v1283 = vpop.f32.mrf.mxu0
        %v1284 = vadd.f32 0.0, %v1283
        %1285 = vdwg.mxu0
        %1286 = vmatpush.msra.mxu0 0.0
        %1287 = vmatpush.msra.mxu0 0.0
        %1288 = vmatpush.msra.mxu0 0.0
        %1289 = vmatpush.msra.mxu0 0.0
        %1290 = vmatpush.msra.mxu0 0.0
        %1291 = vmatpush.msra.mxu0 0.0
        %1292 = vmatpush.msra.mxu0 0.0
        %1293 = vmatpush.msra.mxu0 0.0
        %1294 = vmatpush.msra.mxu0 0.0
        %1295 = vmatpush.msra.mxu0 0.0
        %1296 = vmatpush.msra.mxu0 0.0
        %1297 = vmatpush.msra.mxu0 0.0
        %1298 = vmatpush.msra.mxu0 0.0
        %1299 = vmatpush.msra.mxu0 0.0
        %1300 = vmatpush.msra.mxu0 0.0
        %1301 = vmatpush.msra.mxu0 %v1258
        %1302 = vmatmul.f32.gmra.mxu0 %v1252
        %v1303 = vpop.f32.mrf.mxu0
        %v1304 = vadd.f32 0.0, %v1303
        %1305 = vdwg.mxu0
        %1306 = vmatpush.msra.mxu0 0.0
        %1307 = vmatpush.msra.mxu0 0.0
        %1308 = vmatpush.msra.mxu0 0.0
        %1309 = vmatpush.msra.mxu0 0.0
        %1310 = vmatpush.msra.mxu0 0.0
        %1311 = vmatpush.msra.mxu0 0.0
        %1312 = vmatpush.msra.mxu0 0.0
        %1313 = vmatpush.msra.mxu0 0.0
        %1314 = vmatpush.msra.mxu0 0.0
        %1315 = vmatpush.msra.mxu0 0.0
        %1316 = vmatpush.msra.mxu0 0.0
        %1317 = vmatpush.msra.mxu0 0.0
        %1318 = vmatpush.msra.mxu0 0.0
        %1319 = vmatpush.msra.mxu0 0.0
        %1320 = vmatpush.msra.mxu0 0.0
        %1321 = vmatpush.msra.mxu0 %v1261
        %1322 = vmatmul.f32.gmra.mxu0 %v1252
        %v1323 = vpop.f32.mrf.mxu0
        %v1324 = vadd.f32 0.0, %v1323
        %1325 = vdwg.mxu0
        %1326 = vmatpush.msra.mxu0 0.0
        %1327 = vmatpush.msra.mxu0 0.0
        %1328 = vmatpush.msra.mxu0 0.0
        %1329 = vmatpush.msra.mxu0 0.0
        %1330 = vmatpush.msra.mxu0 0.0
        %1331 = vmatpush.msra.mxu0 0.0
        %1332 = vmatpush.msra.mxu0 0.0
        %1333 = vmatpush.msra.mxu0 0.0
        %1334 = vmatpush.msra.mxu0 0.0
        %1335 = vmatpush.msra.mxu0 0.0
        %1336 = vmatpush.msra.mxu0 0.0
        %1337 = vmatpush.msra.mxu0 0.0
        %1338 = vmatpush.msra.mxu0 0.0
        %1339 = vmatpush.msra.mxu0 0.0
        %1340 = vmatpush.msra.mxu0 0.0
        %1341 = vmatpush.msra.mxu0 %v1264
        %1342 = vmatmul.f32.gmra.mxu0 %v1252
        %v1343 = vpop.f32.mrf.mxu0
        %v1344 = vadd.f32 0.0, %v1343
        %1345 = vdwg.mxu0
        %v1346 = vperm.slane %v1205, 0
        %v1347 = vperm.slane %v1206, 0
        %v1348 = vperm.slane %v1207, 0
        %v1349 = vperm.slane %v1208, 0
        %v1350 = vmul.f32 %v1284, %v1346
        %v1351 = vmul.f32 %v1304, %v1347
        %v1352 = vmul.f32 %v1324, %v1348
        %v1353 = vmul.f32 %v1344, %v1349
        %v1354 = vadd.f32 %v1221, %v1350
        %v1355 = vadd.f32 %v1222, %v1351
        %v1356 = vadd.f32 %v1223, %v1352
        %v1357 = vadd.f32 %v1224, %v1353
        %1358 = vst [vmem:[#allocation1] ss:$2 sm:$0xff] %v227
        %s1359 = scalar_lea.vmem [#allocation1], 16
        %1360 = vst [vmem:[%s1359] ss:$2 sm:$0xff] %v228
        %v1361 = vld.sshfl [vmem:[#allocation1] sm:$0xff pattern:$0x75316420]
        %v1362 = vld.sshfl [vmem:[#allocation1 + $0x8] sm:$0xff pattern:$0x75316420]
        %v1363 = vld.sshfl [vmem:[#allocation1 + $0x10] sm:$0xff pattern:$0x75316420]
        %v1364 = vld.sshfl [vmem:[#allocation1 + $0x18] sm:$0xff pattern:$0x75316420]
        %1369 = vrot.lane.b32.xlu0 %v1361, 55
        %v1370 = vpop.permute.xlu0 %1369
        %1371 = vrot.lane.b32.xlu0 %v1362, 55
        %v1372 = vpop.permute.xlu0 %1371
        %1373 = vrot.lane.b32.xlu0 %v1363, 55
        %v1374 = vpop.permute.xlu0 %1373
        %1375 = vrot.lane.b32.xlu0 %v1364, 55
        %v1376 = vpop.permute.xlu0 %1375
        %vm1377 = vcmp.lt.s32.totalorder %v251, 55
        %v1378 = vsel %vm1377, %v1374, %v1376
        %v1379 = vsel %vm1377, %v1372, %v1374
        %v1380 = vsel %vm1377, %v1370, %v1372
        %v1381 = vsel %vm1377, %v1376, %v1370
        %s1382 = scalar_lea.vmem %s2, 16
        %v1383 = vld [vmem:[%s1382] sm:$0x3]
        %v1385 = vsel %vm258, %v1383, 0
        %v1388 = vsel %vm262, %v1381, 0
        %v1391 = vsel %vm262, %v1380, 0
        %v1394 = vsel %vm262, %v1379, 0
        %v1397 = vsel %vm262, %v1378, 0
        %1399 = vmatpush.msra.mxu0 0.0
        %1400 = vmatpush.msra.mxu0 0.0
        %1401 = vmatpush.msra.mxu0 0.0
        %1402 = vmatpush.msra.mxu0 0.0
        %1403 = vmatpush.msra.mxu0 0.0
        %1404 = vmatpush.msra.mxu0 0.0
        %1405 = vmatpush.msra.mxu0 0.0
        %1406 = vmatpush.msra.mxu0 0.0
        %1407 = vmatpush.msra.mxu0 0.0
        %1408 = vmatpush.msra.mxu0 0.0
        %1409 = vmatpush.msra.mxu0 0.0
        %1410 = vmatpush.msra.mxu0 0.0
        %1411 = vmatpush.msra.mxu0 0.0
        %1412 = vmatpush.msra.mxu0 0.0
        %1413 = vmatpush.msra.mxu0 0.0
        %1414 = vmatpush.msra.mxu0 %v1388
        %1415 = vmatmul.f32.gmra.mxu0 %v1385
        %v1416 = vpop.f32.mrf.mxu0
        %v1417 = vadd.f32 0.0, %v1416
        %1418 = vdwg.mxu0
        %1419 = vmatpush.msra.mxu0 0.0
        %1420 = vmatpush.msra.mxu0 0.0
        %1421 = vmatpush.msra.mxu0 0.0
        %1422 = vmatpush.msra.mxu0 0.0
        %1423 = vmatpush.msra.mxu0 0.0
        %1424 = vmatpush.msra.mxu0 0.0
        %1425 = vmatpush.msra.mxu0 0.0
        %1426 = vmatpush.msra.mxu0 0.0
        %1427 = vmatpush.msra.mxu0 0.0
        %1428 = vmatpush.msra.mxu0 0.0
        %1429 = vmatpush.msra.mxu0 0.0
        %1430 = vmatpush.msra.mxu0 0.0
        %1431 = vmatpush.msra.mxu0 0.0
        %1432 = vmatpush.msra.mxu0 0.0
        %1433 = vmatpush.msra.mxu0 0.0
        %1434 = vmatpush.msra.mxu0 %v1391
        %1435 = vmatmul.f32.gmra.mxu0 %v1385
        %v1436 = vpop.f32.mrf.mxu0
        %v1437 = vadd.f32 0.0, %v1436
        %1438 = vdwg.mxu0
        %1439 = vmatpush.msra.mxu0 0.0
        %1440 = vmatpush.msra.mxu0 0.0
        %1441 = vmatpush.msra.mxu0 0.0
        %1442 = vmatpush.msra.mxu0 0.0
        %1443 = vmatpush.msra.mxu0 0.0
        %1444 = vmatpush.msra.mxu0 0.0
        %1445 = vmatpush.msra.mxu0 0.0
        %1446 = vmatpush.msra.mxu0 0.0
        %1447 = vmatpush.msra.mxu0 0.0
        %1448 = vmatpush.msra.mxu0 0.0
        %1449 = vmatpush.msra.mxu0 0.0
        %1450 = vmatpush.msra.mxu0 0.0
        %1451 = vmatpush.msra.mxu0 0.0
        %1452 = vmatpush.msra.mxu0 0.0
        %1453 = vmatpush.msra.mxu0 0.0
        %1454 = vmatpush.msra.mxu0 %v1394
        %1455 = vmatmul.f32.gmra.mxu0 %v1385
        %v1456 = vpop.f32.mrf.mxu0
        %v1457 = vadd.f32 0.0, %v1456
        %1458 = vdwg.mxu0
        %1459 = vmatpush.msra.mxu0 0.0
        %1460 = vmatpush.msra.mxu0 0.0
        %1461 = vmatpush.msra.mxu0 0.0
        %1462 = vmatpush.msra.mxu0 0.0
        %1463 = vmatpush.msra.mxu0 0.0
        %1464 = vmatpush.msra.mxu0 0.0
        %1465 = vmatpush.msra.mxu0 0.0
        %1466 = vmatpush.msra.mxu0 0.0
        %1467 = vmatpush.msra.mxu0 0.0
        %1468 = vmatpush.msra.mxu0 0.0
        %1469 = vmatpush.msra.mxu0 0.0
        %1470 = vmatpush.msra.mxu0 0.0
        %1471 = vmatpush.msra.mxu0 0.0
        %1472 = vmatpush.msra.mxu0 0.0
        %1473 = vmatpush.msra.mxu0 0.0
        %1474 = vmatpush.msra.mxu0 %v1397
        %1475 = vmatmul.f32.gmra.mxu0 %v1385
        %v1476 = vpop.f32.mrf.mxu0
        %v1477 = vadd.f32 0.0, %v1476
        %1478 = vdwg.mxu0
        %v1479 = vmul.f32 %v1205, %v645
        %v1480 = vmul.f32 %v1206, %v646
        %v1481 = vmul.f32 %v1207, %v647
        %v1482 = vmul.f32 %v1208, %v648
        %v1483 = vperm.slane %v1479, 0
        %v1484 = vperm.slane %v1480, 0
        %v1485 = vperm.slane %v1481, 0
        %v1486 = vperm.slane %v1482, 0
        %v1487 = vmul.f32 %v1417, %v1483
        %v1488 = vmul.f32 %v1437, %v1484
        %v1489 = vmul.f32 %v1457, %v1485
        %v1490 = vmul.f32 %v1477, %v1486
        %v1491 = vadd.f32 %v1354, %v1487
        %v1492 = vadd.f32 %v1355, %v1488
        %v1493 = vadd.f32 %v1356, %v1489
        %v1494 = vadd.f32 %v1357, %v1490
        %1495 = vst [vmem:[#allocation1] ss:$2 sm:$0xff] %v227
        %s1496 = scalar_lea.vmem [#allocation1], 16
        %1497 = vst [vmem:[%s1496] ss:$2 sm:$0xff] %v228
        %v1498 = vld.sshfl [vmem:[#allocation1] sm:$0xff pattern:$0x75316420]
        %v1499 = vld.sshfl [vmem:[#allocation1 + $0x8] sm:$0xff pattern:$0x75316420]
        %v1500 = vld.sshfl [vmem:[#allocation1 + $0x10] sm:$0xff pattern:$0x75316420]
        %v1501 = vld.sshfl [vmem:[#allocation1 + $0x18] sm:$0xff pattern:$0x75316420]
        %1506 = vrot.lane.b32.xlu0 %v1498, 9
        %v1507 = vpop.permute.xlu0 %1506
        %1508 = vrot.lane.b32.xlu0 %v1499, 9
        %v1509 = vpop.permute.xlu0 %1508
        %1510 = vrot.lane.b32.xlu0 %v1500, 9
        %v1511 = vpop.permute.xlu0 %1510
        %1512 = vrot.lane.b32.xlu0 %v1501, 9
        %v1513 = vpop.permute.xlu0 %1512
        %vm1514 = vcmp.lt.s32.totalorder %v251, 9
        %v1515 = vsel %vm1514, %v1511, %v1513
        %v1516 = vsel %vm1514, %v1509, %v1511
        %v1517 = vsel %vm1514, %v1507, %v1509
        %v1518 = vsel %vm1514, %v1513, %v1507
        %s1519 = scalar_lea.vmem %s2, 18
        %v1520 = vld [vmem:[%s1519] sm:$0x3]
        %v1522 = vsel %vm258, %v1520, 0
        %v1525 = vsel %vm262, %v1518, 0
        %v1528 = vsel %vm262, %v1517, 0
        %v1531 = vsel %vm262, %v1516, 0
        %v1534 = vsel %vm262, %v1515, 0
        %1536 = vmatpush.msra.mxu0 0.0
        %1537 = vmatpush.msra.mxu0 0.0
        %1538 = vmatpush.msra.mxu0 0.0
        %1539 = vmatpush.msra.mxu0 0.0
        %1540 = vmatpush.msra.mxu0 0.0
        %1541 = vmatpush.msra.mxu0 0.0
        %1542 = vmatpush.msra.mxu0 0.0
        %1543 = vmatpush.msra.mxu0 0.0
        %1544 = vmatpush.msra.mxu0 0.0
        %1545 = vmatpush.msra.mxu0 0.0
        %1546 = vmatpush.msra.mxu0 0.0
        %1547 = vmatpush.msra.mxu0 0.0
        %1548 = vmatpush.msra.mxu0 0.0
        %1549 = vmatpush.msra.mxu0 0.0
        %1550 = vmatpush.msra.mxu0 0.0
        %1551 = vmatpush.msra.mxu0 %v1525
        %1552 = vmatmul.f32.gmra.mxu0 %v1522
        %v1553 = vpop.f32.mrf.mxu0
        %v1554 = vadd.f32 0.0, %v1553
        %1555 = vdwg.mxu0
        %1556 = vmatpush.msra.mxu0 0.0
        %1557 = vmatpush.msra.mxu0 0.0
        %1558 = vmatpush.msra.mxu0 0.0
        %1559 = vmatpush.msra.mxu0 0.0
        %1560 = vmatpush.msra.mxu0 0.0
        %1561 = vmatpush.msra.mxu0 0.0
        %1562 = vmatpush.msra.mxu0 0.0
        %1563 = vmatpush.msra.mxu0 0.0
        %1564 = vmatpush.msra.mxu0 0.0
        %1565 = vmatpush.msra.mxu0 0.0
        %1566 = vmatpush.msra.mxu0 0.0
        %1567 = vmatpush.msra.mxu0 0.0
        %1568 = vmatpush.msra.mxu0 0.0
        %1569 = vmatpush.msra.mxu0 0.0
        %1570 = vmatpush.msra.mxu0 0.0
        %1571 = vmatpush.msra.mxu0 %v1528
        %1572 = vmatmul.f32.gmra.mxu0 %v1522
        %v1573 = vpop.f32.mrf.mxu0
        %v1574 = vadd.f32 0.0, %v1573
        %1575 = vdwg.mxu0
        %1576 = vmatpush.msra.mxu0 0.0
        %1577 = vmatpush.msra.mxu0 0.0
        %1578 = vmatpush.msra.mxu0 0.0
        %1579 = vmatpush.msra.mxu0 0.0
        %1580 = vmatpush.msra.mxu0 0.0
        %1581 = vmatpush.msra.mxu0 0.0
        %1582 = vmatpush.msra.mxu0 0.0
        %1583 = vmatpush.msra.mxu0 0.0
        %1584 = vmatpush.msra.mxu0 0.0
        %1585 = vmatpush.msra.mxu0 0.0
        %1586 = vmatpush.msra.mxu0 0.0
        %1587 = vmatpush.msra.mxu0 0.0
        %1588 = vmatpush.msra.mxu0 0.0
        %1589 = vmatpush.msra.mxu0 0.0
        %1590 = vmatpush.msra.mxu0 0.0
        %1591 = vmatpush.msra.mxu0 %v1531
        %1592 = vmatmul.f32.gmra.mxu0 %v1522
        %v1593 = vpop.f32.mrf.mxu0
        %v1594 = vadd.f32 0.0, %v1593
        %1595 = vdwg.mxu0
        %1596 = vmatpush.msra.mxu0 0.0
        %1597 = vmatpush.msra.mxu0 0.0
        %1598 = vmatpush.msra.mxu0 0.0
        %1599 = vmatpush.msra.mxu0 0.0
        %1600 = vmatpush.msra.mxu0 0.0
        %1601 = vmatpush.msra.mxu0 0.0
        %1602 = vmatpush.msra.mxu0 0.0
        %1603 = vmatpush.msra.mxu0 0.0
        %1604 = vmatpush.msra.mxu0 0.0
        %1605 = vmatpush.msra.mxu0 0.0
        %1606 = vmatpush.msra.mxu0 0.0
        %1607 = vmatpush.msra.mxu0 0.0
        %1608 = vmatpush.msra.mxu0 0.0
        %1609 = vmatpush.msra.mxu0 0.0
        %1610 = vmatpush.msra.mxu0 0.0
        %1611 = vmatpush.msra.mxu0 %v1534
        %1612 = vmatmul.f32.gmra.mxu0 %v1522
        %v1613 = vpop.f32.mrf.mxu0
        %v1614 = vadd.f32 0.0, %v1613
        %1615 = vdwg.mxu0
        %v1616 = vperm.slane %v367, 2
        %v1617 = vperm.slane %v368, 2
        %v1618 = vperm.slane %v369, 2
        %v1619 = vperm.slane %v370, 2
        %v1620 = vmul.f32 %v1554, %v1616
        %v1621 = vmul.f32 %v1574, %v1617
        %v1622 = vmul.f32 %v1594, %v1618
        %v1623 = vmul.f32 %v1614, %v1619
        %v1624 = vadd.f32 %v1491, %v1620
        %v1625 = vadd.f32 %v1492, %v1621
        %v1626 = vadd.f32 %v1493, %v1622
        %v1627 = vadd.f32 %v1494, %v1623
        %1628 = vst [vmem:[#allocation1] ss:$2 sm:$0xff] %v227
        %s1629 = scalar_lea.vmem [#allocation1], 16
        %1630 = vst [vmem:[%s1629] ss:$2 sm:$0xff] %v228
        %v1631 = vld.sshfl [vmem:[#allocation1] sm:$0xff pattern:$0x75316420]
        %v1632 = vld.sshfl [vmem:[#allocation1 + $0x8] sm:$0xff pattern:$0x75316420]
        %v1633 = vld.sshfl [vmem:[#allocation1 + $0x10] sm:$0xff pattern:$0x75316420]
        %v1634 = vld.sshfl [vmem:[#allocation1 + $0x18] sm:$0xff pattern:$0x75316420]
        %1639 = vrot.lane.b32.xlu0 %v1631, 8
        %v1640 = vpop.permute.xlu0 %1639
        %1641 = vrot.lane.b32.xlu0 %v1632, 8
        %v1642 = vpop.permute.xlu0 %1641
        %1643 = vrot.lane.b32.xlu0 %v1633, 8
        %v1644 = vpop.permute.xlu0 %1643
        %1645 = vrot.lane.b32.xlu0 %v1634, 8
        %v1646 = vpop.permute.xlu0 %1645
        %vm1647 = vcmp.lt.s32.totalorder %v251, 8
        %v1648 = vsel %vm1647, %v1644, %v1646
        %v1649 = vsel %vm1647, %v1642, %v1644
        %v1650 = vsel %vm1647, %v1640, %v1642
        %v1651 = vsel %vm1647, %v1646, %v1640
        %s1652 = scalar_lea.vmem %s2, 20
        %v1653 = vld [vmem:[%s1652] sm:$0x3]
        %v1655 = vsel %vm258, %v1653, 0
        %v1658 = vsel %vm262, %v1651, 0
        %v1661 = vsel %vm262, %v1650, 0
        %v1664 = vsel %vm262, %v1649, 0
        %v1667 = vsel %vm262, %v1648, 0
        %1669 = vmatpush.msra.mxu0 0.0
        %1670 = vmatpush.msra.mxu0 0.0
        %1671 = vmatpush.msra.mxu0 0.0
        %1672 = vmatpush.msra.mxu0 0.0
        %1673 = vmatpush.msra.mxu0 0.0
        %1674 = vmatpush.msra.mxu0 0.0
        %1675 = vmatpush.msra.mxu0 0.0
        %1676 = vmatpush.msra.mxu0 0.0
        %1677 = vmatpush.msra.mxu0 0.0
        %1678 = vmatpush.msra.mxu0 0.0
        %1679 = vmatpush.msra.mxu0 0.0
        %1680 = vmatpush.msra.mxu0 0.0
        %1681 = vmatpush.msra.mxu0 0.0
        %1682 = vmatpush.msra.mxu0 0.0
        %1683 = vmatpush.msra.mxu0 0.0
        %1684 = vmatpush.msra.mxu0 %v1658
        %1685 = vmatmul.f32.gmra.mxu0 %v1655
        %v1686 = vpop.f32.mrf.mxu0
        %v1687 = vadd.f32 0.0, %v1686
        %1688 = vdwg.mxu0
        %1689 = vmatpush.msra.mxu0 0.0
        %1690 = vmatpush.msra.mxu0 0.0
        %1691 = vmatpush.msra.mxu0 0.0
        %1692 = vmatpush.msra.mxu0 0.0
        %1693 = vmatpush.msra.mxu0 0.0
        %1694 = vmatpush.msra.mxu0 0.0
        %1695 = vmatpush.msra.mxu0 0.0
        %1696 = vmatpush.msra.mxu0 0.0
        %1697 = vmatpush.msra.mxu0 0.0
        %1698 = vmatpush.msra.mxu0 0.0
        %1699 = vmatpush.msra.mxu0 0.0
        %1700 = vmatpush.msra.mxu0 0.0
        %1701 = vmatpush.msra.mxu0 0.0
        %1702 = vmatpush.msra.mxu0 0.0
        %1703 = vmatpush.msra.mxu0 0.0
        %1704 = vmatpush.msra.mxu0 %v1661
        %1705 = vmatmul.f32.gmra.mxu0 %v1655
        %v1706 = vpop.f32.mrf.mxu0
        %v1707 = vadd.f32 0.0, %v1706
        %1708 = vdwg.mxu0
        %1709 = vmatpush.msra.mxu0 0.0
        %1710 = vmatpush.msra.mxu0 0.0
        %1711 = vmatpush.msra.mxu0 0.0
        %1712 = vmatpush.msra.mxu0 0.0
        %1713 = vmatpush.msra.mxu0 0.0
        %1714 = vmatpush.msra.mxu0 0.0
        %1715 = vmatpush.msra.mxu0 0.0
        %1716 = vmatpush.msra.mxu0 0.0
        %1717 = vmatpush.msra.mxu0 0.0
        %1718 = vmatpush.msra.mxu0 0.0
        %1719 = vmatpush.msra.mxu0 0.0
        %1720 = vmatpush.msra.mxu0 0.0
        %1721 = vmatpush.msra.mxu0 0.0
        %1722 = vmatpush.msra.mxu0 0.0
        %1723 = vmatpush.msra.mxu0 0.0
        %1724 = vmatpush.msra.mxu0 %v1664
        %1725 = vmatmul.f32.gmra.mxu0 %v1655
        %v1726 = vpop.f32.mrf.mxu0
        %v1727 = vadd.f32 0.0, %v1726
        %1728 = vdwg.mxu0
        %1729 = vmatpush.msra.mxu0 0.0
        %1730 = vmatpush.msra.mxu0 0.0
        %1731 = vmatpush.msra.mxu0 0.0
        %1732 = vmatpush.msra.mxu0 0.0
        %1733 = vmatpush.msra.mxu0 0.0
        %1734 = vmatpush.msra.mxu0 0.0
        %1735 = vmatpush.msra.mxu0 0.0
        %1736 = vmatpush.msra.mxu0 0.0
        %1737 = vmatpush.msra.mxu0 0.0
        %1738 = vmatpush.msra.mxu0 0.0
        %1739 = vmatpush.msra.mxu0 0.0
        %1740 = vmatpush.msra.mxu0 0.0
        %1741 = vmatpush.msra.mxu0 0.0
        %1742 = vmatpush.msra.mxu0 0.0
        %1743 = vmatpush.msra.mxu0 0.0
        %1744 = vmatpush.msra.mxu0 %v1667
        %1745 = vmatmul.f32.gmra.mxu0 %v1655
        %v1746 = vpop.f32.mrf.mxu0
        %v1747 = vadd.f32 0.0, %v1746
        %1748 = vdwg.mxu0
        %v1749 = vperm.slane %v223, 2
        %v1750 = vperm.slane %v224, 2
        %v1751 = vperm.slane %v225, 2
        %v1752 = vperm.slane %v226, 2
        %v1753 = vmul.f32 %v1687, %v1749
        %v1754 = vmul.f32 %v1707, %v1750
        %v1755 = vmul.f32 %v1727, %v1751
        %v1756 = vmul.f32 %v1747, %v1752
        %v1757 = vadd.f32 %v1624, %v1753
        %v1758 = vadd.f32 %v1625, %v1754
        %v1759 = vadd.f32 %v1626, %v1755
        %v1760 = vadd.f32 %v1627, %v1756
        %1761 = vst [vmem:[#allocation1] ss:$2 sm:$0xff] %v227
        %s1762 = scalar_lea.vmem [#allocation1], 16
        %1763 = vst [vmem:[%s1762] ss:$2 sm:$0xff] %v228
        %v1764 = vld.sshfl [vmem:[#allocation1] sm:$0xff pattern:$0x75316420]
        %v1765 = vld.sshfl [vmem:[#allocation1 + $0x8] sm:$0xff pattern:$0x75316420]
        %v1766 = vld.sshfl [vmem:[#allocation1 + $0x10] sm:$0xff pattern:$0x75316420]
        %v1767 = vld.sshfl [vmem:[#allocation1 + $0x18] sm:$0xff pattern:$0x75316420]
        %1772 = vrot.lane.b32.xlu0 %v1764, 7
        %v1773 = vpop.permute.xlu0 %1772
        %1774 = vrot.lane.b32.xlu0 %v1765, 7
        %v1775 = vpop.permute.xlu0 %1774
        %1776 = vrot.lane.b32.xlu0 %v1766, 7
        %v1777 = vpop.permute.xlu0 %1776
        %1778 = vrot.lane.b32.xlu0 %v1767, 7
        %v1779 = vpop.permute.xlu0 %1778
        %vm1780 = vcmp.lt.s32.totalorder %v251, 7
        %v1781 = vsel %vm1780, %v1777, %v1779
        %v1782 = vsel %vm1780, %v1775, %v1777
        %v1783 = vsel %vm1780, %v1773, %v1775
        %v1784 = vsel %vm1780, %v1779, %v1773
        %s1785 = scalar_lea.vmem %s2, 22
        %v1786 = vld [vmem:[%s1785] sm:$0x3]
        %v1788 = vsel %vm258, %v1786, 0
        %v1791 = vsel %vm262, %v1784, 0
        %v1794 = vsel %vm262, %v1783, 0
        %v1797 = vsel %vm262, %v1782, 0
        %v1800 = vsel %vm262, %v1781, 0
        %1802 = vmatpush.msra.mxu0 0.0
        %1803 = vmatpush.msra.mxu0 0.0
        %1804 = vmatpush.msra.mxu0 0.0
        %1805 = vmatpush.msra.mxu0 0.0
        %1806 = vmatpush.msra.mxu0 0.0
        %1807 = vmatpush.msra.mxu0 0.0
        %1808 = vmatpush.msra.mxu0 0.0
        %1809 = vmatpush.msra.mxu0 0.0
        %1810 = vmatpush.msra.mxu0 0.0
        %1811 = vmatpush.msra.mxu0 0.0
        %1812 = vmatpush.msra.mxu0 0.0
        %1813 = vmatpush.msra.mxu0 0.0
        %1814 = vmatpush.msra.mxu0 0.0
        %1815 = vmatpush.msra.mxu0 0.0
        %1816 = vmatpush.msra.mxu0 0.0
        %1817 = vmatpush.msra.mxu0 %v1791
        %1818 = vmatmul.f32.gmra.mxu0 %v1788
        %v1819 = vpop.f32.mrf.mxu0
        %v1820 = vadd.f32 0.0, %v1819
        %1821 = vdwg.mxu0
        %1822 = vmatpush.msra.mxu0 0.0
        %1823 = vmatpush.msra.mxu0 0.0
        %1824 = vmatpush.msra.mxu0 0.0
        %1825 = vmatpush.msra.mxu0 0.0
        %1826 = vmatpush.msra.mxu0 0.0
        %1827 = vmatpush.msra.mxu0 0.0
        %1828 = vmatpush.msra.mxu0 0.0
        %1829 = vmatpush.msra.mxu0 0.0
        %1830 = vmatpush.msra.mxu0 0.0
        %1831 = vmatpush.msra.mxu0 0.0
        %1832 = vmatpush.msra.mxu0 0.0
        %1833 = vmatpush.msra.mxu0 0.0
        %1834 = vmatpush.msra.mxu0 0.0
        %1835 = vmatpush.msra.mxu0 0.0
        %1836 = vmatpush.msra.mxu0 0.0
        %1837 = vmatpush.msra.mxu0 %v1794
        %1838 = vmatmul.f32.gmra.mxu0 %v1788
        %v1839 = vpop.f32.mrf.mxu0
        %v1840 = vadd.f32 0.0, %v1839
        %1841 = vdwg.mxu0
        %1842 = vmatpush.msra.mxu0 0.0
        %1843 = vmatpush.msra.mxu0 0.0
        %1844 = vmatpush.msra.mxu0 0.0
        %1845 = vmatpush.msra.mxu0 0.0
        %1846 = vmatpush.msra.mxu0 0.0
        %1847 = vmatpush.msra.mxu0 0.0
        %1848 = vmatpush.msra.mxu0 0.0
        %1849 = vmatpush.msra.mxu0 0.0
        %1850 = vmatpush.msra.mxu0 0.0
        %1851 = vmatpush.msra.mxu0 0.0
        %1852 = vmatpush.msra.mxu0 0.0
        %1853 = vmatpush.msra.mxu0 0.0
        %1854 = vmatpush.msra.mxu0 0.0
        %1855 = vmatpush.msra.mxu0 0.0
        %1856 = vmatpush.msra.mxu0 0.0
        %1857 = vmatpush.msra.mxu0 %v1797
        %1858 = vmatmul.f32.gmra.mxu0 %v1788
        %v1859 = vpop.f32.mrf.mxu0
        %v1860 = vadd.f32 0.0, %v1859
        %1861 = vdwg.mxu0
        %1862 = vmatpush.msra.mxu0 0.0
        %1863 = vmatpush.msra.mxu0 0.0
        %1864 = vmatpush.msra.mxu0 0.0
        %1865 = vmatpush.msra.mxu0 0.0
        %1866 = vmatpush.msra.mxu0 0.0
        %1867 = vmatpush.msra.mxu0 0.0
        %1868 = vmatpush.msra.mxu0 0.0
        %1869 = vmatpush.msra.mxu0 0.0
        %1870 = vmatpush.msra.mxu0 0.0
        %1871 = vmatpush.msra.mxu0 0.0
        %1872 = vmatpush.msra.mxu0 0.0
        %1873 = vmatpush.msra.mxu0 0.0
        %1874 = vmatpush.msra.mxu0 0.0
        %1875 = vmatpush.msra.mxu0 0.0
        %1876 = vmatpush.msra.mxu0 0.0
        %1877 = vmatpush.msra.mxu0 %v1800
        %1878 = vmatmul.f32.gmra.mxu0 %v1788
        %v1879 = vpop.f32.mrf.mxu0
        %v1880 = vadd.f32 0.0, %v1879
        %1881 = vdwg.mxu0
        %v1882 = vperm.slane %v1205, 2
        %v1883 = vperm.slane %v1206, 2
        %v1884 = vperm.slane %v1207, 2
        %v1885 = vperm.slane %v1208, 2
        %v1886 = vmul.f32 %v1820, %v1882
        %v1887 = vmul.f32 %v1840, %v1883
        %v1888 = vmul.f32 %v1860, %v1884
        %v1889 = vmul.f32 %v1880, %v1885
        %v1890 = vadd.f32 %v1757, %v1886
        %v1891 = vadd.f32 %v1758, %v1887
        %v1892 = vadd.f32 %v1759, %v1888
        %v1893 = vadd.f32 %v1760, %v1889
        %1894 = vst [vmem:[#allocation1] ss:$2 sm:$0xff] %v227
        %s1895 = scalar_lea.vmem [#allocation1], 16
        %1896 = vst [vmem:[%s1895] ss:$2 sm:$0xff] %v228
        %v1897 = vld.sshfl [vmem:[#allocation1] sm:$0xff pattern:$0x75316420]
        %v1898 = vld.sshfl [vmem:[#allocation1 + $0x8] sm:$0xff pattern:$0x75316420]
        %v1899 = vld.sshfl [vmem:[#allocation1 + $0x10] sm:$0xff pattern:$0x75316420]
        %v1900 = vld.sshfl [vmem:[#allocation1 + $0x18] sm:$0xff pattern:$0x75316420]
        %1905 = vrot.lane.b32.xlu0 %v1897, 1
        %v1906 = vpop.permute.xlu0 %1905
        %1907 = vrot.lane.b32.xlu0 %v1898, 1
        %v1908 = vpop.permute.xlu0 %1907
        %1909 = vrot.lane.b32.xlu0 %v1899, 1
        %v1910 = vpop.permute.xlu0 %1909
        %1911 = vrot.lane.b32.xlu0 %v1900, 1
        %v1912 = vpop.permute.xlu0 %1911
        %vm1913 = vcmp.lt.s32.totalorder %v251, 1
        %v1914 = vsel %vm1913, %v1910, %v1912
        %v1915 = vsel %vm1913, %v1908, %v1910
        %v1916 = vsel %vm1913, %v1906, %v1908
        %v1917 = vsel %vm1913, %v1912, %v1906
        %s1918 = scalar_lea.vmem %s2, 24
        %v1919 = vld [vmem:[%s1918] sm:$0x3]
        %v1921 = vsel %vm258, %v1919, 0
        %v1924 = vsel %vm262, %v1917, 0
        %v1927 = vsel %vm262, %v1916, 0
        %v1930 = vsel %vm262, %v1915, 0
        %v1933 = vsel %vm262, %v1914, 0
        %1935 = vmatpush.msra.mxu0 0.0
        %1936 = vmatpush.msra.mxu0 0.0
        %1937 = vmatpush.msra.mxu0 0.0
        %1938 = vmatpush.msra.mxu0 0.0
        %1939 = vmatpush.msra.mxu0 0.0
        %1940 = vmatpush.msra.mxu0 0.0
        %1941 = vmatpush.msra.mxu0 0.0
        %1942 = vmatpush.msra.mxu0 0.0
        %1943 = vmatpush.msra.mxu0 0.0
        %1944 = vmatpush.msra.mxu0 0.0
        %1945 = vmatpush.msra.mxu0 0.0
        %1946 = vmatpush.msra.mxu0 0.0
        %1947 = vmatpush.msra.mxu0 0.0
        %1948 = vmatpush.msra.mxu0 0.0
        %1949 = vmatpush.msra.mxu0 0.0
        %1950 = vmatpush.msra.mxu0 %v1924
        %1951 = vmatmul.f32.gmra.mxu0 %v1921
        %v1952 = vpop.f32.mrf.mxu0
        %v1953 = vadd.f32 0.0, %v1952
        %1954 = vdwg.mxu0
        %1955 = vmatpush.msra.mxu0 0.0
        %1956 = vmatpush.msra.mxu0 0.0
        %1957 = vmatpush.msra.mxu0 0.0
        %1958 = vmatpush.msra.mxu0 0.0
        %1959 = vmatpush.msra.mxu0 0.0
        %1960 = vmatpush.msra.mxu0 0.0
        %1961 = vmatpush.msra.mxu0 0.0
        %1962 = vmatpush.msra.mxu0 0.0
        %1963 = vmatpush.msra.mxu0 0.0
        %1964 = vmatpush.msra.mxu0 0.0
        %1965 = vmatpush.msra.mxu0 0.0
        %1966 = vmatpush.msra.mxu0 0.0
        %1967 = vmatpush.msra.mxu0 0.0
        %1968 = vmatpush.msra.mxu0 0.0
        %1969 = vmatpush.msra.mxu0 0.0
        %1970 = vmatpush.msra.mxu0 %v1927
        %1971 = vmatmul.f32.gmra.mxu0 %v1921
        %v1972 = vpop.f32.mrf.mxu0
        %v1973 = vadd.f32 0.0, %v1972
        %1974 = vdwg.mxu0
        %1975 = vmatpush.msra.mxu0 0.0
        %1976 = vmatpush.msra.mxu0 0.0
        %1977 = vmatpush.msra.mxu0 0.0
        %1978 = vmatpush.msra.mxu0 0.0
        %1979 = vmatpush.msra.mxu0 0.0
        %1980 = vmatpush.msra.mxu0 0.0
        %1981 = vmatpush.msra.mxu0 0.0
        %1982 = vmatpush.msra.mxu0 0.0
        %1983 = vmatpush.msra.mxu0 0.0
        %1984 = vmatpush.msra.mxu0 0.0
        %1985 = vmatpush.msra.mxu0 0.0
        %1986 = vmatpush.msra.mxu0 0.0
        %1987 = vmatpush.msra.mxu0 0.0
        %1988 = vmatpush.msra.mxu0 0.0
        %1989 = vmatpush.msra.mxu0 0.0
        %1990 = vmatpush.msra.mxu0 %v1930
        %1991 = vmatmul.f32.gmra.mxu0 %v1921
        %v1992 = vpop.f32.mrf.mxu0
        %v1993 = vadd.f32 0.0, %v1992
        %1994 = vdwg.mxu0
        %1995 = vmatpush.msra.mxu0 0.0
        %1996 = vmatpush.msra.mxu0 0.0
        %1997 = vmatpush.msra.mxu0 0.0
        %1998 = vmatpush.msra.mxu0 0.0
        %1999 = vmatpush.msra.mxu0 0.0
        %2000 = vmatpush.msra.mxu0 0.0
        %2001 = vmatpush.msra.mxu0 0.0
        %2002 = vmatpush.msra.mxu0 0.0
        %2003 = vmatpush.msra.mxu0 0.0
        %2004 = vmatpush.msra.mxu0 0.0
        %2005 = vmatpush.msra.mxu0 0.0
        %2006 = vmatpush.msra.mxu0 0.0
        %2007 = vmatpush.msra.mxu0 0.0
        %2008 = vmatpush.msra.mxu0 0.0
        %2009 = vmatpush.msra.mxu0 0.0
        %2010 = vmatpush.msra.mxu0 %v1933
        %2011 = vmatmul.f32.gmra.mxu0 %v1921
        %v2012 = vpop.f32.mrf.mxu0
        %v2013 = vadd.f32 0.0, %v2012
        %2014 = vdwg.mxu0
        %v2015 = vperm.slane %v223, 4
        %v2016 = vperm.slane %v224, 4
        %v2017 = vperm.slane %v225, 4
        %v2018 = vperm.slane %v226, 4
        %v2019 = vmul.f32 %v1953, %v2015
        %v2020 = vmul.f32 %v1973, %v2016
        %v2021 = vmul.f32 %v1993, %v2017
        %v2022 = vmul.f32 %v2013, %v2018
        %v2023 = vadd.f32 %v1890, %v2019
        %v2024 = vadd.f32 %v1891, %v2020
        %v2025 = vadd.f32 %v1892, %v2021
        %v2026 = vadd.f32 %v1893, %v2022
        %s2027 = scalar_lea.vmem %s2, 26
        %v2028 = vld [vmem:[%s2027] sm:$0x3]
        %2029 = vst [vmem:[#allocation1] ss:$2 sm:$0xff] %v227
        %s2030 = scalar_lea.vmem [#allocation1], 16
        %2031 = vst [vmem:[%s2030] ss:$2 sm:$0xff] %v228
        %v2032 = vld.sshfl [vmem:[#allocation1] sm:$0xff pattern:$0x75316420]
        %v2033 = vld.sshfl [vmem:[#allocation1 + $0x8] sm:$0xff pattern:$0x75316420]
        %v2034 = vld.sshfl [vmem:[#allocation1 + $0x10] sm:$0xff pattern:$0x75316420]
        %v2035 = vld.sshfl [vmem:[#allocation1 + $0x18] sm:$0xff pattern:$0x75316420]
        %v2037 = vsel %vm258, %v2028, 0
        %v2039 = vsel %vm262, %v2032, 0
        %v2041 = vsel %vm262, %v2033, 0
        %v2043 = vsel %vm262, %v2034, 0
        %v2045 = vsel %vm262, %v2035, 0
        %2047 = vmatpush.msra.mxu0 0.0
        %2048 = vmatpush.msra.mxu0 0.0
        %2049 = vmatpush.msra.mxu0 0.0
        %2050 = vmatpush.msra.mxu0 0.0
        %2051 = vmatpush.msra.mxu0 0.0
        %2052 = vmatpush.msra.mxu0 0.0
        %2053 = vmatpush.msra.mxu0 0.0
        %2054 = vmatpush.msra.mxu0 0.0
        %2055 = vmatpush.msra.mxu0 0.0
        %2056 = vmatpush.msra.mxu0 0.0
        %2057 = vmatpush.msra.mxu0 0.0
        %2058 = vmatpush.msra.mxu0 0.0
        %2059 = vmatpush.msra.mxu0 0.0
        %2060 = vmatpush.msra.mxu0 0.0
        %2061 = vmatpush.msra.mxu0 0.0
        %2062 = vmatpush.msra.mxu0 %v2039
        %2063 = vmatmul.f32.gmra.mxu0 %v2037
        %v2064 = vpop.f32.mrf.mxu0
        %v2065 = vadd.f32 0.0, %v2064
        %2066 = vdwg.mxu0
        %2067 = vmatpush.msra.mxu0 0.0
        %2068 = vmatpush.msra.mxu0 0.0
        %2069 = vmatpush.msra.mxu0 0.0
        %2070 = vmatpush.msra.mxu0 0.0
        %2071 = vmatpush.msra.mxu0 0.0
        %2072 = vmatpush.msra.mxu0 0.0
        %2073 = vmatpush.msra.mxu0 0.0
        %2074 = vmatpush.msra.mxu0 0.0
        %2075 = vmatpush.msra.mxu0 0.0
        %2076 = vmatpush.msra.mxu0 0.0
        %2077 = vmatpush.msra.mxu0 0.0
        %2078 = vmatpush.msra.mxu0 0.0
        %2079 = vmatpush.msra.mxu0 0.0
        %2080 = vmatpush.msra.mxu0 0.0
        %2081 = vmatpush.msra.mxu0 0.0
        %2082 = vmatpush.msra.mxu0 %v2041
        %2083 = vmatmul.f32.gmra.mxu0 %v2037
        %v2084 = vpop.f32.mrf.mxu0
        %v2085 = vadd.f32 0.0, %v2084
        %2086 = vdwg.mxu0
        %2087 = vmatpush.msra.mxu0 0.0
        %2088 = vmatpush.msra.mxu0 0.0
        %2089 = vmatpush.msra.mxu0 0.0
        %2090 = vmatpush.msra.mxu0 0.0
        %2091 = vmatpush.msra.mxu0 0.0
        %2092 = vmatpush.msra.mxu0 0.0
        %2093 = vmatpush.msra.mxu0 0.0
        %2094 = vmatpush.msra.mxu0 0.0
        %2095 = vmatpush.msra.mxu0 0.0
        %2096 = vmatpush.msra.mxu0 0.0
        %2097 = vmatpush.msra.mxu0 0.0
        %2098 = vmatpush.msra.mxu0 0.0
        %2099 = vmatpush.msra.mxu0 0.0
        %2100 = vmatpush.msra.mxu0 0.0
        %2101 = vmatpush.msra.mxu0 0.0
        %2102 = vmatpush.msra.mxu0 %v2043
        %2103 = vmatmul.f32.gmra.mxu0 %v2037
        %v2104 = vpop.f32.mrf.mxu0
        %v2105 = vadd.f32 0.0, %v2104
        %2106 = vdwg.mxu0
        %2107 = vmatpush.msra.mxu0 0.0
        %2108 = vmatpush.msra.mxu0 0.0
        %2109 = vmatpush.msra.mxu0 0.0
        %2110 = vmatpush.msra.mxu0 0.0
        %2111 = vmatpush.msra.mxu0 0.0
        %2112 = vmatpush.msra.mxu0 0.0
        %2113 = vmatpush.msra.mxu0 0.0
        %2114 = vmatpush.msra.mxu0 0.0
        %2115 = vmatpush.msra.mxu0 0.0
        %2116 = vmatpush.msra.mxu0 0.0
        %2117 = vmatpush.msra.mxu0 0.0
        %2118 = vmatpush.msra.mxu0 0.0
        %2119 = vmatpush.msra.mxu0 0.0
        %2120 = vmatpush.msra.mxu0 0.0
        %2121 = vmatpush.msra.mxu0 0.0
        %2122 = vmatpush.msra.mxu0 %v2045
        %2123 = vmatmul.f32.gmra.mxu0 %v2037
        %v2124 = vpop.f32.mrf.mxu0
        %v2125 = vadd.f32 0.0, %v2124
        %2126 = vdwg.mxu0
        %v2127 = vadd.f32 %v2023, %v2065
        %v2128 = vadd.f32 %v2024, %v2085
        %v2129 = vadd.f32 %v2025, %v2105
        %v2130 = vadd.f32 %v2026, %v2125
        %2131 = vst [vmem:[#allocation1] ss:$2 sm:$0xff] %v227
        %s2132 = scalar_lea.vmem [#allocation1], 16
        %2133 = vst [vmem:[%s2132] ss:$2 sm:$0xff] %v228
        %v2134 = vld.sshfl [vmem:[#allocation1] sm:$0xff pattern:$0x75316420]
        %v2135 = vld.sshfl [vmem:[#allocation1 + $0x8] sm:$0xff pattern:$0x75316420]
        %v2136 = vld.sshfl [vmem:[#allocation1 + $0x10] sm:$0xff pattern:$0x75316420]
        %v2137 = vld.sshfl [vmem:[#allocation1 + $0x18] sm:$0xff pattern:$0x75316420]
        %2142 = vrot.lane.b32.xlu0 %v2134, 127
        %v2143 = vpop.permute.xlu0 %2142
        %2144 = vrot.lane.b32.xlu0 %v2135, 127
        %v2145 = vpop.permute.xlu0 %2144
        %2146 = vrot.lane.b32.xlu0 %v2136, 127
        %v2147 = vpop.permute.xlu0 %2146
        %2148 = vrot.lane.b32.xlu0 %v2137, 127
        %v2149 = vpop.permute.xlu0 %2148
        %vm2150 = vcmp.lt.s32.totalorder %v251, 127
        %v2151 = vsel %vm2150, %v2147, %v2149
        %v2152 = vsel %vm2150, %v2145, %v2147
        %v2153 = vsel %vm2150, %v2143, %v2145
        %v2154 = vsel %vm2150, %v2149, %v2143
        %s2155 = scalar_lea.vmem %s2, 28
        %v2156 = vld [vmem:[%s2155] sm:$0x3]
        %v2158 = vsel %vm258, %v2156, 0
        %v2161 = vsel %vm262, %v2153, 0
        %v2164 = vsel %vm262, %v2152, 0
        %v2167 = vsel %vm262, %v2151, 0
        %v2170 = vsel %vm262, %v2154, 0
        %2172 = vmatpush.msra.mxu0 0.0
        %2173 = vmatpush.msra.mxu0 0.0
        %2174 = vmatpush.msra.mxu0 0.0
        %2175 = vmatpush.msra.mxu0 0.0
        %2176 = vmatpush.msra.mxu0 0.0
        %2177 = vmatpush.msra.mxu0 0.0
        %2178 = vmatpush.msra.mxu0 0.0
        %2179 = vmatpush.msra.mxu0 0.0
        %2180 = vmatpush.msra.mxu0 0.0
        %2181 = vmatpush.msra.mxu0 0.0
        %2182 = vmatpush.msra.mxu0 0.0
        %2183 = vmatpush.msra.mxu0 0.0
        %2184 = vmatpush.msra.mxu0 0.0
        %2185 = vmatpush.msra.mxu0 0.0
        %2186 = vmatpush.msra.mxu0 0.0
        %2187 = vmatpush.msra.mxu0 %v2161
        %2188 = vmatmul.f32.gmra.mxu0 %v2158
        %v2189 = vpop.f32.mrf.mxu0
        %v2190 = vadd.f32 0.0, %v2189
        %2191 = vdwg.mxu0
        %2192 = vmatpush.msra.mxu0 0.0
        %2193 = vmatpush.msra.mxu0 0.0
        %2194 = vmatpush.msra.mxu0 0.0
        %2195 = vmatpush.msra.mxu0 0.0
        %2196 = vmatpush.msra.mxu0 0.0
        %2197 = vmatpush.msra.mxu0 0.0
        %2198 = vmatpush.msra.mxu0 0.0
        %2199 = vmatpush.msra.mxu0 0.0
        %2200 = vmatpush.msra.mxu0 0.0
        %2201 = vmatpush.msra.mxu0 0.0
        %2202 = vmatpush.msra.mxu0 0.0
        %2203 = vmatpush.msra.mxu0 0.0
        %2204 = vmatpush.msra.mxu0 0.0
        %2205 = vmatpush.msra.mxu0 0.0
        %2206 = vmatpush.msra.mxu0 0.0
        %2207 = vmatpush.msra.mxu0 %v2164
        %2208 = vmatmul.f32.gmra.mxu0 %v2158
        %v2209 = vpop.f32.mrf.mxu0
        %v2210 = vadd.f32 0.0, %v2209
        %2211 = vdwg.mxu0
        %2212 = vmatpush.msra.mxu0 0.0
        %2213 = vmatpush.msra.mxu0 0.0
        %2214 = vmatpush.msra.mxu0 0.0
        %2215 = vmatpush.msra.mxu0 0.0
        %2216 = vmatpush.msra.mxu0 0.0
        %2217 = vmatpush.msra.mxu0 0.0
        %2218 = vmatpush.msra.mxu0 0.0
        %2219 = vmatpush.msra.mxu0 0.0
        %2220 = vmatpush.msra.mxu0 0.0
        %2221 = vmatpush.msra.mxu0 0.0
        %2222 = vmatpush.msra.mxu0 0.0
        %2223 = vmatpush.msra.mxu0 0.0
        %2224 = vmatpush.msra.mxu0 0.0
        %2225 = vmatpush.msra.mxu0 0.0
        %2226 = vmatpush.msra.mxu0 0.0
        %2227 = vmatpush.msra.mxu0 %v2167
        %2228 = vmatmul.f32.gmra.mxu0 %v2158
        %v2229 = vpop.f32.mrf.mxu0
        %v2230 = vadd.f32 0.0, %v2229
        %2231 = vdwg.mxu0
        %2232 = vmatpush.msra.mxu0 0.0
        %2233 = vmatpush.msra.mxu0 0.0
        %2234 = vmatpush.msra.mxu0 0.0
        %2235 = vmatpush.msra.mxu0 0.0
        %2236 = vmatpush.msra.mxu0 0.0
        %2237 = vmatpush.msra.mxu0 0.0
        %2238 = vmatpush.msra.mxu0 0.0
        %2239 = vmatpush.msra.mxu0 0.0
        %2240 = vmatpush.msra.mxu0 0.0
        %2241 = vmatpush.msra.mxu0 0.0
        %2242 = vmatpush.msra.mxu0 0.0
        %2243 = vmatpush.msra.mxu0 0.0
        %2244 = vmatpush.msra.mxu0 0.0
        %2245 = vmatpush.msra.mxu0 0.0
        %2246 = vmatpush.msra.mxu0 0.0
        %2247 = vmatpush.msra.mxu0 %v2170
        %2248 = vmatmul.f32.gmra.mxu0 %v2158
        %v2249 = vpop.f32.mrf.mxu0
        %v2250 = vadd.f32 0.0, %v2249
        %2251 = vdwg.mxu0
        %v2252 = vperm.slane %v223, 5
        %v2253 = vperm.slane %v224, 5
        %v2254 = vperm.slane %v225, 5
        %v2255 = vperm.slane %v226, 5
        %v2256 = vmul.f32 %v2190, %v2252
        %v2257 = vmul.f32 %v2210, %v2253
        %v2258 = vmul.f32 %v2230, %v2254
        %v2259 = vmul.f32 %v2250, %v2255
        %v2260 = vadd.f32 %v2127, %v2256
        %v2261 = vadd.f32 %v2128, %v2257
        %v2262 = vadd.f32 %v2129, %v2258
        %v2263 = vadd.f32 %v2130, %v2259
        %2264 = vst [vmem:[#allocation1] ss:$2 sm:$0xff] %v227
        %s2265 = scalar_lea.vmem [#allocation1], 16
        %2266 = vst [vmem:[%s2265] ss:$2 sm:$0xff] %v228
        %v2267 = vld.sshfl [vmem:[#allocation1] sm:$0xff pattern:$0x75316420]
        %v2268 = vld.sshfl [vmem:[#allocation1 + $0x8] sm:$0xff pattern:$0x75316420]
        %v2269 = vld.sshfl [vmem:[#allocation1 + $0x10] sm:$0xff pattern:$0x75316420]
        %v2270 = vld.sshfl [vmem:[#allocation1 + $0x18] sm:$0xff pattern:$0x75316420]
        %2275 = vrot.lane.b32.xlu0 %v2267, 121
        %v2276 = vpop.permute.xlu0 %2275
        %2277 = vrot.lane.b32.xlu0 %v2268, 121
        %v2278 = vpop.permute.xlu0 %2277
        %2279 = vrot.lane.b32.xlu0 %v2269, 121
        %v2280 = vpop.permute.xlu0 %2279
        %2281 = vrot.lane.b32.xlu0 %v2270, 121
        %v2282 = vpop.permute.xlu0 %2281
        %vm2283 = vcmp.lt.s32.totalorder %v251, 121
        %v2284 = vsel %vm2283, %v2280, %v2282
        %v2285 = vsel %vm2283, %v2278, %v2280
        %v2286 = vsel %vm2283, %v2276, %v2278
        %v2287 = vsel %vm2283, %v2282, %v2276
        %s2288 = scalar_lea.vmem %s2, 30
        %v2289 = vld [vmem:[%s2288] sm:$0x3]
        %v2291 = vsel %vm258, %v2289, 0
        %v2294 = vsel %vm262, %v2286, 0
        %v2297 = vsel %vm262, %v2285, 0
        %v2300 = vsel %vm262, %v2284, 0
        %v2303 = vsel %vm262, %v2287, 0
        %2305 = vmatpush.msra.mxu0 0.0
        %2306 = vmatpush.msra.mxu0 0.0
        %2307 = vmatpush.msra.mxu0 0.0
        %2308 = vmatpush.msra.mxu0 0.0
        %2309 = vmatpush.msra.mxu0 0.0
        %2310 = vmatpush.msra.mxu0 0.0
        %2311 = vmatpush.msra.mxu0 0.0
        %2312 = vmatpush.msra.mxu0 0.0
        %2313 = vmatpush.msra.mxu0 0.0
        %2314 = vmatpush.msra.mxu0 0.0
        %2315 = vmatpush.msra.mxu0 0.0
        %2316 = vmatpush.msra.mxu0 0.0
        %2317 = vmatpush.msra.mxu0 0.0
        %2318 = vmatpush.msra.mxu0 0.0
        %2319 = vmatpush.msra.mxu0 0.0
        %2320 = vmatpush.msra.mxu0 %v2294
        %2321 = vmatmul.f32.gmra.mxu0 %v2291
        %v2322 = vpop.f32.mrf.mxu0
        %v2323 = vadd.f32 0.0, %v2322
        %2324 = vdwg.mxu0
        %2325 = vmatpush.msra.mxu0 0.0
        %2326 = vmatpush.msra.mxu0 0.0
        %2327 = vmatpush.msra.mxu0 0.0
        %2328 = vmatpush.msra.mxu0 0.0
        %2329 = vmatpush.msra.mxu0 0.0
        %2330 = vmatpush.msra.mxu0 0.0
        %2331 = vmatpush.msra.mxu0 0.0
        %2332 = vmatpush.msra.mxu0 0.0
        %2333 = vmatpush.msra.mxu0 0.0
        %2334 = vmatpush.msra.mxu0 0.0
        %2335 = vmatpush.msra.mxu0 0.0
        %2336 = vmatpush.msra.mxu0 0.0
        %2337 = vmatpush.msra.mxu0 0.0
        %2338 = vmatpush.msra.mxu0 0.0
        %2339 = vmatpush.msra.mxu0 0.0
        %2340 = vmatpush.msra.mxu0 %v2297
        %2341 = vmatmul.f32.gmra.mxu0 %v2291
        %v2342 = vpop.f32.mrf.mxu0
        %v2343 = vadd.f32 0.0, %v2342
        %2344 = vdwg.mxu0
        %2345 = vmatpush.msra.mxu0 0.0
        %2346 = vmatpush.msra.mxu0 0.0
        %2347 = vmatpush.msra.mxu0 0.0
        %2348 = vmatpush.msra.mxu0 0.0
        %2349 = vmatpush.msra.mxu0 0.0
        %2350 = vmatpush.msra.mxu0 0.0
        %2351 = vmatpush.msra.mxu0 0.0
        %2352 = vmatpush.msra.mxu0 0.0
        %2353 = vmatpush.msra.mxu0 0.0
        %2354 = vmatpush.msra.mxu0 0.0
        %2355 = vmatpush.msra.mxu0 0.0
        %2356 = vmatpush.msra.mxu0 0.0
        %2357 = vmatpush.msra.mxu0 0.0
        %2358 = vmatpush.msra.mxu0 0.0
        %2359 = vmatpush.msra.mxu0 0.0
        %2360 = vmatpush.msra.mxu0 %v2300
        %2361 = vmatmul.f32.gmra.mxu0 %v2291
        %v2362 = vpop.f32.mrf.mxu0
        %v2363 = vadd.f32 0.0, %v2362
        %2364 = vdwg.mxu0
        %2365 = vmatpush.msra.mxu0 0.0
        %2366 = vmatpush.msra.mxu0 0.0
        %2367 = vmatpush.msra.mxu0 0.0
        %2368 = vmatpush.msra.mxu0 0.0
        %2369 = vmatpush.msra.mxu0 0.0
        %2370 = vmatpush.msra.mxu0 0.0
        %2371 = vmatpush.msra.mxu0 0.0
        %2372 = vmatpush.msra.mxu0 0.0
        %2373 = vmatpush.msra.mxu0 0.0
        %2374 = vmatpush.msra.mxu0 0.0
        %2375 = vmatpush.msra.mxu0 0.0
        %2376 = vmatpush.msra.mxu0 0.0
        %2377 = vmatpush.msra.mxu0 0.0
        %2378 = vmatpush.msra.mxu0 0.0
        %2379 = vmatpush.msra.mxu0 0.0
        %2380 = vmatpush.msra.mxu0 %v2303
        %2381 = vmatmul.f32.gmra.mxu0 %v2291
        %v2382 = vpop.f32.mrf.mxu0
        %v2383 = vadd.f32 0.0, %v2382
        %2384 = vdwg.mxu0
        %v2385 = vrot.slane %v223, 1
        %v2386 = vrot.slane %v224, 1
        %v2387 = vrot.slane %v225, 1
        %v2388 = vrot.slane %v226, 1
        %v2393 = vmul.f32 %v223, %v2385
        %v2394 = vmul.f32 %v224, %v2386
        %v2395 = vmul.f32 %v225, %v2387
        %v2396 = vmul.f32 %v226, %v2388
        %v2397 = vperm.slane %v2393, 3
        %v2398 = vperm.slane %v2394, 3
        %v2399 = vperm.slane %v2395, 3
        %v2400 = vperm.slane %v2396, 3
        %v2401 = vmul.f32 %v2323, %v2397
        %v2402 = vmul.f32 %v2343, %v2398
        %v2403 = vmul.f32 %v2363, %v2399
        %v2404 = vmul.f32 %v2383, %v2400
        %v2405 = vadd.f32 %v2260, %v2401
        %v2406 = vadd.f32 %v2261, %v2402
        %v2407 = vadd.f32 %v2262, %v2403
        %v2408 = vadd.f32 %v2263, %v2404
        %2409 = vst [vmem:[#allocation1] ss:$2 sm:$0xff] %v227
        %s2410 = scalar_lea.vmem [#allocation1], 16
        %2411 = vst [vmem:[%s2410] ss:$2 sm:$0xff] %v228
        %v2412 = vld.sshfl [vmem:[#allocation1] sm:$0xff pattern:$0x75316420]
        %v2413 = vld.sshfl [vmem:[#allocation1 + $0x8] sm:$0xff pattern:$0x75316420]
        %v2414 = vld.sshfl [vmem:[#allocation1 + $0x10] sm:$0xff pattern:$0x75316420]
        %v2415 = vld.sshfl [vmem:[#allocation1 + $0x18] sm:$0xff pattern:$0x75316420]
        %2420 = vrot.lane.b32.xlu0 %v2412, 120
        %v2421 = vpop.permute.xlu0 %2420
        %2422 = vrot.lane.b32.xlu0 %v2413, 120
        %v2423 = vpop.permute.xlu0 %2422
        %2424 = vrot.lane.b32.xlu0 %v2414, 120
        %v2425 = vpop.permute.xlu0 %2424
        %2426 = vrot.lane.b32.xlu0 %v2415, 120
        %v2427 = vpop.permute.xlu0 %2426
        %vm2428 = vcmp.lt.s32.totalorder %v251, 120
        %v2429 = vsel %vm2428, %v2425, %v2427
        %v2430 = vsel %vm2428, %v2423, %v2425
        %v2431 = vsel %vm2428, %v2421, %v2423
        %v2432 = vsel %vm2428, %v2427, %v2421
        %s2433 = scalar_lea.vmem %s2, 32
        %v2434 = vld [vmem:[%s2433] sm:$0x3]
        %v2436 = vsel %vm258, %v2434, 0
        %v2439 = vsel %vm262, %v2431, 0
        %v2442 = vsel %vm262, %v2430, 0
        %v2445 = vsel %vm262, %v2429, 0
        %v2448 = vsel %vm262, %v2432, 0
        %2450 = vmatpush.msra.mxu0 0.0
        %2451 = vmatpush.msra.mxu0 0.0
        %2452 = vmatpush.msra.mxu0 0.0
        %2453 = vmatpush.msra.mxu0 0.0
        %2454 = vmatpush.msra.mxu0 0.0
        %2455 = vmatpush.msra.mxu0 0.0
        %2456 = vmatpush.msra.mxu0 0.0
        %2457 = vmatpush.msra.mxu0 0.0
        %2458 = vmatpush.msra.mxu0 0.0
        %2459 = vmatpush.msra.mxu0 0.0
        %2460 = vmatpush.msra.mxu0 0.0
        %2461 = vmatpush.msra.mxu0 0.0
        %2462 = vmatpush.msra.mxu0 0.0
        %2463 = vmatpush.msra.mxu0 0.0
        %2464 = vmatpush.msra.mxu0 0.0
        %2465 = vmatpush.msra.mxu0 %v2439
        %2466 = vmatmul.f32.gmra.mxu0 %v2436
        %v2467 = vpop.f32.mrf.mxu0
        %v2468 = vadd.f32 0.0, %v2467
        %2469 = vdwg.mxu0
        %2470 = vmatpush.msra.mxu0 0.0
        %2471 = vmatpush.msra.mxu0 0.0
        %2472 = vmatpush.msra.mxu0 0.0
        %2473 = vmatpush.msra.mxu0 0.0
        %2474 = vmatpush.msra.mxu0 0.0
        %2475 = vmatpush.msra.mxu0 0.0
        %2476 = vmatpush.msra.mxu0 0.0
        %2477 = vmatpush.msra.mxu0 0.0
        %2478 = vmatpush.msra.mxu0 0.0
        %2479 = vmatpush.msra.mxu0 0.0
        %2480 = vmatpush.msra.mxu0 0.0
        %2481 = vmatpush.msra.mxu0 0.0
        %2482 = vmatpush.msra.mxu0 0.0
        %2483 = vmatpush.msra.mxu0 0.0
        %2484 = vmatpush.msra.mxu0 0.0
        %2485 = vmatpush.msra.mxu0 %v2442
        %2486 = vmatmul.f32.gmra.mxu0 %v2436
        %v2487 = vpop.f32.mrf.mxu0
        %v2488 = vadd.f32 0.0, %v2487
        %2489 = vdwg.mxu0
        %2490 = vmatpush.msra.mxu0 0.0
        %2491 = vmatpush.msra.mxu0 0.0
        %2492 = vmatpush.msra.mxu0 0.0
        %2493 = vmatpush.msra.mxu0 0.0
        %2494 = vmatpush.msra.mxu0 0.0
        %2495 = vmatpush.msra.mxu0 0.0
        %2496 = vmatpush.msra.mxu0 0.0
        %2497 = vmatpush.msra.mxu0 0.0
        %2498 = vmatpush.msra.mxu0 0.0
        %2499 = vmatpush.msra.mxu0 0.0
        %2500 = vmatpush.msra.mxu0 0.0
        %2501 = vmatpush.msra.mxu0 0.0
        %2502 = vmatpush.msra.mxu0 0.0
        %2503 = vmatpush.msra.mxu0 0.0
        %2504 = vmatpush.msra.mxu0 0.0
        %2505 = vmatpush.msra.mxu0 %v2445
        %2506 = vmatmul.f32.gmra.mxu0 %v2436
        %v2507 = vpop.f32.mrf.mxu0
        %v2508 = vadd.f32 0.0, %v2507
        %2509 = vdwg.mxu0
        %2510 = vmatpush.msra.mxu0 0.0
        %2511 = vmatpush.msra.mxu0 0.0
        %2512 = vmatpush.msra.mxu0 0.0
        %2513 = vmatpush.msra.mxu0 0.0
        %2514 = vmatpush.msra.mxu0 0.0
        %2515 = vmatpush.msra.mxu0 0.0
        %2516 = vmatpush.msra.mxu0 0.0
        %2517 = vmatpush.msra.mxu0 0.0
        %2518 = vmatpush.msra.mxu0 0.0
        %2519 = vmatpush.msra.mxu0 0.0
        %2520 = vmatpush.msra.mxu0 0.0
        %2521 = vmatpush.msra.mxu0 0.0
        %2522 = vmatpush.msra.mxu0 0.0
        %2523 = vmatpush.msra.mxu0 0.0
        %2524 = vmatpush.msra.mxu0 0.0
        %2525 = vmatpush.msra.mxu0 %v2448
        %2526 = vmatmul.f32.gmra.mxu0 %v2436
        %v2527 = vpop.f32.mrf.mxu0
        %v2528 = vadd.f32 0.0, %v2527
        %2529 = vdwg.mxu0
        %v2530 = vperm.slane %v223, 3
        %v2531 = vperm.slane %v224, 3
        %v2532 = vperm.slane %v225, 3
        %v2533 = vperm.slane %v226, 3
        %v2534 = vmul.f32 %v2468, %v2530
        %v2535 = vmul.f32 %v2488, %v2531
        %v2536 = vmul.f32 %v2508, %v2532
        %v2537 = vmul.f32 %v2528, %v2533
        %v2538 = vadd.f32 %v2405, %v2534
        %v2539 = vadd.f32 %v2406, %v2535
        %v2540 = vadd.f32 %v2407, %v2536
        %v2541 = vadd.f32 %v2408, %v2537
        %2542 = vst [vmem:[#allocation1] ss:$2 sm:$0xff] %v227
        %s2543 = scalar_lea.vmem [#allocation1], 16
        %2544 = vst [vmem:[%s2543] ss:$2 sm:$0xff] %v228
        %v2545 = vld.sshfl [vmem:[#allocation1] sm:$0xff pattern:$0x75316420]
        %v2546 = vld.sshfl [vmem:[#allocation1 + $0x8] sm:$0xff pattern:$0x75316420]
        %v2547 = vld.sshfl [vmem:[#allocation1 + $0x10] sm:$0xff pattern:$0x75316420]
        %v2548 = vld.sshfl [vmem:[#allocation1 + $0x18] sm:$0xff pattern:$0x75316420]
        %2553 = vrot.lane.b32.xlu0 %v2545, 119
        %v2554 = vpop.permute.xlu0 %2553
        %2555 = vrot.lane.b32.xlu0 %v2546, 119
        %v2556 = vpop.permute.xlu0 %2555
        %2557 = vrot.lane.b32.xlu0 %v2547, 119
        %v2558 = vpop.permute.xlu0 %2557
        %2559 = vrot.lane.b32.xlu0 %v2548, 119
        %v2560 = vpop.permute.xlu0 %2559
        %vm2561 = vcmp.lt.s32.totalorder %v251, 119
        %v2562 = vsel %vm2561, %v2558, %v2560
        %v2563 = vsel %vm2561, %v2556, %v2558
        %v2564 = vsel %vm2561, %v2554, %v2556
        %v2565 = vsel %vm2561, %v2560, %v2554
        %s2566 = scalar_lea.vmem %s2, 34
        %v2567 = vld [vmem:[%s2566] sm:$0x3]
        %v2569 = vsel %vm258, %v2567, 0
        %v2572 = vsel %vm262, %v2564, 0
        %v2575 = vsel %vm262, %v2563, 0
        %v2578 = vsel %vm262, %v2562, 0
        %v2581 = vsel %vm262, %v2565, 0
        %2583 = vmatpush.msra.mxu0 0.0
        %2584 = vmatpush.msra.mxu0 0.0
        %2585 = vmatpush.msra.mxu0 0.0
        %2586 = vmatpush.msra.mxu0 0.0
        %2587 = vmatpush.msra.mxu0 0.0
        %2588 = vmatpush.msra.mxu0 0.0
        %2589 = vmatpush.msra.mxu0 0.0
        %2590 = vmatpush.msra.mxu0 0.0
        %2591 = vmatpush.msra.mxu0 0.0
        %2592 = vmatpush.msra.mxu0 0.0
        %2593 = vmatpush.msra.mxu0 0.0
        %2594 = vmatpush.msra.mxu0 0.0
        %2595 = vmatpush.msra.mxu0 0.0
        %2596 = vmatpush.msra.mxu0 0.0
        %2597 = vmatpush.msra.mxu0 0.0
        %2598 = vmatpush.msra.mxu0 %v2572
        %2599 = vmatmul.f32.gmra.mxu0 %v2569
        %v2600 = vpop.f32.mrf.mxu0
        %v2601 = vadd.f32 0.0, %v2600
        %2602 = vdwg.mxu0
        %2603 = vmatpush.msra.mxu0 0.0
        %2604 = vmatpush.msra.mxu0 0.0
        %2605 = vmatpush.msra.mxu0 0.0
        %2606 = vmatpush.msra.mxu0 0.0
        %2607 = vmatpush.msra.mxu0 0.0
        %2608 = vmatpush.msra.mxu0 0.0
        %2609 = vmatpush.msra.mxu0 0.0
        %2610 = vmatpush.msra.mxu0 0.0
        %2611 = vmatpush.msra.mxu0 0.0
        %2612 = vmatpush.msra.mxu0 0.0
        %2613 = vmatpush.msra.mxu0 0.0
        %2614 = vmatpush.msra.mxu0 0.0
        %2615 = vmatpush.msra.mxu0 0.0
        %2616 = vmatpush.msra.mxu0 0.0
        %2617 = vmatpush.msra.mxu0 0.0
        %2618 = vmatpush.msra.mxu0 %v2575
        %2619 = vmatmul.f32.gmra.mxu0 %v2569
        %v2620 = vpop.f32.mrf.mxu0
        %v2621 = vadd.f32 0.0, %v2620
        %2622 = vdwg.mxu0
        %2623 = vmatpush.msra.mxu0 0.0
        %2624 = vmatpush.msra.mxu0 0.0
        %2625 = vmatpush.msra.mxu0 0.0
        %2626 = vmatpush.msra.mxu0 0.0
        %2627 = vmatpush.msra.mxu0 0.0
        %2628 = vmatpush.msra.mxu0 0.0
        %2629 = vmatpush.msra.mxu0 0.0
        %2630 = vmatpush.msra.mxu0 0.0
        %2631 = vmatpush.msra.mxu0 0.0
        %2632 = vmatpush.msra.mxu0 0.0
        %2633 = vmatpush.msra.mxu0 0.0
        %2634 = vmatpush.msra.mxu0 0.0
        %2635 = vmatpush.msra.mxu0 0.0
        %2636 = vmatpush.msra.mxu0 0.0
        %2637 = vmatpush.msra.mxu0 0.0
        %2638 = vmatpush.msra.mxu0 %v2578
        %2639 = vmatmul.f32.gmra.mxu0 %v2569
        %v2640 = vpop.f32.mrf.mxu0
        %v2641 = vadd.f32 0.0, %v2640
        %2642 = vdwg.mxu0
        %2643 = vmatpush.msra.mxu0 0.0
        %2644 = vmatpush.msra.mxu0 0.0
        %2645 = vmatpush.msra.mxu0 0.0
        %2646 = vmatpush.msra.mxu0 0.0
        %2647 = vmatpush.msra.mxu0 0.0
        %2648 = vmatpush.msra.mxu0 0.0
        %2649 = vmatpush.msra.mxu0 0.0
        %2650 = vmatpush.msra.mxu0 0.0
        %2651 = vmatpush.msra.mxu0 0.0
        %2652 = vmatpush.msra.mxu0 0.0
        %2653 = vmatpush.msra.mxu0 0.0
        %2654 = vmatpush.msra.mxu0 0.0
        %2655 = vmatpush.msra.mxu0 0.0
        %2656 = vmatpush.msra.mxu0 0.0
        %2657 = vmatpush.msra.mxu0 0.0
        %2658 = vmatpush.msra.mxu0 %v2581
        %2659 = vmatmul.f32.gmra.mxu0 %v2569
        %v2660 = vpop.f32.mrf.mxu0
        %v2661 = vadd.f32 0.0, %v2660
        %2662 = vdwg.mxu0
        %v2663 = vperm.slane %v367, 3
        %v2664 = vperm.slane %v368, 3
        %v2665 = vperm.slane %v369, 3
        %v2666 = vperm.slane %v370, 3
        %v2667 = vmul.f32 %v2601, %v2663
        %v2668 = vmul.f32 %v2621, %v2664
        %v2669 = vmul.f32 %v2641, %v2665
        %v2670 = vmul.f32 %v2661, %v2666
        %v2671 = vadd.f32 %v2538, %v2667
        %v2672 = vadd.f32 %v2539, %v2668
        %v2673 = vadd.f32 %v2540, %v2669
        %v2674 = vadd.f32 %v2541, %v2670
        %2675 = vst [vmem:[#allocation1] ss:$2 sm:$0xff] %v227
        %s2676 = scalar_lea.vmem [#allocation1], 16
        %2677 = vst [vmem:[%s2676] ss:$2 sm:$0xff] %v228
        %v2678 = vld.sshfl [vmem:[#allocation1] sm:$0xff pattern:$0x75316420]
        %v2679 = vld.sshfl [vmem:[#allocation1 + $0x8] sm:$0xff pattern:$0x75316420]
        %v2680 = vld.sshfl [vmem:[#allocation1 + $0x10] sm:$0xff pattern:$0x75316420]
        %v2681 = vld.sshfl [vmem:[#allocation1 + $0x18] sm:$0xff pattern:$0x75316420]
        %2686 = vrot.lane.b32.xlu0 %v2678, 73
        %v2687 = vpop.permute.xlu0 %2686
        %2688 = vrot.lane.b32.xlu0 %v2679, 73
        %v2689 = vpop.permute.xlu0 %2688
        %2690 = vrot.lane.b32.xlu0 %v2680, 73
        %v2691 = vpop.permute.xlu0 %2690
        %2692 = vrot.lane.b32.xlu0 %v2681, 73
        %v2693 = vpop.permute.xlu0 %2692
        %v2694 = vsel %vm252, %v2691, %v2693
        %v2695 = vsel %vm252, %v2689, %v2691
        %v2696 = vsel %vm252, %v2687, %v2689
        %v2697 = vsel %vm252, %v2693, %v2687
        %s2698 = scalar_lea.vmem %s2, 36
        %v2699 = vld [vmem:[%s2698] sm:$0x3]
        %v2701 = vsel %vm258, %v2699, 0
        %v2704 = vsel %vm262, %v2696, 0
        %v2707 = vsel %vm262, %v2695, 0
        %v2710 = vsel %vm262, %v2694, 0
        %v2713 = vsel %vm262, %v2697, 0
        %2715 = vmatpush.msra.mxu0 0.0
        %2716 = vmatpush.msra.mxu0 0.0
        %2717 = vmatpush.msra.mxu0 0.0
        %2718 = vmatpush.msra.mxu0 0.0
        %2719 = vmatpush.msra.mxu0 0.0
        %2720 = vmatpush.msra.mxu0 0.0
        %2721 = vmatpush.msra.mxu0 0.0
        %2722 = vmatpush.msra.mxu0 0.0
        %2723 = vmatpush.msra.mxu0 0.0
        %2724 = vmatpush.msra.mxu0 0.0
        %2725 = vmatpush.msra.mxu0 0.0
        %2726 = vmatpush.msra.mxu0 0.0
        %2727 = vmatpush.msra.mxu0 0.0
        %2728 = vmatpush.msra.mxu0 0.0
        %2729 = vmatpush.msra.mxu0 0.0
        %2730 = vmatpush.msra.mxu0 %v2704
        %2731 = vmatmul.f32.gmra.mxu0 %v2701
        %v2732 = vpop.f32.mrf.mxu0
        %v2733 = vadd.f32 0.0, %v2732
        %2734 = vdwg.mxu0
        %2735 = vmatpush.msra.mxu0 0.0
        %2736 = vmatpush.msra.mxu0 0.0
        %2737 = vmatpush.msra.mxu0 0.0
        %2738 = vmatpush.msra.mxu0 0.0
        %2739 = vmatpush.msra.mxu0 0.0
        %2740 = vmatpush.msra.mxu0 0.0
        %2741 = vmatpush.msra.mxu0 0.0
        %2742 = vmatpush.msra.mxu0 0.0
        %2743 = vmatpush.msra.mxu0 0.0
        %2744 = vmatpush.msra.mxu0 0.0
        %2745 = vmatpush.msra.mxu0 0.0
        %2746 = vmatpush.msra.mxu0 0.0
        %2747 = vmatpush.msra.mxu0 0.0
        %2748 = vmatpush.msra.mxu0 0.0
        %2749 = vmatpush.msra.mxu0 0.0
        %2750 = vmatpush.msra.mxu0 %v2707
        %2751 = vmatmul.f32.gmra.mxu0 %v2701
        %v2752 = vpop.f32.mrf.mxu0
        %v2753 = vadd.f32 0.0, %v2752
        %2754 = vdwg.mxu0
        %2755 = vmatpush.msra.mxu0 0.0
        %2756 = vmatpush.msra.mxu0 0.0
        %2757 = vmatpush.msra.mxu0 0.0
        %2758 = vmatpush.msra.mxu0 0.0
        %2759 = vmatpush.msra.mxu0 0.0
        %2760 = vmatpush.msra.mxu0 0.0
        %2761 = vmatpush.msra.mxu0 0.0
        %2762 = vmatpush.msra.mxu0 0.0
        %2763 = vmatpush.msra.mxu0 0.0
        %2764 = vmatpush.msra.mxu0 0.0
        %2765 = vmatpush.msra.mxu0 0.0
        %2766 = vmatpush.msra.mxu0 0.0
        %2767 = vmatpush.msra.mxu0 0.0
        %2768 = vmatpush.msra.mxu0 0.0
        %2769 = vmatpush.msra.mxu0 0.0
        %2770 = vmatpush.msra.mxu0 %v2710
        %2771 = vmatmul.f32.gmra.mxu0 %v2701
        %v2772 = vpop.f32.mrf.mxu0
        %v2773 = vadd.f32 0.0, %v2772
        %2774 = vdwg.mxu0
        %2775 = vmatpush.msra.mxu0 0.0
        %2776 = vmatpush.msra.mxu0 0.0
        %2777 = vmatpush.msra.mxu0 0.0
        %2778 = vmatpush.msra.mxu0 0.0
        %2779 = vmatpush.msra.mxu0 0.0
        %2780 = vmatpush.msra.mxu0 0.0
        %2781 = vmatpush.msra.mxu0 0.0
        %2782 = vmatpush.msra.mxu0 0.0
        %2783 = vmatpush.msra.mxu0 0.0
        %2784 = vmatpush.msra.mxu0 0.0
        %2785 = vmatpush.msra.mxu0 0.0
        %2786 = vmatpush.msra.mxu0 0.0
        %2787 = vmatpush.msra.mxu0 0.0
        %2788 = vmatpush.msra.mxu0 0.0
        %2789 = vmatpush.msra.mxu0 0.0
        %2790 = vmatpush.msra.mxu0 %v2713
        %2791 = vmatmul.f32.gmra.mxu0 %v2701
        %v2792 = vpop.f32.mrf.mxu0
        %v2793 = vadd.f32 0.0, %v2792
        %2794 = vdwg.mxu0
        %v2795 = vmul.f32 %v2393, %v1197
        %v2796 = vmul.f32 %v2394, %v1198
        %v2797 = vmul.f32 %v2395, %v1199
        %v2798 = vmul.f32 %v2396, %v1200
        %v2799 = vperm.slane %v2795, 1
        %v2800 = vperm.slane %v2796, 1
        %v2801 = vperm.slane %v2797, 1
        %v2802 = vperm.slane %v2798, 1
        %v2803 = vmul.f32 %v2733, %v2799
        %v2804 = vmul.f32 %v2753, %v2800
        %v2805 = vmul.f32 %v2773, %v2801
        %v2806 = vmul.f32 %v2793, %v2802
        %v2807 = vadd.f32 %v2671, %v2803
        %v2808 = vadd.f32 %v2672, %v2804
        %v2809 = vadd.f32 %v2673, %v2805
        %v2810 = vadd.f32 %v2674, %v2806
        %2811 = vst [vmem:[#allocation1] ss:$2 sm:$0xff] %v227
        %s2812 = scalar_lea.vmem [#allocation1], 16
        %2813 = vst [vmem:[%s2812] ss:$2 sm:$0xff] %v228
        %v2814 = vld.sshfl [vmem:[#allocation1] sm:$0xff pattern:$0x75316420]
        %v2815 = vld.sshfl [vmem:[#allocation1 + $0x8] sm:$0xff pattern:$0x75316420]
        %v2816 = vld.sshfl [vmem:[#allocation1 + $0x10] sm:$0xff pattern:$0x75316420]
        %v2817 = vld.sshfl [vmem:[#allocation1 + $0x18] sm:$0xff pattern:$0x75316420]
        %2822 = vrot.lane.b32.xlu0 %v2814, 72
        %v2823 = vpop.permute.xlu0 %2822
        %2824 = vrot.lane.b32.xlu0 %v2815, 72
        %v2825 = vpop.permute.xlu0 %2824
        %2826 = vrot.lane.b32.xlu0 %v2816, 72
        %v2827 = vpop.permute.xlu0 %2826
        %2828 = vrot.lane.b32.xlu0 %v2817, 72
        %v2829 = vpop.permute.xlu0 %2828
        %v2830 = vsel %vm410, %v2827, %v2829
        %v2831 = vsel %vm410, %v2825, %v2827
        %v2832 = vsel %vm410, %v2823, %v2825
        %v2833 = vsel %vm410, %v2829, %v2823
        %s2834 = scalar_lea.vmem %s2, 38
        %v2835 = vld [vmem:[%s2834] sm:$0x3]
        %v2837 = vsel %vm258, %v2835, 0
        %v2840 = vsel %vm262, %v2832, 0
        %v2843 = vsel %vm262, %v2831, 0
        %v2846 = vsel %vm262, %v2830, 0
        %v2849 = vsel %vm262, %v2833, 0
        %2851 = vmatpush.msra.mxu0 0.0
        %2852 = vmatpush.msra.mxu0 0.0
        %2853 = vmatpush.msra.mxu0 0.0
        %2854 = vmatpush.msra.mxu0 0.0
        %2855 = vmatpush.msra.mxu0 0.0
        %2856 = vmatpush.msra.mxu0 0.0
        %2857 = vmatpush.msra.mxu0 0.0
        %2858 = vmatpush.msra.mxu0 0.0
        %2859 = vmatpush.msra.mxu0 0.0
        %2860 = vmatpush.msra.mxu0 0.0
        %2861 = vmatpush.msra.mxu0 0.0
        %2862 = vmatpush.msra.mxu0 0.0
        %2863 = vmatpush.msra.mxu0 0.0
        %2864 = vmatpush.msra.mxu0 0.0
        %2865 = vmatpush.msra.mxu0 0.0
        %2866 = vmatpush.msra.mxu0 %v2840
        %2867 = vmatmul.f32.gmra.mxu0 %v2837
        %v2868 = vpop.f32.mrf.mxu0
        %v2869 = vadd.f32 0.0, %v2868
        %2870 = vdwg.mxu0
        %2871 = vmatpush.msra.mxu0 0.0
        %2872 = vmatpush.msra.mxu0 0.0
        %2873 = vmatpush.msra.mxu0 0.0
        %2874 = vmatpush.msra.mxu0 0.0
        %2875 = vmatpush.msra.mxu0 0.0
        %2876 = vmatpush.msra.mxu0 0.0
        %2877 = vmatpush.msra.mxu0 0.0
        %2878 = vmatpush.msra.mxu0 0.0
        %2879 = vmatpush.msra.mxu0 0.0
        %2880 = vmatpush.msra.mxu0 0.0
        %2881 = vmatpush.msra.mxu0 0.0
        %2882 = vmatpush.msra.mxu0 0.0
        %2883 = vmatpush.msra.mxu0 0.0
        %2884 = vmatpush.msra.mxu0 0.0
        %2885 = vmatpush.msra.mxu0 0.0
        %2886 = vmatpush.msra.mxu0 %v2843
        %2887 = vmatmul.f32.gmra.mxu0 %v2837
        %v2888 = vpop.f32.mrf.mxu0
        %v2889 = vadd.f32 0.0, %v2888
        %2890 = vdwg.mxu0
        %2891 = vmatpush.msra.mxu0 0.0
        %2892 = vmatpush.msra.mxu0 0.0
        %2893 = vmatpush.msra.mxu0 0.0
        %2894 = vmatpush.msra.mxu0 0.0
        %2895 = vmatpush.msra.mxu0 0.0
        %2896 = vmatpush.msra.mxu0 0.0
        %2897 = vmatpush.msra.mxu0 0.0
        %2898 = vmatpush.msra.mxu0 0.0
        %2899 = vmatpush.msra.mxu0 0.0
        %2900 = vmatpush.msra.mxu0 0.0
        %2901 = vmatpush.msra.mxu0 0.0
        %2902 = vmatpush.msra.mxu0 0.0
        %2903 = vmatpush.msra.mxu0 0.0
        %2904 = vmatpush.msra.mxu0 0.0
        %2905 = vmatpush.msra.mxu0 0.0
        %2906 = vmatpush.msra.mxu0 %v2846
        %2907 = vmatmul.f32.gmra.mxu0 %v2837
        %v2908 = vpop.f32.mrf.mxu0
        %v2909 = vadd.f32 0.0, %v2908
        %2910 = vdwg.mxu0
        %2911 = vmatpush.msra.mxu0 0.0
        %2912 = vmatpush.msra.mxu0 0.0
        %2913 = vmatpush.msra.mxu0 0.0
        %2914 = vmatpush.msra.mxu0 0.0
        %2915 = vmatpush.msra.mxu0 0.0
        %2916 = vmatpush.msra.mxu0 0.0
        %2917 = vmatpush.msra.mxu0 0.0
        %2918 = vmatpush.msra.mxu0 0.0
        %2919 = vmatpush.msra.mxu0 0.0
        %2920 = vmatpush.msra.mxu0 0.0
        %2921 = vmatpush.msra.mxu0 0.0
        %2922 = vmatpush.msra.mxu0 0.0
        %2923 = vmatpush.msra.mxu0 0.0
        %2924 = vmatpush.msra.mxu0 0.0
        %2925 = vmatpush.msra.mxu0 0.0
        %2926 = vmatpush.msra.mxu0 %v2849
        %2927 = vmatmul.f32.gmra.mxu0 %v2837
        %v2928 = vpop.f32.mrf.mxu0
        %v2929 = vadd.f32 0.0, %v2928
        %2930 = vdwg.mxu0
        %v2931 = vperm.slane %v2393, 1
        %v2932 = vperm.slane %v2394, 1
        %v2933 = vperm.slane %v2395, 1
        %v2934 = vperm.slane %v2396, 1
        %v2935 = vmul.f32 %v2869, %v2931
        %v2936 = vmul.f32 %v2889, %v2932
        %v2937 = vmul.f32 %v2909, %v2933
        %v2938 = vmul.f32 %v2929, %v2934
        %v2939 = vadd.f32 %v2807, %v2935
        %v2940 = vadd.f32 %v2808, %v2936
        %v2941 = vadd.f32 %v2809, %v2937
        %v2942 = vadd.f32 %v2810, %v2938
        %2943 = vst [vmem:[#allocation1] ss:$2 sm:$0xff] %v227
        %s2944 = scalar_lea.vmem [#allocation1], 16
        %2945 = vst [vmem:[%s2944] ss:$2 sm:$0xff] %v228
        %v2946 = vld.sshfl [vmem:[#allocation1] sm:$0xff pattern:$0x75316420]
        %v2947 = vld.sshfl [vmem:[#allocation1 + $0x8] sm:$0xff pattern:$0x75316420]
        %v2948 = vld.sshfl [vmem:[#allocation1 + $0x10] sm:$0xff pattern:$0x75316420]
        %v2949 = vld.sshfl [vmem:[#allocation1 + $0x18] sm:$0xff pattern:$0x75316420]
        %2954 = vrot.lane.b32.xlu0 %v2946, 71
        %v2955 = vpop.permute.xlu0 %2954
        %2956 = vrot.lane.b32.xlu0 %v2947, 71
        %v2957 = vpop.permute.xlu0 %2956
        %2958 = vrot.lane.b32.xlu0 %v2948, 71
        %v2959 = vpop.permute.xlu0 %2958
        %2960 = vrot.lane.b32.xlu0 %v2949, 71
        %v2961 = vpop.permute.xlu0 %2960
        %v2962 = vsel %vm543, %v2959, %v2961
        %v2963 = vsel %vm543, %v2957, %v2959
        %v2964 = vsel %vm543, %v2955, %v2957
        %v2965 = vsel %vm543, %v2961, %v2955
        %s2966 = scalar_lea.vmem %s2, 40
        %v2967 = vld [vmem:[%s2966] sm:$0x3]
        %v2969 = vsel %vm258, %v2967, 0
        %v2972 = vsel %vm262, %v2964, 0
        %v2975 = vsel %vm262, %v2963, 0
        %v2978 = vsel %vm262, %v2962, 0
        %v2981 = vsel %vm262, %v2965, 0
        %2983 = vmatpush.msra.mxu0 0.0
        %2984 = vmatpush.msra.mxu0 0.0
        %2985 = vmatpush.msra.mxu0 0.0
        %2986 = vmatpush.msra.mxu0 0.0
        %2987 = vmatpush.msra.mxu0 0.0
        %2988 = vmatpush.msra.mxu0 0.0
        %2989 = vmatpush.msra.mxu0 0.0
        %2990 = vmatpush.msra.mxu0 0.0
        %2991 = vmatpush.msra.mxu0 0.0
        %2992 = vmatpush.msra.mxu0 0.0
        %2993 = vmatpush.msra.mxu0 0.0
        %2994 = vmatpush.msra.mxu0 0.0
        %2995 = vmatpush.msra.mxu0 0.0
        %2996 = vmatpush.msra.mxu0 0.0
        %2997 = vmatpush.msra.mxu0 0.0
        %2998 = vmatpush.msra.mxu0 %v2972
        %2999 = vmatmul.f32.gmra.mxu0 %v2969
        %v3000 = vpop.f32.mrf.mxu0
        %v3001 = vadd.f32 0.0, %v3000
        %3002 = vdwg.mxu0
        %3003 = vmatpush.msra.mxu0 0.0
        %3004 = vmatpush.msra.mxu0 0.0
        %3005 = vmatpush.msra.mxu0 0.0
        %3006 = vmatpush.msra.mxu0 0.0
        %3007 = vmatpush.msra.mxu0 0.0
        %3008 = vmatpush.msra.mxu0 0.0
        %3009 = vmatpush.msra.mxu0 0.0
        %3010 = vmatpush.msra.mxu0 0.0
        %3011 = vmatpush.msra.mxu0 0.0
        %3012 = vmatpush.msra.mxu0 0.0
        %3013 = vmatpush.msra.mxu0 0.0
        %3014 = vmatpush.msra.mxu0 0.0
        %3015 = vmatpush.msra.mxu0 0.0
        %3016 = vmatpush.msra.mxu0 0.0
        %3017 = vmatpush.msra.mxu0 0.0
        %3018 = vmatpush.msra.mxu0 %v2975
        %3019 = vmatmul.f32.gmra.mxu0 %v2969
        %v3020 = vpop.f32.mrf.mxu0
        %v3021 = vadd.f32 0.0, %v3020
        %3022 = vdwg.mxu0
        %3023 = vmatpush.msra.mxu0 0.0
        %3024 = vmatpush.msra.mxu0 0.0
        %3025 = vmatpush.msra.mxu0 0.0
        %3026 = vmatpush.msra.mxu0 0.0
        %3027 = vmatpush.msra.mxu0 0.0
        %3028 = vmatpush.msra.mxu0 0.0
        %3029 = vmatpush.msra.mxu0 0.0
        %3030 = vmatpush.msra.mxu0 0.0
        %3031 = vmatpush.msra.mxu0 0.0
        %3032 = vmatpush.msra.mxu0 0.0
        %3033 = vmatpush.msra.mxu0 0.0
        %3034 = vmatpush.msra.mxu0 0.0
        %3035 = vmatpush.msra.mxu0 0.0
        %3036 = vmatpush.msra.mxu0 0.0
        %3037 = vmatpush.msra.mxu0 0.0
        %3038 = vmatpush.msra.mxu0 %v2978
        %3039 = vmatmul.f32.gmra.mxu0 %v2969
        %v3040 = vpop.f32.mrf.mxu0
        %v3041 = vadd.f32 0.0, %v3040
        %3042 = vdwg.mxu0
        %3043 = vmatpush.msra.mxu0 0.0
        %3044 = vmatpush.msra.mxu0 0.0
        %3045 = vmatpush.msra.mxu0 0.0
        %3046 = vmatpush.msra.mxu0 0.0
        %3047 = vmatpush.msra.mxu0 0.0
        %3048 = vmatpush.msra.mxu0 0.0
        %3049 = vmatpush.msra.mxu0 0.0
        %3050 = vmatpush.msra.mxu0 0.0
        %3051 = vmatpush.msra.mxu0 0.0
        %3052 = vmatpush.msra.mxu0 0.0
        %3053 = vmatpush.msra.mxu0 0.0
        %3054 = vmatpush.msra.mxu0 0.0
        %3055 = vmatpush.msra.mxu0 0.0
        %3056 = vmatpush.msra.mxu0 0.0
        %3057 = vmatpush.msra.mxu0 0.0
        %3058 = vmatpush.msra.mxu0 %v2981
        %3059 = vmatmul.f32.gmra.mxu0 %v2969
        %v3060 = vpop.f32.mrf.mxu0
        %v3061 = vadd.f32 0.0, %v3060
        %3062 = vdwg.mxu0
        %v3063 = vmul.f32 %v2393, %v371
        %v3064 = vmul.f32 %v2394, %v372
        %v3065 = vmul.f32 %v2395, %v373
        %v3066 = vmul.f32 %v2396, %v374
        %v3067 = vperm.slane %v3063, 1
        %v3068 = vperm.slane %v3064, 1
        %v3069 = vperm.slane %v3065, 1
        %v3070 = vperm.slane %v3066, 1
        %v3071 = vmul.f32 %v3001, %v3067
        %v3072 = vmul.f32 %v3021, %v3068
        %v3073 = vmul.f32 %v3041, %v3069
        %v3074 = vmul.f32 %v3061, %v3070
        %v3075 = vadd.f32 %v2939, %v3071
        %v3076 = vadd.f32 %v2940, %v3072
        %v3077 = vadd.f32 %v2941, %v3073
        %v3078 = vadd.f32 %v2942, %v3074
        %3079 = vst [vmem:[#allocation1] ss:$2 sm:$0xff] %v227
        %s3080 = scalar_lea.vmem [#allocation1], 16
        %3081 = vst [vmem:[%s3080] ss:$2 sm:$0xff] %v228
        %v3082 = vld.sshfl [vmem:[#allocation1] sm:$0xff pattern:$0x75316420]
        %v3083 = vld.sshfl [vmem:[#allocation1 + $0x8] sm:$0xff pattern:$0x75316420]
        %v3084 = vld.sshfl [vmem:[#allocation1 + $0x10] sm:$0xff pattern:$0x75316420]
        %v3085 = vld.sshfl [vmem:[#allocation1 + $0x18] sm:$0xff pattern:$0x75316420]
        %3090 = vrot.lane.b32.xlu0 %v3082, 65
        %v3091 = vpop.permute.xlu0 %3090
        %3092 = vrot.lane.b32.xlu0 %v3083, 65
        %v3093 = vpop.permute.xlu0 %3092
        %3094 = vrot.lane.b32.xlu0 %v3084, 65
        %v3095 = vpop.permute.xlu0 %3094
        %3096 = vrot.lane.b32.xlu0 %v3085, 65
        %v3097 = vpop.permute.xlu0 %3096
        %v3098 = vsel %vm688, %v3095, %v3097
        %v3099 = vsel %vm688, %v3093, %v3095
        %v3100 = vsel %vm688, %v3091, %v3093
        %v3101 = vsel %vm688, %v3097, %v3091
        %s3102 = scalar_lea.vmem %s2, 42
        %v3103 = vld [vmem:[%s3102] sm:$0x3]
        %v3105 = vsel %vm258, %v3103, 0
        %v3108 = vsel %vm262, %v3100, 0
        %v3111 = vsel %vm262, %v3099, 0
        %v3114 = vsel %vm262, %v3098, 0
        %v3117 = vsel %vm262, %v3101, 0
        %3119 = vmatpush.msra.mxu0 0.0
        %3120 = vmatpush.msra.mxu0 0.0
        %3121 = vmatpush.msra.mxu0 0.0
        %3122 = vmatpush.msra.mxu0 0.0
        %3123 = vmatpush.msra.mxu0 0.0
        %3124 = vmatpush.msra.mxu0 0.0
        %3125 = vmatpush.msra.mxu0 0.0
        %3126 = vmatpush.msra.mxu0 0.0
        %3127 = vmatpush.msra.mxu0 0.0
        %3128 = vmatpush.msra.mxu0 0.0
        %3129 = vmatpush.msra.mxu0 0.0
        %3130 = vmatpush.msra.mxu0 0.0
        %3131 = vmatpush.msra.mxu0 0.0
        %3132 = vmatpush.msra.mxu0 0.0
        %3133 = vmatpush.msra.mxu0 0.0
        %3134 = vmatpush.msra.mxu0 %v3108
        %3135 = vmatmul.f32.gmra.mxu0 %v3105
        %v3136 = vpop.f32.mrf.mxu0
        %v3137 = vadd.f32 0.0, %v3136
        %3138 = vdwg.mxu0
        %3139 = vmatpush.msra.mxu0 0.0
        %3140 = vmatpush.msra.mxu0 0.0
        %3141 = vmatpush.msra.mxu0 0.0
        %3142 = vmatpush.msra.mxu0 0.0
        %3143 = vmatpush.msra.mxu0 0.0
        %3144 = vmatpush.msra.mxu0 0.0
        %3145 = vmatpush.msra.mxu0 0.0
        %3146 = vmatpush.msra.mxu0 0.0
        %3147 = vmatpush.msra.mxu0 0.0
        %3148 = vmatpush.msra.mxu0 0.0
        %3149 = vmatpush.msra.mxu0 0.0
        %3150 = vmatpush.msra.mxu0 0.0
        %3151 = vmatpush.msra.mxu0 0.0
        %3152 = vmatpush.msra.mxu0 0.0
        %3153 = vmatpush.msra.mxu0 0.0
        %3154 = vmatpush.msra.mxu0 %v3111
        %3155 = vmatmul.f32.gmra.mxu0 %v3105
        %v3156 = vpop.f32.mrf.mxu0
        %v3157 = vadd.f32 0.0, %v3156
        %3158 = vdwg.mxu0
        %3159 = vmatpush.msra.mxu0 0.0
        %3160 = vmatpush.msra.mxu0 0.0
        %3161 = vmatpush.msra.mxu0 0.0
        %3162 = vmatpush.msra.mxu0 0.0
        %3163 = vmatpush.msra.mxu0 0.0
        %3164 = vmatpush.msra.mxu0 0.0
        %3165 = vmatpush.msra.mxu0 0.0
        %3166 = vmatpush.msra.mxu0 0.0
        %3167 = vmatpush.msra.mxu0 0.0
        %3168 = vmatpush.msra.mxu0 0.0
        %3169 = vmatpush.msra.mxu0 0.0
        %3170 = vmatpush.msra.mxu0 0.0
        %3171 = vmatpush.msra.mxu0 0.0
        %3172 = vmatpush.msra.mxu0 0.0
        %3173 = vmatpush.msra.mxu0 0.0
        %3174 = vmatpush.msra.mxu0 %v3114
        %3175 = vmatmul.f32.gmra.mxu0 %v3105
        %v3176 = vpop.f32.mrf.mxu0
        %v3177 = vadd.f32 0.0, %v3176
        %3178 = vdwg.mxu0
        %3179 = vmatpush.msra.mxu0 0.0
        %3180 = vmatpush.msra.mxu0 0.0
        %3181 = vmatpush.msra.mxu0 0.0
        %3182 = vmatpush.msra.mxu0 0.0
        %3183 = vmatpush.msra.mxu0 0.0
        %3184 = vmatpush.msra.mxu0 0.0
        %3185 = vmatpush.msra.mxu0 0.0
        %3186 = vmatpush.msra.mxu0 0.0
        %3187 = vmatpush.msra.mxu0 0.0
        %3188 = vmatpush.msra.mxu0 0.0
        %3189 = vmatpush.msra.mxu0 0.0
        %3190 = vmatpush.msra.mxu0 0.0
        %3191 = vmatpush.msra.mxu0 0.0
        %3192 = vmatpush.msra.mxu0 0.0
        %3193 = vmatpush.msra.mxu0 0.0
        %3194 = vmatpush.msra.mxu0 %v3117
        %3195 = vmatmul.f32.gmra.mxu0 %v3105
        %v3196 = vpop.f32.mrf.mxu0
        %v3197 = vadd.f32 0.0, %v3196
        %3198 = vdwg.mxu0
        %v3199 = vperm.slane %v1205, 1
        %v3200 = vperm.slane %v1206, 1
        %v3201 = vperm.slane %v1207, 1
        %v3202 = vperm.slane %v1208, 1
        %v3203 = vmul.f32 %v3137, %v3199
        %v3204 = vmul.f32 %v3157, %v3200
        %v3205 = vmul.f32 %v3177, %v3201
        %v3206 = vmul.f32 %v3197, %v3202
        %v3207 = vadd.f32 %v3075, %v3203
        %v3208 = vadd.f32 %v3076, %v3204
        %v3209 = vadd.f32 %v3077, %v3205
        %v3210 = vadd.f32 %v3078, %v3206
        %3211 = vst [vmem:[#allocation1] ss:$2 sm:$0xff] %v227
        %s3212 = scalar_lea.vmem [#allocation1], 16
        %3213 = vst [vmem:[%s3212] ss:$2 sm:$0xff] %v228
        %v3214 = vld.sshfl [vmem:[#allocation1] sm:$0xff pattern:$0x75316420]
        %v3215 = vld.sshfl [vmem:[#allocation1 + $0x8] sm:$0xff pattern:$0x75316420]
        %v3216 = vld.sshfl [vmem:[#allocation1 + $0x10] sm:$0xff pattern:$0x75316420]
        %v3217 = vld.sshfl [vmem:[#allocation1 + $0x18] sm:$0xff pattern:$0x75316420]
        %3222 = vrot.lane.b32.xlu0 %v3214, 64
        %v3223 = vpop.permute.xlu0 %3222
        %3224 = vrot.lane.b32.xlu0 %v3215, 64
        %v3225 = vpop.permute.xlu0 %3224
        %3226 = vrot.lane.b32.xlu0 %v3216, 64
        %v3227 = vpop.permute.xlu0 %3226
        %3228 = vrot.lane.b32.xlu0 %v3217, 64
        %v3229 = vpop.permute.xlu0 %3228
        %v3230 = vsel %vm825, %v3227, %v3229
        %v3231 = vsel %vm825, %v3225, %v3227
        %v3232 = vsel %vm825, %v3223, %v3225
        %v3233 = vsel %vm825, %v3229, %v3223
        %s3234 = scalar_lea.vmem %s2, 44
        %v3235 = vld [vmem:[%s3234] sm:$0x3]
        %v3237 = vsel %vm258, %v3235, 0
        %v3240 = vsel %vm262, %v3232, 0
        %v3243 = vsel %vm262, %v3231, 0
        %v3246 = vsel %vm262, %v3230, 0
        %v3249 = vsel %vm262, %v3233, 0
        %3251 = vmatpush.msra.mxu0 0.0
        %3252 = vmatpush.msra.mxu0 0.0
        %3253 = vmatpush.msra.mxu0 0.0
        %3254 = vmatpush.msra.mxu0 0.0
        %3255 = vmatpush.msra.mxu0 0.0
        %3256 = vmatpush.msra.mxu0 0.0
        %3257 = vmatpush.msra.mxu0 0.0
        %3258 = vmatpush.msra.mxu0 0.0
        %3259 = vmatpush.msra.mxu0 0.0
        %3260 = vmatpush.msra.mxu0 0.0
        %3261 = vmatpush.msra.mxu0 0.0
        %3262 = vmatpush.msra.mxu0 0.0
        %3263 = vmatpush.msra.mxu0 0.0
        %3264 = vmatpush.msra.mxu0 0.0
        %3265 = vmatpush.msra.mxu0 0.0
        %3266 = vmatpush.msra.mxu0 %v3240
        %3267 = vmatmul.f32.gmra.mxu0 %v3237
        %v3268 = vpop.f32.mrf.mxu0
        %v3269 = vadd.f32 0.0, %v3268
        %3270 = vdwg.mxu0
        %3271 = vmatpush.msra.mxu0 0.0
        %3272 = vmatpush.msra.mxu0 0.0
        %3273 = vmatpush.msra.mxu0 0.0
        %3274 = vmatpush.msra.mxu0 0.0
        %3275 = vmatpush.msra.mxu0 0.0
        %3276 = vmatpush.msra.mxu0 0.0
        %3277 = vmatpush.msra.mxu0 0.0
        %3278 = vmatpush.msra.mxu0 0.0
        %3279 = vmatpush.msra.mxu0 0.0
        %3280 = vmatpush.msra.mxu0 0.0
        %3281 = vmatpush.msra.mxu0 0.0
        %3282 = vmatpush.msra.mxu0 0.0
        %3283 = vmatpush.msra.mxu0 0.0
        %3284 = vmatpush.msra.mxu0 0.0
        %3285 = vmatpush.msra.mxu0 0.0
        %3286 = vmatpush.msra.mxu0 %v3243
        %3287 = vmatmul.f32.gmra.mxu0 %v3237
        %v3288 = vpop.f32.mrf.mxu0
        %v3289 = vadd.f32 0.0, %v3288
        %3290 = vdwg.mxu0
        %3291 = vmatpush.msra.mxu0 0.0
        %3292 = vmatpush.msra.mxu0 0.0
        %3293 = vmatpush.msra.mxu0 0.0
        %3294 = vmatpush.msra.mxu0 0.0
        %3295 = vmatpush.msra.mxu0 0.0
        %3296 = vmatpush.msra.mxu0 0.0
        %3297 = vmatpush.msra.mxu0 0.0
        %3298 = vmatpush.msra.mxu0 0.0
        %3299 = vmatpush.msra.mxu0 0.0
        %3300 = vmatpush.msra.mxu0 0.0
        %3301 = vmatpush.msra.mxu0 0.0
        %3302 = vmatpush.msra.mxu0 0.0
        %3303 = vmatpush.msra.mxu0 0.0
        %3304 = vmatpush.msra.mxu0 0.0
        %3305 = vmatpush.msra.mxu0 0.0
        %3306 = vmatpush.msra.mxu0 %v3246
        %3307 = vmatmul.f32.gmra.mxu0 %v3237
        %v3308 = vpop.f32.mrf.mxu0
        %v3309 = vadd.f32 0.0, %v3308
        %3310 = vdwg.mxu0
        %3311 = vmatpush.msra.mxu0 0.0
        %3312 = vmatpush.msra.mxu0 0.0
        %3313 = vmatpush.msra.mxu0 0.0
        %3314 = vmatpush.msra.mxu0 0.0
        %3315 = vmatpush.msra.mxu0 0.0
        %3316 = vmatpush.msra.mxu0 0.0
        %3317 = vmatpush.msra.mxu0 0.0
        %3318 = vmatpush.msra.mxu0 0.0
        %3319 = vmatpush.msra.mxu0 0.0
        %3320 = vmatpush.msra.mxu0 0.0
        %3321 = vmatpush.msra.mxu0 0.0
        %3322 = vmatpush.msra.mxu0 0.0
        %3323 = vmatpush.msra.mxu0 0.0
        %3324 = vmatpush.msra.mxu0 0.0
        %3325 = vmatpush.msra.mxu0 0.0
        %3326 = vmatpush.msra.mxu0 %v3249
        %3327 = vmatmul.f32.gmra.mxu0 %v3237
        %v3328 = vpop.f32.mrf.mxu0
        %v3329 = vadd.f32 0.0, %v3328
        %3330 = vdwg.mxu0
        %v3331 = vperm.slane %v223, 1
        %v3332 = vperm.slane %v224, 1
        %v3333 = vperm.slane %v225, 1
        %v3334 = vperm.slane %v226, 1
        %v3335 = vmul.f32 %v3269, %v3331
        %v3336 = vmul.f32 %v3289, %v3332
        %v3337 = vmul.f32 %v3309, %v3333
        %v3338 = vmul.f32 %v3329, %v3334
        %v3339 = vadd.f32 %v3207, %v3335
        %v3340 = vadd.f32 %v3208, %v3336
        %v3341 = vadd.f32 %v3209, %v3337
        %v3342 = vadd.f32 %v3210, %v3338
        %3343 = vst [vmem:[#allocation1] ss:$2 sm:$0xff] %v227
        %s3344 = scalar_lea.vmem [#allocation1], 16
        %3345 = vst [vmem:[%s3344] ss:$2 sm:$0xff] %v228
        %v3346 = vld.sshfl [vmem:[#allocation1] sm:$0xff pattern:$0x75316420]
        %v3347 = vld.sshfl [vmem:[#allocation1 + $0x8] sm:$0xff pattern:$0x75316420]
        %v3348 = vld.sshfl [vmem:[#allocation1 + $0x10] sm:$0xff pattern:$0x75316420]
        %v3349 = vld.sshfl [vmem:[#allocation1 + $0x18] sm:$0xff pattern:$0x75316420]
        %3354 = vrot.lane.b32.xlu0 %v3346, 63
        %v3355 = vpop.permute.xlu0 %3354
        %3356 = vrot.lane.b32.xlu0 %v3347, 63
        %v3357 = vpop.permute.xlu0 %3356
        %3358 = vrot.lane.b32.xlu0 %v3348, 63
        %v3359 = vpop.permute.xlu0 %3358
        %3360 = vrot.lane.b32.xlu0 %v3349, 63
        %v3361 = vpop.permute.xlu0 %3360
        %v3362 = vsel %vm958, %v3359, %v3361
        %v3363 = vsel %vm958, %v3357, %v3359
        %v3364 = vsel %vm958, %v3355, %v3357
        %v3365 = vsel %vm958, %v3361, %v3355
        %s3366 = scalar_lea.vmem %s2, 46
        %v3367 = vld [vmem:[%s3366] sm:$0x3]
        %v3369 = vsel %vm258, %v3367, 0
        %v3372 = vsel %vm262, %v3364, 0
        %v3375 = vsel %vm262, %v3363, 0
        %v3378 = vsel %vm262, %v3362, 0
        %v3381 = vsel %vm262, %v3365, 0
        %3383 = vmatpush.msra.mxu0 0.0
        %3384 = vmatpush.msra.mxu0 0.0
        %3385 = vmatpush.msra.mxu0 0.0
        %3386 = vmatpush.msra.mxu0 0.0
        %3387 = vmatpush.msra.mxu0 0.0
        %3388 = vmatpush.msra.mxu0 0.0
        %3389 = vmatpush.msra.mxu0 0.0
        %3390 = vmatpush.msra.mxu0 0.0
        %3391 = vmatpush.msra.mxu0 0.0
        %3392 = vmatpush.msra.mxu0 0.0
        %3393 = vmatpush.msra.mxu0 0.0
        %3394 = vmatpush.msra.mxu0 0.0
        %3395 = vmatpush.msra.mxu0 0.0
        %3396 = vmatpush.msra.mxu0 0.0
        %3397 = vmatpush.msra.mxu0 0.0
        %3398 = vmatpush.msra.mxu0 %v3372
        %3399 = vmatmul.f32.gmra.mxu0 %v3369
        %v3400 = vpop.f32.mrf.mxu0
        %v3401 = vadd.f32 0.0, %v3400
        %3402 = vdwg.mxu0
        %3403 = vmatpush.msra.mxu0 0.0
        %3404 = vmatpush.msra.mxu0 0.0
        %3405 = vmatpush.msra.mxu0 0.0
        %3406 = vmatpush.msra.mxu0 0.0
        %3407 = vmatpush.msra.mxu0 0.0
        %3408 = vmatpush.msra.mxu0 0.0
        %3409 = vmatpush.msra.mxu0 0.0
        %3410 = vmatpush.msra.mxu0 0.0
        %3411 = vmatpush.msra.mxu0 0.0
        %3412 = vmatpush.msra.mxu0 0.0
        %3413 = vmatpush.msra.mxu0 0.0
        %3414 = vmatpush.msra.mxu0 0.0
        %3415 = vmatpush.msra.mxu0 0.0
        %3416 = vmatpush.msra.mxu0 0.0
        %3417 = vmatpush.msra.mxu0 0.0
        %3418 = vmatpush.msra.mxu0 %v3375
        %3419 = vmatmul.f32.gmra.mxu0 %v3369
        %v3420 = vpop.f32.mrf.mxu0
        %v3421 = vadd.f32 0.0, %v3420
        %3422 = vdwg.mxu0
        %3423 = vmatpush.msra.mxu0 0.0
        %3424 = vmatpush.msra.mxu0 0.0
        %3425 = vmatpush.msra.mxu0 0.0
        %3426 = vmatpush.msra.mxu0 0.0
        %3427 = vmatpush.msra.mxu0 0.0
        %3428 = vmatpush.msra.mxu0 0.0
        %3429 = vmatpush.msra.mxu0 0.0
        %3430 = vmatpush.msra.mxu0 0.0
        %3431 = vmatpush.msra.mxu0 0.0
        %3432 = vmatpush.msra.mxu0 0.0
        %3433 = vmatpush.msra.mxu0 0.0
        %3434 = vmatpush.msra.mxu0 0.0
        %3435 = vmatpush.msra.mxu0 0.0
        %3436 = vmatpush.msra.mxu0 0.0
        %3437 = vmatpush.msra.mxu0 0.0
        %3438 = vmatpush.msra.mxu0 %v3378
        %3439 = vmatmul.f32.gmra.mxu0 %v3369
        %v3440 = vpop.f32.mrf.mxu0
        %v3441 = vadd.f32 0.0, %v3440
        %3442 = vdwg.mxu0
        %3443 = vmatpush.msra.mxu0 0.0
        %3444 = vmatpush.msra.mxu0 0.0
        %3445 = vmatpush.msra.mxu0 0.0
        %3446 = vmatpush.msra.mxu0 0.0
        %3447 = vmatpush.msra.mxu0 0.0
        %3448 = vmatpush.msra.mxu0 0.0
        %3449 = vmatpush.msra.mxu0 0.0
        %3450 = vmatpush.msra.mxu0 0.0
        %3451 = vmatpush.msra.mxu0 0.0
        %3452 = vmatpush.msra.mxu0 0.0
        %3453 = vmatpush.msra.mxu0 0.0
        %3454 = vmatpush.msra.mxu0 0.0
        %3455 = vmatpush.msra.mxu0 0.0
        %3456 = vmatpush.msra.mxu0 0.0
        %3457 = vmatpush.msra.mxu0 0.0
        %3458 = vmatpush.msra.mxu0 %v3381
        %3459 = vmatmul.f32.gmra.mxu0 %v3369
        %v3460 = vpop.f32.mrf.mxu0
        %v3461 = vadd.f32 0.0, %v3460
        %3462 = vdwg.mxu0
        %v3463 = vperm.slane %v790, 1
        %v3464 = vperm.slane %v791, 1
        %v3465 = vperm.slane %v792, 1
        %v3466 = vperm.slane %v793, 1
        %v3467 = vmul.f32 %v3401, %v3463
        %v3468 = vmul.f32 %v3421, %v3464
        %v3469 = vmul.f32 %v3441, %v3465
        %v3470 = vmul.f32 %v3461, %v3466
        %v3471 = vadd.f32 %v3339, %v3467
        %v3472 = vadd.f32 %v3340, %v3468
        %v3473 = vadd.f32 %v3341, %v3469
        %v3474 = vadd.f32 %v3342, %v3470
        %3475 = vst [vmem:[#allocation1] ss:$2 sm:$0xff] %v227
        %s3476 = scalar_lea.vmem [#allocation1], 16
        %3477 = vst [vmem:[%s3476] ss:$2 sm:$0xff] %v228
        %v3478 = vld.sshfl [vmem:[#allocation1] sm:$0xff pattern:$0x75316420]
        %v3479 = vld.sshfl [vmem:[#allocation1 + $0x8] sm:$0xff pattern:$0x75316420]
        %v3480 = vld.sshfl [vmem:[#allocation1 + $0x10] sm:$0xff pattern:$0x75316420]
        %v3481 = vld.sshfl [vmem:[#allocation1 + $0x18] sm:$0xff pattern:$0x75316420]
        %3486 = vrot.lane.b32.xlu0 %v3478, 57
        %v3487 = vpop.permute.xlu0 %3486
        %3488 = vrot.lane.b32.xlu0 %v3479, 57
        %v3489 = vpop.permute.xlu0 %3488
        %3490 = vrot.lane.b32.xlu0 %v3480, 57
        %v3491 = vpop.permute.xlu0 %3490
        %3492 = vrot.lane.b32.xlu0 %v3481, 57
        %v3493 = vpop.permute.xlu0 %3492
        %v3494 = vsel %vm1095, %v3491, %v3493
        %v3495 = vsel %vm1095, %v3489, %v3491
        %v3496 = vsel %vm1095, %v3487, %v3489
        %v3497 = vsel %vm1095, %v3493, %v3487
        %s3498 = scalar_lea.vmem %s2, 48
        %v3499 = vld [vmem:[%s3498] sm:$0x3]
        %v3501 = vsel %vm258, %v3499, 0
        %v3504 = vsel %vm262, %v3496, 0
        %v3507 = vsel %vm262, %v3495, 0
        %v3510 = vsel %vm262, %v3494, 0
        %v3513 = vsel %vm262, %v3497, 0
        %3515 = vmatpush.msra.mxu0 0.0
        %3516 = vmatpush.msra.mxu0 0.0
        %3517 = vmatpush.msra.mxu0 0.0
        %3518 = vmatpush.msra.mxu0 0.0
        %3519 = vmatpush.msra.mxu0 0.0
        %3520 = vmatpush.msra.mxu0 0.0
        %3521 = vmatpush.msra.mxu0 0.0
        %3522 = vmatpush.msra.mxu0 0.0
        %3523 = vmatpush.msra.mxu0 0.0
        %3524 = vmatpush.msra.mxu0 0.0
        %3525 = vmatpush.msra.mxu0 0.0
        %3526 = vmatpush.msra.mxu0 0.0
        %3527 = vmatpush.msra.mxu0 0.0
        %3528 = vmatpush.msra.mxu0 0.0
        %3529 = vmatpush.msra.mxu0 0.0
        %3530 = vmatpush.msra.mxu0 %v3504
        %3531 = vmatmul.f32.gmra.mxu0 %v3501
        %v3532 = vpop.f32.mrf.mxu0
        %v3533 = vadd.f32 0.0, %v3532
        %3534 = vdwg.mxu0
        %3535 = vmatpush.msra.mxu0 0.0
        %3536 = vmatpush.msra.mxu0 0.0
        %3537 = vmatpush.msra.mxu0 0.0
        %3538 = vmatpush.msra.mxu0 0.0
        %3539 = vmatpush.msra.mxu0 0.0
        %3540 = vmatpush.msra.mxu0 0.0
        %3541 = vmatpush.msra.mxu0 0.0
        %3542 = vmatpush.msra.mxu0 0.0
        %3543 = vmatpush.msra.mxu0 0.0
        %3544 = vmatpush.msra.mxu0 0.0
        %3545 = vmatpush.msra.mxu0 0.0
        %3546 = vmatpush.msra.mxu0 0.0
        %3547 = vmatpush.msra.mxu0 0.0
        %3548 = vmatpush.msra.mxu0 0.0
        %3549 = vmatpush.msra.mxu0 0.0
        %3550 = vmatpush.msra.mxu0 %v3507
        %3551 = vmatmul.f32.gmra.mxu0 %v3501
        %v3552 = vpop.f32.mrf.mxu0
        %v3553 = vadd.f32 0.0, %v3552
        %3554 = vdwg.mxu0
        %3555 = vmatpush.msra.mxu0 0.0
        %3556 = vmatpush.msra.mxu0 0.0
        %3557 = vmatpush.msra.mxu0 0.0
        %3558 = vmatpush.msra.mxu0 0.0
        %3559 = vmatpush.msra.mxu0 0.0
        %3560 = vmatpush.msra.mxu0 0.0
        %3561 = vmatpush.msra.mxu0 0.0
        %3562 = vmatpush.msra.mxu0 0.0
        %3563 = vmatpush.msra.mxu0 0.0
        %3564 = vmatpush.msra.mxu0 0.0
        %3565 = vmatpush.msra.mxu0 0.0
        %3566 = vmatpush.msra.mxu0 0.0
        %3567 = vmatpush.msra.mxu0 0.0
        %3568 = vmatpush.msra.mxu0 0.0
        %3569 = vmatpush.msra.mxu0 0.0
        %3570 = vmatpush.msra.mxu0 %v3510
        %3571 = vmatmul.f32.gmra.mxu0 %v3501
        %v3572 = vpop.f32.mrf.mxu0
        %v3573 = vadd.f32 0.0, %v3572
        %3574 = vdwg.mxu0
        %3575 = vmatpush.msra.mxu0 0.0
        %3576 = vmatpush.msra.mxu0 0.0
        %3577 = vmatpush.msra.mxu0 0.0
        %3578 = vmatpush.msra.mxu0 0.0
        %3579 = vmatpush.msra.mxu0 0.0
        %3580 = vmatpush.msra.mxu0 0.0
        %3581 = vmatpush.msra.mxu0 0.0
        %3582 = vmatpush.msra.mxu0 0.0
        %3583 = vmatpush.msra.mxu0 0.0
        %3584 = vmatpush.msra.mxu0 0.0
        %3585 = vmatpush.msra.mxu0 0.0
        %3586 = vmatpush.msra.mxu0 0.0
        %3587 = vmatpush.msra.mxu0 0.0
        %3588 = vmatpush.msra.mxu0 0.0
        %3589 = vmatpush.msra.mxu0 0.0
        %3590 = vmatpush.msra.mxu0 %v3513
        %3591 = vmatmul.f32.gmra.mxu0 %v3501
        %v3592 = vpop.f32.mrf.mxu0
        %v3593 = vadd.f32 0.0, %v3592
        %3594 = vdwg.mxu0
        %v3595 = vmul.f32 %v367, %v1197
        %v3596 = vmul.f32 %v368, %v1198
        %v3597 = vmul.f32 %v369, %v1199
        %v3598 = vmul.f32 %v370, %v1200
        %v3599 = vperm.slane %v3595, 1
        %v3600 = vperm.slane %v3596, 1
        %v3601 = vperm.slane %v3597, 1
        %v3602 = vperm.slane %v3598, 1
        %v3603 = vmul.f32 %v3533, %v3599
        %v3604 = vmul.f32 %v3553, %v3600
        %v3605 = vmul.f32 %v3573, %v3601
        %v3606 = vmul.f32 %v3593, %v3602
        %v3607 = vadd.f32 %v3471, %v3603
        %v3608 = vadd.f32 %v3472, %v3604
        %v3609 = vadd.f32 %v3473, %v3605
        %v3610 = vadd.f32 %v3474, %v3606
        %3611 = vst [vmem:[#allocation1] ss:$2 sm:$0xff] %v227
        %s3612 = scalar_lea.vmem [#allocation1], 16
        %3613 = vst [vmem:[%s3612] ss:$2 sm:$0xff] %v228
        %v3614 = vld.sshfl [vmem:[#allocation1] sm:$0xff pattern:$0x75316420]
        %v3615 = vld.sshfl [vmem:[#allocation1 + $0x8] sm:$0xff pattern:$0x75316420]
        %v3616 = vld.sshfl [vmem:[#allocation1 + $0x10] sm:$0xff pattern:$0x75316420]
        %v3617 = vld.sshfl [vmem:[#allocation1 + $0x18] sm:$0xff pattern:$0x75316420]
        %3622 = vrot.lane.b32.xlu0 %v3614, 56
        %v3623 = vpop.permute.xlu0 %3622
        %3624 = vrot.lane.b32.xlu0 %v3615, 56
        %v3625 = vpop.permute.xlu0 %3624
        %3626 = vrot.lane.b32.xlu0 %v3616, 56
        %v3627 = vpop.permute.xlu0 %3626
        %3628 = vrot.lane.b32.xlu0 %v3617, 56
        %v3629 = vpop.permute.xlu0 %3628
        %v3630 = vsel %vm1244, %v3627, %v3629
        %v3631 = vsel %vm1244, %v3625, %v3627
        %v3632 = vsel %vm1244, %v3623, %v3625
        %v3633 = vsel %vm1244, %v3629, %v3623
        %s3634 = scalar_lea.vmem %s2, 50
        %v3635 = vld [vmem:[%s3634] sm:$0x3]
        %v3637 = vsel %vm258, %v3635, 0
        %v3640 = vsel %vm262, %v3632, 0
        %v3643 = vsel %vm262, %v3631, 0
        %v3646 = vsel %vm262, %v3630, 0
        %v3649 = vsel %vm262, %v3633, 0
        %3651 = vmatpush.msra.mxu0 0.0
        %3652 = vmatpush.msra.mxu0 0.0
        %3653 = vmatpush.msra.mxu0 0.0
        %3654 = vmatpush.msra.mxu0 0.0
        %3655 = vmatpush.msra.mxu0 0.0
        %3656 = vmatpush.msra.mxu0 0.0
        %3657 = vmatpush.msra.mxu0 0.0
        %3658 = vmatpush.msra.mxu0 0.0
        %3659 = vmatpush.msra.mxu0 0.0
        %3660 = vmatpush.msra.mxu0 0.0
        %3661 = vmatpush.msra.mxu0 0.0
        %3662 = vmatpush.msra.mxu0 0.0
        %3663 = vmatpush.msra.mxu0 0.0
        %3664 = vmatpush.msra.mxu0 0.0
        %3665 = vmatpush.msra.mxu0 0.0
        %3666 = vmatpush.msra.mxu0 %v3640
        %3667 = vmatmul.f32.gmra.mxu0 %v3637
        %v3668 = vpop.f32.mrf.mxu0
        %v3669 = vadd.f32 0.0, %v3668
        %3670 = vdwg.mxu0
        %3671 = vmatpush.msra.mxu0 0.0
        %3672 = vmatpush.msra.mxu0 0.0
        %3673 = vmatpush.msra.mxu0 0.0
        %3674 = vmatpush.msra.mxu0 0.0
        %3675 = vmatpush.msra.mxu0 0.0
        %3676 = vmatpush.msra.mxu0 0.0
        %3677 = vmatpush.msra.mxu0 0.0
        %3678 = vmatpush.msra.mxu0 0.0
        %3679 = vmatpush.msra.mxu0 0.0
        %3680 = vmatpush.msra.mxu0 0.0
        %3681 = vmatpush.msra.mxu0 0.0
        %3682 = vmatpush.msra.mxu0 0.0
        %3683 = vmatpush.msra.mxu0 0.0
        %3684 = vmatpush.msra.mxu0 0.0
        %3685 = vmatpush.msra.mxu0 0.0
        %3686 = vmatpush.msra.mxu0 %v3643
        %3687 = vmatmul.f32.gmra.mxu0 %v3637
        %v3688 = vpop.f32.mrf.mxu0
        %v3689 = vadd.f32 0.0, %v3688
        %3690 = vdwg.mxu0
        %3691 = vmatpush.msra.mxu0 0.0
        %3692 = vmatpush.msra.mxu0 0.0
        %3693 = vmatpush.msra.mxu0 0.0
        %3694 = vmatpush.msra.mxu0 0.0
        %3695 = vmatpush.msra.mxu0 0.0
        %3696 = vmatpush.msra.mxu0 0.0
        %3697 = vmatpush.msra.mxu0 0.0
        %3698 = vmatpush.msra.mxu0 0.0
        %3699 = vmatpush.msra.mxu0 0.0
        %3700 = vmatpush.msra.mxu0 0.0
        %3701 = vmatpush.msra.mxu0 0.0
        %3702 = vmatpush.msra.mxu0 0.0
        %3703 = vmatpush.msra.mxu0 0.0
        %3704 = vmatpush.msra.mxu0 0.0
        %3705 = vmatpush.msra.mxu0 0.0
        %3706 = vmatpush.msra.mxu0 %v3646
        %3707 = vmatmul.f32.gmra.mxu0 %v3637
        %v3708 = vpop.f32.mrf.mxu0
        %v3709 = vadd.f32 0.0, %v3708
        %3710 = vdwg.mxu0
        %3711 = vmatpush.msra.mxu0 0.0
        %3712 = vmatpush.msra.mxu0 0.0
        %3713 = vmatpush.msra.mxu0 0.0
        %3714 = vmatpush.msra.mxu0 0.0
        %3715 = vmatpush.msra.mxu0 0.0
        %3716 = vmatpush.msra.mxu0 0.0
        %3717 = vmatpush.msra.mxu0 0.0
        %3718 = vmatpush.msra.mxu0 0.0
        %3719 = vmatpush.msra.mxu0 0.0
        %3720 = vmatpush.msra.mxu0 0.0
        %3721 = vmatpush.msra.mxu0 0.0
        %3722 = vmatpush.msra.mxu0 0.0
        %3723 = vmatpush.msra.mxu0 0.0
        %3724 = vmatpush.msra.mxu0 0.0
        %3725 = vmatpush.msra.mxu0 0.0
        %3726 = vmatpush.msra.mxu0 %v3649
        %3727 = vmatmul.f32.gmra.mxu0 %v3637
        %v3728 = vpop.f32.mrf.mxu0
        %v3729 = vadd.f32 0.0, %v3728
        %3730 = vdwg.mxu0
        %v3731 = vperm.slane %v367, 1
        %v3732 = vperm.slane %v368, 1
        %v3733 = vperm.slane %v369, 1
        %v3734 = vperm.slane %v370, 1
        %v3735 = vmul.f32 %v3669, %v3731
        %v3736 = vmul.f32 %v3689, %v3732
        %v3737 = vmul.f32 %v3709, %v3733
        %v3738 = vmul.f32 %v3729, %v3734
        %v3739 = vadd.f32 %v3607, %v3735
        %v3740 = vadd.f32 %v3608, %v3736
        %v3741 = vadd.f32 %v3609, %v3737
        %v3742 = vadd.f32 %v3610, %v3738
        %3743 = vst [vmem:[#allocation1] ss:$2 sm:$0xff] %v227
        %s3744 = scalar_lea.vmem [#allocation1], 16
        %3745 = vst [vmem:[%s3744] ss:$2 sm:$0xff] %v228
        %v3746 = vld.sshfl [vmem:[#allocation1] sm:$0xff pattern:$0x75316420]
        %v3747 = vld.sshfl [vmem:[#allocation1 + $0x8] sm:$0xff pattern:$0x75316420]
        %v3748 = vld.sshfl [vmem:[#allocation1 + $0x10] sm:$0xff pattern:$0x75316420]
        %v3749 = vld.sshfl [vmem:[#allocation1 + $0x18] sm:$0xff pattern:$0x75316420]
        %3754 = vrot.lane.b32.xlu0 %v3746, 55
        %v3755 = vpop.permute.xlu0 %3754
        %3756 = vrot.lane.b32.xlu0 %v3747, 55
        %v3757 = vpop.permute.xlu0 %3756
        %3758 = vrot.lane.b32.xlu0 %v3748, 55
        %v3759 = vpop.permute.xlu0 %3758
        %3760 = vrot.lane.b32.xlu0 %v3749, 55
        %v3761 = vpop.permute.xlu0 %3760
        %v3762 = vsel %vm1377, %v3759, %v3761
        %v3763 = vsel %vm1377, %v3757, %v3759
        %v3764 = vsel %vm1377, %v3755, %v3757
        %v3765 = vsel %vm1377, %v3761, %v3755
        %s3766 = scalar_lea.vmem %s2, 52
        %v3767 = vld [vmem:[%s3766] sm:$0x3]
        %v3769 = vsel %vm258, %v3767, 0
        %v3772 = vsel %vm262, %v3764, 0
        %v3775 = vsel %vm262, %v3763, 0
        %v3778 = vsel %vm262, %v3762, 0
        %v3781 = vsel %vm262, %v3765, 0
        %3783 = vmatpush.msra.mxu0 0.0
        %3784 = vmatpush.msra.mxu0 0.0
        %3785 = vmatpush.msra.mxu0 0.0
        %3786 = vmatpush.msra.mxu0 0.0
        %3787 = vmatpush.msra.mxu0 0.0
        %3788 = vmatpush.msra.mxu0 0.0
        %3789 = vmatpush.msra.mxu0 0.0
        %3790 = vmatpush.msra.mxu0 0.0
        %3791 = vmatpush.msra.mxu0 0.0
        %3792 = vmatpush.msra.mxu0 0.0
        %3793 = vmatpush.msra.mxu0 0.0
        %3794 = vmatpush.msra.mxu0 0.0
        %3795 = vmatpush.msra.mxu0 0.0
        %3796 = vmatpush.msra.mxu0 0.0
        %3797 = vmatpush.msra.mxu0 0.0
        %3798 = vmatpush.msra.mxu0 %v3772
        %3799 = vmatmul.f32.gmra.mxu0 %v3769
        %v3800 = vpop.f32.mrf.mxu0
        %v3801 = vadd.f32 0.0, %v3800
        %3802 = vdwg.mxu0
        %3803 = vmatpush.msra.mxu0 0.0
        %3804 = vmatpush.msra.mxu0 0.0
        %3805 = vmatpush.msra.mxu0 0.0
        %3806 = vmatpush.msra.mxu0 0.0
        %3807 = vmatpush.msra.mxu0 0.0
        %3808 = vmatpush.msra.mxu0 0.0
        %3809 = vmatpush.msra.mxu0 0.0
        %3810 = vmatpush.msra.mxu0 0.0
        %3811 = vmatpush.msra.mxu0 0.0
        %3812 = vmatpush.msra.mxu0 0.0
        %3813 = vmatpush.msra.mxu0 0.0
        %3814 = vmatpush.msra.mxu0 0.0
        %3815 = vmatpush.msra.mxu0 0.0
        %3816 = vmatpush.msra.mxu0 0.0
        %3817 = vmatpush.msra.mxu0 0.0
        %3818 = vmatpush.msra.mxu0 %v3775
        %3819 = vmatmul.f32.gmra.mxu0 %v3769
        %v3820 = vpop.f32.mrf.mxu0
        %v3821 = vadd.f32 0.0, %v3820
        %3822 = vdwg.mxu0
        %3823 = vmatpush.msra.mxu0 0.0
        %3824 = vmatpush.msra.mxu0 0.0
        %3825 = vmatpush.msra.mxu0 0.0
        %3826 = vmatpush.msra.mxu0 0.0
        %3827 = vmatpush.msra.mxu0 0.0
        %3828 = vmatpush.msra.mxu0 0.0
        %3829 = vmatpush.msra.mxu0 0.0
        %3830 = vmatpush.msra.mxu0 0.0
        %3831 = vmatpush.msra.mxu0 0.0
        %3832 = vmatpush.msra.mxu0 0.0
        %3833 = vmatpush.msra.mxu0 0.0
        %3834 = vmatpush.msra.mxu0 0.0
        %3835 = vmatpush.msra.mxu0 0.0
        %3836 = vmatpush.msra.mxu0 0.0
        %3837 = vmatpush.msra.mxu0 0.0
        %3838 = vmatpush.msra.mxu0 %v3778
        %3839 = vmatmul.f32.gmra.mxu0 %v3769
        %v3840 = vpop.f32.mrf.mxu0
        %v3841 = vadd.f32 0.0, %v3840
        %3842 = vdwg.mxu0
        %3843 = vmatpush.msra.mxu0 0.0
        %3844 = vmatpush.msra.mxu0 0.0
        %3845 = vmatpush.msra.mxu0 0.0
        %3846 = vmatpush.msra.mxu0 0.0
        %3847 = vmatpush.msra.mxu0 0.0
        %3848 = vmatpush.msra.mxu0 0.0
        %3849 = vmatpush.msra.mxu0 0.0
        %3850 = vmatpush.msra.mxu0 0.0
        %3851 = vmatpush.msra.mxu0 0.0
        %3852 = vmatpush.msra.mxu0 0.0
        %3853 = vmatpush.msra.mxu0 0.0
        %3854 = vmatpush.msra.mxu0 0.0
        %3855 = vmatpush.msra.mxu0 0.0
        %3856 = vmatpush.msra.mxu0 0.0
        %3857 = vmatpush.msra.mxu0 0.0
        %3858 = vmatpush.msra.mxu0 %v3781
        %3859 = vmatmul.f32.gmra.mxu0 %v3769
        %v3860 = vpop.f32.mrf.mxu0
        %v3861 = vadd.f32 0.0, %v3860
        %3862 = vdwg.mxu0
        %v3863 = vperm.slane %v379, 1
        %v3864 = vperm.slane %v380, 1
        %v3865 = vperm.slane %v381, 1
        %v3866 = vperm.slane %v382, 1
        %v3867 = vmul.f32 %v3801, %v3863
        %v3868 = vmul.f32 %v3821, %v3864
        %v3869 = vmul.f32 %v3841, %v3865
        %v3870 = vmul.f32 %v3861, %v3866
        %v3871 = vadd.f32 %v3739, %v3867
        %v3872 = vadd.f32 %v3740, %v3868
        %v3873 = vadd.f32 %v3741, %v3869
        %v3874 = vadd.f32 %v3742, %v3870
        %vm3875 = vcmask 1041408
        %v3876 = vsel %vm3875, %v3871, 0.0
        %v3877 = vsel %vm3875, %v3872, 0.0
        %v3878 = vadd.f32 %v3876, %v3877
        %v3879 = vsel %vm3875, %v3873, 0.0
        %v3880 = vadd.f32 %v3878, %v3879
        %v3881 = vsel %vm3875, %v3874, 0.0
        %v3882 = vadd.f32 %v3880, %v3881
        %3883 = vadd.xlane.f32.xlu0 %v3882
        %v3884 = vpop.xlane.xlu0 %3883
        %v3885 = vmul.f32 %v3884, 0.001953125
        %v3886 = vsub.f32 %v3871, %v3885
        %v3887 = vsub.f32 %v3872, %v3885
        %v3888 = vsub.f32 %v3873, %v3885
        %v3889 = vsub.f32 %v3874, %v3885
        %v3890 = vmul.f32 %v3886, %v3886
        %v3891 = vmul.f32 %v3887, %v3887
        %v3892 = vmul.f32 %v3888, %v3888
        %v3893 = vmul.f32 %v3889, %v3889
        %v3894 = vsel %vm3875, %v3890, 0.0
        %v3895 = vsel %vm3875, %v3891, 0.0
        %v3896 = vadd.f32 %v3894, %v3895
        %v3897 = vsel %vm3875, %v3892, 0.0
        %v3898 = vadd.f32 %v3896, %v3897
        %v3899 = vsel %vm3875, %v3893, 0.0
        %v3900 = vadd.f32 %v3898, %v3899
        %3901 = vadd.xlane.f32.xlu0 %v3900
        %v3902 = vpop.xlane.xlu0 %3901
        %v3903 = vmul.f32 %v3902, 0.001953125
        %v3904 = vadd.f32 %v3903, 1e-05
        %v3905 = vrsqrt.pop %v3904
        %v3906 = vmul.f32 %v3905, %v3904
        %v3907 = vmul.f32 %v3906, %v3905
        %v3908 = vmul.f32 0.5, %v3907
        %v3909 = vsub.f32 1.5, %v3908
        %v3910 = vmul.f32 %v3905, %v3909
        %vm3911 = vweird.f32 %v3904
        %vm3912 = vweird.f32 %v3905
        %vm3913 = vmor %vm3911, %vm3912
        %v3914 = vsel %vm3913, %v3905, %v3910
        %v3915 = vmul.f32 %v3886, %v3914
        %v3916 = vmul.f32 %v3887, %v3914
        %v3917 = vmul.f32 %v3888, %v3914
        %v3918 = vmul.f32 %v3889, %v3914
        %vm3919 = vcmp.ge.f32.partialorder %v3915, 0.0
        %vm3920 = vcmp.ge.f32.partialorder %v3916, 0.0
        %vm3921 = vcmp.ge.f32.partialorder %v3917, 0.0
        %vm3922 = vcmp.ge.f32.partialorder %v3918, 0.0
        %v3923 = vmul.f32 %v3915, 0.2
        %v3924 = vmul.f32 %v3916, 0.2
        %v3925 = vmul.f32 %v3917, 0.2
        %v3926 = vmul.f32 %v3918, 0.2
        %v3927 = vsel %vm3919, %v3915, %v3923
        %v3928 = vsel %vm3920, %v3916, %v3924
        %v3929 = vsel %vm3921, %v3917, %v3925
        %v3930 = vsel %vm3922, %v3918, %v3926
        %3931 = vrot.lane.b32.xlu0 %v3927, 73
        %v3932 = vpop.permute.xlu0 %3931
        %3933 = vrot.lane.b32.xlu0 %v3928, 73
        %v3934 = vpop.permute.xlu0 %3933
        %3935 = vrot.lane.b32.xlu0 %v3929, 73
        %v3936 = vpop.permute.xlu0 %3935
        %3937 = vrot.lane.b32.xlu0 %v3930, 73
        %v3938 = vpop.permute.xlu0 %3937
        %v3939 = vsel %vm252, %v3936, %v3938
        %v3940 = vsel %vm252, %v3934, %v3936
        %v3941 = vsel %vm252, %v3932, %v3934
        %v3942 = vsel %vm252, %v3938, %v3932
        %v3943 = vld [vmem:[%s3] sm:$0xf]
        %vm3944 = vcmask 15360
        %v3946 = vsel %vm3944, %v3943, 0
        %v3949 = vsel %vm3875, %v3942, 0
        %v3952 = vsel %vm3875, %v3941, 0
        %v3955 = vsel %vm3875, %v3940, 0
        %v3958 = vsel %vm3875, %v3939, 0
        %3960 = vmatpush.msra.mxu0 0.0
        %3961 = vmatpush.msra.mxu0 0.0
        %3962 = vmatpush.msra.mxu0 0.0
        %3963 = vmatpush.msra.mxu0 0.0
        %3964 = vmatpush.msra.mxu0 0.0
        %3965 = vmatpush.msra.mxu0 0.0
        %3966 = vmatpush.msra.mxu0 0.0
        %3967 = vmatpush.msra.mxu0 0.0
        %3968 = vmatpush.msra.mxu0 0.0
        %3969 = vmatpush.msra.mxu0 0.0
        %3970 = vmatpush.msra.mxu0 0.0
        %3971 = vmatpush.msra.mxu0 0.0
        %3972 = vmatpush.msra.mxu0 0.0
        %3973 = vmatpush.msra.mxu0 0.0
        %3974 = vmatpush.msra.mxu0 0.0
        %3975 = vmatpush.msra.mxu0 %v3949
        %3976 = vmatmul.f32.gmra.mxu0 %v3946
        %v3977 = vpop.f32.mrf.mxu0
        %v3978 = vadd.f32 0.0, %v3977
        %3979 = vdwg.mxu0
        %3980 = vmatpush.msra.mxu0 0.0
        %3981 = vmatpush.msra.mxu0 0.0
        %3982 = vmatpush.msra.mxu0 0.0
        %3983 = vmatpush.msra.mxu0 0.0
        %3984 = vmatpush.msra.mxu0 0.0
        %3985 = vmatpush.msra.mxu0 0.0
        %3986 = vmatpush.msra.mxu0 0.0
        %3987 = vmatpush.msra.mxu0 0.0
        %3988 = vmatpush.msra.mxu0 0.0
        %3989 = vmatpush.msra.mxu0 0.0
        %3990 = vmatpush.msra.mxu0 0.0
        %3991 = vmatpush.msra.mxu0 0.0
        %3992 = vmatpush.msra.mxu0 0.0
        %3993 = vmatpush.msra.mxu0 0.0
        %3994 = vmatpush.msra.mxu0 0.0
        %3995 = vmatpush.msra.mxu0 %v3952
        %3996 = vmatmul.f32.gmra.mxu0 %v3946
        %v3997 = vpop.f32.mrf.mxu0
        %v3998 = vadd.f32 0.0, %v3997
        %3999 = vdwg.mxu0
        %4000 = vmatpush.msra.mxu0 0.0
        %4001 = vmatpush.msra.mxu0 0.0
        %4002 = vmatpush.msra.mxu0 0.0
        %4003 = vmatpush.msra.mxu0 0.0
        %4004 = vmatpush.msra.mxu0 0.0
        %4005 = vmatpush.msra.mxu0 0.0
        %4006 = vmatpush.msra.mxu0 0.0
        %4007 = vmatpush.msra.mxu0 0.0
        %4008 = vmatpush.msra.mxu0 0.0
        %4009 = vmatpush.msra.mxu0 0.0
        %4010 = vmatpush.msra.mxu0 0.0
        %4011 = vmatpush.msra.mxu0 0.0
        %4012 = vmatpush.msra.mxu0 0.0
        %4013 = vmatpush.msra.mxu0 0.0
        %4014 = vmatpush.msra.mxu0 0.0
        %4015 = vmatpush.msra.mxu0 %v3955
        %4016 = vmatmul.f32.gmra.mxu0 %v3946
        %v4017 = vpop.f32.mrf.mxu0
        %v4018 = vadd.f32 0.0, %v4017
        %4019 = vdwg.mxu0
        %4020 = vmatpush.msra.mxu0 0.0
        %4021 = vmatpush.msra.mxu0 0.0
        %4022 = vmatpush.msra.mxu0 0.0
        %4023 = vmatpush.msra.mxu0 0.0
        %4024 = vmatpush.msra.mxu0 0.0
        %4025 = vmatpush.msra.mxu0 0.0
        %4026 = vmatpush.msra.mxu0 0.0
        %4027 = vmatpush.msra.mxu0 0.0
        %4028 = vmatpush.msra.mxu0 0.0
        %4029 = vmatpush.msra.mxu0 0.0
        %4030 = vmatpush.msra.mxu0 0.0
        %4031 = vmatpush.msra.mxu0 0.0
        %4032 = vmatpush.msra.mxu0 0.0
        %4033 = vmatpush.msra.mxu0 0.0
        %4034 = vmatpush.msra.mxu0 0.0
        %4035 = vmatpush.msra.mxu0 %v3958
        %4036 = vmatmul.f32.gmra.mxu0 %v3946
        %v4037 = vpop.f32.mrf.mxu0
        %v4038 = vadd.f32 0.0, %v4037
        %4039 = vdwg.mxu0
        %v4040 = vmul.f32 %v3978, %v383
        %v4041 = vmul.f32 %v3998, %v384
        %v4042 = vmul.f32 %v4018, %v385
        %v4043 = vmul.f32 %v4038, %v386
        %4044 = vrot.lane.b32.xlu0 %v3927, 72
        %v4045 = vpop.permute.xlu0 %4044
        %4046 = vrot.lane.b32.xlu0 %v3928, 72
        %v4047 = vpop.permute.xlu0 %4046
        %4048 = vrot.lane.b32.xlu0 %v3929, 72
        %v4049 = vpop.permute.xlu0 %4048
        %4050 = vrot.lane.b32.xlu0 %v3930, 72
        %v4051 = vpop.permute.xlu0 %4050
        %v4052 = vsel %vm410, %v4049, %v4051
        %v4053 = vsel %vm410, %v4047, %v4049
        %v4054 = vsel %vm410, %v4045, %v4047
        %v4055 = vsel %vm410, %v4051, %v4045
        %s4056 = scalar_lea.vmem %s3, 4
        %v4057 = vld [vmem:[%s4056] sm:$0xf]
        %v4059 = vsel %vm3944, %v4057, 0
        %v4062 = vsel %vm3875, %v4055, 0
        %v4065 = vsel %vm3875, %v4054, 0
        %v4068 = vsel %vm3875, %v4053, 0
        %v4071 = vsel %vm3875, %v4052, 0
        %4073 = vmatpush.msra.mxu0 0.0
        %4074 = vmatpush.msra.mxu0 0.0
        %4075 = vmatpush.msra.mxu0 0.0
        %4076 = vmatpush.msra.mxu0 0.0
        %4077 = vmatpush.msra.mxu0 0.0
        %4078 = vmatpush.msra.mxu0 0.0
        %4079 = vmatpush.msra.mxu0 0.0
        %4080 = vmatpush.msra.mxu0 0.0
        %4081 = vmatpush.msra.mxu0 0.0
        %4082 = vmatpush.msra.mxu0 0.0
        %4083 = vmatpush.msra.mxu0 0.0
        %4084 = vmatpush.msra.mxu0 0.0
        %4085 = vmatpush.msra.mxu0 0.0
        %4086 = vmatpush.msra.mxu0 0.0
        %4087 = vmatpush.msra.mxu0 0.0
        %4088 = vmatpush.msra.mxu0 %v4062
        %4089 = vmatmul.f32.gmra.mxu0 %v4059
        %v4090 = vpop.f32.mrf.mxu0
        %v4091 = vadd.f32 0.0, %v4090
        %4092 = vdwg.mxu0
        %4093 = vmatpush.msra.mxu0 0.0
        %4094 = vmatpush.msra.mxu0 0.0
        %4095 = vmatpush.msra.mxu0 0.0
        %4096 = vmatpush.msra.mxu0 0.0
        %4097 = vmatpush.msra.mxu0 0.0
        %4098 = vmatpush.msra.mxu0 0.0
        %4099 = vmatpush.msra.mxu0 0.0
        %4100 = vmatpush.msra.mxu0 0.0
        %4101 = vmatpush.msra.mxu0 0.0
        %4102 = vmatpush.msra.mxu0 0.0
        %4103 = vmatpush.msra.mxu0 0.0
        %4104 = vmatpush.msra.mxu0 0.0
        %4105 = vmatpush.msra.mxu0 0.0
        %4106 = vmatpush.msra.mxu0 0.0
        %4107 = vmatpush.msra.mxu0 0.0
        %4108 = vmatpush.msra.mxu0 %v4065
        %4109 = vmatmul.f32.gmra.mxu0 %v4059
        %v4110 = vpop.f32.mrf.mxu0
        %v4111 = vadd.f32 0.0, %v4110
        %4112 = vdwg.mxu0
        %4113 = vmatpush.msra.mxu0 0.0
        %4114 = vmatpush.msra.mxu0 0.0
        %4115 = vmatpush.msra.mxu0 0.0
        %4116 = vmatpush.msra.mxu0 0.0
        %4117 = vmatpush.msra.mxu0 0.0
        %4118 = vmatpush.msra.mxu0 0.0
        %4119 = vmatpush.msra.mxu0 0.0
        %4120 = vmatpush.msra.mxu0 0.0
        %4121 = vmatpush.msra.mxu0 0.0
        %4122 = vmatpush.msra.mxu0 0.0
        %4123 = vmatpush.msra.mxu0 0.0
        %4124 = vmatpush.msra.mxu0 0.0
        %4125 = vmatpush.msra.mxu0 0.0
        %4126 = vmatpush.msra.mxu0 0.0
        %4127 = vmatpush.msra.mxu0 0.0
        %4128 = vmatpush.msra.mxu0 %v4068
        %4129 = vmatmul.f32.gmra.mxu0 %v4059
        %v4130 = vpop.f32.mrf.mxu0
        %v4131 = vadd.f32 0.0, %v4130
        %4132 = vdwg.mxu0
        %4133 = vmatpush.msra.mxu0 0.0
        %4134 = vmatpush.msra.mxu0 0.0
        %4135 = vmatpush.msra.mxu0 0.0
        %4136 = vmatpush.msra.mxu0 0.0
        %4137 = vmatpush.msra.mxu0 0.0
        %4138 = vmatpush.msra.mxu0 0.0
        %4139 = vmatpush.msra.mxu0 0.0
        %4140 = vmatpush.msra.mxu0 0.0
        %4141 = vmatpush.msra.mxu0 0.0
        %4142 = vmatpush.msra.mxu0 0.0
        %4143 = vmatpush.msra.mxu0 0.0
        %4144 = vmatpush.msra.mxu0 0.0
        %4145 = vmatpush.msra.mxu0 0.0
        %4146 = vmatpush.msra.mxu0 0.0
        %4147 = vmatpush.msra.mxu0 0.0
        %4148 = vmatpush.msra.mxu0 %v4071
        %4149 = vmatmul.f32.gmra.mxu0 %v4059
        %v4150 = vpop.f32.mrf.mxu0
        %v4151 = vadd.f32 0.0, %v4150
        %4152 = vdwg.mxu0
        %v4153 = vmul.f32 %v4091, %v512
        %v4154 = vmul.f32 %v4111, %v513
        %v4155 = vmul.f32 %v4131, %v514
        %v4156 = vmul.f32 %v4151, %v515
        %v4157 = vadd.f32 %v4040, %v4153
        %v4158 = vadd.f32 %v4041, %v4154
        %v4159 = vadd.f32 %v4042, %v4155
        %v4160 = vadd.f32 %v4043, %v4156
        %4161 = vrot.lane.b32.xlu0 %v3927, 71
        %v4162 = vpop.permute.xlu0 %4161
        %4163 = vrot.lane.b32.xlu0 %v3928, 71
        %v4164 = vpop.permute.xlu0 %4163
        %4165 = vrot.lane.b32.xlu0 %v3929, 71
        %v4166 = vpop.permute.xlu0 %4165
        %4167 = vrot.lane.b32.xlu0 %v3930, 71
        %v4168 = vpop.permute.xlu0 %4167
        %v4169 = vsel %vm543, %v4166, %v4168
        %v4170 = vsel %vm543, %v4164, %v4166
        %v4171 = vsel %vm543, %v4162, %v4164
        %v4172 = vsel %vm543, %v4168, %v4162
        %s4173 = scalar_lea.vmem %s3, 8
        %v4174 = vld [vmem:[%s4173] sm:$0xf]
        %v4176 = vsel %vm3944, %v4174, 0
        %v4179 = vsel %vm3875, %v4172, 0
        %v4182 = vsel %vm3875, %v4171, 0
        %v4185 = vsel %vm3875, %v4170, 0
        %v4188 = vsel %vm3875, %v4169, 0
        %4190 = vmatpush.msra.mxu0 0.0
        %4191 = vmatpush.msra.mxu0 0.0
        %4192 = vmatpush.msra.mxu0 0.0
        %4193 = vmatpush.msra.mxu0 0.0
        %4194 = vmatpush.msra.mxu0 0.0
        %4195 = vmatpush.msra.mxu0 0.0
        %4196 = vmatpush.msra.mxu0 0.0
        %4197 = vmatpush.msra.mxu0 0.0
        %4198 = vmatpush.msra.mxu0 0.0
        %4199 = vmatpush.msra.mxu0 0.0
        %4200 = vmatpush.msra.mxu0 0.0
        %4201 = vmatpush.msra.mxu0 0.0
        %4202 = vmatpush.msra.mxu0 0.0
        %4203 = vmatpush.msra.mxu0 0.0
        %4204 = vmatpush.msra.mxu0 0.0
        %4205 = vmatpush.msra.mxu0 %v4179
        %4206 = vmatmul.f32.gmra.mxu0 %v4176
        %v4207 = vpop.f32.mrf.mxu0
        %v4208 = vadd.f32 0.0, %v4207
        %4209 = vdwg.mxu0
        %4210 = vmatpush.msra.mxu0 0.0
        %4211 = vmatpush.msra.mxu0 0.0
        %4212 = vmatpush.msra.mxu0 0.0
        %4213 = vmatpush.msra.mxu0 0.0
        %4214 = vmatpush.msra.mxu0 0.0
        %4215 = vmatpush.msra.mxu0 0.0
        %4216 = vmatpush.msra.mxu0 0.0
        %4217 = vmatpush.msra.mxu0 0.0
        %4218 = vmatpush.msra.mxu0 0.0
        %4219 = vmatpush.msra.mxu0 0.0
        %4220 = vmatpush.msra.mxu0 0.0
        %4221 = vmatpush.msra.mxu0 0.0
        %4222 = vmatpush.msra.mxu0 0.0
        %4223 = vmatpush.msra.mxu0 0.0
        %4224 = vmatpush.msra.mxu0 0.0
        %4225 = vmatpush.msra.mxu0 %v4182
        %4226 = vmatmul.f32.gmra.mxu0 %v4176
        %v4227 = vpop.f32.mrf.mxu0
        %v4228 = vadd.f32 0.0, %v4227
        %4229 = vdwg.mxu0
        %4230 = vmatpush.msra.mxu0 0.0
        %4231 = vmatpush.msra.mxu0 0.0
        %4232 = vmatpush.msra.mxu0 0.0
        %4233 = vmatpush.msra.mxu0 0.0
        %4234 = vmatpush.msra.mxu0 0.0
        %4235 = vmatpush.msra.mxu0 0.0
        %4236 = vmatpush.msra.mxu0 0.0
        %4237 = vmatpush.msra.mxu0 0.0
        %4238 = vmatpush.msra.mxu0 0.0
        %4239 = vmatpush.msra.mxu0 0.0
        %4240 = vmatpush.msra.mxu0 0.0
        %4241 = vmatpush.msra.mxu0 0.0
        %4242 = vmatpush.msra.mxu0 0.0
        %4243 = vmatpush.msra.mxu0 0.0
        %4244 = vmatpush.msra.mxu0 0.0
        %4245 = vmatpush.msra.mxu0 %v4185
        %4246 = vmatmul.f32.gmra.mxu0 %v4176
        %v4247 = vpop.f32.mrf.mxu0
        %v4248 = vadd.f32 0.0, %v4247
        %4249 = vdwg.mxu0
        %4250 = vmatpush.msra.mxu0 0.0
        %4251 = vmatpush.msra.mxu0 0.0
        %4252 = vmatpush.msra.mxu0 0.0
        %4253 = vmatpush.msra.mxu0 0.0
        %4254 = vmatpush.msra.mxu0 0.0
        %4255 = vmatpush.msra.mxu0 0.0
        %4256 = vmatpush.msra.mxu0 0.0
        %4257 = vmatpush.msra.mxu0 0.0
        %4258 = vmatpush.msra.mxu0 0.0
        %4259 = vmatpush.msra.mxu0 0.0
        %4260 = vmatpush.msra.mxu0 0.0
        %4261 = vmatpush.msra.mxu0 0.0
        %4262 = vmatpush.msra.mxu0 0.0
        %4263 = vmatpush.msra.mxu0 0.0
        %4264 = vmatpush.msra.mxu0 0.0
        %4265 = vmatpush.msra.mxu0 %v4188
        %4266 = vmatmul.f32.gmra.mxu0 %v4176
        %v4267 = vpop.f32.mrf.mxu0
        %v4268 = vadd.f32 0.0, %v4267
        %4269 = vdwg.mxu0
        %v4270 = vmul.f32 %v4208, %v657
        %v4271 = vmul.f32 %v4228, %v658
        %v4272 = vmul.f32 %v4248, %v659
        %v4273 = vmul.f32 %v4268, %v660
        %v4274 = vadd.f32 %v4157, %v4270
        %v4275 = vadd.f32 %v4158, %v4271
        %v4276 = vadd.f32 %v4159, %v4272
        %v4277 = vadd.f32 %v4160, %v4273
        %4278 = vrot.lane.b32.xlu0 %v3927, 65
        %v4279 = vpop.permute.xlu0 %4278
        %4280 = vrot.lane.b32.xlu0 %v3928, 65
        %v4281 = vpop.permute.xlu0 %4280
        %4282 = vrot.lane.b32.xlu0 %v3929, 65
        %v4283 = vpop.permute.xlu0 %4282
        %4284 = vrot.lane.b32.xlu0 %v3930, 65
        %v4285 = vpop.permute.xlu0 %4284
        %v4286 = vsel %vm688, %v4283, %v4285
        %v4287 = vsel %vm688, %v4281, %v4283
        %v4288 = vsel %vm688, %v4279, %v4281
        %v4289 = vsel %vm688, %v4285, %v4279
        %s4290 = scalar_lea.vmem %s3, 12
        %v4291 = vld [vmem:[%s4290] sm:$0xf]
        %v4293 = vsel %vm3944, %v4291, 0
        %v4296 = vsel %vm3875, %v4289, 0
        %v4299 = vsel %vm3875, %v4288, 0
        %v4302 = vsel %vm3875, %v4287, 0
        %v4305 = vsel %vm3875, %v4286, 0
        %4307 = vmatpush.msra.mxu0 0.0
        %4308 = vmatpush.msra.mxu0 0.0
        %4309 = vmatpush.msra.mxu0 0.0
        %4310 = vmatpush.msra.mxu0 0.0
        %4311 = vmatpush.msra.mxu0 0.0
        %4312 = vmatpush.msra.mxu0 0.0
        %4313 = vmatpush.msra.mxu0 0.0
        %4314 = vmatpush.msra.mxu0 0.0
        %4315 = vmatpush.msra.mxu0 0.0
        %4316 = vmatpush.msra.mxu0 0.0
        %4317 = vmatpush.msra.mxu0 0.0
        %4318 = vmatpush.msra.mxu0 0.0
        %4319 = vmatpush.msra.mxu0 0.0
        %4320 = vmatpush.msra.mxu0 0.0
        %4321 = vmatpush.msra.mxu0 0.0
        %4322 = vmatpush.msra.mxu0 %v4296
        %4323 = vmatmul.f32.gmra.mxu0 %v4293
        %v4324 = vpop.f32.mrf.mxu0
        %v4325 = vadd.f32 0.0, %v4324
        %4326 = vdwg.mxu0
        %4327 = vmatpush.msra.mxu0 0.0
        %4328 = vmatpush.msra.mxu0 0.0
        %4329 = vmatpush.msra.mxu0 0.0
        %4330 = vmatpush.msra.mxu0 0.0
        %4331 = vmatpush.msra.mxu0 0.0
        %4332 = vmatpush.msra.mxu0 0.0
        %4333 = vmatpush.msra.mxu0 0.0
        %4334 = vmatpush.msra.mxu0 0.0
        %4335 = vmatpush.msra.mxu0 0.0
        %4336 = vmatpush.msra.mxu0 0.0
        %4337 = vmatpush.msra.mxu0 0.0
        %4338 = vmatpush.msra.mxu0 0.0
        %4339 = vmatpush.msra.mxu0 0.0
        %4340 = vmatpush.msra.mxu0 0.0
        %4341 = vmatpush.msra.mxu0 0.0
        %4342 = vmatpush.msra.mxu0 %v4299
        %4343 = vmatmul.f32.gmra.mxu0 %v4293
        %v4344 = vpop.f32.mrf.mxu0
        %v4345 = vadd.f32 0.0, %v4344
        %4346 = vdwg.mxu0
        %4347 = vmatpush.msra.mxu0 0.0
        %4348 = vmatpush.msra.mxu0 0.0
        %4349 = vmatpush.msra.mxu0 0.0
        %4350 = vmatpush.msra.mxu0 0.0
        %4351 = vmatpush.msra.mxu0 0.0
        %4352 = vmatpush.msra.mxu0 0.0
        %4353 = vmatpush.msra.mxu0 0.0
        %4354 = vmatpush.msra.mxu0 0.0
        %4355 = vmatpush.msra.mxu0 0.0
        %4356 = vmatpush.msra.mxu0 0.0
        %4357 = vmatpush.msra.mxu0 0.0
        %4358 = vmatpush.msra.mxu0 0.0
        %4359 = vmatpush.msra.mxu0 0.0
        %4360 = vmatpush.msra.mxu0 0.0
        %4361 = vmatpush.msra.mxu0 0.0
        %4362 = vmatpush.msra.mxu0 %v4302
        %4363 = vmatmul.f32.gmra.mxu0 %v4293
        %v4364 = vpop.f32.mrf.mxu0
        %v4365 = vadd.f32 0.0, %v4364
        %4366 = vdwg.mxu0
        %4367 = vmatpush.msra.mxu0 0.0
        %4368 = vmatpush.msra.mxu0 0.0
        %4369 = vmatpush.msra.mxu0 0.0
        %4370 = vmatpush.msra.mxu0 0.0
        %4371 = vmatpush.msra.mxu0 0.0
        %4372 = vmatpush.msra.mxu0 0.0
        %4373 = vmatpush.msra.mxu0 0.0
        %4374 = vmatpush.msra.mxu0 0.0
        %4375 = vmatpush.msra.mxu0 0.0
        %4376 = vmatpush.msra.mxu0 0.0
        %4377 = vmatpush.msra.mxu0 0.0
        %4378 = vmatpush.msra.mxu0 0.0
        %4379 = vmatpush.msra.mxu0 0.0
        %4380 = vmatpush.msra.mxu0 0.0
        %4381 = vmatpush.msra.mxu0 0.0
        %4382 = vmatpush.msra.mxu0 %v4305
        %4383 = vmatmul.f32.gmra.mxu0 %v4293
        %v4384 = vpop.f32.mrf.mxu0
        %v4385 = vadd.f32 0.0, %v4384
        %4386 = vdwg.mxu0
        %v4387 = vmul.f32 %v4325, %v794
        %v4388 = vmul.f32 %v4345, %v795
        %v4389 = vmul.f32 %v4365, %v796
        %v4390 = vmul.f32 %v4385, %v797
        %v4391 = vadd.f32 %v4274, %v4387
        %v4392 = vadd.f32 %v4275, %v4388
        %v4393 = vadd.f32 %v4276, %v4389
        %v4394 = vadd.f32 %v4277, %v4390
        %4395 = vrot.lane.b32.xlu0 %v3927, 64
        %v4396 = vpop.permute.xlu0 %4395
        %4397 = vrot.lane.b32.xlu0 %v3928, 64
        %v4398 = vpop.permute.xlu0 %4397
        %4399 = vrot.lane.b32.xlu0 %v3929, 64
        %v4400 = vpop.permute.xlu0 %4399
        %4401 = vrot.lane.b32.xlu0 %v3930, 64
        %v4402 = vpop.permute.xlu0 %4401
        %v4403 = vsel %vm825, %v4400, %v4402
        %v4404 = vsel %vm825, %v4398, %v4400
        %v4405 = vsel %vm825, %v4396, %v4398
        %v4406 = vsel %vm825, %v4402, %v4396
        %s4407 = scalar_lea.vmem %s3, 16
        %v4408 = vld [vmem:[%s4407] sm:$0xf]
        %v4410 = vsel %vm3944, %v4408, 0
        %v4413 = vsel %vm3875, %v4406, 0
        %v4416 = vsel %vm3875, %v4405, 0
        %v4419 = vsel %vm3875, %v4404, 0
        %v4422 = vsel %vm3875, %v4403, 0
        %4424 = vmatpush.msra.mxu0 0.0
        %4425 = vmatpush.msra.mxu0 0.0
        %4426 = vmatpush.msra.mxu0 0.0
        %4427 = vmatpush.msra.mxu0 0.0
        %4428 = vmatpush.msra.mxu0 0.0
        %4429 = vmatpush.msra.mxu0 0.0
        %4430 = vmatpush.msra.mxu0 0.0
        %4431 = vmatpush.msra.mxu0 0.0
        %4432 = vmatpush.msra.mxu0 0.0
        %4433 = vmatpush.msra.mxu0 0.0
        %4434 = vmatpush.msra.mxu0 0.0
        %4435 = vmatpush.msra.mxu0 0.0
        %4436 = vmatpush.msra.mxu0 0.0
        %4437 = vmatpush.msra.mxu0 0.0
        %4438 = vmatpush.msra.mxu0 0.0
        %4439 = vmatpush.msra.mxu0 %v4413
        %4440 = vmatmul.f32.gmra.mxu0 %v4410
        %v4441 = vpop.f32.mrf.mxu0
        %v4442 = vadd.f32 0.0, %v4441
        %4443 = vdwg.mxu0
        %4444 = vmatpush.msra.mxu0 0.0
        %4445 = vmatpush.msra.mxu0 0.0
        %4446 = vmatpush.msra.mxu0 0.0
        %4447 = vmatpush.msra.mxu0 0.0
        %4448 = vmatpush.msra.mxu0 0.0
        %4449 = vmatpush.msra.mxu0 0.0
        %4450 = vmatpush.msra.mxu0 0.0
        %4451 = vmatpush.msra.mxu0 0.0
        %4452 = vmatpush.msra.mxu0 0.0
        %4453 = vmatpush.msra.mxu0 0.0
        %4454 = vmatpush.msra.mxu0 0.0
        %4455 = vmatpush.msra.mxu0 0.0
        %4456 = vmatpush.msra.mxu0 0.0
        %4457 = vmatpush.msra.mxu0 0.0
        %4458 = vmatpush.msra.mxu0 0.0
        %4459 = vmatpush.msra.mxu0 %v4416
        %4460 = vmatmul.f32.gmra.mxu0 %v4410
        %v4461 = vpop.f32.mrf.mxu0
        %v4462 = vadd.f32 0.0, %v4461
        %4463 = vdwg.mxu0
        %4464 = vmatpush.msra.mxu0 0.0
        %4465 = vmatpush.msra.mxu0 0.0
        %4466 = vmatpush.msra.mxu0 0.0
        %4467 = vmatpush.msra.mxu0 0.0
        %4468 = vmatpush.msra.mxu0 0.0
        %4469 = vmatpush.msra.mxu0 0.0
        %4470 = vmatpush.msra.mxu0 0.0
        %4471 = vmatpush.msra.mxu0 0.0
        %4472 = vmatpush.msra.mxu0 0.0
        %4473 = vmatpush.msra.mxu0 0.0
        %4474 = vmatpush.msra.mxu0 0.0
        %4475 = vmatpush.msra.mxu0 0.0
        %4476 = vmatpush.msra.mxu0 0.0
        %4477 = vmatpush.msra.mxu0 0.0
        %4478 = vmatpush.msra.mxu0 0.0
        %4479 = vmatpush.msra.mxu0 %v4419
        %4480 = vmatmul.f32.gmra.mxu0 %v4410
        %v4481 = vpop.f32.mrf.mxu0
        %v4482 = vadd.f32 0.0, %v4481
        %4483 = vdwg.mxu0
        %4484 = vmatpush.msra.mxu0 0.0
        %4485 = vmatpush.msra.mxu0 0.0
        %4486 = vmatpush.msra.mxu0 0.0
        %4487 = vmatpush.msra.mxu0 0.0
        %4488 = vmatpush.msra.mxu0 0.0
        %4489 = vmatpush.msra.mxu0 0.0
        %4490 = vmatpush.msra.mxu0 0.0
        %4491 = vmatpush.msra.mxu0 0.0
        %4492 = vmatpush.msra.mxu0 0.0
        %4493 = vmatpush.msra.mxu0 0.0
        %4494 = vmatpush.msra.mxu0 0.0
        %4495 = vmatpush.msra.mxu0 0.0
        %4496 = vmatpush.msra.mxu0 0.0
        %4497 = vmatpush.msra.mxu0 0.0
        %4498 = vmatpush.msra.mxu0 0.0
        %4499 = vmatpush.msra.mxu0 %v4422
        %4500 = vmatmul.f32.gmra.mxu0 %v4410
        %v4501 = vpop.f32.mrf.mxu0
        %v4502 = vadd.f32 0.0, %v4501
        %4503 = vdwg.mxu0
        %v4504 = vmul.f32 %v4442, %v927
        %v4505 = vmul.f32 %v4462, %v928
        %v4506 = vmul.f32 %v4482, %v929
        %v4507 = vmul.f32 %v4502, %v930
        %v4508 = vadd.f32 %v4391, %v4504
        %v4509 = vadd.f32 %v4392, %v4505
        %v4510 = vadd.f32 %v4393, %v4506
        %v4511 = vadd.f32 %v4394, %v4507
        %4512 = vrot.lane.b32.xlu0 %v3927, 63
        %v4513 = vpop.permute.xlu0 %4512
        %4514 = vrot.lane.b32.xlu0 %v3928, 63
        %v4515 = vpop.permute.xlu0 %4514
        %4516 = vrot.lane.b32.xlu0 %v3929, 63
        %v4517 = vpop.permute.xlu0 %4516
        %4518 = vrot.lane.b32.xlu0 %v3930, 63
        %v4519 = vpop.permute.xlu0 %4518
        %v4520 = vsel %vm958, %v4517, %v4519
        %v4521 = vsel %vm958, %v4515, %v4517
        %v4522 = vsel %vm958, %v4513, %v4515
        %v4523 = vsel %vm958, %v4519, %v4513
        %s4524 = scalar_lea.vmem %s3, 20
        %v4525 = vld [vmem:[%s4524] sm:$0xf]
        %v4527 = vsel %vm3944, %v4525, 0
        %v4530 = vsel %vm3875, %v4523, 0
        %v4533 = vsel %vm3875, %v4522, 0
        %v4536 = vsel %vm3875, %v4521, 0
        %v4539 = vsel %vm3875, %v4520, 0
        %4541 = vmatpush.msra.mxu0 0.0
        %4542 = vmatpush.msra.mxu0 0.0
        %4543 = vmatpush.msra.mxu0 0.0
        %4544 = vmatpush.msra.mxu0 0.0
        %4545 = vmatpush.msra.mxu0 0.0
        %4546 = vmatpush.msra.mxu0 0.0
        %4547 = vmatpush.msra.mxu0 0.0
        %4548 = vmatpush.msra.mxu0 0.0
        %4549 = vmatpush.msra.mxu0 0.0
        %4550 = vmatpush.msra.mxu0 0.0
        %4551 = vmatpush.msra.mxu0 0.0
        %4552 = vmatpush.msra.mxu0 0.0
        %4553 = vmatpush.msra.mxu0 0.0
        %4554 = vmatpush.msra.mxu0 0.0
        %4555 = vmatpush.msra.mxu0 0.0
        %4556 = vmatpush.msra.mxu0 %v4530
        %4557 = vmatmul.f32.gmra.mxu0 %v4527
        %v4558 = vpop.f32.mrf.mxu0
        %v4559 = vadd.f32 0.0, %v4558
        %4560 = vdwg.mxu0
        %4561 = vmatpush.msra.mxu0 0.0
        %4562 = vmatpush.msra.mxu0 0.0
        %4563 = vmatpush.msra.mxu0 0.0
        %4564 = vmatpush.msra.mxu0 0.0
        %4565 = vmatpush.msra.mxu0 0.0
        %4566 = vmatpush.msra.mxu0 0.0
        %4567 = vmatpush.msra.mxu0 0.0
        %4568 = vmatpush.msra.mxu0 0.0
        %4569 = vmatpush.msra.mxu0 0.0
        %4570 = vmatpush.msra.mxu0 0.0
        %4571 = vmatpush.msra.mxu0 0.0
        %4572 = vmatpush.msra.mxu0 0.0
        %4573 = vmatpush.msra.mxu0 0.0
        %4574 = vmatpush.msra.mxu0 0.0
        %4575 = vmatpush.msra.mxu0 0.0
        %4576 = vmatpush.msra.mxu0 %v4533
        %4577 = vmatmul.f32.gmra.mxu0 %v4527
        %v4578 = vpop.f32.mrf.mxu0
        %v4579 = vadd.f32 0.0, %v4578
        %4580 = vdwg.mxu0
        %4581 = vmatpush.msra.mxu0 0.0
        %4582 = vmatpush.msra.mxu0 0.0
        %4583 = vmatpush.msra.mxu0 0.0
        %4584 = vmatpush.msra.mxu0 0.0
        %4585 = vmatpush.msra.mxu0 0.0
        %4586 = vmatpush.msra.mxu0 0.0
        %4587 = vmatpush.msra.mxu0 0.0
        %4588 = vmatpush.msra.mxu0 0.0
        %4589 = vmatpush.msra.mxu0 0.0
        %4590 = vmatpush.msra.mxu0 0.0
        %4591 = vmatpush.msra.mxu0 0.0
        %4592 = vmatpush.msra.mxu0 0.0
        %4593 = vmatpush.msra.mxu0 0.0
        %4594 = vmatpush.msra.mxu0 0.0
        %4595 = vmatpush.msra.mxu0 0.0
        %4596 = vmatpush.msra.mxu0 %v4536
        %4597 = vmatmul.f32.gmra.mxu0 %v4527
        %v4598 = vpop.f32.mrf.mxu0
        %v4599 = vadd.f32 0.0, %v4598
        %4600 = vdwg.mxu0
        %4601 = vmatpush.msra.mxu0 0.0
        %4602 = vmatpush.msra.mxu0 0.0
        %4603 = vmatpush.msra.mxu0 0.0
        %4604 = vmatpush.msra.mxu0 0.0
        %4605 = vmatpush.msra.mxu0 0.0
        %4606 = vmatpush.msra.mxu0 0.0
        %4607 = vmatpush.msra.mxu0 0.0
        %4608 = vmatpush.msra.mxu0 0.0
        %4609 = vmatpush.msra.mxu0 0.0
        %4610 = vmatpush.msra.mxu0 0.0
        %4611 = vmatpush.msra.mxu0 0.0
        %4612 = vmatpush.msra.mxu0 0.0
        %4613 = vmatpush.msra.mxu0 0.0
        %4614 = vmatpush.msra.mxu0 0.0
        %4615 = vmatpush.msra.mxu0 0.0
        %4616 = vmatpush.msra.mxu0 %v4539
        %4617 = vmatmul.f32.gmra.mxu0 %v4527
        %v4618 = vpop.f32.mrf.mxu0
        %v4619 = vadd.f32 0.0, %v4618
        %4620 = vdwg.mxu0
        %v4621 = vmul.f32 %v4559, %v1064
        %v4622 = vmul.f32 %v4579, %v1065
        %v4623 = vmul.f32 %v4599, %v1066
        %v4624 = vmul.f32 %v4619, %v1067
        %v4625 = vadd.f32 %v4508, %v4621
        %v4626 = vadd.f32 %v4509, %v4622
        %v4627 = vadd.f32 %v4510, %v4623
        %v4628 = vadd.f32 %v4511, %v4624
        %4629 = vrot.lane.b32.xlu0 %v3927, 57
        %v4630 = vpop.permute.xlu0 %4629
        %4631 = vrot.lane.b32.xlu0 %v3928, 57
        %v4632 = vpop.permute.xlu0 %4631
        %4633 = vrot.lane.b32.xlu0 %v3929, 57
        %v4634 = vpop.permute.xlu0 %4633
        %4635 = vrot.lane.b32.xlu0 %v3930, 57
        %v4636 = vpop.permute.xlu0 %4635
        %v4637 = vsel %vm1095, %v4634, %v4636
        %v4638 = vsel %vm1095, %v4632, %v4634
        %v4639 = vsel %vm1095, %v4630, %v4632
        %v4640 = vsel %vm1095, %v4636, %v4630
        %s4641 = scalar_lea.vmem %s3, 24
        %v4642 = vld [vmem:[%s4641] sm:$0xf]
        %v4644 = vsel %vm3944, %v4642, 0
        %v4647 = vsel %vm3875, %v4640, 0
        %v4650 = vsel %vm3875, %v4639, 0
        %v4653 = vsel %vm3875, %v4638, 0
        %v4656 = vsel %vm3875, %v4637, 0
        %4658 = vmatpush.msra.mxu0 0.0
        %4659 = vmatpush.msra.mxu0 0.0
        %4660 = vmatpush.msra.mxu0 0.0
        %4661 = vmatpush.msra.mxu0 0.0
        %4662 = vmatpush.msra.mxu0 0.0
        %4663 = vmatpush.msra.mxu0 0.0
        %4664 = vmatpush.msra.mxu0 0.0
        %4665 = vmatpush.msra.mxu0 0.0
        %4666 = vmatpush.msra.mxu0 0.0
        %4667 = vmatpush.msra.mxu0 0.0
        %4668 = vmatpush.msra.mxu0 0.0
        %4669 = vmatpush.msra.mxu0 0.0
        %4670 = vmatpush.msra.mxu0 0.0
        %4671 = vmatpush.msra.mxu0 0.0
        %4672 = vmatpush.msra.mxu0 0.0
        %4673 = vmatpush.msra.mxu0 %v4647
        %4674 = vmatmul.f32.gmra.mxu0 %v4644
        %v4675 = vpop.f32.mrf.mxu0
        %v4676 = vadd.f32 0.0, %v4675
        %4677 = vdwg.mxu0
        %4678 = vmatpush.msra.mxu0 0.0
        %4679 = vmatpush.msra.mxu0 0.0
        %4680 = vmatpush.msra.mxu0 0.0
        %4681 = vmatpush.msra.mxu0 0.0
        %4682 = vmatpush.msra.mxu0 0.0
        %4683 = vmatpush.msra.mxu0 0.0
        %4684 = vmatpush.msra.mxu0 0.0
        %4685 = vmatpush.msra.mxu0 0.0
        %4686 = vmatpush.msra.mxu0 0.0
        %4687 = vmatpush.msra.mxu0 0.0
        %4688 = vmatpush.msra.mxu0 0.0
        %4689 = vmatpush.msra.mxu0 0.0
        %4690 = vmatpush.msra.mxu0 0.0
        %4691 = vmatpush.msra.mxu0 0.0
        %4692 = vmatpush.msra.mxu0 0.0
        %4693 = vmatpush.msra.mxu0 %v4650
        %4694 = vmatmul.f32.gmra.mxu0 %v4644
        %v4695 = vpop.f32.mrf.mxu0
        %v4696 = vadd.f32 0.0, %v4695
        %4697 = vdwg.mxu0
        %4698 = vmatpush.msra.mxu0 0.0
        %4699 = vmatpush.msra.mxu0 0.0
        %4700 = vmatpush.msra.mxu0 0.0
        %4701 = vmatpush.msra.mxu0 0.0
        %4702 = vmatpush.msra.mxu0 0.0
        %4703 = vmatpush.msra.mxu0 0.0
        %4704 = vmatpush.msra.mxu0 0.0
        %4705 = vmatpush.msra.mxu0 0.0
        %4706 = vmatpush.msra.mxu0 0.0
        %4707 = vmatpush.msra.mxu0 0.0
        %4708 = vmatpush.msra.mxu0 0.0
        %4709 = vmatpush.msra.mxu0 0.0
        %4710 = vmatpush.msra.mxu0 0.0
        %4711 = vmatpush.msra.mxu0 0.0
        %4712 = vmatpush.msra.mxu0 0.0
        %4713 = vmatpush.msra.mxu0 %v4653
        %4714 = vmatmul.f32.gmra.mxu0 %v4644
        %v4715 = vpop.f32.mrf.mxu0
        %v4716 = vadd.f32 0.0, %v4715
        %4717 = vdwg.mxu0
        %4718 = vmatpush.msra.mxu0 0.0
        %4719 = vmatpush.msra.mxu0 0.0
        %4720 = vmatpush.msra.mxu0 0.0
        %4721 = vmatpush.msra.mxu0 0.0
        %4722 = vmatpush.msra.mxu0 0.0
        %4723 = vmatpush.msra.mxu0 0.0
        %4724 = vmatpush.msra.mxu0 0.0
        %4725 = vmatpush.msra.mxu0 0.0
        %4726 = vmatpush.msra.mxu0 0.0
        %4727 = vmatpush.msra.mxu0 0.0
        %4728 = vmatpush.msra.mxu0 0.0
        %4729 = vmatpush.msra.mxu0 0.0
        %4730 = vmatpush.msra.mxu0 0.0
        %4731 = vmatpush.msra.mxu0 0.0
        %4732 = vmatpush.msra.mxu0 0.0
        %4733 = vmatpush.msra.mxu0 %v4656
        %4734 = vmatmul.f32.gmra.mxu0 %v4644
        %v4735 = vpop.f32.mrf.mxu0
        %v4736 = vadd.f32 0.0, %v4735
        %4737 = vdwg.mxu0
        %v4738 = vmul.f32 %v4676, %v1213
        %v4739 = vmul.f32 %v4696, %v1214
        %v4740 = vmul.f32 %v4716, %v1215
        %v4741 = vmul.f32 %v4736, %v1216
        %v4742 = vadd.f32 %v4625, %v4738
        %v4743 = vadd.f32 %v4626, %v4739
        %v4744 = vadd.f32 %v4627, %v4740
        %v4745 = vadd.f32 %v4628, %v4741
        %4746 = vrot.lane.b32.xlu0 %v3927, 56
        %v4747 = vpop.permute.xlu0 %4746
        %4748 = vrot.lane.b32.xlu0 %v3928, 56
        %v4749 = vpop.permute.xlu0 %4748
        %4750 = vrot.lane.b32.xlu0 %v3929, 56
        %v4751 = vpop.permute.xlu0 %4750
        %4752 = vrot.lane.b32.xlu0 %v3930, 56
        %v4753 = vpop.permute.xlu0 %4752
        %v4754 = vsel %vm1244, %v4751, %v4753
        %v4755 = vsel %vm1244, %v4749, %v4751
        %v4756 = vsel %vm1244, %v4747, %v4749
        %v4757 = vsel %vm1244, %v4753, %v4747
        %s4758 = scalar_lea.vmem %s3, 28
        %v4759 = vld [vmem:[%s4758] sm:$0xf]
        %v4761 = vsel %vm3944, %v4759, 0
        %v4764 = vsel %vm3875, %v4757, 0
        %v4767 = vsel %vm3875, %v4756, 0
        %v4770 = vsel %vm3875, %v4755, 0
        %v4773 = vsel %vm3875, %v4754, 0
        %4775 = vmatpush.msra.mxu0 0.0
        %4776 = vmatpush.msra.mxu0 0.0
        %4777 = vmatpush.msra.mxu0 0.0
        %4778 = vmatpush.msra.mxu0 0.0
        %4779 = vmatpush.msra.mxu0 0.0
        %4780 = vmatpush.msra.mxu0 0.0
        %4781 = vmatpush.msra.mxu0 0.0
        %4782 = vmatpush.msra.mxu0 0.0
        %4783 = vmatpush.msra.mxu0 0.0
        %4784 = vmatpush.msra.mxu0 0.0
        %4785 = vmatpush.msra.mxu0 0.0
        %4786 = vmatpush.msra.mxu0 0.0
        %4787 = vmatpush.msra.mxu0 0.0
        %4788 = vmatpush.msra.mxu0 0.0
        %4789 = vmatpush.msra.mxu0 0.0
        %4790 = vmatpush.msra.mxu0 %v4764
        %4791 = vmatmul.f32.gmra.mxu0 %v4761
        %v4792 = vpop.f32.mrf.mxu0
        %v4793 = vadd.f32 0.0, %v4792
        %4794 = vdwg.mxu0
        %4795 = vmatpush.msra.mxu0 0.0
        %4796 = vmatpush.msra.mxu0 0.0
        %4797 = vmatpush.msra.mxu0 0.0
        %4798 = vmatpush.msra.mxu0 0.0
        %4799 = vmatpush.msra.mxu0 0.0
        %4800 = vmatpush.msra.mxu0 0.0
        %4801 = vmatpush.msra.mxu0 0.0
        %4802 = vmatpush.msra.mxu0 0.0
        %4803 = vmatpush.msra.mxu0 0.0
        %4804 = vmatpush.msra.mxu0 0.0
        %4805 = vmatpush.msra.mxu0 0.0
        %4806 = vmatpush.msra.mxu0 0.0
        %4807 = vmatpush.msra.mxu0 0.0
        %4808 = vmatpush.msra.mxu0 0.0
        %4809 = vmatpush.msra.mxu0 0.0
        %4810 = vmatpush.msra.mxu0 %v4767
        %4811 = vmatmul.f32.gmra.mxu0 %v4761
        %v4812 = vpop.f32.mrf.mxu0
        %v4813 = vadd.f32 0.0, %v4812
        %4814 = vdwg.mxu0
        %4815 = vmatpush.msra.mxu0 0.0
        %4816 = vmatpush.msra.mxu0 0.0
        %4817 = vmatpush.msra.mxu0 0.0
        %4818 = vmatpush.msra.mxu0 0.0
        %4819 = vmatpush.msra.mxu0 0.0
        %4820 = vmatpush.msra.mxu0 0.0
        %4821 = vmatpush.msra.mxu0 0.0
        %4822 = vmatpush.msra.mxu0 0.0
        %4823 = vmatpush.msra.mxu0 0.0
        %4824 = vmatpush.msra.mxu0 0.0
        %4825 = vmatpush.msra.mxu0 0.0
        %4826 = vmatpush.msra.mxu0 0.0
        %4827 = vmatpush.msra.mxu0 0.0
        %4828 = vmatpush.msra.mxu0 0.0
        %4829 = vmatpush.msra.mxu0 0.0
        %4830 = vmatpush.msra.mxu0 %v4770
        %4831 = vmatmul.f32.gmra.mxu0 %v4761
        %v4832 = vpop.f32.mrf.mxu0
        %v4833 = vadd.f32 0.0, %v4832
        %4834 = vdwg.mxu0
        %4835 = vmatpush.msra.mxu0 0.0
        %4836 = vmatpush.msra.mxu0 0.0
        %4837 = vmatpush.msra.mxu0 0.0
        %4838 = vmatpush.msra.mxu0 0.0
        %4839 = vmatpush.msra.mxu0 0.0
        %4840 = vmatpush.msra.mxu0 0.0
        %4841 = vmatpush.msra.mxu0 0.0
        %4842 = vmatpush.msra.mxu0 0.0
        %4843 = vmatpush.msra.mxu0 0.0
        %4844 = vmatpush.msra.mxu0 0.0
        %4845 = vmatpush.msra.mxu0 0.0
        %4846 = vmatpush.msra.mxu0 0.0
        %4847 = vmatpush.msra.mxu0 0.0
        %4848 = vmatpush.msra.mxu0 0.0
        %4849 = vmatpush.msra.mxu0 0.0
        %4850 = vmatpush.msra.mxu0 %v4773
        %4851 = vmatmul.f32.gmra.mxu0 %v4761
        %v4852 = vpop.f32.mrf.mxu0
        %v4853 = vadd.f32 0.0, %v4852
        %4854 = vdwg.mxu0
        %v4855 = vmul.f32 %v4793, %v1346
        %v4856 = vmul.f32 %v4813, %v1347
        %v4857 = vmul.f32 %v4833, %v1348
        %v4858 = vmul.f32 %v4853, %v1349
        %v4859 = vadd.f32 %v4742, %v4855
        %v4860 = vadd.f32 %v4743, %v4856
        %v4861 = vadd.f32 %v4744, %v4857
        %v4862 = vadd.f32 %v4745, %v4858
        %4863 = vrot.lane.b32.xlu0 %v3927, 55
        %v4864 = vpop.permute.xlu0 %4863
        %4865 = vrot.lane.b32.xlu0 %v3928, 55
        %v4866 = vpop.permute.xlu0 %4865
        %4867 = vrot.lane.b32.xlu0 %v3929, 55
        %v4868 = vpop.permute.xlu0 %4867
        %4869 = vrot.lane.b32.xlu0 %v3930, 55
        %v4870 = vpop.permute.xlu0 %4869
        %v4871 = vsel %vm1377, %v4868, %v4870
        %v4872 = vsel %vm1377, %v4866, %v4868
        %v4873 = vsel %vm1377, %v4864, %v4866
        %v4874 = vsel %vm1377, %v4870, %v4864
        %s4875 = scalar_lea.vmem %s3, 32
        %v4876 = vld [vmem:[%s4875] sm:$0xf]
        %v4878 = vsel %vm3944, %v4876, 0
        %v4881 = vsel %vm3875, %v4874, 0
        %v4884 = vsel %vm3875, %v4873, 0
        %v4887 = vsel %vm3875, %v4872, 0
        %v4890 = vsel %vm3875, %v4871, 0
        %4892 = vmatpush.msra.mxu0 0.0
        %4893 = vmatpush.msra.mxu0 0.0
        %4894 = vmatpush.msra.mxu0 0.0
        %4895 = vmatpush.msra.mxu0 0.0
        %4896 = vmatpush.msra.mxu0 0.0
        %4897 = vmatpush.msra.mxu0 0.0
        %4898 = vmatpush.msra.mxu0 0.0
        %4899 = vmatpush.msra.mxu0 0.0
        %4900 = vmatpush.msra.mxu0 0.0
        %4901 = vmatpush.msra.mxu0 0.0
        %4902 = vmatpush.msra.mxu0 0.0
        %4903 = vmatpush.msra.mxu0 0.0
        %4904 = vmatpush.msra.mxu0 0.0
        %4905 = vmatpush.msra.mxu0 0.0
        %4906 = vmatpush.msra.mxu0 0.0
        %4907 = vmatpush.msra.mxu0 %v4881
        %4908 = vmatmul.f32.gmra.mxu0 %v4878
        %v4909 = vpop.f32.mrf.mxu0
        %v4910 = vadd.f32 0.0, %v4909
        %4911 = vdwg.mxu0
        %4912 = vmatpush.msra.mxu0 0.0
        %4913 = vmatpush.msra.mxu0 0.0
        %4914 = vmatpush.msra.mxu0 0.0
        %4915 = vmatpush.msra.mxu0 0.0
        %4916 = vmatpush.msra.mxu0 0.0
        %4917 = vmatpush.msra.mxu0 0.0
        %4918 = vmatpush.msra.mxu0 0.0
        %4919 = vmatpush.msra.mxu0 0.0
        %4920 = vmatpush.msra.mxu0 0.0
        %4921 = vmatpush.msra.mxu0 0.0
        %4922 = vmatpush.msra.mxu0 0.0
        %4923 = vmatpush.msra.mxu0 0.0
        %4924 = vmatpush.msra.mxu0 0.0
        %4925 = vmatpush.msra.mxu0 0.0
        %4926 = vmatpush.msra.mxu0 0.0
        %4927 = vmatpush.msra.mxu0 %v4884
        %4928 = vmatmul.f32.gmra.mxu0 %v4878
        %v4929 = vpop.f32.mrf.mxu0
        %v4930 = vadd.f32 0.0, %v4929
        %4931 = vdwg.mxu0
        %4932 = vmatpush.msra.mxu0 0.0
        %4933 = vmatpush.msra.mxu0 0.0
        %4934 = vmatpush.msra.mxu0 0.0
        %4935 = vmatpush.msra.mxu0 0.0
        %4936 = vmatpush.msra.mxu0 0.0
        %4937 = vmatpush.msra.mxu0 0.0
        %4938 = vmatpush.msra.mxu0 0.0
        %4939 = vmatpush.msra.mxu0 0.0
        %4940 = vmatpush.msra.mxu0 0.0
        %4941 = vmatpush.msra.mxu0 0.0
        %4942 = vmatpush.msra.mxu0 0.0
        %4943 = vmatpush.msra.mxu0 0.0
        %4944 = vmatpush.msra.mxu0 0.0
        %4945 = vmatpush.msra.mxu0 0.0
        %4946 = vmatpush.msra.mxu0 0.0
        %4947 = vmatpush.msra.mxu0 %v4887
        %4948 = vmatmul.f32.gmra.mxu0 %v4878
        %v4949 = vpop.f32.mrf.mxu0
        %v4950 = vadd.f32 0.0, %v4949
        %4951 = vdwg.mxu0
        %4952 = vmatpush.msra.mxu0 0.0
        %4953 = vmatpush.msra.mxu0 0.0
        %4954 = vmatpush.msra.mxu0 0.0
        %4955 = vmatpush.msra.mxu0 0.0
        %4956 = vmatpush.msra.mxu0 0.0
        %4957 = vmatpush.msra.mxu0 0.0
        %4958 = vmatpush.msra.mxu0 0.0
        %4959 = vmatpush.msra.mxu0 0.0
        %4960 = vmatpush.msra.mxu0 0.0
        %4961 = vmatpush.msra.mxu0 0.0
        %4962 = vmatpush.msra.mxu0 0.0
        %4963 = vmatpush.msra.mxu0 0.0
        %4964 = vmatpush.msra.mxu0 0.0
        %4965 = vmatpush.msra.mxu0 0.0
        %4966 = vmatpush.msra.mxu0 0.0
        %4967 = vmatpush.msra.mxu0 %v4890
        %4968 = vmatmul.f32.gmra.mxu0 %v4878
        %v4969 = vpop.f32.mrf.mxu0
        %v4970 = vadd.f32 0.0, %v4969
        %4971 = vdwg.mxu0
        %v4972 = vmul.f32 %v4910, %v1483
        %v4973 = vmul.f32 %v4930, %v1484
        %v4974 = vmul.f32 %v4950, %v1485
        %v4975 = vmul.f32 %v4970, %v1486
        %v4976 = vadd.f32 %v4859, %v4972
        %v4977 = vadd.f32 %v4860, %v4973
        %v4978 = vadd.f32 %v4861, %v4974
        %v4979 = vadd.f32 %v4862, %v4975
        %4980 = vrot.lane.b32.xlu0 %v3927, 9
        %v4981 = vpop.permute.xlu0 %4980
        %4982 = vrot.lane.b32.xlu0 %v3928, 9
        %v4983 = vpop.permute.xlu0 %4982
        %4984 = vrot.lane.b32.xlu0 %v3929, 9
        %v4985 = vpop.permute.xlu0 %4984
        %4986 = vrot.lane.b32.xlu0 %v3930, 9
        %v4987 = vpop.permute.xlu0 %4986
        %v4988 = vsel %vm1514, %v4985, %v4987
        %v4989 = vsel %vm1514, %v4983, %v4985
        %v4990 = vsel %vm1514, %v4981, %v4983
        %v4991 = vsel %vm1514, %v4987, %v4981
        %s4992 = scalar_lea.vmem %s3, 36
        %v4993 = vld [vmem:[%s4992] sm:$0xf]
        %v4995 = vsel %vm3944, %v4993, 0
        %v4998 = vsel %vm3875, %v4991, 0
        %v5001 = vsel %vm3875, %v4990, 0
        %v5004 = vsel %vm3875, %v4989, 0
        %v5007 = vsel %vm3875, %v4988, 0
        %5009 = vmatpush.msra.mxu0 0.0
        %5010 = vmatpush.msra.mxu0 0.0
        %5011 = vmatpush.msra.mxu0 0.0
        %5012 = vmatpush.msra.mxu0 0.0
        %5013 = vmatpush.msra.mxu0 0.0
        %5014 = vmatpush.msra.mxu0 0.0
        %5015 = vmatpush.msra.mxu0 0.0
        %5016 = vmatpush.msra.mxu0 0.0
        %5017 = vmatpush.msra.mxu0 0.0
        %5018 = vmatpush.msra.mxu0 0.0
        %5019 = vmatpush.msra.mxu0 0.0
        %5020 = vmatpush.msra.mxu0 0.0
        %5021 = vmatpush.msra.mxu0 0.0
        %5022 = vmatpush.msra.mxu0 0.0
        %5023 = vmatpush.msra.mxu0 0.0
        %5024 = vmatpush.msra.mxu0 %v4998
        %5025 = vmatmul.f32.gmra.mxu0 %v4995
        %v5026 = vpop.f32.mrf.mxu0
        %v5027 = vadd.f32 0.0, %v5026
        %5028 = vdwg.mxu0
        %5029 = vmatpush.msra.mxu0 0.0
        %5030 = vmatpush.msra.mxu0 0.0
        %5031 = vmatpush.msra.mxu0 0.0
        %5032 = vmatpush.msra.mxu0 0.0
        %5033 = vmatpush.msra.mxu0 0.0
        %5034 = vmatpush.msra.mxu0 0.0
        %5035 = vmatpush.msra.mxu0 0.0
        %5036 = vmatpush.msra.mxu0 0.0
        %5037 = vmatpush.msra.mxu0 0.0
        %5038 = vmatpush.msra.mxu0 0.0
        %5039 = vmatpush.msra.mxu0 0.0
        %5040 = vmatpush.msra.mxu0 0.0
        %5041 = vmatpush.msra.mxu0 0.0
        %5042 = vmatpush.msra.mxu0 0.0
        %5043 = vmatpush.msra.mxu0 0.0
        %5044 = vmatpush.msra.mxu0 %v5001
        %5045 = vmatmul.f32.gmra.mxu0 %v4995
        %v5046 = vpop.f32.mrf.mxu0
        %v5047 = vadd.f32 0.0, %v5046
        %5048 = vdwg.mxu0
        %5049 = vmatpush.msra.mxu0 0.0
        %5050 = vmatpush.msra.mxu0 0.0
        %5051 = vmatpush.msra.mxu0 0.0
        %5052 = vmatpush.msra.mxu0 0.0
        %5053 = vmatpush.msra.mxu0 0.0
        %5054 = vmatpush.msra.mxu0 0.0
        %5055 = vmatpush.msra.mxu0 0.0
        %5056 = vmatpush.msra.mxu0 0.0
        %5057 = vmatpush.msra.mxu0 0.0
        %5058 = vmatpush.msra.mxu0 0.0
        %5059 = vmatpush.msra.mxu0 0.0
        %5060 = vmatpush.msra.mxu0 0.0
        %5061 = vmatpush.msra.mxu0 0.0
        %5062 = vmatpush.msra.mxu0 0.0
        %5063 = vmatpush.msra.mxu0 0.0
        %5064 = vmatpush.msra.mxu0 %v5004
        %5065 = vmatmul.f32.gmra.mxu0 %v4995
        %v5066 = vpop.f32.mrf.mxu0
        %v5067 = vadd.f32 0.0, %v5066
        %5068 = vdwg.mxu0
        %5069 = vmatpush.msra.mxu0 0.0
        %5070 = vmatpush.msra.mxu0 0.0
        %5071 = vmatpush.msra.mxu0 0.0
        %5072 = vmatpush.msra.mxu0 0.0
        %5073 = vmatpush.msra.mxu0 0.0
        %5074 = vmatpush.msra.mxu0 0.0
        %5075 = vmatpush.msra.mxu0 0.0
        %5076 = vmatpush.msra.mxu0 0.0
        %5077 = vmatpush.msra.mxu0 0.0
        %5078 = vmatpush.msra.mxu0 0.0
        %5079 = vmatpush.msra.mxu0 0.0
        %5080 = vmatpush.msra.mxu0 0.0
        %5081 = vmatpush.msra.mxu0 0.0
        %5082 = vmatpush.msra.mxu0 0.0
        %5083 = vmatpush.msra.mxu0 0.0
        %5084 = vmatpush.msra.mxu0 %v5007
        %5085 = vmatmul.f32.gmra.mxu0 %v4995
        %v5086 = vpop.f32.mrf.mxu0
        %v5087 = vadd.f32 0.0, %v5086
        %5088 = vdwg.mxu0
        %v5089 = vmul.f32 %v5027, %v1616
        %v5090 = vmul.f32 %v5047, %v1617
        %v5091 = vmul.f32 %v5067, %v1618
        %v5092 = vmul.f32 %v5087, %v1619
        %v5093 = vadd.f32 %v4976, %v5089
        %v5094 = vadd.f32 %v4977, %v5090
        %v5095 = vadd.f32 %v4978, %v5091
        %v5096 = vadd.f32 %v4979, %v5092
        %5097 = vrot.lane.b32.xlu0 %v3927, 8
        %v5098 = vpop.permute.xlu0 %5097
        %5099 = vrot.lane.b32.xlu0 %v3928, 8
        %v5100 = vpop.permute.xlu0 %5099
        %5101 = vrot.lane.b32.xlu0 %v3929, 8
        %v5102 = vpop.permute.xlu0 %5101
        %5103 = vrot.lane.b32.xlu0 %v3930, 8
        %v5104 = vpop.permute.xlu0 %5103
        %v5105 = vsel %vm1647, %v5102, %v5104
        %v5106 = vsel %vm1647, %v5100, %v5102
        %v5107 = vsel %vm1647, %v5098, %v5100
        %v5108 = vsel %vm1647, %v5104, %v5098
        %s5109 = scalar_lea.vmem %s3, 40
        %v5110 = vld [vmem:[%s5109] sm:$0xf]
        %v5112 = vsel %vm3944, %v5110, 0
        %v5115 = vsel %vm3875, %v5108, 0
        %v5118 = vsel %vm3875, %v5107, 0
        %v5121 = vsel %vm3875, %v5106, 0
        %v5124 = vsel %vm3875, %v5105, 0
        %5126 = vmatpush.msra.mxu0 0.0
        %5127 = vmatpush.msra.mxu0 0.0
        %5128 = vmatpush.msra.mxu0 0.0
        %5129 = vmatpush.msra.mxu0 0.0
        %5130 = vmatpush.msra.mxu0 0.0
        %5131 = vmatpush.msra.mxu0 0.0
        %5132 = vmatpush.msra.mxu0 0.0
        %5133 = vmatpush.msra.mxu0 0.0
        %5134 = vmatpush.msra.mxu0 0.0
        %5135 = vmatpush.msra.mxu0 0.0
        %5136 = vmatpush.msra.mxu0 0.0
        %5137 = vmatpush.msra.mxu0 0.0
        %5138 = vmatpush.msra.mxu0 0.0
        %5139 = vmatpush.msra.mxu0 0.0
        %5140 = vmatpush.msra.mxu0 0.0
        %5141 = vmatpush.msra.mxu0 %v5115
        %5142 = vmatmul.f32.gmra.mxu0 %v5112
        %v5143 = vpop.f32.mrf.mxu0
        %v5144 = vadd.f32 0.0, %v5143
        %5145 = vdwg.mxu0
        %5146 = vmatpush.msra.mxu0 0.0
        %5147 = vmatpush.msra.mxu0 0.0
        %5148 = vmatpush.msra.mxu0 0.0
        %5149 = vmatpush.msra.mxu0 0.0
        %5150 = vmatpush.msra.mxu0 0.0
        %5151 = vmatpush.msra.mxu0 0.0
        %5152 = vmatpush.msra.mxu0 0.0
        %5153 = vmatpush.msra.mxu0 0.0
        %5154 = vmatpush.msra.mxu0 0.0
        %5155 = vmatpush.msra.mxu0 0.0
        %5156 = vmatpush.msra.mxu0 0.0
        %5157 = vmatpush.msra.mxu0 0.0
        %5158 = vmatpush.msra.mxu0 0.0
        %5159 = vmatpush.msra.mxu0 0.0
        %5160 = vmatpush.msra.mxu0 0.0
        %5161 = vmatpush.msra.mxu0 %v5118
        %5162 = vmatmul.f32.gmra.mxu0 %v5112
        %v5163 = vpop.f32.mrf.mxu0
        %v5164 = vadd.f32 0.0, %v5163
        %5165 = vdwg.mxu0
        %5166 = vmatpush.msra.mxu0 0.0
        %5167 = vmatpush.msra.mxu0 0.0
        %5168 = vmatpush.msra.mxu0 0.0
        %5169 = vmatpush.msra.mxu0 0.0
        %5170 = vmatpush.msra.mxu0 0.0
        %5171 = vmatpush.msra.mxu0 0.0
        %5172 = vmatpush.msra.mxu0 0.0
        %5173 = vmatpush.msra.mxu0 0.0
        %5174 = vmatpush.msra.mxu0 0.0
        %5175 = vmatpush.msra.mxu0 0.0
        %5176 = vmatpush.msra.mxu0 0.0
        %5177 = vmatpush.msra.mxu0 0.0
        %5178 = vmatpush.msra.mxu0 0.0
        %5179 = vmatpush.msra.mxu0 0.0
        %5180 = vmatpush.msra.mxu0 0.0
        %5181 = vmatpush.msra.mxu0 %v5121
        %5182 = vmatmul.f32.gmra.mxu0 %v5112
        %v5183 = vpop.f32.mrf.mxu0
        %v5184 = vadd.f32 0.0, %v5183
        %5185 = vdwg.mxu0
        %5186 = vmatpush.msra.mxu0 0.0
        %5187 = vmatpush.msra.mxu0 0.0
        %5188 = vmatpush.msra.mxu0 0.0
        %5189 = vmatpush.msra.mxu0 0.0
        %5190 = vmatpush.msra.mxu0 0.0
        %5191 = vmatpush.msra.mxu0 0.0
        %5192 = vmatpush.msra.mxu0 0.0
        %5193 = vmatpush.msra.mxu0 0.0
        %5194 = vmatpush.msra.mxu0 0.0
        %5195 = vmatpush.msra.mxu0 0.0
        %5196 = vmatpush.msra.mxu0 0.0
        %5197 = vmatpush.msra.mxu0 0.0
        %5198 = vmatpush.msra.mxu0 0.0
        %5199 = vmatpush.msra.mxu0 0.0
        %5200 = vmatpush.msra.mxu0 0.0
        %5201 = vmatpush.msra.mxu0 %v5124
        %5202 = vmatmul.f32.gmra.mxu0 %v5112
        %v5203 = vpop.f32.mrf.mxu0
        %v5204 = vadd.f32 0.0, %v5203
        %5205 = vdwg.mxu0
        %v5206 = vmul.f32 %v5144, %v1749
        %v5207 = vmul.f32 %v5164, %v1750
        %v5208 = vmul.f32 %v5184, %v1751
        %v5209 = vmul.f32 %v5204, %v1752
        %v5210 = vadd.f32 %v5093, %v5206
        %v5211 = vadd.f32 %v5094, %v5207
        %v5212 = vadd.f32 %v5095, %v5208
        %v5213 = vadd.f32 %v5096, %v5209
        %5214 = vrot.lane.b32.xlu0 %v3927, 7
        %v5215 = vpop.permute.xlu0 %5214
        %5216 = vrot.lane.b32.xlu0 %v3928, 7
        %v5217 = vpop.permute.xlu0 %5216
        %5218 = vrot.lane.b32.xlu0 %v3929, 7
        %v5219 = vpop.permute.xlu0 %5218
        %5220 = vrot.lane.b32.xlu0 %v3930, 7
        %v5221 = vpop.permute.xlu0 %5220
        %v5222 = vsel %vm1780, %v5219, %v5221
        %v5223 = vsel %vm1780, %v5217, %v5219
        %v5224 = vsel %vm1780, %v5215, %v5217
        %v5225 = vsel %vm1780, %v5221, %v5215
        %s5226 = scalar_lea.vmem %s3, 44
        %v5227 = vld [vmem:[%s5226] sm:$0xf]
        %v5229 = vsel %vm3944, %v5227, 0
        %v5232 = vsel %vm3875, %v5225, 0
        %v5235 = vsel %vm3875, %v5224, 0
        %v5238 = vsel %vm3875, %v5223, 0
        %v5241 = vsel %vm3875, %v5222, 0
        %5243 = vmatpush.msra.mxu0 0.0
        %5244 = vmatpush.msra.mxu0 0.0
        %5245 = vmatpush.msra.mxu0 0.0
        %5246 = vmatpush.msra.mxu0 0.0
        %5247 = vmatpush.msra.mxu0 0.0
        %5248 = vmatpush.msra.mxu0 0.0
        %5249 = vmatpush.msra.mxu0 0.0
        %5250 = vmatpush.msra.mxu0 0.0
        %5251 = vmatpush.msra.mxu0 0.0
        %5252 = vmatpush.msra.mxu0 0.0
        %5253 = vmatpush.msra.mxu0 0.0
        %5254 = vmatpush.msra.mxu0 0.0
        %5255 = vmatpush.msra.mxu0 0.0
        %5256 = vmatpush.msra.mxu0 0.0
        %5257 = vmatpush.msra.mxu0 0.0
        %5258 = vmatpush.msra.mxu0 %v5232
        %5259 = vmatmul.f32.gmra.mxu0 %v5229
        %v5260 = vpop.f32.mrf.mxu0
        %v5261 = vadd.f32 0.0, %v5260
        %5262 = vdwg.mxu0
        %5263 = vmatpush.msra.mxu0 0.0
        %5264 = vmatpush.msra.mxu0 0.0
        %5265 = vmatpush.msra.mxu0 0.0
        %5266 = vmatpush.msra.mxu0 0.0
        %5267 = vmatpush.msra.mxu0 0.0
        %5268 = vmatpush.msra.mxu0 0.0
        %5269 = vmatpush.msra.mxu0 0.0
        %5270 = vmatpush.msra.mxu0 0.0
        %5271 = vmatpush.msra.mxu0 0.0
        %5272 = vmatpush.msra.mxu0 0.0
        %5273 = vmatpush.msra.mxu0 0.0
        %5274 = vmatpush.msra.mxu0 0.0
        %5275 = vmatpush.msra.mxu0 0.0
        %5276 = vmatpush.msra.mxu0 0.0
        %5277 = vmatpush.msra.mxu0 0.0
        %5278 = vmatpush.msra.mxu0 %v5235
        %5279 = vmatmul.f32.gmra.mxu0 %v5229
        %v5280 = vpop.f32.mrf.mxu0
        %v5281 = vadd.f32 0.0, %v5280
        %5282 = vdwg.mxu0
        %5283 = vmatpush.msra.mxu0 0.0
        %5284 = vmatpush.msra.mxu0 0.0
        %5285 = vmatpush.msra.mxu0 0.0
        %5286 = vmatpush.msra.mxu0 0.0
        %5287 = vmatpush.msra.mxu0 0.0
        %5288 = vmatpush.msra.mxu0 0.0
        %5289 = vmatpush.msra.mxu0 0.0
        %5290 = vmatpush.msra.mxu0 0.0
        %5291 = vmatpush.msra.mxu0 0.0
        %5292 = vmatpush.msra.mxu0 0.0
        %5293 = vmatpush.msra.mxu0 0.0
        %5294 = vmatpush.msra.mxu0 0.0
        %5295 = vmatpush.msra.mxu0 0.0
        %5296 = vmatpush.msra.mxu0 0.0
        %5297 = vmatpush.msra.mxu0 0.0
        %5298 = vmatpush.msra.mxu0 %v5238
        %5299 = vmatmul.f32.gmra.mxu0 %v5229
        %v5300 = vpop.f32.mrf.mxu0
        %v5301 = vadd.f32 0.0, %v5300
        %5302 = vdwg.mxu0
        %5303 = vmatpush.msra.mxu0 0.0
        %5304 = vmatpush.msra.mxu0 0.0
        %5305 = vmatpush.msra.mxu0 0.0
        %5306 = vmatpush.msra.mxu0 0.0
        %5307 = vmatpush.msra.mxu0 0.0
        %5308 = vmatpush.msra.mxu0 0.0
        %5309 = vmatpush.msra.mxu0 0.0
        %5310 = vmatpush.msra.mxu0 0.0
        %5311 = vmatpush.msra.mxu0 0.0
        %5312 = vmatpush.msra.mxu0 0.0
        %5313 = vmatpush.msra.mxu0 0.0
        %5314 = vmatpush.msra.mxu0 0.0
        %5315 = vmatpush.msra.mxu0 0.0
        %5316 = vmatpush.msra.mxu0 0.0
        %5317 = vmatpush.msra.mxu0 0.0
        %5318 = vmatpush.msra.mxu0 %v5241
        %5319 = vmatmul.f32.gmra.mxu0 %v5229
        %v5320 = vpop.f32.mrf.mxu0
        %v5321 = vadd.f32 0.0, %v5320
        %5322 = vdwg.mxu0
        %v5323 = vmul.f32 %v5261, %v1882
        %v5324 = vmul.f32 %v5281, %v1883
        %v5325 = vmul.f32 %v5301, %v1884
        %v5326 = vmul.f32 %v5321, %v1885
        %v5327 = vadd.f32 %v5210, %v5323
        %v5328 = vadd.f32 %v5211, %v5324
        %v5329 = vadd.f32 %v5212, %v5325
        %v5330 = vadd.f32 %v5213, %v5326
        %5331 = vrot.lane.b32.xlu0 %v3927, 1
        %v5332 = vpop.permute.xlu0 %5331
        %5333 = vrot.lane.b32.xlu0 %v3928, 1
        %v5334 = vpop.permute.xlu0 %5333
        %5335 = vrot.lane.b32.xlu0 %v3929, 1
        %v5336 = vpop.permute.xlu0 %5335
        %5337 = vrot.lane.b32.xlu0 %v3930, 1
        %v5338 = vpop.permute.xlu0 %5337
        %v5339 = vsel %vm1913, %v5336, %v5338
        %v5340 = vsel %vm1913, %v5334, %v5336
        %v5341 = vsel %vm1913, %v5332, %v5334
        %v5342 = vsel %vm1913, %v5338, %v5332
        %s5343 = scalar_lea.vmem %s3, 48
        %v5344 = vld [vmem:[%s5343] sm:$0xf]
        %v5346 = vsel %vm3944, %v5344, 0
        %v5349 = vsel %vm3875, %v5342, 0
        %v5352 = vsel %vm3875, %v5341, 0
        %v5355 = vsel %vm3875, %v5340, 0
        %v5358 = vsel %vm3875, %v5339, 0
        %5360 = vmatpush.msra.mxu0 0.0
        %5361 = vmatpush.msra.mxu0 0.0
        %5362 = vmatpush.msra.mxu0 0.0
        %5363 = vmatpush.msra.mxu0 0.0
        %5364 = vmatpush.msra.mxu0 0.0
        %5365 = vmatpush.msra.mxu0 0.0
        %5366 = vmatpush.msra.mxu0 0.0
        %5367 = vmatpush.msra.mxu0 0.0
        %5368 = vmatpush.msra.mxu0 0.0
        %5369 = vmatpush.msra.mxu0 0.0
        %5370 = vmatpush.msra.mxu0 0.0
        %5371 = vmatpush.msra.mxu0 0.0
        %5372 = vmatpush.msra.mxu0 0.0
        %5373 = vmatpush.msra.mxu0 0.0
        %5374 = vmatpush.msra.mxu0 0.0
        %5375 = vmatpush.msra.mxu0 %v5349
        %5376 = vmatmul.f32.gmra.mxu0 %v5346
        %v5377 = vpop.f32.mrf.mxu0
        %v5378 = vadd.f32 0.0, %v5377
        %5379 = vdwg.mxu0
        %5380 = vmatpush.msra.mxu0 0.0
        %5381 = vmatpush.msra.mxu0 0.0
        %5382 = vmatpush.msra.mxu0 0.0
        %5383 = vmatpush.msra.mxu0 0.0
        %5384 = vmatpush.msra.mxu0 0.0
        %5385 = vmatpush.msra.mxu0 0.0
        %5386 = vmatpush.msra.mxu0 0.0
        %5387 = vmatpush.msra.mxu0 0.0
        %5388 = vmatpush.msra.mxu0 0.0
        %5389 = vmatpush.msra.mxu0 0.0
        %5390 = vmatpush.msra.mxu0 0.0
        %5391 = vmatpush.msra.mxu0 0.0
        %5392 = vmatpush.msra.mxu0 0.0
        %5393 = vmatpush.msra.mxu0 0.0
        %5394 = vmatpush.msra.mxu0 0.0
        %5395 = vmatpush.msra.mxu0 %v5352
        %5396 = vmatmul.f32.gmra.mxu0 %v5346
        %v5397 = vpop.f32.mrf.mxu0
        %v5398 = vadd.f32 0.0, %v5397
        %5399 = vdwg.mxu0
        %5400 = vmatpush.msra.mxu0 0.0
        %5401 = vmatpush.msra.mxu0 0.0
        %5402 = vmatpush.msra.mxu0 0.0
        %5403 = vmatpush.msra.mxu0 0.0
        %5404 = vmatpush.msra.mxu0 0.0
        %5405 = vmatpush.msra.mxu0 0.0
        %5406 = vmatpush.msra.mxu0 0.0
        %5407 = vmatpush.msra.mxu0 0.0
        %5408 = vmatpush.msra.mxu0 0.0
        %5409 = vmatpush.msra.mxu0 0.0
        %5410 = vmatpush.msra.mxu0 0.0
        %5411 = vmatpush.msra.mxu0 0.0
        %5412 = vmatpush.msra.mxu0 0.0
        %5413 = vmatpush.msra.mxu0 0.0
        %5414 = vmatpush.msra.mxu0 0.0
        %5415 = vmatpush.msra.mxu0 %v5355
        %5416 = vmatmul.f32.gmra.mxu0 %v5346
        %v5417 = vpop.f32.mrf.mxu0
        %v5418 = vadd.f32 0.0, %v5417
        %5419 = vdwg.mxu0
        %5420 = vmatpush.msra.mxu0 0.0
        %5421 = vmatpush.msra.mxu0 0.0
        %5422 = vmatpush.msra.mxu0 0.0
        %5423 = vmatpush.msra.mxu0 0.0
        %5424 = vmatpush.msra.mxu0 0.0
        %5425 = vmatpush.msra.mxu0 0.0
        %5426 = vmatpush.msra.mxu0 0.0
        %5427 = vmatpush.msra.mxu0 0.0
        %5428 = vmatpush.msra.mxu0 0.0
        %5429 = vmatpush.msra.mxu0 0.0
        %5430 = vmatpush.msra.mxu0 0.0
        %5431 = vmatpush.msra.mxu0 0.0
        %5432 = vmatpush.msra.mxu0 0.0
        %5433 = vmatpush.msra.mxu0 0.0
        %5434 = vmatpush.msra.mxu0 0.0
        %5435 = vmatpush.msra.mxu0 %v5358
        %5436 = vmatmul.f32.gmra.mxu0 %v5346
        %v5437 = vpop.f32.mrf.mxu0
        %v5438 = vadd.f32 0.0, %v5437
        %5439 = vdwg.mxu0
        %v5440 = vmul.f32 %v5378, %v2015
        %v5441 = vmul.f32 %v5398, %v2016
        %v5442 = vmul.f32 %v5418, %v2017
        %v5443 = vmul.f32 %v5438, %v2018
        %v5444 = vadd.f32 %v5327, %v5440
        %v5445 = vadd.f32 %v5328, %v5441
        %v5446 = vadd.f32 %v5329, %v5442
        %v5447 = vadd.f32 %v5330, %v5443
        %s5448 = scalar_lea.vmem %s3, 52
        %v5449 = vld [vmem:[%s5448] sm:$0xf]
        %v5451 = vsel %vm3944, %v5449, 0
        %v5454 = vsel %vm3875, %v3927, 0
        %v5457 = vsel %vm3875, %v3928, 0
        %v5460 = vsel %vm3875, %v3929, 0
        %v5463 = vsel %vm3875, %v3930, 0
        %5465 = vmatpush.msra.mxu0 0.0
        %5466 = vmatpush.msra.mxu0 0.0
        %5467 = vmatpush.msra.mxu0 0.0
        %5468 = vmatpush.msra.mxu0 0.0
        %5469 = vmatpush.msra.mxu0 0.0
        %5470 = vmatpush.msra.mxu0 0.0
        %5471 = vmatpush.msra.mxu0 0.0
        %5472 = vmatpush.msra.mxu0 0.0
        %5473 = vmatpush.msra.mxu0 0.0
        %5474 = vmatpush.msra.mxu0 0.0
        %5475 = vmatpush.msra.mxu0 0.0
        %5476 = vmatpush.msra.mxu0 0.0
        %5477 = vmatpush.msra.mxu0 0.0
        %5478 = vmatpush.msra.mxu0 0.0
        %5479 = vmatpush.msra.mxu0 0.0
        %5480 = vmatpush.msra.mxu0 %v5454
        %5481 = vmatmul.f32.gmra.mxu0 %v5451
        %v5482 = vpop.f32.mrf.mxu0
        %v5483 = vadd.f32 0.0, %v5482
        %5484 = vdwg.mxu0
        %5485 = vmatpush.msra.mxu0 0.0
        %5486 = vmatpush.msra.mxu0 0.0
        %5487 = vmatpush.msra.mxu0 0.0
        %5488 = vmatpush.msra.mxu0 0.0
        %5489 = vmatpush.msra.mxu0 0.0
        %5490 = vmatpush.msra.mxu0 0.0
        %5491 = vmatpush.msra.mxu0 0.0
        %5492 = vmatpush.msra.mxu0 0.0
        %5493 = vmatpush.msra.mxu0 0.0
        %5494 = vmatpush.msra.mxu0 0.0
        %5495 = vmatpush.msra.mxu0 0.0
        %5496 = vmatpush.msra.mxu0 0.0
        %5497 = vmatpush.msra.mxu0 0.0
        %5498 = vmatpush.msra.mxu0 0.0
        %5499 = vmatpush.msra.mxu0 0.0
        %5500 = vmatpush.msra.mxu0 %v5457
        %5501 = vmatmul.f32.gmra.mxu0 %v5451
        %v5502 = vpop.f32.mrf.mxu0
        %v5503 = vadd.f32 0.0, %v5502
        %5504 = vdwg.mxu0
        %5505 = vmatpush.msra.mxu0 0.0
        %5506 = vmatpush.msra.mxu0 0.0
        %5507 = vmatpush.msra.mxu0 0.0
        %5508 = vmatpush.msra.mxu0 0.0
        %5509 = vmatpush.msra.mxu0 0.0
        %5510 = vmatpush.msra.mxu0 0.0
        %5511 = vmatpush.msra.mxu0 0.0
        %5512 = vmatpush.msra.mxu0 0.0
        %5513 = vmatpush.msra.mxu0 0.0
        %5514 = vmatpush.msra.mxu0 0.0
        %5515 = vmatpush.msra.mxu0 0.0
        %5516 = vmatpush.msra.mxu0 0.0
        %5517 = vmatpush.msra.mxu0 0.0
        %5518 = vmatpush.msra.mxu0 0.0
        %5519 = vmatpush.msra.mxu0 0.0
        %5520 = vmatpush.msra.mxu0 %v5460
        %5521 = vmatmul.f32.gmra.mxu0 %v5451
        %v5522 = vpop.f32.mrf.mxu0
        %v5523 = vadd.f32 0.0, %v5522
        %5524 = vdwg.mxu0
        %5525 = vmatpush.msra.mxu0 0.0
        %5526 = vmatpush.msra.mxu0 0.0
        %5527 = vmatpush.msra.mxu0 0.0
        %5528 = vmatpush.msra.mxu0 0.0
        %5529 = vmatpush.msra.mxu0 0.0
        %5530 = vmatpush.msra.mxu0 0.0
        %5531 = vmatpush.msra.mxu0 0.0
        %5532 = vmatpush.msra.mxu0 0.0
        %5533 = vmatpush.msra.mxu0 0.0
        %5534 = vmatpush.msra.mxu0 0.0
        %5535 = vmatpush.msra.mxu0 0.0
        %5536 = vmatpush.msra.mxu0 0.0
        %5537 = vmatpush.msra.mxu0 0.0
        %5538 = vmatpush.msra.mxu0 0.0
        %5539 = vmatpush.msra.mxu0 0.0
        %5540 = vmatpush.msra.mxu0 %v5463
        %5541 = vmatmul.f32.gmra.mxu0 %v5451
        %v5542 = vpop.f32.mrf.mxu0
        %v5543 = vadd.f32 0.0, %v5542
        %5544 = vdwg.mxu0
        %v5545 = vadd.f32 %v5444, %v5483
        %v5546 = vadd.f32 %v5445, %v5503
        %v5547 = vadd.f32 %v5446, %v5523
        %v5548 = vadd.f32 %v5447, %v5543
        %5549 = vrot.lane.b32.xlu0 %v3927, 127
        %v5550 = vpop.permute.xlu0 %5549
        %5551 = vrot.lane.b32.xlu0 %v3928, 127
        %v5552 = vpop.permute.xlu0 %5551
        %5553 = vrot.lane.b32.xlu0 %v3929, 127
        %v5554 = vpop.permute.xlu0 %5553
        %5555 = vrot.lane.b32.xlu0 %v3930, 127
        %v5556 = vpop.permute.xlu0 %5555
        %v5557 = vsel %vm2150, %v5554, %v5556
        %v5558 = vsel %vm2150, %v5552, %v5554
        %v5559 = vsel %vm2150, %v5550, %v5552
        %v5560 = vsel %vm2150, %v5556, %v5550
        %s5561 = scalar_lea.vmem %s3, 56
        %v5562 = vld [vmem:[%s5561] sm:$0xf]
        %v5564 = vsel %vm3944, %v5562, 0
        %v5567 = vsel %vm3875, %v5559, 0
        %v5570 = vsel %vm3875, %v5558, 0
        %v5573 = vsel %vm3875, %v5557, 0
        %v5576 = vsel %vm3875, %v5560, 0
        %5578 = vmatpush.msra.mxu0 0.0
        %5579 = vmatpush.msra.mxu0 0.0
        %5580 = vmatpush.msra.mxu0 0.0
        %5581 = vmatpush.msra.mxu0 0.0
        %5582 = vmatpush.msra.mxu0 0.0
        %5583 = vmatpush.msra.mxu0 0.0
        %5584 = vmatpush.msra.mxu0 0.0
        %5585 = vmatpush.msra.mxu0 0.0
        %5586 = vmatpush.msra.mxu0 0.0
        %5587 = vmatpush.msra.mxu0 0.0
        %5588 = vmatpush.msra.mxu0 0.0
        %5589 = vmatpush.msra.mxu0 0.0
        %5590 = vmatpush.msra.mxu0 0.0
        %5591 = vmatpush.msra.mxu0 0.0
        %5592 = vmatpush.msra.mxu0 0.0
        %5593 = vmatpush.msra.mxu0 %v5567
        %5594 = vmatmul.f32.gmra.mxu0 %v5564
        %v5595 = vpop.f32.mrf.mxu0
        %v5596 = vadd.f32 0.0, %v5595
        %5597 = vdwg.mxu0
        %5598 = vmatpush.msra.mxu0 0.0
        %5599 = vmatpush.msra.mxu0 0.0
        %5600 = vmatpush.msra.mxu0 0.0
        %5601 = vmatpush.msra.mxu0 0.0
        %5602 = vmatpush.msra.mxu0 0.0
        %5603 = vmatpush.msra.mxu0 0.0
        %5604 = vmatpush.msra.mxu0 0.0
        %5605 = vmatpush.msra.mxu0 0.0
        %5606 = vmatpush.msra.mxu0 0.0
        %5607 = vmatpush.msra.mxu0 0.0
        %5608 = vmatpush.msra.mxu0 0.0
        %5609 = vmatpush.msra.mxu0 0.0
        %5610 = vmatpush.msra.mxu0 0.0
        %5611 = vmatpush.msra.mxu0 0.0
        %5612 = vmatpush.msra.mxu0 0.0
        %5613 = vmatpush.msra.mxu0 %v5570
        %5614 = vmatmul.f32.gmra.mxu0 %v5564
        %v5615 = vpop.f32.mrf.mxu0
        %v5616 = vadd.f32 0.0, %v5615
        %5617 = vdwg.mxu0
        %5618 = vmatpush.msra.mxu0 0.0
        %5619 = vmatpush.msra.mxu0 0.0
        %5620 = vmatpush.msra.mxu0 0.0
        %5621 = vmatpush.msra.mxu0 0.0
        %5622 = vmatpush.msra.mxu0 0.0
        %5623 = vmatpush.msra.mxu0 0.0
        %5624 = vmatpush.msra.mxu0 0.0
        %5625 = vmatpush.msra.mxu0 0.0
        %5626 = vmatpush.msra.mxu0 0.0
        %5627 = vmatpush.msra.mxu0 0.0
        %5628 = vmatpush.msra.mxu0 0.0
        %5629 = vmatpush.msra.mxu0 0.0
        %5630 = vmatpush.msra.mxu0 0.0
        %5631 = vmatpush.msra.mxu0 0.0
        %5632 = vmatpush.msra.mxu0 0.0
        %5633 = vmatpush.msra.mxu0 %v5573
        %5634 = vmatmul.f32.gmra.mxu0 %v5564
        %v5635 = vpop.f32.mrf.mxu0
        %v5636 = vadd.f32 0.0, %v5635
        %5637 = vdwg.mxu0
        %5638 = vmatpush.msra.mxu0 0.0
        %5639 = vmatpush.msra.mxu0 0.0
        %5640 = vmatpush.msra.mxu0 0.0
        %5641 = vmatpush.msra.mxu0 0.0
        %5642 = vmatpush.msra.mxu0 0.0
        %5643 = vmatpush.msra.mxu0 0.0
        %5644 = vmatpush.msra.mxu0 0.0
        %5645 = vmatpush.msra.mxu0 0.0
        %5646 = vmatpush.msra.mxu0 0.0
        %5647 = vmatpush.msra.mxu0 0.0
        %5648 = vmatpush.msra.mxu0 0.0
        %5649 = vmatpush.msra.mxu0 0.0
        %5650 = vmatpush.msra.mxu0 0.0
        %5651 = vmatpush.msra.mxu0 0.0
        %5652 = vmatpush.msra.mxu0 0.0
        %5653 = vmatpush.msra.mxu0 %v5576
        %5654 = vmatmul.f32.gmra.mxu0 %v5564
        %v5655 = vpop.f32.mrf.mxu0
        %v5656 = vadd.f32 0.0, %v5655
        %5657 = vdwg.mxu0
        %v5658 = vmul.f32 %v5596, %v2252
        %v5659 = vmul.f32 %v5616, %v2253
        %v5660 = vmul.f32 %v5636, %v2254
        %v5661 = vmul.f32 %v5656, %v2255
        %v5662 = vadd.f32 %v5545, %v5658
        %v5663 = vadd.f32 %v5546, %v5659
        %v5664 = vadd.f32 %v5547, %v5660
        %v5665 = vadd.f32 %v5548, %v5661
        %5666 = vrot.lane.b32.xlu0 %v3927, 121
        %v5667 = vpop.permute.xlu0 %5666
        %5668 = vrot.lane.b32.xlu0 %v3928, 121
        %v5669 = vpop.permute.xlu0 %5668
        %5670 = vrot.lane.b32.xlu0 %v3929, 121
        %v5671 = vpop.permute.xlu0 %5670
        %5672 = vrot.lane.b32.xlu0 %v3930, 121
        %v5673 = vpop.permute.xlu0 %5672
        %v5674 = vsel %vm2283, %v5671, %v5673
        %v5675 = vsel %vm2283, %v5669, %v5671
        %v5676 = vsel %vm2283, %v5667, %v5669
        %v5677 = vsel %vm2283, %v5673, %v5667
        %s5678 = scalar_lea.vmem %s3, 60
        %v5679 = vld [vmem:[%s5678] sm:$0xf]
        %v5681 = vsel %vm3944, %v5679, 0
        %v5684 = vsel %vm3875, %v5676, 0
        %v5687 = vsel %vm3875, %v5675, 0
        %v5690 = vsel %vm3875, %v5674, 0
        %v5693 = vsel %vm3875, %v5677, 0
        %5695 = vmatpush.msra.mxu0 0.0
        %5696 = vmatpush.msra.mxu0 0.0
        %5697 = vmatpush.msra.mxu0 0.0
        %5698 = vmatpush.msra.mxu0 0.0
        %5699 = vmatpush.msra.mxu0 0.0
        %5700 = vmatpush.msra.mxu0 0.0
        %5701 = vmatpush.msra.mxu0 0.0
        %5702 = vmatpush.msra.mxu0 0.0
        %5703 = vmatpush.msra.mxu0 0.0
        %5704 = vmatpush.msra.mxu0 0.0
        %5705 = vmatpush.msra.mxu0 0.0
        %5706 = vmatpush.msra.mxu0 0.0
        %5707 = vmatpush.msra.mxu0 0.0
        %5708 = vmatpush.msra.mxu0 0.0
        %5709 = vmatpush.msra.mxu0 0.0
        %5710 = vmatpush.msra.mxu0 %v5684
        %5711 = vmatmul.f32.gmra.mxu0 %v5681
        %v5712 = vpop.f32.mrf.mxu0
        %v5713 = vadd.f32 0.0, %v5712
        %5714 = vdwg.mxu0
        %5715 = vmatpush.msra.mxu0 0.0
        %5716 = vmatpush.msra.mxu0 0.0
        %5717 = vmatpush.msra.mxu0 0.0
        %5718 = vmatpush.msra.mxu0 0.0
        %5719 = vmatpush.msra.mxu0 0.0
        %5720 = vmatpush.msra.mxu0 0.0
        %5721 = vmatpush.msra.mxu0 0.0
        %5722 = vmatpush.msra.mxu0 0.0
        %5723 = vmatpush.msra.mxu0 0.0
        %5724 = vmatpush.msra.mxu0 0.0
        %5725 = vmatpush.msra.mxu0 0.0
        %5726 = vmatpush.msra.mxu0 0.0
        %5727 = vmatpush.msra.mxu0 0.0
        %5728 = vmatpush.msra.mxu0 0.0
        %5729 = vmatpush.msra.mxu0 0.0
        %5730 = vmatpush.msra.mxu0 %v5687
        %5731 = vmatmul.f32.gmra.mxu0 %v5681
        %v5732 = vpop.f32.mrf.mxu0
        %v5733 = vadd.f32 0.0, %v5732
        %5734 = vdwg.mxu0
        %5735 = vmatpush.msra.mxu0 0.0
        %5736 = vmatpush.msra.mxu0 0.0
        %5737 = vmatpush.msra.mxu0 0.0
        %5738 = vmatpush.msra.mxu0 0.0
        %5739 = vmatpush.msra.mxu0 0.0
        %5740 = vmatpush.msra.mxu0 0.0
        %5741 = vmatpush.msra.mxu0 0.0
        %5742 = vmatpush.msra.mxu0 0.0
        %5743 = vmatpush.msra.mxu0 0.0
        %5744 = vmatpush.msra.mxu0 0.0
        %5745 = vmatpush.msra.mxu0 0.0
        %5746 = vmatpush.msra.mxu0 0.0
        %5747 = vmatpush.msra.mxu0 0.0
        %5748 = vmatpush.msra.mxu0 0.0
        %5749 = vmatpush.msra.mxu0 0.0
        %5750 = vmatpush.msra.mxu0 %v5690
        %5751 = vmatmul.f32.gmra.mxu0 %v5681
        %v5752 = vpop.f32.mrf.mxu0
        %v5753 = vadd.f32 0.0, %v5752
        %5754 = vdwg.mxu0
        %5755 = vmatpush.msra.mxu0 0.0
        %5756 = vmatpush.msra.mxu0 0.0
        %5757 = vmatpush.msra.mxu0 0.0
        %5758 = vmatpush.msra.mxu0 0.0
        %5759 = vmatpush.msra.mxu0 0.0
        %5760 = vmatpush.msra.mxu0 0.0
        %5761 = vmatpush.msra.mxu0 0.0
        %5762 = vmatpush.msra.mxu0 0.0
        %5763 = vmatpush.msra.mxu0 0.0
        %5764 = vmatpush.msra.mxu0 0.0
        %5765 = vmatpush.msra.mxu0 0.0
        %5766 = vmatpush.msra.mxu0 0.0
        %5767 = vmatpush.msra.mxu0 0.0
        %5768 = vmatpush.msra.mxu0 0.0
        %5769 = vmatpush.msra.mxu0 0.0
        %5770 = vmatpush.msra.mxu0 %v5693
        %5771 = vmatmul.f32.gmra.mxu0 %v5681
        %v5772 = vpop.f32.mrf.mxu0
        %v5773 = vadd.f32 0.0, %v5772
        %5774 = vdwg.mxu0
        %v5775 = vmul.f32 %v5713, %v2397
        %v5776 = vmul.f32 %v5733, %v2398
        %v5777 = vmul.f32 %v5753, %v2399
        %v5778 = vmul.f32 %v5773, %v2400
        %v5779 = vadd.f32 %v5662, %v5775
        %v5780 = vadd.f32 %v5663, %v5776
        %v5781 = vadd.f32 %v5664, %v5777
        %v5782 = vadd.f32 %v5665, %v5778
        %5783 = vrot.lane.b32.xlu0 %v3927, 120
        %v5784 = vpop.permute.xlu0 %5783
        %5785 = vrot.lane.b32.xlu0 %v3928, 120
        %v5786 = vpop.permute.xlu0 %5785
        %5787 = vrot.lane.b32.xlu0 %v3929, 120
        %v5788 = vpop.permute.xlu0 %5787
        %5789 = vrot.lane.b32.xlu0 %v3930, 120
        %v5790 = vpop.permute.xlu0 %5789
        %v5791 = vsel %vm2428, %v5788, %v5790
        %v5792 = vsel %vm2428, %v5786, %v5788
        %v5793 = vsel %vm2428, %v5784, %v5786
        %v5794 = vsel %vm2428, %v5790, %v5784
        %s5795 = scalar_lea.vmem %s3, 64
        %v5796 = vld [vmem:[%s5795] sm:$0xf]
        %v5798 = vsel %vm3944, %v5796, 0
        %v5801 = vsel %vm3875, %v5793, 0
        %v5804 = vsel %vm3875, %v5792, 0
        %v5807 = vsel %vm3875, %v5791, 0
        %v5810 = vsel %vm3875, %v5794, 0
        %5812 = vmatpush.msra.mxu0 0.0
        %5813 = vmatpush.msra.mxu0 0.0
        %5814 = vmatpush.msra.mxu0 0.0
        %5815 = vmatpush.msra.mxu0 0.0
        %5816 = vmatpush.msra.mxu0 0.0
        %5817 = vmatpush.msra.mxu0 0.0
        %5818 = vmatpush.msra.mxu0 0.0
        %5819 = vmatpush.msra.mxu0 0.0
        %5820 = vmatpush.msra.mxu0 0.0
        %5821 = vmatpush.msra.mxu0 0.0
        %5822 = vmatpush.msra.mxu0 0.0
        %5823 = vmatpush.msra.mxu0 0.0
        %5824 = vmatpush.msra.mxu0 0.0
        %5825 = vmatpush.msra.mxu0 0.0
        %5826 = vmatpush.msra.mxu0 0.0
        %5827 = vmatpush.msra.mxu0 %v5801
        %5828 = vmatmul.f32.gmra.mxu0 %v5798
        %v5829 = vpop.f32.mrf.mxu0
        %v5830 = vadd.f32 0.0, %v5829
        %5831 = vdwg.mxu0
        %5832 = vmatpush.msra.mxu0 0.0
        %5833 = vmatpush.msra.mxu0 0.0
        %5834 = vmatpush.msra.mxu0 0.0
        %5835 = vmatpush.msra.mxu0 0.0
        %5836 = vmatpush.msra.mxu0 0.0
        %5837 = vmatpush.msra.mxu0 0.0
        %5838 = vmatpush.msra.mxu0 0.0
        %5839 = vmatpush.msra.mxu0 0.0
        %5840 = vmatpush.msra.mxu0 0.0
        %5841 = vmatpush.msra.mxu0 0.0
        %5842 = vmatpush.msra.mxu0 0.0
        %5843 = vmatpush.msra.mxu0 0.0
        %5844 = vmatpush.msra.mxu0 0.0
        %5845 = vmatpush.msra.mxu0 0.0
        %5846 = vmatpush.msra.mxu0 0.0
        %5847 = vmatpush.msra.mxu0 %v5804
        %5848 = vmatmul.f32.gmra.mxu0 %v5798
        %v5849 = vpop.f32.mrf.mxu0
        %v5850 = vadd.f32 0.0, %v5849
        %5851 = vdwg.mxu0
        %5852 = vmatpush.msra.mxu0 0.0
        %5853 = vmatpush.msra.mxu0 0.0
        %5854 = vmatpush.msra.mxu0 0.0
        %5855 = vmatpush.msra.mxu0 0.0
        %5856 = vmatpush.msra.mxu0 0.0
        %5857 = vmatpush.msra.mxu0 0.0
        %5858 = vmatpush.msra.mxu0 0.0
        %5859 = vmatpush.msra.mxu0 0.0
        %5860 = vmatpush.msra.mxu0 0.0
        %5861 = vmatpush.msra.mxu0 0.0
        %5862 = vmatpush.msra.mxu0 0.0
        %5863 = vmatpush.msra.mxu0 0.0
        %5864 = vmatpush.msra.mxu0 0.0
        %5865 = vmatpush.msra.mxu0 0.0
        %5866 = vmatpush.msra.mxu0 0.0
        %5867 = vmatpush.msra.mxu0 %v5807
        %5868 = vmatmul.f32.gmra.mxu0 %v5798
        %v5869 = vpop.f32.mrf.mxu0
        %v5870 = vadd.f32 0.0, %v5869
        %5871 = vdwg.mxu0
        %5872 = vmatpush.msra.mxu0 0.0
        %5873 = vmatpush.msra.mxu0 0.0
        %5874 = vmatpush.msra.mxu0 0.0
        %5875 = vmatpush.msra.mxu0 0.0
        %5876 = vmatpush.msra.mxu0 0.0
        %5877 = vmatpush.msra.mxu0 0.0
        %5878 = vmatpush.msra.mxu0 0.0
        %5879 = vmatpush.msra.mxu0 0.0
        %5880 = vmatpush.msra.mxu0 0.0
        %5881 = vmatpush.msra.mxu0 0.0
        %5882 = vmatpush.msra.mxu0 0.0
        %5883 = vmatpush.msra.mxu0 0.0
        %5884 = vmatpush.msra.mxu0 0.0
        %5885 = vmatpush.msra.mxu0 0.0
        %5886 = vmatpush.msra.mxu0 0.0
        %5887 = vmatpush.msra.mxu0 %v5810
        %5888 = vmatmul.f32.gmra.mxu0 %v5798
        %v5889 = vpop.f32.mrf.mxu0
        %v5890 = vadd.f32 0.0, %v5889
        %5891 = vdwg.mxu0
        %v5892 = vmul.f32 %v5830, %v2530
        %v5893 = vmul.f32 %v5850, %v2531
        %v5894 = vmul.f32 %v5870, %v2532
        %v5895 = vmul.f32 %v5890, %v2533
        %v5896 = vadd.f32 %v5779, %v5892
        %v5897 = vadd.f32 %v5780, %v5893
        %v5898 = vadd.f32 %v5781, %v5894
        %v5899 = vadd.f32 %v5782, %v5895
        %5900 = vrot.lane.b32.xlu0 %v3927, 119
        %v5901 = vpop.permute.xlu0 %5900
        %5902 = vrot.lane.b32.xlu0 %v3928, 119
        %v5903 = vpop.permute.xlu0 %5902
        %5904 = vrot.lane.b32.xlu0 %v3929, 119
        %v5905 = vpop.permute.xlu0 %5904
        %5906 = vrot.lane.b32.xlu0 %v3930, 119
        %v5907 = vpop.permute.xlu0 %5906
        %v5908 = vsel %vm2561, %v5905, %v5907
        %v5909 = vsel %vm2561, %v5903, %v5905
        %v5910 = vsel %vm2561, %v5901, %v5903
        %v5911 = vsel %vm2561, %v5907, %v5901
        %s5912 = scalar_lea.vmem %s3, 68
        %v5913 = vld [vmem:[%s5912] sm:$0xf]
        %v5915 = vsel %vm3944, %v5913, 0
        %v5918 = vsel %vm3875, %v5910, 0
        %v5921 = vsel %vm3875, %v5909, 0
        %v5924 = vsel %vm3875, %v5908, 0
        %v5927 = vsel %vm3875, %v5911, 0
        %5929 = vmatpush.msra.mxu0 0.0
        %5930 = vmatpush.msra.mxu0 0.0
        %5931 = vmatpush.msra.mxu0 0.0
        %5932 = vmatpush.msra.mxu0 0.0
        %5933 = vmatpush.msra.mxu0 0.0
        %5934 = vmatpush.msra.mxu0 0.0
        %5935 = vmatpush.msra.mxu0 0.0
        %5936 = vmatpush.msra.mxu0 0.0
        %5937 = vmatpush.msra.mxu0 0.0
        %5938 = vmatpush.msra.mxu0 0.0
        %5939 = vmatpush.msra.mxu0 0.0
        %5940 = vmatpush.msra.mxu0 0.0
        %5941 = vmatpush.msra.mxu0 0.0
        %5942 = vmatpush.msra.mxu0 0.0
        %5943 = vmatpush.msra.mxu0 0.0
        %5944 = vmatpush.msra.mxu0 %v5918
        %5945 = vmatmul.f32.gmra.mxu0 %v5915
        %v5946 = vpop.f32.mrf.mxu0
        %v5947 = vadd.f32 0.0, %v5946
        %5948 = vdwg.mxu0
        %5949 = vmatpush.msra.mxu0 0.0
        %5950 = vmatpush.msra.mxu0 0.0
        %5951 = vmatpush.msra.mxu0 0.0
        %5952 = vmatpush.msra.mxu0 0.0
        %5953 = vmatpush.msra.mxu0 0.0
        %5954 = vmatpush.msra.mxu0 0.0
        %5955 = vmatpush.msra.mxu0 0.0
        %5956 = vmatpush.msra.mxu0 0.0
        %5957 = vmatpush.msra.mxu0 0.0
        %5958 = vmatpush.msra.mxu0 0.0
        %5959 = vmatpush.msra.mxu0 0.0
        %5960 = vmatpush.msra.mxu0 0.0
        %5961 = vmatpush.msra.mxu0 0.0
        %5962 = vmatpush.msra.mxu0 0.0
        %5963 = vmatpush.msra.mxu0 0.0
        %5964 = vmatpush.msra.mxu0 %v5921
        %5965 = vmatmul.f32.gmra.mxu0 %v5915
        %v5966 = vpop.f32.mrf.mxu0
        %v5967 = vadd.f32 0.0, %v5966
        %5968 = vdwg.mxu0
        %5969 = vmatpush.msra.mxu0 0.0
        %5970 = vmatpush.msra.mxu0 0.0
        %5971 = vmatpush.msra.mxu0 0.0
        %5972 = vmatpush.msra.mxu0 0.0
        %5973 = vmatpush.msra.mxu0 0.0
        %5974 = vmatpush.msra.mxu0 0.0
        %5975 = vmatpush.msra.mxu0 0.0
        %5976 = vmatpush.msra.mxu0 0.0
        %5977 = vmatpush.msra.mxu0 0.0
        %5978 = vmatpush.msra.mxu0 0.0
        %5979 = vmatpush.msra.mxu0 0.0
        %5980 = vmatpush.msra.mxu0 0.0
        %5981 = vmatpush.msra.mxu0 0.0
        %5982 = vmatpush.msra.mxu0 0.0
        %5983 = vmatpush.msra.mxu0 0.0
        %5984 = vmatpush.msra.mxu0 %v5924
        %5985 = vmatmul.f32.gmra.mxu0 %v5915
        %v5986 = vpop.f32.mrf.mxu0
        %v5987 = vadd.f32 0.0, %v5986
        %5988 = vdwg.mxu0
        %5989 = vmatpush.msra.mxu0 0.0
        %5990 = vmatpush.msra.mxu0 0.0
        %5991 = vmatpush.msra.mxu0 0.0
        %5992 = vmatpush.msra.mxu0 0.0
        %5993 = vmatpush.msra.mxu0 0.0
        %5994 = vmatpush.msra.mxu0 0.0
        %5995 = vmatpush.msra.mxu0 0.0
        %5996 = vmatpush.msra.mxu0 0.0
        %5997 = vmatpush.msra.mxu0 0.0
        %5998 = vmatpush.msra.mxu0 0.0
        %5999 = vmatpush.msra.mxu0 0.0
        %6000 = vmatpush.msra.mxu0 0.0
        %6001 = vmatpush.msra.mxu0 0.0
        %6002 = vmatpush.msra.mxu0 0.0
        %6003 = vmatpush.msra.mxu0 0.0
        %6004 = vmatpush.msra.mxu0 %v5927
        %6005 = vmatmul.f32.gmra.mxu0 %v5915
        %v6006 = vpop.f32.mrf.mxu0
        %v6007 = vadd.f32 0.0, %v6006
        %6008 = vdwg.mxu0
        %v6009 = vmul.f32 %v5947, %v2663
        %v6010 = vmul.f32 %v5967, %v2664
        %v6011 = vmul.f32 %v5987, %v2665
        %v6012 = vmul.f32 %v6007, %v2666
        %v6013 = vadd.f32 %v5896, %v6009
        %v6014 = vadd.f32 %v5897, %v6010
        %v6015 = vadd.f32 %v5898, %v6011
        %v6016 = vadd.f32 %v5899, %v6012
        %s6017 = scalar_lea.vmem %s3, 72
        %v6018 = vld [vmem:[%s6017] sm:$0xf]
        %v6020 = vsel %vm3944, %v6018, 0
        %6022 = vmatpush.msra.mxu0 0.0
        %6023 = vmatpush.msra.mxu0 0.0
        %6024 = vmatpush.msra.mxu0 0.0
        %6025 = vmatpush.msra.mxu0 0.0
        %6026 = vmatpush.msra.mxu0 0.0
        %6027 = vmatpush.msra.mxu0 0.0
        %6028 = vmatpush.msra.mxu0 0.0
        %6029 = vmatpush.msra.mxu0 0.0
        %6030 = vmatpush.msra.mxu0 0.0
        %6031 = vmatpush.msra.mxu0 0.0
        %6032 = vmatpush.msra.mxu0 0.0
        %6033 = vmatpush.msra.mxu0 0.0
        %6034 = vmatpush.msra.mxu0 0.0
        %6035 = vmatpush.msra.mxu0 0.0
        %6036 = vmatpush.msra.mxu0 0.0
        %6037 = vmatpush.msra.mxu0 %v3952
        %6038 = vmatmul.f32.gmra.mxu0 %v6020
        %v6039 = vpop.f32.mrf.mxu0
        %v6040 = vadd.f32 0.0, %v6039
        %6041 = vdwg.mxu0
        %6042 = vmatpush.msra.mxu0 0.0
        %6043 = vmatpush.msra.mxu0 0.0
        %6044 = vmatpush.msra.mxu0 0.0
        %6045 = vmatpush.msra.mxu0 0.0
        %6046 = vmatpush.msra.mxu0 0.0
        %6047 = vmatpush.msra.mxu0 0.0
        %6048 = vmatpush.msra.mxu0 0.0
        %6049 = vmatpush.msra.mxu0 0.0
        %6050 = vmatpush.msra.mxu0 0.0
        %6051 = vmatpush.msra.mxu0 0.0
        %6052 = vmatpush.msra.mxu0 0.0
        %6053 = vmatpush.msra.mxu0 0.0
        %6054 = vmatpush.msra.mxu0 0.0
        %6055 = vmatpush.msra.mxu0 0.0
        %6056 = vmatpush.msra.mxu0 0.0
        %6057 = vmatpush.msra.mxu0 %v3955
        %6058 = vmatmul.f32.gmra.mxu0 %v6020
        %v6059 = vpop.f32.mrf.mxu0
        %v6060 = vadd.f32 0.0, %v6059
        %6061 = vdwg.mxu0
        %6062 = vmatpush.msra.mxu0 0.0
        %6063 = vmatpush.msra.mxu0 0.0
        %6064 = vmatpush.msra.mxu0 0.0
        %6065 = vmatpush.msra.mxu0 0.0
        %6066 = vmatpush.msra.mxu0 0.0
        %6067 = vmatpush.msra.mxu0 0.0
        %6068 = vmatpush.msra.mxu0 0.0
        %6069 = vmatpush.msra.mxu0 0.0
        %6070 = vmatpush.msra.mxu0 0.0
        %6071 = vmatpush.msra.mxu0 0.0
        %6072 = vmatpush.msra.mxu0 0.0
        %6073 = vmatpush.msra.mxu0 0.0
        %6074 = vmatpush.msra.mxu0 0.0
        %6075 = vmatpush.msra.mxu0 0.0
        %6076 = vmatpush.msra.mxu0 0.0
        %6077 = vmatpush.msra.mxu0 %v3958
        %6078 = vmatmul.f32.gmra.mxu0 %v6020
        %v6079 = vpop.f32.mrf.mxu0
        %v6080 = vadd.f32 0.0, %v6079
        %6081 = vdwg.mxu0
        %6082 = vmatpush.msra.mxu0 0.0
        %6083 = vmatpush.msra.mxu0 0.0
        %6084 = vmatpush.msra.mxu0 0.0
        %6085 = vmatpush.msra.mxu0 0.0
        %6086 = vmatpush.msra.mxu0 0.0
        %6087 = vmatpush.msra.mxu0 0.0
        %6088 = vmatpush.msra.mxu0 0.0
        %6089 = vmatpush.msra.mxu0 0.0
        %6090 = vmatpush.msra.mxu0 0.0
        %6091 = vmatpush.msra.mxu0 0.0
        %6092 = vmatpush.msra.mxu0 0.0
        %6093 = vmatpush.msra.mxu0 0.0
        %6094 = vmatpush.msra.mxu0 0.0
        %6095 = vmatpush.msra.mxu0 0.0
        %6096 = vmatpush.msra.mxu0 0.0
        %6097 = vmatpush.msra.mxu0 %v3949
        %6098 = vmatmul.f32.gmra.mxu0 %v6020
        %v6099 = vpop.f32.mrf.mxu0
        %v6100 = vadd.f32 0.0, %v6099
        %6101 = vdwg.mxu0
        %v6102 = vmul.f32 %v6040, %v2799
        %v6103 = vmul.f32 %v6060, %v2800
        %v6104 = vmul.f32 %v6080, %v2801
        %v6105 = vmul.f32 %v6100, %v2802
        %v6106 = vadd.f32 %v6013, %v6102
        %v6107 = vadd.f32 %v6014, %v6103
        %v6108 = vadd.f32 %v6015, %v6104
        %v6109 = vadd.f32 %v6016, %v6105
        %s6110 = scalar_lea.vmem %s3, 76
        %v6111 = vld [vmem:[%s6110] sm:$0xf]
        %v6113 = vsel %vm3944, %v6111, 0
        %6115 = vmatpush.msra.mxu0 0.0
        %6116 = vmatpush.msra.mxu0 0.0
        %6117 = vmatpush.msra.mxu0 0.0
        %6118 = vmatpush.msra.mxu0 0.0
        %6119 = vmatpush.msra.mxu0 0.0
        %6120 = vmatpush.msra.mxu0 0.0
        %6121 = vmatpush.msra.mxu0 0.0
        %6122 = vmatpush.msra.mxu0 0.0
        %6123 = vmatpush.msra.mxu0 0.0
        %6124 = vmatpush.msra.mxu0 0.0
        %6125 = vmatpush.msra.mxu0 0.0
        %6126 = vmatpush.msra.mxu0 0.0
        %6127 = vmatpush.msra.mxu0 0.0
        %6128 = vmatpush.msra.mxu0 0.0
        %6129 = vmatpush.msra.mxu0 0.0
        %6130 = vmatpush.msra.mxu0 %v4065
        %6131 = vmatmul.f32.gmra.mxu0 %v6113
        %v6132 = vpop.f32.mrf.mxu0
        %v6133 = vadd.f32 0.0, %v6132
        %6134 = vdwg.mxu0
        %6135 = vmatpush.msra.mxu0 0.0
        %6136 = vmatpush.msra.mxu0 0.0
        %6137 = vmatpush.msra.mxu0 0.0
        %6138 = vmatpush.msra.mxu0 0.0
        %6139 = vmatpush.msra.mxu0 0.0
        %6140 = vmatpush.msra.mxu0 0.0
        %6141 = vmatpush.msra.mxu0 0.0
        %6142 = vmatpush.msra.mxu0 0.0
        %6143 = vmatpush.msra.mxu0 0.0
        %6144 = vmatpush.msra.mxu0 0.0
        %6145 = vmatpush.msra.mxu0 0.0
        %6146 = vmatpush.msra.mxu0 0.0
        %6147 = vmatpush.msra.mxu0 0.0
        %6148 = vmatpush.msra.mxu0 0.0
        %6149 = vmatpush.msra.mxu0 0.0
        %6150 = vmatpush.msra.mxu0 %v4068
        %6151 = vmatmul.f32.gmra.mxu0 %v6113
        %v6152 = vpop.f32.mrf.mxu0
        %v6153 = vadd.f32 0.0, %v6152
        %6154 = vdwg.mxu0
        %6155 = vmatpush.msra.mxu0 0.0
        %6156 = vmatpush.msra.mxu0 0.0
        %6157 = vmatpush.msra.mxu0 0.0
        %6158 = vmatpush.msra.mxu0 0.0
        %6159 = vmatpush.msra.mxu0 0.0
        %6160 = vmatpush.msra.mxu0 0.0
        %6161 = vmatpush.msra.mxu0 0.0
        %6162 = vmatpush.msra.mxu0 0.0
        %6163 = vmatpush.msra.mxu0 0.0
        %6164 = vmatpush.msra.mxu0 0.0
        %6165 = vmatpush.msra.mxu0 0.0
        %6166 = vmatpush.msra.mxu0 0.0
        %6167 = vmatpush.msra.mxu0 0.0
        %6168 = vmatpush.msra.mxu0 0.0
        %6169 = vmatpush.msra.mxu0 0.0
        %6170 = vmatpush.msra.mxu0 %v4071
        %6171 = vmatmul.f32.gmra.mxu0 %v6113
        %v6172 = vpop.f32.mrf.mxu0
        %v6173 = vadd.f32 0.0, %v6172
        %6174 = vdwg.mxu0
        %6175 = vmatpush.msra.mxu0 0.0
        %6176 = vmatpush.msra.mxu0 0.0
        %6177 = vmatpush.msra.mxu0 0.0
        %6178 = vmatpush.msra.mxu0 0.0
        %6179 = vmatpush.msra.mxu0 0.0
        %6180 = vmatpush.msra.mxu0 0.0
        %6181 = vmatpush.msra.mxu0 0.0
        %6182 = vmatpush.msra.mxu0 0.0
        %6183 = vmatpush.msra.mxu0 0.0
        %6184 = vmatpush.msra.mxu0 0.0
        %6185 = vmatpush.msra.mxu0 0.0
        %6186 = vmatpush.msra.mxu0 0.0
        %6187 = vmatpush.msra.mxu0 0.0
        %6188 = vmatpush.msra.mxu0 0.0
        %6189 = vmatpush.msra.mxu0 0.0
        %6190 = vmatpush.msra.mxu0 %v4062
        %6191 = vmatmul.f32.gmra.mxu0 %v6113
        %v6192 = vpop.f32.mrf.mxu0
        %v6193 = vadd.f32 0.0, %v6192
        %6194 = vdwg.mxu0
        %v6195 = vmul.f32 %v6133, %v2931
        %v6196 = vmul.f32 %v6153, %v2932
        %v6197 = vmul.f32 %v6173, %v2933
        %v6198 = vmul.f32 %v6193, %v2934
        %v6199 = vadd.f32 %v6106, %v6195
        %v6200 = vadd.f32 %v6107, %v6196
        %v6201 = vadd.f32 %v6108, %v6197
        %v6202 = vadd.f32 %v6109, %v6198
        %s6203 = scalar_lea.vmem %s3, 80
        %v6204 = vld [vmem:[%s6203] sm:$0xf]
        %v6206 = vsel %vm3944, %v6204, 0
        %6208 = vmatpush.msra.mxu0 0.0
        %6209 = vmatpush.msra.mxu0 0.0
        %6210 = vmatpush.msra.mxu0 0.0
        %6211 = vmatpush.msra.mxu0 0.0
        %6212 = vmatpush.msra.mxu0 0.0
        %6213 = vmatpush.msra.mxu0 0.0
        %6214 = vmatpush.msra.mxu0 0.0
        %6215 = vmatpush.msra.mxu0 0.0
        %6216 = vmatpush.msra.mxu0 0.0
        %6217 = vmatpush.msra.mxu0 0.0
        %6218 = vmatpush.msra.mxu0 0.0
        %6219 = vmatpush.msra.mxu0 0.0
        %6220 = vmatpush.msra.mxu0 0.0
        %6221 = vmatpush.msra.mxu0 0.0
        %6222 = vmatpush.msra.mxu0 0.0
        %6223 = vmatpush.msra.mxu0 %v4182
        %6224 = vmatmul.f32.gmra.mxu0 %v6206
        %v6225 = vpop.f32.mrf.mxu0
        %v6226 = vadd.f32 0.0, %v6225
        %6227 = vdwg.mxu0
        %6228 = vmatpush.msra.mxu0 0.0
        %6229 = vmatpush.msra.mxu0 0.0
        %6230 = vmatpush.msra.mxu0 0.0
        %6231 = vmatpush.msra.mxu0 0.0
        %6232 = vmatpush.msra.mxu0 0.0
        %6233 = vmatpush.msra.mxu0 0.0
        %6234 = vmatpush.msra.mxu0 0.0
        %6235 = vmatpush.msra.mxu0 0.0
        %6236 = vmatpush.msra.mxu0 0.0
        %6237 = vmatpush.msra.mxu0 0.0
        %6238 = vmatpush.msra.mxu0 0.0
        %6239 = vmatpush.msra.mxu0 0.0
        %6240 = vmatpush.msra.mxu0 0.0
        %6241 = vmatpush.msra.mxu0 0.0
        %6242 = vmatpush.msra.mxu0 0.0
        %6243 = vmatpush.msra.mxu0 %v4185
        %6244 = vmatmul.f32.gmra.mxu0 %v6206
        %v6245 = vpop.f32.mrf.mxu0
        %v6246 = vadd.f32 0.0, %v6245
        %6247 = vdwg.mxu0
        %6248 = vmatpush.msra.mxu0 0.0
        %6249 = vmatpush.msra.mxu0 0.0
        %6250 = vmatpush.msra.mxu0 0.0
        %6251 = vmatpush.msra.mxu0 0.0
        %6252 = vmatpush.msra.mxu0 0.0
        %6253 = vmatpush.msra.mxu0 0.0
        %6254 = vmatpush.msra.mxu0 0.0
        %6255 = vmatpush.msra.mxu0 0.0
        %6256 = vmatpush.msra.mxu0 0.0
        %6257 = vmatpush.msra.mxu0 0.0
        %6258 = vmatpush.msra.mxu0 0.0
        %6259 = vmatpush.msra.mxu0 0.0
        %6260 = vmatpush.msra.mxu0 0.0
        %6261 = vmatpush.msra.mxu0 0.0
        %6262 = vmatpush.msra.mxu0 0.0
        %6263 = vmatpush.msra.mxu0 %v4188
        %6264 = vmatmul.f32.gmra.mxu0 %v6206
        %v6265 = vpop.f32.mrf.mxu0
        %v6266 = vadd.f32 0.0, %v6265
        %6267 = vdwg.mxu0
        %6268 = vmatpush.msra.mxu0 0.0
        %6269 = vmatpush.msra.mxu0 0.0
        %6270 = vmatpush.msra.mxu0 0.0
        %6271 = vmatpush.msra.mxu0 0.0
        %6272 = vmatpush.msra.mxu0 0.0
        %6273 = vmatpush.msra.mxu0 0.0
        %6274 = vmatpush.msra.mxu0 0.0
        %6275 = vmatpush.msra.mxu0 0.0
        %6276 = vmatpush.msra.mxu0 0.0
        %6277 = vmatpush.msra.mxu0 0.0
        %6278 = vmatpush.msra.mxu0 0.0
        %6279 = vmatpush.msra.mxu0 0.0
        %6280 = vmatpush.msra.mxu0 0.0
        %6281 = vmatpush.msra.mxu0 0.0
        %6282 = vmatpush.msra.mxu0 0.0
        %6283 = vmatpush.msra.mxu0 %v4179
        %6284 = vmatmul.f32.gmra.mxu0 %v6206
        %v6285 = vpop.f32.mrf.mxu0
        %v6286 = vadd.f32 0.0, %v6285
        %6287 = vdwg.mxu0
        %v6288 = vmul.f32 %v6226, %v3067
        %v6289 = vmul.f32 %v6246, %v3068
        %v6290 = vmul.f32 %v6266, %v3069
        %v6291 = vmul.f32 %v6286, %v3070
        %v6292 = vadd.f32 %v6199, %v6288
        %v6293 = vadd.f32 %v6200, %v6289
        %v6294 = vadd.f32 %v6201, %v6290
        %v6295 = vadd.f32 %v6202, %v6291
        %s6296 = scalar_lea.vmem %s3, 84
        %v6297 = vld [vmem:[%s6296] sm:$0xf]
        %v6299 = vsel %vm3944, %v6297, 0
        %6301 = vmatpush.msra.mxu0 0.0
        %6302 = vmatpush.msra.mxu0 0.0
        %6303 = vmatpush.msra.mxu0 0.0
        %6304 = vmatpush.msra.mxu0 0.0
        %6305 = vmatpush.msra.mxu0 0.0
        %6306 = vmatpush.msra.mxu0 0.0
        %6307 = vmatpush.msra.mxu0 0.0
        %6308 = vmatpush.msra.mxu0 0.0
        %6309 = vmatpush.msra.mxu0 0.0
        %6310 = vmatpush.msra.mxu0 0.0
        %6311 = vmatpush.msra.mxu0 0.0
        %6312 = vmatpush.msra.mxu0 0.0
        %6313 = vmatpush.msra.mxu0 0.0
        %6314 = vmatpush.msra.mxu0 0.0
        %6315 = vmatpush.msra.mxu0 0.0
        %6316 = vmatpush.msra.mxu0 %v4299
        %6317 = vmatmul.f32.gmra.mxu0 %v6299
        %v6318 = vpop.f32.mrf.mxu0
        %v6319 = vadd.f32 0.0, %v6318
        %6320 = vdwg.mxu0
        %6321 = vmatpush.msra.mxu0 0.0
        %6322 = vmatpush.msra.mxu0 0.0
        %6323 = vmatpush.msra.mxu0 0.0
        %6324 = vmatpush.msra.mxu0 0.0
        %6325 = vmatpush.msra.mxu0 0.0
        %6326 = vmatpush.msra.mxu0 0.0
        %6327 = vmatpush.msra.mxu0 0.0
        %6328 = vmatpush.msra.mxu0 0.0
        %6329 = vmatpush.msra.mxu0 0.0
        %6330 = vmatpush.msra.mxu0 0.0
        %6331 = vmatpush.msra.mxu0 0.0
        %6332 = vmatpush.msra.mxu0 0.0
        %6333 = vmatpush.msra.mxu0 0.0
        %6334 = vmatpush.msra.mxu0 0.0
        %6335 = vmatpush.msra.mxu0 0.0
        %6336 = vmatpush.msra.mxu0 %v4302
        %6337 = vmatmul.f32.gmra.mxu0 %v6299
        %v6338 = vpop.f32.mrf.mxu0
        %v6339 = vadd.f32 0.0, %v6338
        %6340 = vdwg.mxu0
        %6341 = vmatpush.msra.mxu0 0.0
        %6342 = vmatpush.msra.mxu0 0.0
        %6343 = vmatpush.msra.mxu0 0.0
        %6344 = vmatpush.msra.mxu0 0.0
        %6345 = vmatpush.msra.mxu0 0.0
        %6346 = vmatpush.msra.mxu0 0.0
        %6347 = vmatpush.msra.mxu0 0.0
        %6348 = vmatpush.msra.mxu0 0.0
        %6349 = vmatpush.msra.mxu0 0.0
        %6350 = vmatpush.msra.mxu0 0.0
        %6351 = vmatpush.msra.mxu0 0.0
        %6352 = vmatpush.msra.mxu0 0.0
        %6353 = vmatpush.msra.mxu0 0.0
        %6354 = vmatpush.msra.mxu0 0.0
        %6355 = vmatpush.msra.mxu0 0.0
        %6356 = vmatpush.msra.mxu0 %v4305
        %6357 = vmatmul.f32.gmra.mxu0 %v6299
        %v6358 = vpop.f32.mrf.mxu0
        %v6359 = vadd.f32 0.0, %v6358
        %6360 = vdwg.mxu0
        %6361 = vmatpush.msra.mxu0 0.0
        %6362 = vmatpush.msra.mxu0 0.0
        %6363 = vmatpush.msra.mxu0 0.0
        %6364 = vmatpush.msra.mxu0 0.0
        %6365 = vmatpush.msra.mxu0 0.0
        %6366 = vmatpush.msra.mxu0 0.0
        %6367 = vmatpush.msra.mxu0 0.0
        %6368 = vmatpush.msra.mxu0 0.0
        %6369 = vmatpush.msra.mxu0 0.0
        %6370 = vmatpush.msra.mxu0 0.0
        %6371 = vmatpush.msra.mxu0 0.0
        %6372 = vmatpush.msra.mxu0 0.0
        %6373 = vmatpush.msra.mxu0 0.0
        %6374 = vmatpush.msra.mxu0 0.0
        %6375 = vmatpush.msra.mxu0 0.0
        %6376 = vmatpush.msra.mxu0 %v4296
        %6377 = vmatmul.f32.gmra.mxu0 %v6299
        %v6378 = vpop.f32.mrf.mxu0
        %v6379 = vadd.f32 0.0, %v6378
        %6380 = vdwg.mxu0
        %v6381 = vmul.f32 %v6319, %v3199
        %v6382 = vmul.f32 %v6339, %v3200
        %v6383 = vmul.f32 %v6359, %v3201
        %v6384 = vmul.f32 %v6379, %v3202
        %v6385 = vadd.f32 %v6292, %v6381
        %v6386 = vadd.f32 %v6293, %v6382
        %v6387 = vadd.f32 %v6294, %v6383
        %v6388 = vadd.f32 %v6295, %v6384
        %s6389 = scalar_lea.vmem %s3, 88
        %v6390 = vld [vmem:[%s6389] sm:$0xf]
        %v6392 = vsel %vm3944, %v6390, 0
        %6394 = vmatpush.msra.mxu0 0.0
        %6395 = vmatpush.msra.mxu0 0.0
        %6396 = vmatpush.msra.mxu0 0.0
        %6397 = vmatpush.msra.mxu0 0.0
        %6398 = vmatpush.msra.mxu0 0.0
        %6399 = vmatpush.msra.mxu0 0.0
        %6400 = vmatpush.msra.mxu0 0.0
        %6401 = vmatpush.msra.mxu0 0.0
        %6402 = vmatpush.msra.mxu0 0.0
        %6403 = vmatpush.msra.mxu0 0.0
        %6404 = vmatpush.msra.mxu0 0.0
        %6405 = vmatpush.msra.mxu0 0.0
        %6406 = vmatpush.msra.mxu0 0.0
        %6407 = vmatpush.msra.mxu0 0.0
        %6408 = vmatpush.msra.mxu0 0.0
        %6409 = vmatpush.msra.mxu0 %v4416
        %6410 = vmatmul.f32.gmra.mxu0 %v6392
        %v6411 = vpop.f32.mrf.mxu0
        %v6412 = vadd.f32 0.0, %v6411
        %6413 = vdwg.mxu0
        %6414 = vmatpush.msra.mxu0 0.0
        %6415 = vmatpush.msra.mxu0 0.0
        %6416 = vmatpush.msra.mxu0 0.0
        %6417 = vmatpush.msra.mxu0 0.0
        %6418 = vmatpush.msra.mxu0 0.0
        %6419 = vmatpush.msra.mxu0 0.0
        %6420 = vmatpush.msra.mxu0 0.0
        %6421 = vmatpush.msra.mxu0 0.0
        %6422 = vmatpush.msra.mxu0 0.0
        %6423 = vmatpush.msra.mxu0 0.0
        %6424 = vmatpush.msra.mxu0 0.0
        %6425 = vmatpush.msra.mxu0 0.0
        %6426 = vmatpush.msra.mxu0 0.0
        %6427 = vmatpush.msra.mxu0 0.0
        %6428 = vmatpush.msra.mxu0 0.0
        %6429 = vmatpush.msra.mxu0 %v4419
        %6430 = vmatmul.f32.gmra.mxu0 %v6392
        %v6431 = vpop.f32.mrf.mxu0
        %v6432 = vadd.f32 0.0, %v6431
        %6433 = vdwg.mxu0
        %6434 = vmatpush.msra.mxu0 0.0
        %6435 = vmatpush.msra.mxu0 0.0
        %6436 = vmatpush.msra.mxu0 0.0
        %6437 = vmatpush.msra.mxu0 0.0
        %6438 = vmatpush.msra.mxu0 0.0
        %6439 = vmatpush.msra.mxu0 0.0
        %6440 = vmatpush.msra.mxu0 0.0
        %6441 = vmatpush.msra.mxu0 0.0
        %6442 = vmatpush.msra.mxu0 0.0
        %6443 = vmatpush.msra.mxu0 0.0
        %6444 = vmatpush.msra.mxu0 0.0
        %6445 = vmatpush.msra.mxu0 0.0
        %6446 = vmatpush.msra.mxu0 0.0
        %6447 = vmatpush.msra.mxu0 0.0
        %6448 = vmatpush.msra.mxu0 0.0
        %6449 = vmatpush.msra.mxu0 %v4422
        %6450 = vmatmul.f32.gmra.mxu0 %v6392
        %v6451 = vpop.f32.mrf.mxu0
        %v6452 = vadd.f32 0.0, %v6451
        %6453 = vdwg.mxu0
        %6454 = vmatpush.msra.mxu0 0.0
        %6455 = vmatpush.msra.mxu0 0.0
        %6456 = vmatpush.msra.mxu0 0.0
        %6457 = vmatpush.msra.mxu0 0.0
        %6458 = vmatpush.msra.mxu0 0.0
        %6459 = vmatpush.msra.mxu0 0.0
        %6460 = vmatpush.msra.mxu0 0.0
        %6461 = vmatpush.msra.mxu0 0.0
        %6462 = vmatpush.msra.mxu0 0.0
        %6463 = vmatpush.msra.mxu0 0.0
        %6464 = vmatpush.msra.mxu0 0.0
        %6465 = vmatpush.msra.mxu0 0.0
        %6466 = vmatpush.msra.mxu0 0.0
        %6467 = vmatpush.msra.mxu0 0.0
        %6468 = vmatpush.msra.mxu0 0.0
        %6469 = vmatpush.msra.mxu0 %v4413
        %6470 = vmatmul.f32.gmra.mxu0 %v6392
        %v6471 = vpop.f32.mrf.mxu0
        %v6472 = vadd.f32 0.0, %v6471
        %6473 = vdwg.mxu0
        %v6474 = vmul.f32 %v6412, %v3331
        %v6475 = vmul.f32 %v6432, %v3332
        %v6476 = vmul.f32 %v6452, %v3333
        %v6477 = vmul.f32 %v6472, %v3334
        %v6478 = vadd.f32 %v6385, %v6474
        %v6479 = vadd.f32 %v6386, %v6475
        %v6480 = vadd.f32 %v6387, %v6476
        %v6481 = vadd.f32 %v6388, %v6477
        %s6482 = scalar_lea.vmem %s3, 92
        %v6483 = vld [vmem:[%s6482] sm:$0xf]
        %v6485 = vsel %vm3944, %v6483, 0
        %6487 = vmatpush.msra.mxu0 0.0
        %6488 = vmatpush.msra.mxu0 0.0
        %6489 = vmatpush.msra.mxu0 0.0
        %6490 = vmatpush.msra.mxu0 0.0
        %6491 = vmatpush.msra.mxu0 0.0
        %6492 = vmatpush.msra.mxu0 0.0
        %6493 = vmatpush.msra.mxu0 0.0
        %6494 = vmatpush.msra.mxu0 0.0
        %6495 = vmatpush.msra.mxu0 0.0
        %6496 = vmatpush.msra.mxu0 0.0
        %6497 = vmatpush.msra.mxu0 0.0
        %6498 = vmatpush.msra.mxu0 0.0
        %6499 = vmatpush.msra.mxu0 0.0
        %6500 = vmatpush.msra.mxu0 0.0
        %6501 = vmatpush.msra.mxu0 0.0
        %6502 = vmatpush.msra.mxu0 %v4533
        %6503 = vmatmul.f32.gmra.mxu0 %v6485
        %v6504 = vpop.f32.mrf.mxu0
        %v6505 = vadd.f32 0.0, %v6504
        %6506 = vdwg.mxu0
        %6507 = vmatpush.msra.mxu0 0.0
        %6508 = vmatpush.msra.mxu0 0.0
        %6509 = vmatpush.msra.mxu0 0.0
        %6510 = vmatpush.msra.mxu0 0.0
        %6511 = vmatpush.msra.mxu0 0.0
        %6512 = vmatpush.msra.mxu0 0.0
        %6513 = vmatpush.msra.mxu0 0.0
        %6514 = vmatpush.msra.mxu0 0.0
        %6515 = vmatpush.msra.mxu0 0.0
        %6516 = vmatpush.msra.mxu0 0.0
        %6517 = vmatpush.msra.mxu0 0.0
        %6518 = vmatpush.msra.mxu0 0.0
        %6519 = vmatpush.msra.mxu0 0.0
        %6520 = vmatpush.msra.mxu0 0.0
        %6521 = vmatpush.msra.mxu0 0.0
        %6522 = vmatpush.msra.mxu0 %v4536
        %6523 = vmatmul.f32.gmra.mxu0 %v6485
        %v6524 = vpop.f32.mrf.mxu0
        %v6525 = vadd.f32 0.0, %v6524
        %6526 = vdwg.mxu0
        %6527 = vmatpush.msra.mxu0 0.0
        %6528 = vmatpush.msra.mxu0 0.0
        %6529 = vmatpush.msra.mxu0 0.0
        %6530 = vmatpush.msra.mxu0 0.0
        %6531 = vmatpush.msra.mxu0 0.0
        %6532 = vmatpush.msra.mxu0 0.0
        %6533 = vmatpush.msra.mxu0 0.0
        %6534 = vmatpush.msra.mxu0 0.0
        %6535 = vmatpush.msra.mxu0 0.0
        %6536 = vmatpush.msra.mxu0 0.0
        %6537 = vmatpush.msra.mxu0 0.0
        %6538 = vmatpush.msra.mxu0 0.0
        %6539 = vmatpush.msra.mxu0 0.0
        %6540 = vmatpush.msra.mxu0 0.0
        %6541 = vmatpush.msra.mxu0 0.0
        %6542 = vmatpush.msra.mxu0 %v4539
        %6543 = vmatmul.f32.gmra.mxu0 %v6485
        %v6544 = vpop.f32.mrf.mxu0
        %v6545 = vadd.f32 0.0, %v6544
        %6546 = vdwg.mxu0
        %6547 = vmatpush.msra.mxu0 0.0
        %6548 = vmatpush.msra.mxu0 0.0
        %6549 = vmatpush.msra.mxu0 0.0
        %6550 = vmatpush.msra.mxu0 0.0
        %6551 = vmatpush.msra.mxu0 0.0
        %6552 = vmatpush.msra.mxu0 0.0
        %6553 = vmatpush.msra.mxu0 0.0
        %6554 = vmatpush.msra.mxu0 0.0
        %6555 = vmatpush.msra.mxu0 0.0
        %6556 = vmatpush.msra.mxu0 0.0
        %6557 = vmatpush.msra.mxu0 0.0
        %6558 = vmatpush.msra.mxu0 0.0
        %6559 = vmatpush.msra.mxu0 0.0
        %6560 = vmatpush.msra.mxu0 0.0
        %6561 = vmatpush.msra.mxu0 0.0
        %6562 = vmatpush.msra.mxu0 %v4530
        %6563 = vmatmul.f32.gmra.mxu0 %v6485
        %v6564 = vpop.f32.mrf.mxu0
        %v6565 = vadd.f32 0.0, %v6564
        %6566 = vdwg.mxu0
        %v6567 = vmul.f32 %v6505, %v3463
        %v6568 = vmul.f32 %v6525, %v3464
        %v6569 = vmul.f32 %v6545, %v3465
        %v6570 = vmul.f32 %v6565, %v3466
        %v6571 = vadd.f32 %v6478, %v6567
        %v6572 = vadd.f32 %v6479, %v6568
        %v6573 = vadd.f32 %v6480, %v6569
        %v6574 = vadd.f32 %v6481, %v6570
        %s6575 = scalar_lea.vmem %s3, 96
        %v6576 = vld [vmem:[%s6575] sm:$0xf]
        %v6578 = vsel %vm3944, %v6576, 0
        %6580 = vmatpush.msra.mxu0 0.0
        %6581 = vmatpush.msra.mxu0 0.0
        %6582 = vmatpush.msra.mxu0 0.0
        %6583 = vmatpush.msra.mxu0 0.0
        %6584 = vmatpush.msra.mxu0 0.0
        %6585 = vmatpush.msra.mxu0 0.0
        %6586 = vmatpush.msra.mxu0 0.0
        %6587 = vmatpush.msra.mxu0 0.0
        %6588 = vmatpush.msra.mxu0 0.0
        %6589 = vmatpush.msra.mxu0 0.0
        %6590 = vmatpush.msra.mxu0 0.0
        %6591 = vmatpush.msra.mxu0 0.0
        %6592 = vmatpush.msra.mxu0 0.0
        %6593 = vmatpush.msra.mxu0 0.0
        %6594 = vmatpush.msra.mxu0 0.0
        %6595 = vmatpush.msra.mxu0 %v4650
        %6596 = vmatmul.f32.gmra.mxu0 %v6578
        %v6597 = vpop.f32.mrf.mxu0
        %v6598 = vadd.f32 0.0, %v6597
        %6599 = vdwg.mxu0
        %6600 = vmatpush.msra.mxu0 0.0
        %6601 = vmatpush.msra.mxu0 0.0
        %6602 = vmatpush.msra.mxu0 0.0
        %6603 = vmatpush.msra.mxu0 0.0
        %6604 = vmatpush.msra.mxu0 0.0
        %6605 = vmatpush.msra.mxu0 0.0
        %6606 = vmatpush.msra.mxu0 0.0
        %6607 = vmatpush.msra.mxu0 0.0
        %6608 = vmatpush.msra.mxu0 0.0
        %6609 = vmatpush.msra.mxu0 0.0
        %6610 = vmatpush.msra.mxu0 0.0
        %6611 = vmatpush.msra.mxu0 0.0
        %6612 = vmatpush.msra.mxu0 0.0
        %6613 = vmatpush.msra.mxu0 0.0
        %6614 = vmatpush.msra.mxu0 0.0
        %6615 = vmatpush.msra.mxu0 %v4653
        %6616 = vmatmul.f32.gmra.mxu0 %v6578
        %v6617 = vpop.f32.mrf.mxu0
        %v6618 = vadd.f32 0.0, %v6617
        %6619 = vdwg.mxu0
        %6620 = vmatpush.msra.mxu0 0.0
        %6621 = vmatpush.msra.mxu0 0.0
        %6622 = vmatpush.msra.mxu0 0.0
        %6623 = vmatpush.msra.mxu0 0.0
        %6624 = vmatpush.msra.mxu0 0.0
        %6625 = vmatpush.msra.mxu0 0.0
        %6626 = vmatpush.msra.mxu0 0.0
        %6627 = vmatpush.msra.mxu0 0.0
        %6628 = vmatpush.msra.mxu0 0.0
        %6629 = vmatpush.msra.mxu0 0.0
        %6630 = vmatpush.msra.mxu0 0.0
        %6631 = vmatpush.msra.mxu0 0.0
        %6632 = vmatpush.msra.mxu0 0.0
        %6633 = vmatpush.msra.mxu0 0.0
        %6634 = vmatpush.msra.mxu0 0.0
        %6635 = vmatpush.msra.mxu0 %v4656
        %6636 = vmatmul.f32.gmra.mxu0 %v6578
        %v6637 = vpop.f32.mrf.mxu0
        %v6638 = vadd.f32 0.0, %v6637
        %6639 = vdwg.mxu0
        %6640 = vmatpush.msra.mxu0 0.0
        %6641 = vmatpush.msra.mxu0 0.0
        %6642 = vmatpush.msra.mxu0 0.0
        %6643 = vmatpush.msra.mxu0 0.0
        %6644 = vmatpush.msra.mxu0 0.0
        %6645 = vmatpush.msra.mxu0 0.0
        %6646 = vmatpush.msra.mxu0 0.0
        %6647 = vmatpush.msra.mxu0 0.0
        %6648 = vmatpush.msra.mxu0 0.0
        %6649 = vmatpush.msra.mxu0 0.0
        %6650 = vmatpush.msra.mxu0 0.0
        %6651 = vmatpush.msra.mxu0 0.0
        %6652 = vmatpush.msra.mxu0 0.0
        %6653 = vmatpush.msra.mxu0 0.0
        %6654 = vmatpush.msra.mxu0 0.0
        %6655 = vmatpush.msra.mxu0 %v4647
        %6656 = vmatmul.f32.gmra.mxu0 %v6578
        %v6657 = vpop.f32.mrf.mxu0
        %v6658 = vadd.f32 0.0, %v6657
        %6659 = vdwg.mxu0
        %v6660 = vmul.f32 %v6598, %v3599
        %v6661 = vmul.f32 %v6618, %v3600
        %v6662 = vmul.f32 %v6638, %v3601
        %v6663 = vmul.f32 %v6658, %v3602
        %v6664 = vadd.f32 %v6571, %v6660
        %v6665 = vadd.f32 %v6572, %v6661
        %v6666 = vadd.f32 %v6573, %v6662
        %v6667 = vadd.f32 %v6574, %v6663
        %s6668 = scalar_lea.vmem %s3, 100
        %v6669 = vld [vmem:[%s6668] sm:$0xf]
        %v6671 = vsel %vm3944, %v6669, 0
        %6673 = vmatpush.msra.mxu0 0.0
        %6674 = vmatpush.msra.mxu0 0.0
        %6675 = vmatpush.msra.mxu0 0.0
        %6676 = vmatpush.msra.mxu0 0.0
        %6677 = vmatpush.msra.mxu0 0.0
        %6678 = vmatpush.msra.mxu0 0.0
        %6679 = vmatpush.msra.mxu0 0.0
        %6680 = vmatpush.msra.mxu0 0.0
        %6681 = vmatpush.msra.mxu0 0.0
        %6682 = vmatpush.msra.mxu0 0.0
        %6683 = vmatpush.msra.mxu0 0.0
        %6684 = vmatpush.msra.mxu0 0.0
        %6685 = vmatpush.msra.mxu0 0.0
        %6686 = vmatpush.msra.mxu0 0.0
        %6687 = vmatpush.msra.mxu0 0.0
        %6688 = vmatpush.msra.mxu0 %v4767
        %6689 = vmatmul.f32.gmra.mxu0 %v6671
        %v6690 = vpop.f32.mrf.mxu0
        %v6691 = vadd.f32 0.0, %v6690
        %6692 = vdwg.mxu0
        %6693 = vmatpush.msra.mxu0 0.0
        %6694 = vmatpush.msra.mxu0 0.0
        %6695 = vmatpush.msra.mxu0 0.0
        %6696 = vmatpush.msra.mxu0 0.0
        %6697 = vmatpush.msra.mxu0 0.0
        %6698 = vmatpush.msra.mxu0 0.0
        %6699 = vmatpush.msra.mxu0 0.0
        %6700 = vmatpush.msra.mxu0 0.0
        %6701 = vmatpush.msra.mxu0 0.0
        %6702 = vmatpush.msra.mxu0 0.0
        %6703 = vmatpush.msra.mxu0 0.0
        %6704 = vmatpush.msra.mxu0 0.0
        %6705 = vmatpush.msra.mxu0 0.0
        %6706 = vmatpush.msra.mxu0 0.0
        %6707 = vmatpush.msra.mxu0 0.0
        %6708 = vmatpush.msra.mxu0 %v4770
        %6709 = vmatmul.f32.gmra.mxu0 %v6671
        %v6710 = vpop.f32.mrf.mxu0
        %v6711 = vadd.f32 0.0, %v6710
        %6712 = vdwg.mxu0
        %6713 = vmatpush.msra.mxu0 0.0
        %6714 = vmatpush.msra.mxu0 0.0
        %6715 = vmatpush.msra.mxu0 0.0
        %6716 = vmatpush.msra.mxu0 0.0
        %6717 = vmatpush.msra.mxu0 0.0
        %6718 = vmatpush.msra.mxu0 0.0
        %6719 = vmatpush.msra.mxu0 0.0
        %6720 = vmatpush.msra.mxu0 0.0
        %6721 = vmatpush.msra.mxu0 0.0
        %6722 = vmatpush.msra.mxu0 0.0
        %6723 = vmatpush.msra.mxu0 0.0
        %6724 = vmatpush.msra.mxu0 0.0
        %6725 = vmatpush.msra.mxu0 0.0
        %6726 = vmatpush.msra.mxu0 0.0
        %6727 = vmatpush.msra.mxu0 0.0
        %6728 = vmatpush.msra.mxu0 %v4773
        %6729 = vmatmul.f32.gmra.mxu0 %v6671
        %v6730 = vpop.f32.mrf.mxu0
        %v6731 = vadd.f32 0.0, %v6730
        %6732 = vdwg.mxu0
        %6733 = vmatpush.msra.mxu0 0.0
        %6734 = vmatpush.msra.mxu0 0.0
        %6735 = vmatpush.msra.mxu0 0.0
        %6736 = vmatpush.msra.mxu0 0.0
        %6737 = vmatpush.msra.mxu0 0.0
        %6738 = vmatpush.msra.mxu0 0.0
        %6739 = vmatpush.msra.mxu0 0.0
        %6740 = vmatpush.msra.mxu0 0.0
        %6741 = vmatpush.msra.mxu0 0.0
        %6742 = vmatpush.msra.mxu0 0.0
        %6743 = vmatpush.msra.mxu0 0.0
        %6744 = vmatpush.msra.mxu0 0.0
        %6745 = vmatpush.msra.mxu0 0.0
        %6746 = vmatpush.msra.mxu0 0.0
        %6747 = vmatpush.msra.mxu0 0.0
        %6748 = vmatpush.msra.mxu0 %v4764
        %6749 = vmatmul.f32.gmra.mxu0 %v6671
        %v6750 = vpop.f32.mrf.mxu0
        %v6751 = vadd.f32 0.0, %v6750
        %6752 = vdwg.mxu0
        %v6753 = vmul.f32 %v6691, %v3731
        %v6754 = vmul.f32 %v6711, %v3732
        %v6755 = vmul.f32 %v6731, %v3733
        %v6756 = vmul.f32 %v6751, %v3734
        %v6757 = vadd.f32 %v6664, %v6753
        %v6758 = vadd.f32 %v6665, %v6754
        %v6759 = vadd.f32 %v6666, %v6755
        %v6760 = vadd.f32 %v6667, %v6756
        %s6761 = scalar_lea.vmem %s3, 104
        %v6762 = vld [vmem:[%s6761] sm:$0xf]
        %v6764 = vsel %vm3944, %v6762, 0
        %6766 = vmatpush.msra.mxu0 0.0
        %6767 = vmatpush.msra.mxu0 0.0
        %6768 = vmatpush.msra.mxu0 0.0
        %6769 = vmatpush.msra.mxu0 0.0
        %6770 = vmatpush.msra.mxu0 0.0
        %6771 = vmatpush.msra.mxu0 0.0
        %6772 = vmatpush.msra.mxu0 0.0
        %6773 = vmatpush.msra.mxu0 0.0
        %6774 = vmatpush.msra.mxu0 0.0
        %6775 = vmatpush.msra.mxu0 0.0
        %6776 = vmatpush.msra.mxu0 0.0
        %6777 = vmatpush.msra.mxu0 0.0
        %6778 = vmatpush.msra.mxu0 0.0
        %6779 = vmatpush.msra.mxu0 0.0
        %6780 = vmatpush.msra.mxu0 0.0
        %6781 = vmatpush.msra.mxu0 %v4884
        %6782 = vmatmul.f32.gmra.mxu0 %v6764
        %v6783 = vpop.f32.mrf.mxu0
        %v6784 = vadd.f32 0.0, %v6783
        %6785 = vdwg.mxu0
        %6786 = vmatpush.msra.mxu0 0.0
        %6787 = vmatpush.msra.mxu0 0.0
        %6788 = vmatpush.msra.mxu0 0.0
        %6789 = vmatpush.msra.mxu0 0.0
        %6790 = vmatpush.msra.mxu0 0.0
        %6791 = vmatpush.msra.mxu0 0.0
        %6792 = vmatpush.msra.mxu0 0.0
        %6793 = vmatpush.msra.mxu0 0.0
        %6794 = vmatpush.msra.mxu0 0.0
        %6795 = vmatpush.msra.mxu0 0.0
        %6796 = vmatpush.msra.mxu0 0.0
        %6797 = vmatpush.msra.mxu0 0.0
        %6798 = vmatpush.msra.mxu0 0.0
        %6799 = vmatpush.msra.mxu0 0.0
        %6800 = vmatpush.msra.mxu0 0.0
        %6801 = vmatpush.msra.mxu0 %v4887
        %6802 = vmatmul.f32.gmra.mxu0 %v6764
        %v6803 = vpop.f32.mrf.mxu0
        %v6804 = vadd.f32 0.0, %v6803
        %6805 = vdwg.mxu0
        %6806 = vmatpush.msra.mxu0 0.0
        %6807 = vmatpush.msra.mxu0 0.0
        %6808 = vmatpush.msra.mxu0 0.0
        %6809 = vmatpush.msra.mxu0 0.0
        %6810 = vmatpush.msra.mxu0 0.0
        %6811 = vmatpush.msra.mxu0 0.0
        %6812 = vmatpush.msra.mxu0 0.0
        %6813 = vmatpush.msra.mxu0 0.0
        %6814 = vmatpush.msra.mxu0 0.0
        %6815 = vmatpush.msra.mxu0 0.0
        %6816 = vmatpush.msra.mxu0 0.0
        %6817 = vmatpush.msra.mxu0 0.0
        %6818 = vmatpush.msra.mxu0 0.0
        %6819 = vmatpush.msra.mxu0 0.0
        %6820 = vmatpush.msra.mxu0 0.0
        %6821 = vmatpush.msra.mxu0 %v4890
        %6822 = vmatmul.f32.gmra.mxu0 %v6764
        %v6823 = vpop.f32.mrf.mxu0
        %v6824 = vadd.f32 0.0, %v6823
        %6825 = vdwg.mxu0
        %6826 = vmatpush.msra.mxu0 0.0
        %6827 = vmatpush.msra.mxu0 0.0
        %6828 = vmatpush.msra.mxu0 0.0
        %6829 = vmatpush.msra.mxu0 0.0
        %6830 = vmatpush.msra.mxu0 0.0
        %6831 = vmatpush.msra.mxu0 0.0
        %6832 = vmatpush.msra.mxu0 0.0
        %6833 = vmatpush.msra.mxu0 0.0
        %6834 = vmatpush.msra.mxu0 0.0
        %6835 = vmatpush.msra.mxu0 0.0
        %6836 = vmatpush.msra.mxu0 0.0
        %6837 = vmatpush.msra.mxu0 0.0
        %6838 = vmatpush.msra.mxu0 0.0
        %6839 = vmatpush.msra.mxu0 0.0
        %6840 = vmatpush.msra.mxu0 0.0
        %6841 = vmatpush.msra.mxu0 %v4881
        %6842 = vmatmul.f32.gmra.mxu0 %v6764
        %v6843 = vpop.f32.mrf.mxu0
        %v6844 = vadd.f32 0.0, %v6843
        %6845 = vdwg.mxu0
        %v6846 = vmul.f32 %v6784, %v3863
        %v6847 = vmul.f32 %v6804, %v3864
        %v6848 = vmul.f32 %v6824, %v3865
        %v6849 = vmul.f32 %v6844, %v3866
        %v6850 = vadd.f32 %v6757, %v6846
        %v6851 = vadd.f32 %v6758, %v6847
        %v6852 = vadd.f32 %v6759, %v6848
        %v6853 = vadd.f32 %v6760, %v6849
        %v6854 = vld [vmem:[%s4] sm:$0xf]
        %6856 = vset.pattern.permute.xlu0 0
        %6857 = vperm.xlu0 %6856, %v6854
        %v6858 = vpop.permute.xlu0 %6857
        %v6860 = vadd.f32 %v6850, %v6858
        %v6861 = vadd.f32 %v6851, %v6858
        %v6862 = vadd.f32 %v6852, %v6858
        %v6863 = vadd.f32 %v6853, %v6858
        %v6868 = vrot.slane %v6861, 4
        %v6869 = vrot.slane %v6863, 4
        %v6870 = vsel %vm262, %v6860, %v6868
        %v6871 = vsel %vm262, %v6862, %v6869
        %6874 = vst [vmem:[%s217] sm:$0xff] %v6870
        %6875 = vst [vmem:[%s217 + $0x8] sm:$0xff] %v6871
        %s6876 = sand.u32 %s137, 1
        %s6877 = scalar_lea.sflag [#allocation3], %s6876
        %s6878 = sand.u32 %s137, 1
        %s6879 = smul.addr %s6878, 16
        %s6880 = scalar_lea.vmem [#allocation2], %s6879
        // Predicated region
        $region41: #{tpu_custom_call.1} parent=39 // pred_check
          %p6881 = pneg %p147
        $region42: #{tpu_custom_call.1} parent=39 // pred_check_branch
          %6883 = sbr.rel (%p6881) target = $region44
        $region43: #{tpu_custom_call.1} parent=39 // pred_region
          %6885 = vsyncadd %s6877, 0
          %s6886 = smul.addr %s19, 4
          %s6887 = smul.addr %s6886, 4
          %s6888 = scalar_lea.hbm %s5, %s6887
          %s6890 = sshll.u32 %s6880, 4
          %s6891 = int_to_ptr.vmem [resolvable:$true] %s6890
          %s6892 = sshll.u32 %s6888, 4
          %s6893 = int_to_ptr.hbm [resolvable:$true] %s6892
          %6895 = dma.vmem_to_hbm [thread:$0]  %s6891, 256, %s6893, %s6877
        $region44: #{tpu_custom_call.1} parent=39 // pred_fallthru
          _
      $region40: #{tpu_custom_call.1} parent=5 // pred_fallthru
        _
      %p6896 = scmp.le.s32.totalorder 2, %s14
      // Predicated region
      $region45: #{tpu_custom_call.1} parent=5 // pred_check
        %p6897 = pneg %p6896
      $region46: #{tpu_custom_call.1} parent=5 // pred_check_branch
        %6899 = sbr.rel (%p6897) target = $region48
      $region47: #{tpu_custom_call.1} parent=5 // pred_region
        %s6900 = ssub.s32 %s14, 2
        // Predicated region
        $region49: #{tpu_custom_call.1} parent=47 // pred_check
          %p6901 = pneg %p153
        $region50: #{tpu_custom_call.1} parent=47 // pred_check_branch
          %6903 = sbr.rel (%p6901) target = $region52
        $region51: #{tpu_custom_call.1} parent=47 // pred_region
          %s6904 = sand.u32 %s138, 1
          %s6905 = scalar_lea.sflag [#allocation3], %s6904
          %s6906 = sand.u32 %s138, 1
          %s6907 = smul.addr %s6906, 16
          %s6908 = scalar_lea.vmem [#allocation2], %s6907
          %6910 = dma.done %s6905, 256
        $region52: #{tpu_custom_call.1} parent=47 // pred_fallthru
          _
      $region48: #{tpu_custom_call.1} parent=5 // pred_fallthru
        _
    $region6: #{tpu_custom_call.1} parent=1 // loop_footer
      %s18 = sadd.s32 1, %s14
    $region7: #{tpu_custom_call.1} parent=1 // loop_footer_branch
      %13 = sbr.rel target = $region3
    $region8: #{tpu_custom_call.1} parent=1 // loop_exit
      _
    %6911 = vsyncpa [#allocation3], 1
    %s6912 = scalar_lea.sflag [#allocation3], 1
    %6913 = vsyncpa %s6912, 1

</llo_original>
